<compile_context>
chip_gen: v6e
topology: v6e:2x2x1
jax: 0.10.0
libtpu: 0.0.40
codegen_flags: <defaults>
</compile_context>

<pallas_src>
import functools

import numpy as np
import jax
import jax.numpy as jnp
from jax.experimental import pallas as pl
from jax.experimental.pallas import tpu as pltpu

# ----------------------------- constants (from __init__ defaults) -------------
WIN_SIZE = 11
WIN_SIGMA = 1.5
MSSSIM_WEIGHTS = (0.0448, 0.2856, 0.3001, 0.2363, 0.1333)
K1, K2 = 0.01, 0.03
DATA_RANGE = 1.0
LOGVAR = -5.0                 # nn.Parameter(torch.ones(()) * -5.0)
KL_WEIGHT = 1.0
MSSSIM_LOSS_WEIGHT = 1.0e6


def _vmem_limit_bytes():
    """~3/4 of physical VMEM: 48 MiB on v7x (64 MiB), ~96 MiB on v5e/v6e (128 MiB)."""
    try:
        cap = int(pltpu.get_tpu_info().vmem_capacity_bytes)
    except Exception:
        return 48 * 1024 * 1024          # safe on every generation
    return min((cap * 3) // 4, 100 * 1024 * 1024)


def _gauss_win(size, sigma):
    coords = np.arange(size, dtype=np.float64) - size // 2
    g = np.exp(-(coords ** 2) / (2.0 * sigma ** 2))
    return (g / g.sum()).astype(np.float32)


def _round_up(v, m):
    return ((v + m - 1) // m) * m


# ----------------------------- filter / pool matrices (trace-time constants) --
@functools.lru_cache(maxsize=8)
def _build_msssim_mats(H, W):
    """Banded Gaussian-filter and 2x2 avg-pool matrices for every MS-SSIM level."""
    win = _gauss_win(WIN_SIZE, WIN_SIGMA)
    levels = len(MSSSIM_WEIGHTS)
    dims, meta = [], []
    h, w = H, W
    for _ in range(levels):
        dims.append((h, w))
        hout, wout = h - WIN_SIZE + 1, w - WIN_SIZE + 1
        meta.append((hout, wout, _round_up(wout, 128)))   # lane-pad conv output
        h, w = h // 2, w // 2

    g_mats = []
    for (h, w), (hout, wout, woutp) in zip(dims, meta):
        # 'valid' conv along H as GhT @ x   (GhT: (Hout, H))
        ghT = np.zeros((hout, h), np.float32)
        # 'valid' conv along W as x @ Gw    (Gw: (W, Woutp), zero padded columns)
        gw = np.zeros((w, woutp), np.float32)
        for k in range(WIN_SIZE):
            ghT[np.arange(hout), np.arange(hout) + k] = win[k]
            gw[np.arange(wout) + k, np.arange(wout)] = win[k]
        g_mats += [ghT, gw]

    p_mats = []
    for (h, w) in dims[:-1]:                 # avg_pool2d(k=2,s=2) as Ph @ x @ Pw
        ph = np.zeros((h // 2, h), np.float32)
        ph[np.arange(h // 2), 2 * np.arange(h // 2)] = 0.5
        ph[np.arange(h // 2), 2 * np.arange(h // 2) + 1] = 0.5
        pw = np.zeros((w, w // 2), np.float32)
        pw[2 * np.arange(w // 2), np.arange(w // 2)] = 0.5
        pw[2 * np.arange(w // 2) + 1, np.arange(w // 2)] = 0.5
        p_mats += [ph, pw]
    return tuple(g_mats), tuple(p_mats), tuple(dims), tuple(meta)


# ----------------------------- fused MS-SSIM + pixel-sum kernel ----------------
def _fused_msssim_kernel(x_ref, y_ref, *rest, dims, meta, c1, c2):
    n_lvl = len(meta)
    g_refs = rest[:2 * n_lvl]
    p_refs = rest[2 * n_lvl:2 * n_lvl + 2 * (n_lvl - 1)]
    out_ref = rest[-1]

    x = x_ref[0, 0]                       # (H, W) f32, one (n, c) channel
    y = y_ref[0, 0]
    pix_sum = jnp.sum(jnp.abs(x - y))     # pixel_loss contribution (level 0)

    level_vals = []
    for l in range(n_lvl):
        hl, wl = dims[l]
        hout, wout, woutp = meta[l]
        ghT = g_refs[2 * l][...]          # (Hout, Hl)
        gw = g_refs[2 * l + 1][...]       # (Wl, Woutp)  zero-padded columns

        if hl % 8 == 0:
            # Fused width pass: ONE (5*Hl, Wl) @ (Wl, Woutp) matmul for all five
            # moment maps, then 5 height-pass matmuls on aligned row blocks.
            m5 = jnp.concatenate([x, y, x * x, y * y, x * y], axis=0)
            t = jnp.dot(m5, gw, preferred_element_type=jnp.float32)
            mu1 = jnp.dot(ghT, t[0 * hl:1 * hl], preferred_element_type=jnp.float32)
            mu2 = jnp.dot(ghT, t[1 * hl:2 * hl], preferred_element_type=jnp.float32)
            ex2 = jnp.dot(ghT, t[2 * hl:3 * hl], preferred_element_type=jnp.float32)
            ey2 = jnp.dot(ghT, t[3 * hl:4 * hl], preferred_element_type=jnp.float32)
            exy = jnp.dot(ghT, t[4 * hl:5 * hl], preferred_element_type=jnp.float32)
        else:
            # Deepest level only (rows not 8-aligned): negligible FLOPs -- keep
            # the simple separable path instead of mis-aligned sublane shuffles.
            def filt(a, gw=gw, ghT=ghT):
                tmp = jnp.dot(a, gw, preferred_element_type=jnp.float32)
                return jnp.dot(ghT, tmp, preferred_element_type=jnp.float32)
            mu1, mu2 = filt(x), filt(y)
            ex2, ey2, exy = filt(x * x), filt(y * y), filt(x * y)

        s11 = ex2 - mu1 * mu1
        s22 = ey2 - mu2 * mu2
        s12 = exy - mu1 * mu2
        cs_map = (2.0 * s12 + c2) / (s11 + s22 + c2)

        # Zero-padded Gw columns give cs == ssim == 1.0 exactly, so correct the
        # mean analytically instead of masking (saves full-tile VPU work).
        pad_ones = float(hout * (woutp - wout))
        inv_cnt = 1.0 / float(hout * wout)
        if l < n_lvl - 1:
            val = (jnp.sum(cs_map) - pad_ones) * inv_cnt               # mean cs
        else:
            ssim_map = ((2.0 * mu1 * mu2 + c1) /
                        (mu1 * mu1 + mu2 * mu2 + c1)) * cs_map
            val = (jnp.sum(ssim_map) - pad_ones) * inv_cnt             # mean ssim
        level_vals.append(jnp.maximum(val, 0.0))                       # relu

        if l < n_lvl - 1:                 # 2x2 average pool (MXU) for next level
            ph = p_refs[2 * l][...]       # (Hl/2, Hl)
            pw = p_refs[2 * l + 1][...]   # (Wl, Wl/2)
            x = jnp.dot(ph, jnp.dot(x, pw, preferred_element_type=jnp.float32),
                        preferred_element_type=jnp.float32)
            y = jnp.dot(ph, jnp.dot(y, pw, preferred_element_type=jnp.float32),
                        preferred_element_type=jnp.float32)

    # pack the 6 scalars into one lane-dense (8,128) output tile
    row = jax.lax.broadcasted_iota(jnp.int32, (8, 128), 0)
    col = jax.lax.broadcasted_iota(jnp.int32, (8, 128), 1)
    tile = jnp.zeros((8, 128), jnp.float32)
    for i, s in enumerate(level_vals + [pix_sum]):
        tile = jnp.where((row == i) & (col == 0), s, tile)
    out_ref[0, 0] = tile


def _fused_msssim_pix(x, y):
    """Returns (vals, pix_nc): vals (5, N, C) relu'd cs/ssim means, pix_nc (N, C)."""
    N, C, H, W = x.shape
    g_mats, p_mats, dims, meta = _build_msssim_mats(H, W)
    mats = [jnp.asarray(m) for m in (g_mats + p_mats)]
    n_lvl = len(meta)

    in_specs = [
        pl.BlockSpec((1, 1, H, W), lambda n, c: (n, c, 0, 0)),
        pl.BlockSpec((1, 1, H, W), lambda n, c: (n, c, 0, 0)),
    ]
    # Constant filter / pool matrices: block index never changes -> DMA'd once by
    # the pipeline; total ~1 MiB double-buffered, negligible vs the VMEM budget.
    in_specs += [pl.BlockSpec(m.shape, lambda n, c: (0, 0)) for m in mats]

    # rough cost estimate (filter + pooling matmuls dominate)
    flops = 0
    for (h, w), (hout, wout, woutp) in zip(dims, meta):
        flops += 2 * (5 * h) * w * woutp          # fused width pass
        flops += 5 * 2 * hout * h * woutp         # height pass
        flops += 20 * hout * woutp                # ssim / cs elementwise
    for (h, w) in dims[:-1]:
        flops += 2 * 2 * (h * w * (w // 2) + (h // 2) * h * (w // 2))
    flops *= N * C
    bytes_accessed = 4 * (2 * N * C * H * W
                          + sum(int(np.prod(m.shape)) for m in (g_mats + p_mats))
                          + N * C * 8 * 128)

    packed = pl.pallas_call(
        functools.partial(_fused_msssim_kernel, dims=dims, meta=meta,
                          c1=(K1 * DATA_RANGE) ** 2, c2=(K2 * DATA_RANGE) ** 2),
        grid=(N, C),
        in_specs=in_specs,
        out_specs=pl.BlockSpec((1, 1, 8, 128), lambda n, c: (n, c, 0, 0)),
        out_shape=jax.ShapeDtypeStruct((N, C, 8, 128), jnp.float32),
        compiler_params=pltpu.CompilerParams(
            dimension_semantics=("parallel", "parallel"),
            vmem_limit_bytes=_vmem_limit_bytes()),
        cost_estimate=pl.CostEstimate(flops=int(flops), transcendentals=0,
                                      bytes_accessed=int(bytes_accessed)),
    )(x, y, *mats)

    vals = jnp.transpose(packed[:, :, :n_lvl, 0], (2, 0, 1))   # (5, N, C)
    pix_nc = packed[:, :, n_lvl, 0]                            # (N, C)
    return vals, pix_nc


# ----------------------------- KL (plain jnp; XLA fuses this tiny reduction) ---
def _kl_from_moments(posterior_moments):
    """DiagonalGaussianDistribution(moments).kl() summed over batch and dims."""
    cz = posterior_moments.shape[1] // 2
    mean = posterior_moments[:, :cz]
    logvar = jnp.clip(posterior_moments[:, cz:], -30.0, 20.0)
    return 0.5 * jnp.sum(mean * mean + jnp.exp(logvar) - 1.0 - logvar)


# ----------------------------- forward (module semantics) ----------------------
def msssim_loss_forward(inputs, reconstructions, posterior_moments, split="train"):
    """MSSSIM_Loss.forward with weights=None, cond=None.

    posterior_moments: (N, 2*Cz, Hz, Wz) -> DiagonalGaussianDistribution(mean, logvar).
    Returns ([loss, msssim_loss*1e6, pixel_loss], log) like the PyTorch module.
    """
    n = inputs.shape[0]
    h, w = inputs.shape[2], inputs.shape[3]
    numel = inputs.size
    levels = len(MSSSIM_WEIGHTS)
    assert min(h, w) > (WIN_SIZE - 1) * 2 ** (levels - 1), \
        "image too small for 5-level MS-SSIM"
    # TODO(synk): odd intermediate sizes (avg_pool2d padding=1) not supported in
    #             the fused kernel; require spatial dims divisible by 16.
    assert h % (2 ** (levels - 1)) == 0 and w % (2 ** (levels - 1)) == 0

    vals, pix_nc = _fused_msssim_pix(inputs, reconstructions)
    weights = jnp.asarray(MSSSIM_WEIGHTS, jnp.float32).reshape(-1, 1, 1)
    ms_val = jnp.prod(vals ** weights, axis=0)           # (N, C)
    msssim_loss = 1.0 - jnp.mean(ms_val)                 # size_average=True

    pix_sum = jnp.sum(pix_nc)
    kl_sum = _kl_from_moments(posterior_moments)

    inv_var = float(np.exp(-LOGVAR))
    pixel_loss = pix_sum / n
    # nll = (|x-y| + 1e6*msssim)/exp(logvar) + logvar, summed analytically
    # (identical math, avoids f32 precision loss of the per-pixel formulation).
    nll_sum = pix_sum * inv_var + numel * (
        msssim_loss * MSSSIM_LOSS_WEIGHT * inv_var + LOGVAR)
    nll_loss = nll_sum / n
    weighted_nll_loss = nll_loss                         # weights is None
    kl_loss = kl_sum / n
    loss = weighted_nll_loss + KL_WEIGHT * kl_loss
    rec_loss_mean = pix_sum / numel + msssim_loss * MSSSIM_LOSS_WEIGHT

    log = {
        f"{split}/total_loss": loss,
        f"{split}/logvar": jnp.float32(LOGVAR),
        f"{split}/kl_loss": kl_loss,
        f"{split}/nll_loss": nll_loss,
        f"{split}/rec_loss": rec_loss_mean,
    }
    # msssim_loss.item() in torch returns a python float; here it stays a traced scalar.
    return (loss, msssim_loss * MSSSIM_LOSS_WEIGHT, pixel_loss), log


# ----------------------------- demo --------------------------------------------
if __name__ == "__main__":
    key = jax.random.PRNGKey(0)
    k1, k2, k3 = jax.random.split(key, 3)

    # MS-SSIM (5 levels, win=11) requires min spatial side > 160.
    N, C, H, W = 2, 3, 192, 192
    inputs = jax.random.uniform(k1, (N, C, H, W), jnp.float32)
    reconstructions = jnp.clip(
        inputs + 0.05 * jax.random.normal(k2, (N, C, H, W), jnp.float32), 0.0, 1.0)
    # posterior parameters (mean | logvar) for a 4-channel 24x24 latent
    posterior_moments = 0.1 * jax.random.normal(k3, (N, 8, 24, 24), jnp.float32)

    fwd = jax.jit(msssim_loss_forward)
    (loss, msssim_term, pixel_loss), log = fwd(inputs, reconstructions, posterior_moments)
    jax.block_until_ready(loss)
    jax.block_until_ready(pixel_loss)
    print("KERNEL_OK")
</pallas_src>

<mosaic_0001>
module attributes {stable_mosaic.version = 11 : i64} {
  func.func @_fused_msssim_kernel(%arg0: i32, %arg1: i32, %arg2: memref<1x1x192x192xf32, #tpu.memory_space<vmem>>, %arg3: memref<1x1x192x192xf32, #tpu.memory_space<vmem>>, %arg4: memref<182x192xf32, #tpu.memory_space<vmem>>, %arg5: memref<192x256xf32, #tpu.memory_space<vmem>>, %arg6: memref<86x96xf32, #tpu.memory_space<vmem>>, %arg7: memref<96x128xf32, #tpu.memory_space<vmem>>, %arg8: memref<38x48xf32, #tpu.memory_space<vmem>>, %arg9: memref<48x128xf32, #tpu.memory_space<vmem>>, %arg10: memref<14x24xf32, #tpu.memory_space<vmem>>, %arg11: memref<24x128xf32, #tpu.memory_space<vmem>>, %arg12: memref<2x12xf32, #tpu.memory_space<vmem>>, %arg13: memref<12x128xf32, #tpu.memory_space<vmem>>, %arg14: memref<96x192xf32, #tpu.memory_space<vmem>>, %arg15: memref<192x96xf32, #tpu.memory_space<vmem>>, %arg16: memref<48x96xf32, #tpu.memory_space<vmem>>, %arg17: memref<96x48xf32, #tpu.memory_space<vmem>>, %arg18: memref<24x48xf32, #tpu.memory_space<vmem>>, %arg19: memref<48x24xf32, #tpu.memory_space<vmem>>, %arg20: memref<12x24xf32, #tpu.memory_space<vmem>>, %arg21: memref<24x12xf32, #tpu.memory_space<vmem>>, %arg22: memref<1x1x8x128xf32, #tpu.memory_space<vmem>>) attributes {dimension_semantics = [#tpu.dimension_semantics<parallel>, #tpu.dimension_semantics<parallel>], iteration_bounds = array<i64: 2, 3>, scalar_prefetch = 0 : i64, scratch_operands = 0 : i64, tpu.core_type = #tpu.core_type<tc>, window_params = [{transform_indices = @transform_0, window_bounds = array<i64: 1, 1, 192, 192>}, {transform_indices = @transform_1, window_bounds = array<i64: 1, 1, 192, 192>}, {pipeline_mode = #tpu.pipeline_mode<synchronous>, transform_indices = @transform_2, window_bounds = array<i64: 182, 192>}, {pipeline_mode = #tpu.pipeline_mode<synchronous>, transform_indices = @transform_3, window_bounds = array<i64: 192, 256>}, {pipeline_mode = #tpu.pipeline_mode<synchronous>, transform_indices = @transform_4, window_bounds = array<i64: 86, 96>}, {pipeline_mode = #tpu.pipeline_mode<synchronous>, transform_indices = @transform_5, window_bounds = array<i64: 96, 128>}, {pipeline_mode = #tpu.pipeline_mode<synchronous>, transform_indices = @transform_6, window_bounds = array<i64: 38, 48>}, {pipeline_mode = #tpu.pipeline_mode<synchronous>, transform_indices = @transform_7, window_bounds = array<i64: 48, 128>}, {pipeline_mode = #tpu.pipeline_mode<synchronous>, transform_indices = @transform_8, window_bounds = array<i64: 14, 24>}, {pipeline_mode = #tpu.pipeline_mode<synchronous>, transform_indices = @transform_9, window_bounds = array<i64: 24, 128>}, {pipeline_mode = #tpu.pipeline_mode<synchronous>, transform_indices = @transform_10, window_bounds = array<i64: 2, 12>}, {pipeline_mode = #tpu.pipeline_mode<synchronous>, transform_indices = @transform_11, window_bounds = array<i64: 12, 128>}, {pipeline_mode = #tpu.pipeline_mode<synchronous>, transform_indices = @transform_12, window_bounds = array<i64: 96, 192>}, {pipeline_mode = #tpu.pipeline_mode<synchronous>, transform_indices = @transform_13, window_bounds = array<i64: 192, 96>}, {pipeline_mode = #tpu.pipeline_mode<synchronous>, transform_indices = @transform_14, window_bounds = array<i64: 48, 96>}, {pipeline_mode = #tpu.pipeline_mode<synchronous>, transform_indices = @transform_15, window_bounds = array<i64: 96, 48>}, {pipeline_mode = #tpu.pipeline_mode<synchronous>, transform_indices = @transform_16, window_bounds = array<i64: 24, 48>}, {pipeline_mode = #tpu.pipeline_mode<synchronous>, transform_indices = @transform_17, window_bounds = array<i64: 48, 24>}, {pipeline_mode = #tpu.pipeline_mode<synchronous>, transform_indices = @transform_18, window_bounds = array<i64: 12, 24>}, {pipeline_mode = #tpu.pipeline_mode<synchronous>, transform_indices = @transform_19, window_bounds = array<i64: 24, 12>}, {transform_indices = @transform_20, window_bounds = array<i64: 1, 1, 8, 128>}]} {
    %c0 = arith.constant 0 : index
    %c0_0 = arith.constant 0 : index
    %c0_1 = arith.constant 0 : index
    %c0_2 = arith.constant 0 : index
    %0 = vector.load %arg2[%c0, %c0_0, %c0_1, %c0_2] : memref<1x1x192x192xf32, #tpu.memory_space<vmem>>, vector<1x1x192x192xf32>
    %1 = vector.shape_cast %0 : vector<1x1x192x192xf32> to vector<192x192xf32>
    %c0_3 = arith.constant 0 : index
    %c0_4 = arith.constant 0 : index
    %c0_5 = arith.constant 0 : index
    %c0_6 = arith.constant 0 : index
    %2 = vector.load %arg3[%c0_3, %c0_4, %c0_5, %c0_6] : memref<1x1x192x192xf32, #tpu.memory_space<vmem>>, vector<1x1x192x192xf32>
    %3 = vector.shape_cast %2 : vector<1x1x192x192xf32> to vector<192x192xf32>
    %4 = arith.subf %1, %3 : vector<192x192xf32>
    %5 = math.absf %4 : vector<192x192xf32>
    %6 = vector.shape_cast %5 : vector<192x192xf32> to vector<1x192x192xf32>
    %cst = arith.constant dense<0.000000e+00> : vector<1xf32>
    %7 = vector.multi_reduction <add>, %6, %cst [1, 2] : vector<1x192x192xf32> to vector<1xf32>
    %8 = vector.shape_cast %7 : vector<1xf32> to vector<1x1x1xf32>
    %9 = vector.extract %8[0, 0, 0] : f32 from vector<1x1x1xf32>
    %c0_7 = arith.constant 0 : index
    %c0_8 = arith.constant 0 : index
    %10 = vector.load %arg4[%c0_7, %c0_8] : memref<182x192xf32, #tpu.memory_space<vmem>>, vector<182x192xf32>
    %c0_9 = arith.constant 0 : index
    %c0_10 = arith.constant 0 : index
    %11 = vector.load %arg5[%c0_9, %c0_10] : memref<192x256xf32, #tpu.memory_space<vmem>>, vector<192x256xf32>
    %12 = arith.mulf %1, %1 : vector<192x192xf32>
    %13 = arith.mulf %3, %3 : vector<192x192xf32>
    %14 = arith.mulf %1, %3 : vector<192x192xf32>
    %15 = tpu.concatenate %1, %3, %12, %13, %14 in 0 : vector<192x192xf32>, vector<192x192xf32>, vector<192x192xf32>, vector<192x192xf32>, vector<192x192xf32> -> vector<960x192xf32>
    %cst_11 = arith.constant dense<0.000000e+00> : vector<960x256xf32>
    %16 = tpu.matmul %15, %11, %cst_11 {dimension_numbers = #tpu.dot_dimension_numbers<[1], [0], [0], [1], [0, 0, 1, 1], [], []>} : vector<960x192xf32>, vector<192x256xf32>, vector<960x256xf32> -> vector<960x256xf32>
    %17 = vector.extract_strided_slice %16 {offsets = [0, 0], sizes = [192, 256], strides = [1, 1]} : vector<960x256xf32> to vector<192x256xf32>
    %cst_12 = arith.constant dense<0.000000e+00> : vector<182x256xf32>
    %18 = tpu.matmul %10, %17, %cst_12 {dimension_numbers = #tpu.dot_dimension_numbers<[1], [0], [0], [1], [0, 0, 1, 1], [], []>} : vector<182x192xf32>, vector<192x256xf32>, vector<182x256xf32> -> vector<182x256xf32>
    %19 = vector.extract_strided_slice %16 {offsets = [192, 0], sizes = [192, 256], strides = [1, 1]} : vector<960x256xf32> to vector<192x256xf32>
    %cst_13 = arith.constant dense<0.000000e+00> : vector<182x256xf32>
    %20 = tpu.matmul %10, %19, %cst_13 {dimension_numbers = #tpu.dot_dimension_numbers<[1], [0], [0], [1], [0, 0, 1, 1], [], []>} : vector<182x192xf32>, vector<192x256xf32>, vector<182x256xf32> -> vector<182x256xf32>
    %21 = vector.extract_strided_slice %16 {offsets = [384, 0], sizes = [192, 256], strides = [1, 1]} : vector<960x256xf32> to vector<192x256xf32>
    %cst_14 = arith.constant dense<0.000000e+00> : vector<182x256xf32>
    %22 = tpu.matmul %10, %21, %cst_14 {dimension_numbers = #tpu.dot_dimension_numbers<[1], [0], [0], [1], [0, 0, 1, 1], [], []>} : vector<182x192xf32>, vector<192x256xf32>, vector<182x256xf32> -> vector<182x256xf32>
    %23 = vector.extract_strided_slice %16 {offsets = [576, 0], sizes = [192, 256], strides = [1, 1]} : vector<960x256xf32> to vector<192x256xf32>
    %cst_15 = arith.constant dense<0.000000e+00> : vector<182x256xf32>
    %24 = tpu.matmul %10, %23, %cst_15 {dimension_numbers = #tpu.dot_dimension_numbers<[1], [0], [0], [1], [0, 0, 1, 1], [], []>} : vector<182x192xf32>, vector<192x256xf32>, vector<182x256xf32> -> vector<182x256xf32>
    %25 = vector.extract_strided_slice %16 {offsets = [768, 0], sizes = [192, 256], strides = [1, 1]} : vector<960x256xf32> to vector<192x256xf32>
    %cst_16 = arith.constant dense<0.000000e+00> : vector<182x256xf32>
    %26 = tpu.matmul %10, %25, %cst_16 {dimension_numbers = #tpu.dot_dimension_numbers<[1], [0], [0], [1], [0, 0, 1, 1], [], []>} : vector<182x192xf32>, vector<192x256xf32>, vector<182x256xf32> -> vector<182x256xf32>
    %27 = arith.mulf %18, %18 : vector<182x256xf32>
    %28 = arith.subf %22, %27 : vector<182x256xf32>
    %29 = arith.mulf %20, %20 : vector<182x256xf32>
    %30 = arith.subf %24, %29 : vector<182x256xf32>
    %31 = arith.mulf %18, %20 : vector<182x256xf32>
    %32 = arith.subf %26, %31 : vector<182x256xf32>
    %cst_17 = arith.constant 2.000000e+00 : f32
    %33 = vector.broadcast %cst_17 : f32 to vector<182x256xf32>
    %34 = arith.mulf %33, %32 : vector<182x256xf32>
    %cst_18 = arith.constant 8.99999984E-4 : f32
    %35 = vector.broadcast %cst_18 : f32 to vector<182x256xf32>
    %36 = arith.addf %34, %35 : vector<182x256xf32>
    %37 = arith.addf %28, %30 : vector<182x256xf32>
    %cst_19 = arith.constant 8.99999984E-4 : f32
    %38 = vector.broadcast %cst_19 : f32 to vector<182x256xf32>
    %39 = arith.addf %37, %38 : vector<182x256xf32>
    %40 = arith.divf %36, %39 : vector<182x256xf32>
    %41 = vector.shape_cast %40 : vector<182x256xf32> to vector<1x182x256xf32>
    %cst_20 = arith.constant dense<0.000000e+00> : vector<1xf32>
    %42 = vector.multi_reduction <add>, %41, %cst_20 [1, 2] : vector<1x182x256xf32> to vector<1xf32>
    %43 = vector.shape_cast %42 : vector<1xf32> to vector<1x1x1xf32>
    %44 = vector.extract %43[0, 0, 0] : f32 from vector<1x1x1xf32>
    %cst_21 = arith.constant 1.346800e+04 : f32
    %45 = arith.subf %44, %cst_21 : f32
    %cst_22 = arith.constant 3.01895907E-5 : f32
    %46 = arith.mulf %45, %cst_22 : f32
    %cst_23 = arith.constant 0.000000e+00 : f32
    %47 = arith.maximumf %46, %cst_23 : f32
    %c0_24 = arith.constant 0 : index
    %c0_25 = arith.constant 0 : index
    %48 = vector.load %arg14[%c0_24, %c0_25] : memref<96x192xf32, #tpu.memory_space<vmem>>, vector<96x192xf32>
    %c0_26 = arith.constant 0 : index
    %c0_27 = arith.constant 0 : index
    %49 = vector.load %arg15[%c0_26, %c0_27] : memref<192x96xf32, #tpu.memory_space<vmem>>, vector<192x96xf32>
    %cst_28 = arith.constant dense<0.000000e+00> : vector<192x96xf32>
    %50 = tpu.matmul %1, %49, %cst_28 {dimension_numbers = #tpu.dot_dimension_numbers<[1], [0], [0], [1], [0, 0, 1, 1], [], []>} : vector<192x192xf32>, vector<192x96xf32>, vector<192x96xf32> -> vector<192x96xf32>
    %cst_29 = arith.constant dense<0.000000e+00> : vector<96x96xf32>
    %51 = tpu.matmul %48, %50, %cst_29 {dimension_numbers = #tpu.dot_dimension_numbers<[1], [0], [0], [1], [0, 0, 1, 1], [], []>} : vector<96x192xf32>, vector<192x96xf32>, vector<96x96xf32> -> vector<96x96xf32>
    %cst_30 = arith.constant dense<0.000000e+00> : vector<192x96xf32>
    %52 = tpu.matmul %3, %49, %cst_30 {dimension_numbers = #tpu.dot_dimension_numbers<[1], [0], [0], [1], [0, 0, 1, 1], [], []>} : vector<192x192xf32>, vector<192x96xf32>, vector<192x96xf32> -> vector<192x96xf32>
    %cst_31 = arith.constant dense<0.000000e+00> : vector<96x96xf32>
    %53 = tpu.matmul %48, %52, %cst_31 {dimension_numbers = #tpu.dot_dimension_numbers<[1], [0], [0], [1], [0, 0, 1, 1], [], []>} : vector<96x192xf32>, vector<192x96xf32>, vector<96x96xf32> -> vector<96x96xf32>
    %c0_32 = arith.constant 0 : index
    %c0_33 = arith.constant 0 : index
    %54 = vector.load %arg6[%c0_32, %c0_33] : memref<86x96xf32, #tpu.memory_space<vmem>>, vector<86x96xf32>
    %c0_34 = arith.constant 0 : index
    %c0_35 = arith.constant 0 : index
    %55 = vector.load %arg7[%c0_34, %c0_35] : memref<96x128xf32, #tpu.memory_space<vmem>>, vector<96x128xf32>
    %56 = arith.mulf %51, %51 : vector<96x96xf32>
    %57 = arith.mulf %53, %53 : vector<96x96xf32>
    %58 = arith.mulf %51, %53 : vector<96x96xf32>
    %59 = tpu.concatenate %51, %53, %56, %57, %58 in 0 : vector<96x96xf32>, vector<96x96xf32>, vector<96x96xf32>, vector<96x96xf32>, vector<96x96xf32> -> vector<480x96xf32>
    %cst_36 = arith.constant dense<0.000000e+00> : vector<480x128xf32>
    %60 = tpu.matmul %59, %55, %cst_36 {dimension_numbers = #tpu.dot_dimension_numbers<[1], [0], [0], [1], [0, 0, 1, 1], [], []>} : vector<480x96xf32>, vector<96x128xf32>, vector<480x128xf32> -> vector<480x128xf32>
    %61 = vector.extract_strided_slice %60 {offsets = [0, 0], sizes = [96, 128], strides = [1, 1]} : vector<480x128xf32> to vector<96x128xf32>
    %cst_37 = arith.constant dense<0.000000e+00> : vector<86x128xf32>
    %62 = tpu.matmul %54, %61, %cst_37 {dimension_numbers = #tpu.dot_dimension_numbers<[1], [0], [0], [1], [0, 0, 1, 1], [], []>} : vector<86x96xf32>, vector<96x128xf32>, vector<86x128xf32> -> vector<86x128xf32>
    %63 = vector.extract_strided_slice %60 {offsets = [96, 0], sizes = [96, 128], strides = [1, 1]} : vector<480x128xf32> to vector<96x128xf32>
    %cst_38 = arith.constant dense<0.000000e+00> : vector<86x128xf32>
    %64 = tpu.matmul %54, %63, %cst_38 {dimension_numbers = #tpu.dot_dimension_numbers<[1], [0], [0], [1], [0, 0, 1, 1], [], []>} : vector<86x96xf32>, vector<96x128xf32>, vector<86x128xf32> -> vector<86x128xf32>
    %65 = vector.extract_strided_slice %60 {offsets = [192, 0], sizes = [96, 128], strides = [1, 1]} : vector<480x128xf32> to vector<96x128xf32>
    %cst_39 = arith.constant dense<0.000000e+00> : vector<86x128xf32>
    %66 = tpu.matmul %54, %65, %cst_39 {dimension_numbers = #tpu.dot_dimension_numbers<[1], [0], [0], [1], [0, 0, 1, 1], [], []>} : vector<86x96xf32>, vector<96x128xf32>, vector<86x128xf32> -> vector<86x128xf32>
    %67 = vector.extract_strided_slice %60 {offsets = [288, 0], sizes = [96, 128], strides = [1, 1]} : vector<480x128xf32> to vector<96x128xf32>
    %cst_40 = arith.constant dense<0.000000e+00> : vector<86x128xf32>
    %68 = tpu.matmul %54, %67, %cst_40 {dimension_numbers = #tpu.dot_dimension_numbers<[1], [0], [0], [1], [0, 0, 1, 1], [], []>} : vector<86x96xf32>, vector<96x128xf32>, vector<86x128xf32> -> vector<86x128xf32>
    %69 = vector.extract_strided_slice %60 {offsets = [384, 0], sizes = [96, 128], strides = [1, 1]} : vector<480x128xf32> to vector<96x128xf32>
    %cst_41 = arith.constant dense<0.000000e+00> : vector<86x128xf32>
    %70 = tpu.matmul %54, %69, %cst_41 {dimension_numbers = #tpu.dot_dimension_numbers<[1], [0], [0], [1], [0, 0, 1, 1], [], []>} : vector<86x96xf32>, vector<96x128xf32>, vector<86x128xf32> -> vector<86x128xf32>
    %71 = arith.mulf %62, %62 : vector<86x128xf32>
    %72 = arith.subf %66, %71 : vector<86x128xf32>
    %73 = arith.mulf %64, %64 : vector<86x128xf32>
    %74 = arith.subf %68, %73 : vector<86x128xf32>
    %75 = arith.mulf %62, %64 : vector<86x128xf32>
    %76 = arith.subf %70, %75 : vector<86x128xf32>
    %cst_42 = arith.constant 2.000000e+00 : f32
    %77 = vector.broadcast %cst_42 : f32 to vector<86x128xf32>
    %78 = arith.mulf %77, %76 : vector<86x128xf32>
    %cst_43 = arith.constant 8.99999984E-4 : f32
    %79 = vector.broadcast %cst_43 : f32 to vector<86x128xf32>
    %80 = arith.addf %78, %79 : vector<86x128xf32>
    %81 = arith.addf %72, %74 : vector<86x128xf32>
    %cst_44 = arith.constant 8.99999984E-4 : f32
    %82 = vector.broadcast %cst_44 : f32 to vector<86x128xf32>
    %83 = arith.addf %81, %82 : vector<86x128xf32>
    %84 = arith.divf %80, %83 : vector<86x128xf32>
    %85 = vector.shape_cast %84 : vector<86x128xf32> to vector<1x86x128xf32>
    %cst_45 = arith.constant dense<0.000000e+00> : vector<1xf32>
    %86 = vector.multi_reduction <add>, %85, %cst_45 [1, 2] : vector<1x86x128xf32> to vector<1xf32>
    %87 = vector.shape_cast %86 : vector<1xf32> to vector<1x1x1xf32>
    %88 = vector.extract %87[0, 0, 0] : f32 from vector<1x1x1xf32>
    %cst_46 = arith.constant 3.612000e+03 : f32
    %89 = arith.subf %88, %cst_46 : f32
    %cst_47 = arith.constant 1.35208218E-4 : f32
    %90 = arith.mulf %89, %cst_47 : f32
    %cst_48 = arith.constant 0.000000e+00 : f32
    %91 = arith.maximumf %90, %cst_48 : f32
    %c0_49 = arith.constant 0 : index
    %c0_50 = arith.constant 0 : index
    %92 = vector.load %arg16[%c0_49, %c0_50] : memref<48x96xf32, #tpu.memory_space<vmem>>, vector<48x96xf32>
    %c0_51 = arith.constant 0 : index
    %c0_52 = arith.constant 0 : index
    %93 = vector.load %arg17[%c0_51, %c0_52] : memref<96x48xf32, #tpu.memory_space<vmem>>, vector<96x48xf32>
    %cst_53 = arith.constant dense<0.000000e+00> : vector<96x48xf32>
    %94 = tpu.matmul %51, %93, %cst_53 {dimension_numbers = #tpu.dot_dimension_numbers<[1], [0], [0], [1], [0, 0, 1, 1], [], []>} : vector<96x96xf32>, vector<96x48xf32>, vector<96x48xf32> -> vector<96x48xf32>
    %cst_54 = arith.constant dense<0.000000e+00> : vector<48x48xf32>
    %95 = tpu.matmul %92, %94, %cst_54 {dimension_numbers = #tpu.dot_dimension_numbers<[1], [0], [0], [1], [0, 0, 1, 1], [], []>} : vector<48x96xf32>, vector<96x48xf32>, vector<48x48xf32> -> vector<48x48xf32>
    %cst_55 = arith.constant dense<0.000000e+00> : vector<96x48xf32>
    %96 = tpu.matmul %53, %93, %cst_55 {dimension_numbers = #tpu.dot_dimension_numbers<[1], [0], [0], [1], [0, 0, 1, 1], [], []>} : vector<96x96xf32>, vector<96x48xf32>, vector<96x48xf32> -> vector<96x48xf32>
    %cst_56 = arith.constant dense<0.000000e+00> : vector<48x48xf32>
    %97 = tpu.matmul %92, %96, %cst_56 {dimension_numbers = #tpu.dot_dimension_numbers<[1], [0], [0], [1], [0, 0, 1, 1], [], []>} : vector<48x96xf32>, vector<96x48xf32>, vector<48x48xf32> -> vector<48x48xf32>
    %c0_57 = arith.constant 0 : index
    %c0_58 = arith.constant 0 : index
    %98 = vector.load %arg8[%c0_57, %c0_58] : memref<38x48xf32, #tpu.memory_space<vmem>>, vector<38x48xf32>
    %c0_59 = arith.constant 0 : index
    %c0_60 = arith.constant 0 : index
    %99 = vector.load %arg9[%c0_59, %c0_60] : memref<48x128xf32, #tpu.memory_space<vmem>>, vector<48x128xf32>
    %100 = arith.mulf %95, %95 : vector<48x48xf32>
    %101 = arith.mulf %97, %97 : vector<48x48xf32>
    %102 = arith.mulf %95, %97 : vector<48x48xf32>
    %103 = tpu.concatenate %95, %97, %100, %101, %102 in 0 : vector<48x48xf32>, vector<48x48xf32>, vector<48x48xf32>, vector<48x48xf32>, vector<48x48xf32> -> vector<240x48xf32>
    %cst_61 = arith.constant dense<0.000000e+00> : vector<240x128xf32>
    %104 = tpu.matmul %103, %99, %cst_61 {dimension_numbers = #tpu.dot_dimension_numbers<[1], [0], [0], [1], [0, 0, 1, 1], [], []>} : vector<240x48xf32>, vector<48x128xf32>, vector<240x128xf32> -> vector<240x128xf32>
    %105 = vector.extract_strided_slice %104 {offsets = [0, 0], sizes = [48, 128], strides = [1, 1]} : vector<240x128xf32> to vector<48x128xf32>
    %cst_62 = arith.constant dense<0.000000e+00> : vector<38x128xf32>
    %106 = tpu.matmul %98, %105, %cst_62 {dimension_numbers = #tpu.dot_dimension_numbers<[1], [0], [0], [1], [0, 0, 1, 1], [], []>} : vector<38x48xf32>, vector<48x128xf32>, vector<38x128xf32> -> vector<38x128xf32>
    %107 = vector.extract_strided_slice %104 {offsets = [48, 0], sizes = [48, 128], strides = [1, 1]} : vector<240x128xf32> to vector<48x128xf32>
    %cst_63 = arith.constant dense<0.000000e+00> : vector<38x128xf32>
    %108 = tpu.matmul %98, %107, %cst_63 {dimension_numbers = #tpu.dot_dimension_numbers<[1], [0], [0], [1], [0, 0, 1, 1], [], []>} : vector<38x48xf32>, vector<48x128xf32>, vector<38x128xf32> -> vector<38x128xf32>
    %109 = vector.extract_strided_slice %104 {offsets = [96, 0], sizes = [48, 128], strides = [1, 1]} : vector<240x128xf32> to vector<48x128xf32>
    %cst_64 = arith.constant dense<0.000000e+00> : vector<38x128xf32>
    %110 = tpu.matmul %98, %109, %cst_64 {dimension_numbers = #tpu.dot_dimension_numbers<[1], [0], [0], [1], [0, 0, 1, 1], [], []>} : vector<38x48xf32>, vector<48x128xf32>, vector<38x128xf32> -> vector<38x128xf32>
    %111 = vector.extract_strided_slice %104 {offsets = [144, 0], sizes = [48, 128], strides = [1, 1]} : vector<240x128xf32> to vector<48x128xf32>
    %cst_65 = arith.constant dense<0.000000e+00> : vector<38x128xf32>
    %112 = tpu.matmul %98, %111, %cst_65 {dimension_numbers = #tpu.dot_dimension_numbers<[1], [0], [0], [1], [0, 0, 1, 1], [], []>} : vector<38x48xf32>, vector<48x128xf32>, vector<38x128xf32> -> vector<38x128xf32>
    %113 = vector.extract_strided_slice %104 {offsets = [192, 0], sizes = [48, 128], strides = [1, 1]} : vector<240x128xf32> to vector<48x128xf32>
    %cst_66 = arith.constant dense<0.000000e+00> : vector<38x128xf32>
    %114 = tpu.matmul %98, %113, %cst_66 {dimension_numbers = #tpu.dot_dimension_numbers<[1], [0], [0], [1], [0, 0, 1, 1], [], []>} : vector<38x48xf32>, vector<48x128xf32>, vector<38x128xf32> -> vector<38x128xf32>
    %115 = arith.mulf %106, %106 : vector<38x128xf32>
    %116 = arith.subf %110, %115 : vector<38x128xf32>
    %117 = arith.mulf %108, %108 : vector<38x128xf32>
    %118 = arith.subf %112, %117 : vector<38x128xf32>
    %119 = arith.mulf %106, %108 : vector<38x128xf32>
    %120 = arith.subf %114, %119 : vector<38x128xf32>
    %cst_67 = arith.constant 2.000000e+00 : f32
    %121 = vector.broadcast %cst_67 : f32 to vector<38x128xf32>
    %122 = arith.mulf %121, %120 : vector<38x128xf32>
    %cst_68 = arith.constant 8.99999984E-4 : f32
    %123 = vector.broadcast %cst_68 : f32 to vector<38x128xf32>
    %124 = arith.addf %122, %123 : vector<38x128xf32>
    %125 = arith.addf %116, %118 : vector<38x128xf32>
    %cst_69 = arith.constant 8.99999984E-4 : f32
    %126 = vector.broadcast %cst_69 : f32 to vector<38x128xf32>
    %127 = arith.addf %125, %126 : vector<38x128xf32>
    %128 = arith.divf %124, %127 : vector<38x128xf32>
    %129 = vector.shape_cast %128 : vector<38x128xf32> to vector<1x38x128xf32>
    %cst_70 = arith.constant dense<0.000000e+00> : vector<1xf32>
    %130 = vector.multi_reduction <add>, %129, %cst_70 [1, 2] : vector<1x38x128xf32> to vector<1xf32>
    %131 = vector.shape_cast %130 : vector<1xf32> to vector<1x1x1xf32>
    %132 = vector.extract %131[0, 0, 0] : f32 from vector<1x1x1xf32>
    %cst_71 = arith.constant 3.420000e+03 : f32
    %133 = arith.subf %132, %cst_71 : f32
    %cst_72 = arith.constant 6.92520756E-4 : f32
    %134 = arith.mulf %133, %cst_72 : f32
    %cst_73 = arith.constant 0.000000e+00 : f32
    %135 = arith.maximumf %134, %cst_73 : f32
    %c0_74 = arith.constant 0 : index
    %c0_75 = arith.constant 0 : index
    %136 = vector.load %arg18[%c0_74, %c0_75] : memref<24x48xf32, #tpu.memory_space<vmem>>, vector<24x48xf32>
    %c0_76 = arith.constant 0 : index
    %c0_77 = arith.constant 0 : index
    %137 = vector.load %arg19[%c0_76, %c0_77] : memref<48x24xf32, #tpu.memory_space<vmem>>, vector<48x24xf32>
    %cst_78 = arith.constant dense<0.000000e+00> : vector<48x24xf32>
    %138 = tpu.matmul %95, %137, %cst_78 {dimension_numbers = #tpu.dot_dimension_numbers<[1], [0], [0], [1], [0, 0, 1, 1], [], []>} : vector<48x48xf32>, vector<48x24xf32>, vector<48x24xf32> -> vector<48x24xf32>
    %cst_79 = arith.constant dense<0.000000e+00> : vector<24x24xf32>
    %139 = tpu.matmul %136, %138, %cst_79 {dimension_numbers = #tpu.dot_dimension_numbers<[1], [0], [0], [1], [0, 0, 1, 1], [], []>} : vector<24x48xf32>, vector<48x24xf32>, vector<24x24xf32> -> vector<24x24xf32>
    %cst_80 = arith.constant dense<0.000000e+00> : vector<48x24xf32>
    %140 = tpu.matmul %97, %137, %cst_80 {dimension_numbers = #tpu.dot_dimension_numbers<[1], [0], [0], [1], [0, 0, 1, 1], [], []>} : vector<48x48xf32>, vector<48x24xf32>, vector<48x24xf32> -> vector<48x24xf32>
    %cst_81 = arith.constant dense<0.000000e+00> : vector<24x24xf32>
    %141 = tpu.matmul %136, %140, %cst_81 {dimension_numbers = #tpu.dot_dimension_numbers<[1], [0], [0], [1], [0, 0, 1, 1], [], []>} : vector<24x48xf32>, vector<48x24xf32>, vector<24x24xf32> -> vector<24x24xf32>
    %c0_82 = arith.constant 0 : index
    %c0_83 = arith.constant 0 : index
    %142 = vector.load %arg10[%c0_82, %c0_83] : memref<14x24xf32, #tpu.memory_space<vmem>>, vector<14x24xf32>
    %c0_84 = arith.constant 0 : index
    %c0_85 = arith.constant 0 : index
    %143 = vector.load %arg11[%c0_84, %c0_85] : memref<24x128xf32, #tpu.memory_space<vmem>>, vector<24x128xf32>
    %144 = arith.mulf %139, %139 : vector<24x24xf32>
    %145 = arith.mulf %141, %141 : vector<24x24xf32>
    %146 = arith.mulf %139, %141 : vector<24x24xf32>
    %147 = tpu.concatenate %139, %141, %144, %145, %146 in 0 : vector<24x24xf32>, vector<24x24xf32>, vector<24x24xf32>, vector<24x24xf32>, vector<24x24xf32> -> vector<120x24xf32>
    %cst_86 = arith.constant dense<0.000000e+00> : vector<120x128xf32>
    %148 = tpu.matmul %147, %143, %cst_86 {dimension_numbers = #tpu.dot_dimension_numbers<[1], [0], [0], [1], [0, 0, 1, 1], [], []>} : vector<120x24xf32>, vector<24x128xf32>, vector<120x128xf32> -> vector<120x128xf32>
    %149 = vector.extract_strided_slice %148 {offsets = [0, 0], sizes = [24, 128], strides = [1, 1]} : vector<120x128xf32> to vector<24x128xf32>
    %cst_87 = arith.constant dense<0.000000e+00> : vector<14x128xf32>
    %150 = tpu.matmul %142, %149, %cst_87 {dimension_numbers = #tpu.dot_dimension_numbers<[1], [0], [0], [1], [0, 0, 1, 1], [], []>} : vector<14x24xf32>, vector<24x128xf32>, vector<14x128xf32> -> vector<14x128xf32>
    %151 = vector.extract_strided_slice %148 {offsets = [24, 0], sizes = [24, 128], strides = [1, 1]} : vector<120x128xf32> to vector<24x128xf32>
    %cst_88 = arith.constant dense<0.000000e+00> : vector<14x128xf32>
    %152 = tpu.matmul %142, %151, %cst_88 {dimension_numbers = #tpu.dot_dimension_numbers<[1], [0], [0], [1], [0, 0, 1, 1], [], []>} : vector<14x24xf32>, vector<24x128xf32>, vector<14x128xf32> -> vector<14x128xf32>
    %153 = vector.extract_strided_slice %148 {offsets = [48, 0], sizes = [24, 128], strides = [1, 1]} : vector<120x128xf32> to vector<24x128xf32>
    %cst_89 = arith.constant dense<0.000000e+00> : vector<14x128xf32>
    %154 = tpu.matmul %142, %153, %cst_89 {dimension_numbers = #tpu.dot_dimension_numbers<[1], [0], [0], [1], [0, 0, 1, 1], [], []>} : vector<14x24xf32>, vector<24x128xf32>, vector<14x128xf32> -> vector<14x128xf32>
    %155 = vector.extract_strided_slice %148 {offsets = [72, 0], sizes = [24, 128], strides = [1, 1]} : vector<120x128xf32> to vector<24x128xf32>
    %cst_90 = arith.constant dense<0.000000e+00> : vector<14x128xf32>
    %156 = tpu.matmul %142, %155, %cst_90 {dimension_numbers = #tpu.dot_dimension_numbers<[1], [0], [0], [1], [0, 0, 1, 1], [], []>} : vector<14x24xf32>, vector<24x128xf32>, vector<14x128xf32> -> vector<14x128xf32>
    %157 = vector.extract_strided_slice %148 {offsets = [96, 0], sizes = [24, 128], strides = [1, 1]} : vector<120x128xf32> to vector<24x128xf32>
    %cst_91 = arith.constant dense<0.000000e+00> : vector<14x128xf32>
    %158 = tpu.matmul %142, %157, %cst_91 {dimension_numbers = #tpu.dot_dimension_numbers<[1], [0], [0], [1], [0, 0, 1, 1], [], []>} : vector<14x24xf32>, vector<24x128xf32>, vector<14x128xf32> -> vector<14x128xf32>
    %159 = arith.mulf %150, %150 : vector<14x128xf32>
    %160 = arith.subf %154, %159 : vector<14x128xf32>
    %161 = arith.mulf %152, %152 : vector<14x128xf32>
    %162 = arith.subf %156, %161 : vector<14x128xf32>
    %163 = arith.mulf %150, %152 : vector<14x128xf32>
    %164 = arith.subf %158, %163 : vector<14x128xf32>
    %cst_92 = arith.constant 2.000000e+00 : f32
    %165 = vector.broadcast %cst_92 : f32 to vector<14x128xf32>
    %166 = arith.mulf %165, %164 : vector<14x128xf32>
    %cst_93 = arith.constant 8.99999984E-4 : f32
    %167 = vector.broadcast %cst_93 : f32 to vector<14x128xf32>
    %168 = arith.addf %166, %167 : vector<14x128xf32>
    %169 = arith.addf %160, %162 : vector<14x128xf32>
    %cst_94 = arith.constant 8.99999984E-4 : f32
    %170 = vector.broadcast %cst_94 : f32 to vector<14x128xf32>
    %171 = arith.addf %169, %170 : vector<14x128xf32>
    %172 = arith.divf %168, %171 : vector<14x128xf32>
    %173 = vector.shape_cast %172 : vector<14x128xf32> to vector<1x14x128xf32>
    %cst_95 = arith.constant dense<0.000000e+00> : vector<1xf32>
    %174 = vector.multi_reduction <add>, %173, %cst_95 [1, 2] : vector<1x14x128xf32> to vector<1xf32>
    %175 = vector.shape_cast %174 : vector<1xf32> to vector<1x1x1xf32>
    %176 = vector.extract %175[0, 0, 0] : f32 from vector<1x1x1xf32>
    %cst_96 = arith.constant 1.596000e+03 : f32
    %177 = arith.subf %176, %cst_96 : f32
    %cst_97 = arith.constant 0.00510204071 : f32
    %178 = arith.mulf %177, %cst_97 : f32
    %cst_98 = arith.constant 0.000000e+00 : f32
    %179 = arith.maximumf %178, %cst_98 : f32
    %c0_99 = arith.constant 0 : index
    %c0_100 = arith.constant 0 : index
    %180 = vector.load %arg20[%c0_99, %c0_100] : memref<12x24xf32, #tpu.memory_space<vmem>>, vector<12x24xf32>
    %c0_101 = arith.constant 0 : index
    %c0_102 = arith.constant 0 : index
    %181 = vector.load %arg21[%c0_101, %c0_102] : memref<24x12xf32, #tpu.memory_space<vmem>>, vector<24x12xf32>
    %cst_103 = arith.constant dense<0.000000e+00> : vector<24x12xf32>
    %182 = tpu.matmul %139, %181, %cst_103 {dimension_numbers = #tpu.dot_dimension_numbers<[1], [0], [0], [1], [0, 0, 1, 1], [], []>} : vector<24x24xf32>, vector<24x12xf32>, vector<24x12xf32> -> vector<24x12xf32>
    %cst_104 = arith.constant dense<0.000000e+00> : vector<12x12xf32>
    %183 = tpu.matmul %180, %182, %cst_104 {dimension_numbers = #tpu.dot_dimension_numbers<[1], [0], [0], [1], [0, 0, 1, 1], [], []>} : vector<12x24xf32>, vector<24x12xf32>, vector<12x12xf32> -> vector<12x12xf32>
    %cst_105 = arith.constant dense<0.000000e+00> : vector<24x12xf32>
    %184 = tpu.matmul %141, %181, %cst_105 {dimension_numbers = #tpu.dot_dimension_numbers<[1], [0], [0], [1], [0, 0, 1, 1], [], []>} : vector<24x24xf32>, vector<24x12xf32>, vector<24x12xf32> -> vector<24x12xf32>
    %cst_106 = arith.constant dense<0.000000e+00> : vector<12x12xf32>
    %185 = tpu.matmul %180, %184, %cst_106 {dimension_numbers = #tpu.dot_dimension_numbers<[1], [0], [0], [1], [0, 0, 1, 1], [], []>} : vector<12x24xf32>, vector<24x12xf32>, vector<12x12xf32> -> vector<12x12xf32>
    %c0_107 = arith.constant 0 : index
    %c0_108 = arith.constant 0 : index
    %186 = vector.load %arg12[%c0_107, %c0_108] : memref<2x12xf32, #tpu.memory_space<vmem>>, vector<2x12xf32>
    %c0_109 = arith.constant 0 : index
    %c0_110 = arith.constant 0 : index
    %187 = vector.load %arg13[%c0_109, %c0_110] : memref<12x128xf32, #tpu.memory_space<vmem>>, vector<12x128xf32>
    %cst_111 = arith.constant dense<0.000000e+00> : vector<12x128xf32>
    %188 = tpu.matmul %183, %187, %cst_111 {dimension_numbers = #tpu.dot_dimension_numbers<[1], [0], [0], [1], [0, 0, 1, 1], [], []>} : vector<12x12xf32>, vector<12x128xf32>, vector<12x128xf32> -> vector<12x128xf32>
    %cst_112 = arith.constant dense<0.000000e+00> : vector<2x128xf32>
    %189 = tpu.matmul %186, %188, %cst_112 {dimension_numbers = #tpu.dot_dimension_numbers<[1], [0], [0], [1], [0, 0, 1, 1], [], []>} : vector<2x12xf32>, vector<12x128xf32>, vector<2x128xf32> -> vector<2x128xf32>
    %cst_113 = arith.constant dense<0.000000e+00> : vector<12x128xf32>
    %190 = tpu.matmul %185, %187, %cst_113 {dimension_numbers = #tpu.dot_dimension_numbers<[1], [0], [0], [1], [0, 0, 1, 1], [], []>} : vector<12x12xf32>, vector<12x128xf32>, vector<12x128xf32> -> vector<12x128xf32>
    %cst_114 = arith.constant dense<0.000000e+00> : vector<2x128xf32>
    %191 = tpu.matmul %186, %190, %cst_114 {dimension_numbers = #tpu.dot_dimension_numbers<[1], [0], [0], [1], [0, 0, 1, 1], [], []>} : vector<2x12xf32>, vector<12x128xf32>, vector<2x128xf32> -> vector<2x128xf32>
    %192 = arith.mulf %183, %183 : vector<12x12xf32>
    %cst_115 = arith.constant dense<0.000000e+00> : vector<12x128xf32>
    %193 = tpu.matmul %192, %187, %cst_115 {dimension_numbers = #tpu.dot_dimension_numbers<[1], [0], [0], [1], [0, 0, 1, 1], [], []>} : vector<12x12xf32>, vector<12x128xf32>, vector<12x128xf32> -> vector<12x128xf32>
    %cst_116 = arith.constant dense<0.000000e+00> : vector<2x128xf32>
    %194 = tpu.matmul %186, %193, %cst_116 {dimension_numbers = #tpu.dot_dimension_numbers<[1], [0], [0], [1], [0, 0, 1, 1], [], []>} : vector<2x12xf32>, vector<12x128xf32>, vector<2x128xf32> -> vector<2x128xf32>
    %195 = arith.mulf %185, %185 : vector<12x12xf32>
    %cst_117 = arith.constant dense<0.000000e+00> : vector<12x128xf32>
    %196 = tpu.matmul %195, %187, %cst_117 {dimension_numbers = #tpu.dot_dimension_numbers<[1], [0], [0], [1], [0, 0, 1, 1], [], []>} : vector<12x12xf32>, vector<12x128xf32>, vector<12x128xf32> -> vector<12x128xf32>
    %cst_118 = arith.constant dense<0.000000e+00> : vector<2x128xf32>
    %197 = tpu.matmul %186, %196, %cst_118 {dimension_numbers = #tpu.dot_dimension_numbers<[1], [0], [0], [1], [0, 0, 1, 1], [], []>} : vector<2x12xf32>, vector<12x128xf32>, vector<2x128xf32> -> vector<2x128xf32>
    %198 = arith.mulf %183, %185 : vector<12x12xf32>
    %cst_119 = arith.constant dense<0.000000e+00> : vector<12x128xf32>
    %199 = tpu.matmul %198, %187, %cst_119 {dimension_numbers = #tpu.dot_dimension_numbers<[1], [0], [0], [1], [0, 0, 1, 1], [], []>} : vector<12x12xf32>, vector<12x128xf32>, vector<12x128xf32> -> vector<12x128xf32>
    %cst_120 = arith.constant dense<0.000000e+00> : vector<2x128xf32>
    %200 = tpu.matmul %186, %199, %cst_120 {dimension_numbers = #tpu.dot_dimension_numbers<[1], [0], [0], [1], [0, 0, 1, 1], [], []>} : vector<2x12xf32>, vector<12x128xf32>, vector<2x128xf32> -> vector<2x128xf32>
    %201 = arith.mulf %189, %189 : vector<2x128xf32>
    %202 = arith.subf %194, %201 : vector<2x128xf32>
    %203 = arith.mulf %191, %191 : vector<2x128xf32>
    %204 = arith.subf %197, %203 : vector<2x128xf32>
    %205 = arith.mulf %189, %191 : vector<2x128xf32>
    %206 = arith.subf %200, %205 : vector<2x128xf32>
    %cst_121 = arith.constant 2.000000e+00 : f32
    %207 = vector.broadcast %cst_121 : f32 to vector<2x128xf32>
    %208 = arith.mulf %207, %206 : vector<2x128xf32>
    %cst_122 = arith.constant 8.99999984E-4 : f32
    %209 = vector.broadcast %cst_122 : f32 to vector<2x128xf32>
    %210 = arith.addf %208, %209 : vector<2x128xf32>
    %211 = arith.addf %202, %204 : vector<2x128xf32>
    %cst_123 = arith.constant 8.99999984E-4 : f32
    %212 = vector.broadcast %cst_123 : f32 to vector<2x128xf32>
    %213 = arith.addf %211, %212 : vector<2x128xf32>
    %214 = arith.divf %210, %213 : vector<2x128xf32>
    %cst_124 = arith.constant 2.000000e+00 : f32
    %215 = vector.broadcast %cst_124 : f32 to vector<2x128xf32>
    %216 = arith.mulf %215, %189 : vector<2x128xf32>
    %217 = arith.mulf %216, %191 : vector<2x128xf32>
    %cst_125 = arith.constant 9.99999974E-5 : f32
    %218 = vector.broadcast %cst_125 : f32 to vector<2x128xf32>
    %219 = arith.addf %217, %218 : vector<2x128xf32>
    %220 = arith.mulf %189, %189 : vector<2x128xf32>
    %221 = arith.mulf %191, %191 : vector<2x128xf32>
    %222 = arith.addf %220, %221 : vector<2x128xf32>
    %cst_126 = arith.constant 9.99999974E-5 : f32
    %223 = vector.broadcast %cst_126 : f32 to vector<2x128xf32>
    %224 = arith.addf %222, %223 : vector<2x128xf32>
    %225 = arith.divf %219, %224 : vector<2x128xf32>
    %226 = arith.mulf %225, %214 : vector<2x128xf32>
    %227 = vector.shape_cast %226 : vector<2x128xf32> to vector<1x2x128xf32>
    %cst_127 = arith.constant dense<0.000000e+00> : vector<1xf32>
    %228 = vector.multi_reduction <add>, %227, %cst_127 [1, 2] : vector<1x2x128xf32> to vector<1xf32>
    %229 = vector.shape_cast %228 : vector<1xf32> to vector<1x1x1xf32>
    %230 = vector.extract %229[0, 0, 0] : f32 from vector<1x1x1xf32>
    %cst_128 = arith.constant 2.520000e+02 : f32
    %231 = arith.subf %230, %cst_128 : f32
    %cst_129 = arith.constant 2.500000e-01 : f32
    %232 = arith.mulf %231, %cst_129 : f32
    %cst_130 = arith.constant 0.000000e+00 : f32
    %233 = arith.maximumf %232, %cst_130 : f32
    %234 = tpu.iota {dimensions = array<i32: 0>} : vector<8x128xi32>
    %235 = tpu.iota {dimensions = array<i32: 1>} : vector<8x128xi32>
    %cst_131 = arith.constant 0.000000e+00 : f32
    %236 = vector.broadcast %cst_131 : f32 to vector<8x128xf32>
    %c0_i32 = arith.constant 0 : i32
    %237 = vector.broadcast %c0_i32 : i32 to vector<8x128xi32>
    %238 = arith.cmpi eq, %234, %237 : vector<8x128xi32>
    %c0_i32_132 = arith.constant 0 : i32
    %239 = vector.broadcast %c0_i32_132 : i32 to vector<8x128xi32>
    %240 = arith.cmpi eq, %235, %239 : vector<8x128xi32>
    %241 = arith.andi %238, %240 : vector<8x128xi1>
    %242 = vector.broadcast %47 : f32 to vector<8x128xf32>
    %243 = arith.select %241, %242, %236 : vector<8x128xi1>, vector<8x128xf32>
    %c1_i32 = arith.constant 1 : i32
    %244 = vector.broadcast %c1_i32 : i32 to vector<8x128xi32>
    %245 = arith.cmpi eq, %234, %244 : vector<8x128xi32>
    %c0_i32_133 = arith.constant 0 : i32
    %246 = vector.broadcast %c0_i32_133 : i32 to vector<8x128xi32>
    %247 = arith.cmpi eq, %235, %246 : vector<8x128xi32>
    %248 = arith.andi %245, %247 : vector<8x128xi1>
    %249 = vector.broadcast %91 : f32 to vector<8x128xf32>
    %250 = arith.select %248, %249, %243 : vector<8x128xi1>, vector<8x128xf32>
    %c2_i32 = arith.constant 2 : i32
    %251 = vector.broadcast %c2_i32 : i32 to vector<8x128xi32>
    %252 = arith.cmpi eq, %234, %251 : vector<8x128xi32>
    %c0_i32_134 = arith.constant 0 : i32
    %253 = vector.broadcast %c0_i32_134 : i32 to vector<8x128xi32>
    %254 = arith.cmpi eq, %235, %253 : vector<8x128xi32>
    %255 = arith.andi %252, %254 : vector<8x128xi1>
    %256 = vector.broadcast %135 : f32 to vector<8x128xf32>
    %257 = arith.select %255, %256, %250 : vector<8x128xi1>, vector<8x128xf32>
    %c3_i32 = arith.constant 3 : i32
    %258 = vector.broadcast %c3_i32 : i32 to vector<8x128xi32>
    %259 = arith.cmpi eq, %234, %258 : vector<8x128xi32>
    %c0_i32_135 = arith.constant 0 : i32
    %260 = vector.broadcast %c0_i32_135 : i32 to vector<8x128xi32>
    %261 = arith.cmpi eq, %235, %260 : vector<8x128xi32>
    %262 = arith.andi %259, %261 : vector<8x128xi1>
    %263 = vector.broadcast %179 : f32 to vector<8x128xf32>
    %264 = arith.select %262, %263, %257 : vector<8x128xi1>, vector<8x128xf32>
    %c4_i32 = arith.constant 4 : i32
    %265 = vector.broadcast %c4_i32 : i32 to vector<8x128xi32>
    %266 = arith.cmpi eq, %234, %265 : vector<8x128xi32>
    %c0_i32_136 = arith.constant 0 : i32
    %267 = vector.broadcast %c0_i32_136 : i32 to vector<8x128xi32>
    %268 = arith.cmpi eq, %235, %267 : vector<8x128xi32>
    %269 = arith.andi %266, %268 : vector<8x128xi1>
    %270 = vector.broadcast %233 : f32 to vector<8x128xf32>
    %271 = arith.select %269, %270, %264 : vector<8x128xi1>, vector<8x128xf32>
    %c5_i32 = arith.constant 5 : i32
    %272 = vector.broadcast %c5_i32 : i32 to vector<8x128xi32>
    %273 = arith.cmpi eq, %234, %272 : vector<8x128xi32>
    %c0_i32_137 = arith.constant 0 : i32
    %274 = vector.broadcast %c0_i32_137 : i32 to vector<8x128xi32>
    %275 = arith.cmpi eq, %235, %274 : vector<8x128xi32>
    %276 = arith.andi %273, %275 : vector<8x128xi1>
    %277 = vector.broadcast %9 : f32 to vector<8x128xf32>
    %278 = arith.select %276, %277, %271 : vector<8x128xi1>, vector<8x128xf32>
    %c0_138 = arith.constant 0 : index
    %c0_139 = arith.constant 0 : index
    %c0_140 = arith.constant 0 : index
    %c0_141 = arith.constant 0 : index
    %279 = vector.load %arg22[%c0_138, %c0_139, %c0_140, %c0_141] : memref<1x1x8x128xf32, #tpu.memory_space<vmem>>, vector<1x1x8x128xf32>
    %280 = vector.shape_cast %279 : vector<1x1x8x128xf32> to vector<8x128xf32>
    %281 = vector.shape_cast %278 : vector<8x128xf32> to vector<1x1x8x128xf32>
    tpu.vector_store %arg22[%c0_138, %c0_139, %c0_140, %c0_141], %281 {strides = array<i32>} : memref<1x1x8x128xf32, #tpu.memory_space<vmem>>, vector<1x1x8x128xf32>,
    return
  }
  func.func @transform_0(%arg0: i32, %arg1: i32) -> (i32, i32, i32, i32) {
    %c0_i32 = arith.constant 0 : i32
    %c0_i32_0 = arith.constant 0 : i32
    %c0_i32_1 = arith.constant 0 : i32
    return %arg0, %arg1, %c0_i32, %c0_i32_0 : i32, i32, i32, i32
  }
  func.func @transform_1(%arg0: i32, %arg1: i32) -> (i32, i32, i32, i32) {
    %c0_i32 = arith.constant 0 : i32
    %c0_i32_0 = arith.constant 0 : i32
    %c0_i32_1 = arith.constant 0 : i32
    return %arg0, %arg1, %c0_i32, %c0_i32_0 : i32, i32, i32, i32
  }
  func.func @transform_2(%arg0: i32, %arg1: i32) -> (i32, i32) {
    %c0_i32 = arith.constant 0 : i32
    %c0_i32_0 = arith.constant 0 : i32
    %c0_i32_1 = arith.constant 0 : i32
    return %c0_i32, %c0_i32_0 : i32, i32
  }
  func.func @transform_3(%arg0: i32, %arg1: i32) -> (i32, i32) {
    %c0_i32 = arith.constant 0 : i32
    %c0_i32_0 = arith.constant 0 : i32
    %c0_i32_1 = arith.constant 0 : i32
    return %c0_i32, %c0_i32_0 : i32, i32
  }
  func.func @transform_4(%arg0: i32, %arg1: i32) -> (i32, i32) {
    %c0_i32 = arith.constant 0 : i32
    %c0_i32_0 = arith.constant 0 : i32
    %c0_i32_1 = arith.constant 0 : i32
    return %c0_i32, %c0_i32_0 : i32, i32
  }
  func.func @transform_5(%arg0: i32, %arg1: i32) -> (i32, i32) {
    %c0_i32 = arith.constant 0 : i32
    %c0_i32_0 = arith.constant 0 : i32
    %c0_i32_1 = arith.constant 0 : i32
    return %c0_i32, %c0_i32_0 : i32, i32
  }
  func.func @transform_6(%arg0: i32, %arg1: i32) -> (i32, i32) {
    %c0_i32 = arith.constant 0 : i32
    %c0_i32_0 = arith.constant 0 : i32
    %c0_i32_1 = arith.constant 0 : i32
    return %c0_i32, %c0_i32_0 : i32, i32
  }
  func.func @transform_7(%arg0: i32, %arg1: i32) -> (i32, i32) {
    %c0_i32 = arith.constant 0 : i32
    %c0_i32_0 = arith.constant 0 : i32
    %c0_i32_1 = arith.constant 0 : i32
    return %c0_i32, %c0_i32_0 : i32, i32
  }
  func.func @transform_8(%arg0: i32, %arg1: i32) -> (i32, i32) {
    %c0_i32 = arith.constant 0 : i32
    %c0_i32_0 = arith.constant 0 : i32
    %c0_i32_1 = arith.constant 0 : i32
    return %c0_i32, %c0_i32_0 : i32, i32
  }
  func.func @transform_9(%arg0: i32, %arg1: i32) -> (i32, i32) {
    %c0_i32 = arith.constant 0 : i32
    %c0_i32_0 = arith.constant 0 : i32
    %c0_i32_1 = arith.constant 0 : i32
    return %c0_i32, %c0_i32_0 : i32, i32
  }
  func.func @transform_10(%arg0: i32, %arg1: i32) -> (i32, i32) {
    %c0_i32 = arith.constant 0 : i32
    %c0_i32_0 = arith.constant 0 : i32
    %c0_i32_1 = arith.constant 0 : i32
    return %c0_i32, %c0_i32_0 : i32, i32
  }
  func.func @transform_11(%arg0: i32, %arg1: i32) -> (i32, i32) {
    %c0_i32 = arith.constant 0 : i32
    %c0_i32_0 = arith.constant 0 : i32
    %c0_i32_1 = arith.constant 0 : i32
    return %c0_i32, %c0_i32_0 : i32, i32
  }
  func.func @transform_12(%arg0: i32, %arg1: i32) -> (i32, i32) {
    %c0_i32 = arith.constant 0 : i32
    %c0_i32_0 = arith.constant 0 : i32
    %c0_i32_1 = arith.constant 0 : i32
    return %c0_i32, %c0_i32_0 : i32, i32
  }
  func.func @transform_13(%arg0: i32, %arg1: i32) -> (i32, i32) {
    %c0_i32 = arith.constant 0 : i32
    %c0_i32_0 = arith.constant 0 : i32
    %c0_i32_1 = arith.constant 0 : i32
    return %c0_i32, %c0_i32_0 : i32, i32
  }
  func.func @transform_14(%arg0: i32, %arg1: i32) -> (i32, i32) {
    %c0_i32 = arith.constant 0 : i32
    %c0_i32_0 = arith.constant 0 : i32
    %c0_i32_1 = arith.constant 0 : i32
    return %c0_i32, %c0_i32_0 : i32, i32
  }
  func.func @transform_15(%arg0: i32, %arg1: i32) -> (i32, i32) {
    %c0_i32 = arith.constant 0 : i32
    %c0_i32_0 = arith.constant 0 : i32
    %c0_i32_1 = arith.constant 0 : i32
    return %c0_i32, %c0_i32_0 : i32, i32
  }
  func.func @transform_16(%arg0: i32, %arg1: i32) -> (i32, i32) {
    %c0_i32 = arith.constant 0 : i32
    %c0_i32_0 = arith.constant 0 : i32
    %c0_i32_1 = arith.constant 0 : i32
    return %c0_i32, %c0_i32_0 : i32, i32
  }
  func.func @transform_17(%arg0: i32, %arg1: i32) -> (i32, i32) {
    %c0_i32 = arith.constant 0 : i32
    %c0_i32_0 = arith.constant 0 : i32
    %c0_i32_1 = arith.constant 0 : i32
    return %c0_i32, %c0_i32_0 : i32, i32
  }
  func.func @transform_18(%arg0: i32, %arg1: i32) -> (i32, i32) {
    %c0_i32 = arith.constant 0 : i32
    %c0_i32_0 = arith.constant 0 : i32
    %c0_i32_1 = arith.constant 0 : i32
    return %c0_i32, %c0_i32_0 : i32, i32
  }
  func.func @transform_19(%arg0: i32, %arg1: i32) -> (i32, i32) {
    %c0_i32 = arith.constant 0 : i32
    %c0_i32_0 = arith.constant 0 : i32
    %c0_i32_1 = arith.constant 0 : i32
    return %c0_i32, %c0_i32_0 : i32, i32
  }
  func.func @transform_20(%arg0: i32, %arg1: i32) -> (i32, i32, i32, i32) {
    %c0_i32 = arith.constant 0 : i32
    %c0_i32_0 = arith.constant 0 : i32
    %c0_i32_1 = arith.constant 0 : i32
    return %arg0, %arg1, %c0_i32, %c0_i32_0 : i32, i32, i32, i32
  }
}

</mosaic_0001>

<llo_original>
// kernel: msssim_loss_forward.1
$region0: #{msssim_loss_forward.1}
  #allocation0 [shape = 'u32[]', space=smem, size = 0x4, offset = 0x4, fixed_abs, tag = 'smem constant byte address 0x4 - core index']
  #allocation1 [shape = 'u32[144,128]{1,0:T(1,128)}', space=vmem, size = 0x12000, scoped, tag = 'internal scratch']
  %s0 = inlined_call_operand.hbm [shape: f32[2,3,192,192], index: 0, kind: input, shape index: {}]
  %s1 = inlined_call_operand.hbm [shape: f32[2,3,192,192], index: 1, kind: input, shape index: {}]
  %s2 = inlined_call_operand.hbm [shape: f32[182,192], index: 2, kind: input, shape index: {}]
  %s3 = inlined_call_operand.hbm [shape: f32[192,256], index: 3, kind: input, shape index: {}]
  %s4 = inlined_call_operand.hbm [shape: f32[86,96], index: 4, kind: input, shape index: {}]
  %s5 = inlined_call_operand.hbm [shape: f32[96,128], index: 5, kind: input, shape index: {}]
  %s6 = inlined_call_operand.hbm [shape: f32[38,48], index: 6, kind: input, shape index: {}]
  %s7 = inlined_call_operand.hbm [shape: f32[48,128], index: 7, kind: input, shape index: {}]
  %s8 = inlined_call_operand.hbm [shape: f32[14,24], index: 8, kind: input, shape index: {}]
  %s9 = inlined_call_operand.hbm [shape: f32[24,128], index: 9, kind: input, shape index: {}]
  %s10 = inlined_call_operand.hbm [shape: f32[2,12], index: 10, kind: input, shape index: {}]
  %s11 = inlined_call_operand.hbm [shape: f32[12,128], index: 11, kind: input, shape index: {}]
  %s12 = inlined_call_operand.hbm [shape: f32[96,192], index: 12, kind: input, shape index: {}]
  %s13 = inlined_call_operand.hbm [shape: f32[192,96], index: 13, kind: input, shape index: {}]
  %s14 = inlined_call_operand.hbm [shape: f32[48,96], index: 14, kind: input, shape index: {}]
  %s15 = inlined_call_operand.hbm [shape: f32[96,48], index: 15, kind: input, shape index: {}]
  %s16 = inlined_call_operand.hbm [shape: f32[24,48], index: 16, kind: input, shape index: {}]
  %s17 = inlined_call_operand.hbm [shape: f32[48,24], index: 17, kind: input, shape index: {}]
  %s18 = inlined_call_operand.hbm [shape: f32[12,24], index: 18, kind: input, shape index: {}]
  %s19 = inlined_call_operand.hbm [shape: f32[24,12], index: 19, kind: input, shape index: {}]
  %s20 = inlined_call_operand.vmem [shape: f32[2,3,8,128], index: 20, kind: output, shape index: {}]
  %s21 = sld [smem:[#allocation0]]
  $region193: #{msssim_loss_forward.1} parent=0
    _
  %s23 = ssub.s32 1, %s21
  %s24 = scalar_select 0, %s23, %s21
  $region1: #{msssim_loss_forward.1} parent=0
    #allocation2 [shape = 'u8[393216]{0}', space=vmem, size = 0x60000, scoped, tag = 'input window, operand 0']
    #allocation3 [shape = 's32[2]{0}', space=sflag, size = 0x8, scoped, tag = 'scoped memory for msssim_loss_forward.1']
    #allocation4 [shape = 'u8[393216]{0}', space=vmem, size = 0x60000, scoped, tag = 'input window, operand 1']
    #allocation5 [shape = 's32[2]{0}', space=sflag, size = 0x8, scoped, tag = 'scoped memory for msssim_loss_forward.1']
    #allocation6 [shape = 'u8[188416]{0}', space=vmem, size = 0x2e000, scoped, tag = 'input window, operand 2, single buffered']
    #allocation7 [shape = 'u8[196608]{0}', space=vmem, size = 0x30000, scoped, tag = 'input window, operand 3, single buffered']
    #allocation8 [shape = 's32[1]{0}', space=sflag, size = 0x4, scoped, tag = 'scoped memory for msssim_loss_forward.1']
    #allocation9 [shape = 'u8[45056]{0}', space=vmem, size = 0xb000, scoped, tag = 'input window, operand 4, single buffered']
    #allocation10 [shape = 'u8[49152]{0}', space=vmem, size = 0xc000, scoped, tag = 'input window, operand 5, single buffered']
    #allocation11 [shape = 's32[1]{0}', space=sflag, size = 0x4, scoped, tag = 'scoped memory for msssim_loss_forward.1']
    #allocation12 [shape = 'u8[20480]{0}', space=vmem, size = 0x5000, scoped, tag = 'input window, operand 6, single buffered']
    #allocation13 [shape = 'u8[24576]{0}', space=vmem, size = 0x6000, scoped, tag = 'input window, operand 7, single buffered']
    #allocation14 [shape = 's32[1]{0}', space=sflag, size = 0x4, scoped, tag = 'scoped memory for msssim_loss_forward.1']
    #allocation15 [shape = 'u8[8192]{0}', space=vmem, size = 0x2000, scoped, tag = 'input window, operand 8, single buffered']
    #allocation16 [shape = 'u8[12288]{0}', space=vmem, size = 0x3000, scoped, tag = 'input window, operand 9, single buffered']
    #allocation17 [shape = 's32[1]{0}', space=sflag, size = 0x4, scoped, tag = 'scoped memory for msssim_loss_forward.1']
    #allocation18 [shape = 'u8[1024]{0}', space=vmem, size = 0x400, scoped, tag = 'input window, operand 10, single buffered']
    #allocation19 [shape = 'u8[8192]{0}', space=vmem, size = 0x2000, scoped, tag = 'input window, operand 11, single buffered']
    #allocation20 [shape = 's32[1]{0}', space=sflag, size = 0x4, scoped, tag = 'scoped memory for msssim_loss_forward.1']
    #allocation21 [shape = 'u8[98304]{0}', space=vmem, size = 0x18000, scoped, tag = 'input window, operand 12, single buffered']
    #allocation22 [shape = 'u8[98304]{0}', space=vmem, size = 0x18000, scoped, tag = 'input window, operand 13, single buffered']
    #allocation23 [shape = 's32[1]{0}', space=sflag, size = 0x4, scoped, tag = 'scoped memory for msssim_loss_forward.1']
    #allocation24 [shape = 'u8[24576]{0}', space=vmem, size = 0x6000, scoped, tag = 'input window, operand 14, single buffered']
    #allocation25 [shape = 'u8[49152]{0}', space=vmem, size = 0xc000, scoped, tag = 'input window, operand 15, single buffered']
    #allocation26 [shape = 's32[1]{0}', space=sflag, size = 0x4, scoped, tag = 'scoped memory for msssim_loss_forward.1']
    #allocation27 [shape = 'u8[12288]{0}', space=vmem, size = 0x3000, scoped, tag = 'input window, operand 16, single buffered']
    #allocation28 [shape = 'u8[24576]{0}', space=vmem, size = 0x6000, scoped, tag = 'input window, operand 17, single buffered']
    #allocation29 [shape = 's32[1]{0}', space=sflag, size = 0x4, scoped, tag = 'scoped memory for msssim_loss_forward.1']
    #allocation30 [shape = 'u8[8192]{0}', space=vmem, size = 0x2000, scoped, tag = 'input window, operand 18, single buffered']
    #allocation31 [shape = 'u8[12288]{0}', space=vmem, size = 0x3000, scoped, tag = 'input window, operand 19, single buffered']
    #allocation32 [shape = 's32[1]{0}', space=sflag, size = 0x4, scoped, tag = 'scoped memory for msssim_loss_forward.1']
    %25 = vsyncpa [#allocation3], 0
    %s26 = scalar_lea.sflag [#allocation3], 1
    %27 = vsyncpa %s26, 0
    %28 = vsyncpa [#allocation5], 0
    %s29 = scalar_lea.sflag [#allocation5], 1
    %30 = vsyncpa %s29, 0
    %31 = vsyncpa [#allocation8], 0
    %32 = vsyncpa [#allocation11], 0
    %33 = vsyncpa [#allocation14], 0
    %34 = vsyncpa [#allocation17], 0
    %35 = vsyncpa [#allocation20], 0
    %36 = vsyncpa [#allocation23], 0
    %37 = vsyncpa [#allocation26], 0
    %38 = vsyncpa [#allocation29], 0
    %39 = vsyncpa [#allocation32], 0
    loop: start=0, step=1, limit=8
    $region2: #{msssim_loss_forward.1} parent=1 // loop_pre_header
      _
    $region3: #{msssim_loss_forward.1} parent=1 // loop_header
      %s41 = sphi 0, %s45
      %p42 = scmp.ge.s32.totalorder %s41, 8
      %s48 = sphi 0, %s60
      %s49 = sphi 0, %s56
      %s50 = sphi 0, %s48
      %s51 = sphi 0, %s49
      %s52 = sphi 0, %s50
      %s53 = sphi 0, %s51
      %s65 = sphi 0, %s67
      %s68 = sphi 0, %s65
      %s69 = sphi 0, %s68
      %s85 = sphi 0, %s69
      %s93 = sphi 0, %s95
      %s96 = sphi 0, %s93
      %s97 = sphi 0, %s96
      %s113 = sphi 0, %s97
      %s117 = sphi 0, %s117
      %s119 = sphi 0, %s117
      %s120 = sphi 0, %s119
      %s134 = sphi 0, %s120
      %s138 = sphi 0, %s138
      %s140 = sphi 0, %s138
      %s141 = sphi 0, %s140
      %s155 = sphi 0, %s141
      %s159 = sphi 0, %s159
      %s161 = sphi 0, %s159
      %s162 = sphi 0, %s161
      %s176 = sphi 0, %s162
      %s180 = sphi 0, %s180
      %s182 = sphi 0, %s180
      %s183 = sphi 0, %s182
      %s197 = sphi 0, %s183
      %s201 = sphi 0, %s201
      %s203 = sphi 0, %s201
      %s204 = sphi 0, %s203
      %s218 = sphi 0, %s204
      %s222 = sphi 0, %s222
      %s224 = sphi 0, %s222
      %s225 = sphi 0, %s224
      %s239 = sphi 0, %s225
      %s243 = sphi 0, %s243
      %s245 = sphi 0, %s243
      %s246 = sphi 0, %s245
      %s260 = sphi 0, %s246
      %s264 = sphi 0, %s264
      %s266 = sphi 0, %s264
      %s267 = sphi 0, %s266
      %s281 = sphi 0, %s267
      %s285 = sphi 0, %s285
      %s287 = sphi 0, %s285
      %s288 = sphi 0, %s287
      %s302 = sphi 0, %s288
      %s306 = sphi 0, %s306
      %s308 = sphi 0, %s306
      %s309 = sphi 0, %s308
      %s323 = sphi 0, %s309
      %s327 = sphi 0, %s327
      %s329 = sphi 0, %s327
      %s330 = sphi 0, %s329
      %s344 = sphi 0, %s330
      %s348 = sphi 0, %s348
      %s350 = sphi 0, %s348
      %s351 = sphi 0, %s350
      %s365 = sphi 0, %s351
      %s369 = sphi 0, %s369
      %s371 = sphi 0, %s369
      %s372 = sphi 0, %s371
      %s386 = sphi 0, %s372
      %s390 = sphi 0, %s390
      %s392 = sphi 0, %s390
      %s393 = sphi 0, %s392
      %s407 = sphi 0, %s393
      %s411 = sphi 0, %s411
      %s413 = sphi 0, %s411
      %s414 = sphi 0, %s413
      %s428 = sphi 0, %s414
      %s432 = sphi 0, %s432
      %s434 = sphi 0, %s432
      %s435 = sphi 0, %s434
      %s449 = sphi 0, %s435
      %s453 = sphi 0, %s453
      %s455 = sphi 0, %s453
      %s456 = sphi 0, %s455
      %s470 = sphi 0, %s456
      %s474 = sphi 0, %s474
      %s476 = sphi 0, %s474
      %s477 = sphi 0, %s476
      %s491 = sphi 0, %s477
      %s499 = sphi 0, %s501
      %s502 = sphi 0, %s499
      %s503 = sphi 0, %s502
      %s519 = sphi 0, %s503
    $region4: #{msssim_loss_forward.1} parent=1 // loop_header_branch
      %44 = sbr.rel (%p42) target = $region8
    $region5: #{msssim_loss_forward.1} parent=1 // loop_body
      %s46 = ssub.s32 %s41, 1
      %s47 = ssub.s32 %s41, 2
      %s54 = sadd.s32 1, %s49
      %p55 = scmp.ge.s32.totalorder %s54, 3
      %s56 = scalar_select %p55, 0, %s54
      %s57 = sadd.s32 1, %s48
      %s58 = scalar_select %p55, %s57, %s48
      %p59 = scmp.ge.s32.totalorder %s58, 2
      %s60 = scalar_select %p59, 0, %s58
      %s61 = ssub.s32 %s48, %s60
      %s62 = ssub.s32 %s49, %s56
      %s63 = sor.u32 %s61, %s62
      %p64 = scmp.eq.s32.totalorder %s63, 0
      %s66 = sadd.s32 %s65, 1
      %s67 = scalar_select %p64, %s65, %s66
      %p70 = pneg %p64
      %p71 = scmp.eq.s32.totalorder %s41, 5
      %p72 = por %p70, %p71
      %p73 = scmp.ne.s32.totalorder %s65, %s68
      %p74 = scmp.eq.s32.totalorder %s41, 0
      %p75 = por %p73, %p74
      %p76 = scmp.ne.s32.totalorder %s65, %s68
      %p77 = scmp.eq.s32.totalorder %s46, 5
      %p78 = por %p76, %p77
      %p79 = scmp.ne.s32.totalorder %s68, %s69
      %p80 = scmp.eq.s32.totalorder %s46, 0
      %p81 = por %p79, %p80
      %p82 = scmp.ne.s32.totalorder %s68, %s69
      %p83 = scmp.eq.s32.totalorder %s47, 5
      %p84 = por %p82, %p83
      %p86 = scmp.ne.s32.totalorder %s69, %s85
      %p87 = scmp.eq.s32.totalorder %s47, 0
      %p88 = por %p86, %p87
      %s89 = ssub.s32 %s48, %s60
      %s90 = ssub.s32 %s49, %s56
      %s91 = sor.u32 %s89, %s90
      %p92 = scmp.eq.s32.totalorder %s91, 0
      %s94 = sadd.s32 %s93, 1
      %s95 = scalar_select %p92, %s93, %s94
      %p98 = pneg %p92
      %p99 = scmp.eq.s32.totalorder %s41, 5
      %p100 = por %p98, %p99
      %p101 = scmp.ne.s32.totalorder %s93, %s96
      %p102 = scmp.eq.s32.totalorder %s41, 0
      %p103 = por %p101, %p102
      %p104 = scmp.ne.s32.totalorder %s93, %s96
      %p105 = scmp.eq.s32.totalorder %s46, 5
      %p106 = por %p104, %p105
      %p107 = scmp.ne.s32.totalorder %s96, %s97
      %p108 = scmp.eq.s32.totalorder %s46, 0
      %p109 = por %p107, %p108
      %p110 = scmp.ne.s32.totalorder %s96, %s97
      %p111 = scmp.eq.s32.totalorder %s47, 5
      %p112 = por %p110, %p111
      %p114 = scmp.ne.s32.totalorder %s97, %s113
      %p115 = scmp.eq.s32.totalorder %s47, 0
      %p116 = por %p114, %p115
      %s118 = sadd.s32 %s117, 1
      %p121 = scmp.eq.s32.totalorder %s41, 5
      %p122 = scmp.ne.s32.totalorder %s117, %s119
      %p123 = scmp.eq.s32.totalorder %s41, 0
      %p124 = por %p122, %p123
      %p125 = scmp.ne.s32.totalorder %s117, %s119
      %p126 = scmp.eq.s32.totalorder %s46, 5
      %p127 = por %p125, %p126
      %p128 = scmp.ne.s32.totalorder %s119, %s120
      %p129 = scmp.eq.s32.totalorder %s46, 0
      %p130 = por %p128, %p129
      %p131 = scmp.ne.s32.totalorder %s119, %s120
      %p132 = scmp.eq.s32.totalorder %s47, 5
      %p133 = por %p131, %p132
      %p135 = scmp.ne.s32.totalorder %s120, %s134
      %p136 = scmp.eq.s32.totalorder %s47, 0
      %p137 = por %p135, %p136
      %s139 = sadd.s32 %s138, 1
      %p142 = scmp.eq.s32.totalorder %s41, 5
      %p143 = scmp.ne.s32.totalorder %s138, %s140
      %p144 = scmp.eq.s32.totalorder %s41, 0
      %p145 = por %p143, %p144
      %p146 = scmp.ne.s32.totalorder %s138, %s140
      %p147 = scmp.eq.s32.totalorder %s46, 5
      %p148 = por %p146, %p147
      %p149 = scmp.ne.s32.totalorder %s140, %s141
      %p150 = scmp.eq.s32.totalorder %s46, 0
      %p151 = por %p149, %p150
      %p152 = scmp.ne.s32.totalorder %s140, %s141
      %p153 = scmp.eq.s32.totalorder %s47, 5
      %p154 = por %p152, %p153
      %p156 = scmp.ne.s32.totalorder %s141, %s155
      %p157 = scmp.eq.s32.totalorder %s47, 0
      %p158 = por %p156, %p157
      %s160 = sadd.s32 %s159, 1
      %p163 = scmp.eq.s32.totalorder %s41, 5
      %p164 = scmp.ne.s32.totalorder %s159, %s161
      %p165 = scmp.eq.s32.totalorder %s41, 0
      %p166 = por %p164, %p165
      %p167 = scmp.ne.s32.totalorder %s159, %s161
      %p168 = scmp.eq.s32.totalorder %s46, 5
      %p169 = por %p167, %p168
      %p170 = scmp.ne.s32.totalorder %s161, %s162
      %p171 = scmp.eq.s32.totalorder %s46, 0
      %p172 = por %p170, %p171
      %p173 = scmp.ne.s32.totalorder %s161, %s162
      %p174 = scmp.eq.s32.totalorder %s47, 5
      %p175 = por %p173, %p174
      %p177 = scmp.ne.s32.totalorder %s162, %s176
      %p178 = scmp.eq.s32.totalorder %s47, 0
      %p179 = por %p177, %p178
      %s181 = sadd.s32 %s180, 1
      %p184 = scmp.eq.s32.totalorder %s41, 5
      %p185 = scmp.ne.s32.totalorder %s180, %s182
      %p186 = scmp.eq.s32.totalorder %s41, 0
      %p187 = por %p185, %p186
      %p188 = scmp.ne.s32.totalorder %s180, %s182
      %p189 = scmp.eq.s32.totalorder %s46, 5
      %p190 = por %p188, %p189
      %p191 = scmp.ne.s32.totalorder %s182, %s183
      %p192 = scmp.eq.s32.totalorder %s46, 0
      %p193 = por %p191, %p192
      %p194 = scmp.ne.s32.totalorder %s182, %s183
      %p195 = scmp.eq.s32.totalorder %s47, 5
      %p196 = por %p194, %p195
      %p198 = scmp.ne.s32.totalorder %s183, %s197
      %p199 = scmp.eq.s32.totalorder %s47, 0
      %p200 = por %p198, %p199
      %s202 = sadd.s32 %s201, 1
      %p205 = scmp.eq.s32.totalorder %s41, 5
      %p206 = scmp.ne.s32.totalorder %s201, %s203
      %p207 = scmp.eq.s32.totalorder %s41, 0
      %p208 = por %p206, %p207
      %p209 = scmp.ne.s32.totalorder %s201, %s203
      %p210 = scmp.eq.s32.totalorder %s46, 5
      %p211 = por %p209, %p210
      %p212 = scmp.ne.s32.totalorder %s203, %s204
      %p213 = scmp.eq.s32.totalorder %s46, 0
      %p214 = por %p212, %p213
      %p215 = scmp.ne.s32.totalorder %s203, %s204
      %p216 = scmp.eq.s32.totalorder %s47, 5
      %p217 = por %p215, %p216
      %p219 = scmp.ne.s32.totalorder %s204, %s218
      %p220 = scmp.eq.s32.totalorder %s47, 0
      %p221 = por %p219, %p220
      %s223 = sadd.s32 %s222, 1
      %p226 = scmp.eq.s32.totalorder %s41, 5
      %p227 = scmp.ne.s32.totalorder %s222, %s224
      %p228 = scmp.eq.s32.totalorder %s41, 0
      %p229 = por %p227, %p228
      %p230 = scmp.ne.s32.totalorder %s222, %s224
      %p231 = scmp.eq.s32.totalorder %s46, 5
      %p232 = por %p230, %p231
      %p233 = scmp.ne.s32.totalorder %s224, %s225
      %p234 = scmp.eq.s32.totalorder %s46, 0
      %p235 = por %p233, %p234
      %p236 = scmp.ne.s32.totalorder %s224, %s225
      %p237 = scmp.eq.s32.totalorder %s47, 5
      %p238 = por %p236, %p237
      %p240 = scmp.ne.s32.totalorder %s225, %s239
      %p241 = scmp.eq.s32.totalorder %s47, 0
      %p242 = por %p240, %p241
      %s244 = sadd.s32 %s243, 1
      %p247 = scmp.eq.s32.totalorder %s41, 5
      %p248 = scmp.ne.s32.totalorder %s243, %s245
      %p249 = scmp.eq.s32.totalorder %s41, 0
      %p250 = por %p248, %p249
      %p251 = scmp.ne.s32.totalorder %s243, %s245
      %p252 = scmp.eq.s32.totalorder %s46, 5
      %p253 = por %p251, %p252
      %p254 = scmp.ne.s32.totalorder %s245, %s246
      %p255 = scmp.eq.s32.totalorder %s46, 0
      %p256 = por %p254, %p255
      %p257 = scmp.ne.s32.totalorder %s245, %s246
      %p258 = scmp.eq.s32.totalorder %s47, 5
      %p259 = por %p257, %p258
      %p261 = scmp.ne.s32.totalorder %s246, %s260
      %p262 = scmp.eq.s32.totalorder %s47, 0
      %p263 = por %p261, %p262
      %s265 = sadd.s32 %s264, 1
      %p268 = scmp.eq.s32.totalorder %s41, 5
      %p269 = scmp.ne.s32.totalorder %s264, %s266
      %p270 = scmp.eq.s32.totalorder %s41, 0
      %p271 = por %p269, %p270
      %p272 = scmp.ne.s32.totalorder %s264, %s266
      %p273 = scmp.eq.s32.totalorder %s46, 5
      %p274 = por %p272, %p273
      %p275 = scmp.ne.s32.totalorder %s266, %s267
      %p276 = scmp.eq.s32.totalorder %s46, 0
      %p277 = por %p275, %p276
      %p278 = scmp.ne.s32.totalorder %s266, %s267
      %p279 = scmp.eq.s32.totalorder %s47, 5
      %p280 = por %p278, %p279
      %p282 = scmp.ne.s32.totalorder %s267, %s281
      %p283 = scmp.eq.s32.totalorder %s47, 0
      %p284 = por %p282, %p283
      %s286 = sadd.s32 %s285, 1
      %p289 = scmp.eq.s32.totalorder %s41, 5
      %p290 = scmp.ne.s32.totalorder %s285, %s287
      %p291 = scmp.eq.s32.totalorder %s41, 0
      %p292 = por %p290, %p291
      %p293 = scmp.ne.s32.totalorder %s285, %s287
      %p294 = scmp.eq.s32.totalorder %s46, 5
      %p295 = por %p293, %p294
      %p296 = scmp.ne.s32.totalorder %s287, %s288
      %p297 = scmp.eq.s32.totalorder %s46, 0
      %p298 = por %p296, %p297
      %p299 = scmp.ne.s32.totalorder %s287, %s288
      %p300 = scmp.eq.s32.totalorder %s47, 5
      %p301 = por %p299, %p300
      %p303 = scmp.ne.s32.totalorder %s288, %s302
      %p304 = scmp.eq.s32.totalorder %s47, 0
      %p305 = por %p303, %p304
      %s307 = sadd.s32 %s306, 1
      %p310 = scmp.eq.s32.totalorder %s41, 5
      %p311 = scmp.ne.s32.totalorder %s306, %s308
      %p312 = scmp.eq.s32.totalorder %s41, 0
      %p313 = por %p311, %p312
      %p314 = scmp.ne.s32.totalorder %s306, %s308
      %p315 = scmp.eq.s32.totalorder %s46, 5
      %p316 = por %p314, %p315
      %p317 = scmp.ne.s32.totalorder %s308, %s309
      %p318 = scmp.eq.s32.totalorder %s46, 0
      %p319 = por %p317, %p318
      %p320 = scmp.ne.s32.totalorder %s308, %s309
      %p321 = scmp.eq.s32.totalorder %s47, 5
      %p322 = por %p320, %p321
      %p324 = scmp.ne.s32.totalorder %s309, %s323
      %p325 = scmp.eq.s32.totalorder %s47, 0
      %p326 = por %p324, %p325
      %s328 = sadd.s32 %s327, 1
      %p331 = scmp.eq.s32.totalorder %s41, 5
      %p332 = scmp.ne.s32.totalorder %s327, %s329
      %p333 = scmp.eq.s32.totalorder %s41, 0
      %p334 = por %p332, %p333
      %p335 = scmp.ne.s32.totalorder %s327, %s329
      %p336 = scmp.eq.s32.totalorder %s46, 5
      %p337 = por %p335, %p336
      %p338 = scmp.ne.s32.totalorder %s329, %s330
      %p339 = scmp.eq.s32.totalorder %s46, 0
      %p340 = por %p338, %p339
      %p341 = scmp.ne.s32.totalorder %s329, %s330
      %p342 = scmp.eq.s32.totalorder %s47, 5
      %p343 = por %p341, %p342
      %p345 = scmp.ne.s32.totalorder %s330, %s344
      %p346 = scmp.eq.s32.totalorder %s47, 0
      %p347 = por %p345, %p346
      %s349 = sadd.s32 %s348, 1
      %p352 = scmp.eq.s32.totalorder %s41, 5
      %p353 = scmp.ne.s32.totalorder %s348, %s350
      %p354 = scmp.eq.s32.totalorder %s41, 0
      %p355 = por %p353, %p354
      %p356 = scmp.ne.s32.totalorder %s348, %s350
      %p357 = scmp.eq.s32.totalorder %s46, 5
      %p358 = por %p356, %p357
      %p359 = scmp.ne.s32.totalorder %s350, %s351
      %p360 = scmp.eq.s32.totalorder %s46, 0
      %p361 = por %p359, %p360
      %p362 = scmp.ne.s32.totalorder %s350, %s351
      %p363 = scmp.eq.s32.totalorder %s47, 5
      %p364 = por %p362, %p363
      %p366 = scmp.ne.s32.totalorder %s351, %s365
      %p367 = scmp.eq.s32.totalorder %s47, 0
      %p368 = por %p366, %p367
      %s370 = sadd.s32 %s369, 1
      %p373 = scmp.eq.s32.totalorder %s41, 5
      %p374 = scmp.ne.s32.totalorder %s369, %s371
      %p375 = scmp.eq.s32.totalorder %s41, 0
      %p376 = por %p374, %p375
      %p377 = scmp.ne.s32.totalorder %s369, %s371
      %p378 = scmp.eq.s32.totalorder %s46, 5
      %p379 = por %p377, %p378
      %p380 = scmp.ne.s32.totalorder %s371, %s372
      %p381 = scmp.eq.s32.totalorder %s46, 0
      %p382 = por %p380, %p381
      %p383 = scmp.ne.s32.totalorder %s371, %s372
      %p384 = scmp.eq.s32.totalorder %s47, 5
      %p385 = por %p383, %p384
      %p387 = scmp.ne.s32.totalorder %s372, %s386
      %p388 = scmp.eq.s32.totalorder %s47, 0
      %p389 = por %p387, %p388
      %s391 = sadd.s32 %s390, 1
      %p394 = scmp.eq.s32.totalorder %s41, 5
      %p395 = scmp.ne.s32.totalorder %s390, %s392
      %p396 = scmp.eq.s32.totalorder %s41, 0
      %p397 = por %p395, %p396
      %p398 = scmp.ne.s32.totalorder %s390, %s392
      %p399 = scmp.eq.s32.totalorder %s46, 5
      %p400 = por %p398, %p399
      %p401 = scmp.ne.s32.totalorder %s392, %s393
      %p402 = scmp.eq.s32.totalorder %s46, 0
      %p403 = por %p401, %p402
      %p404 = scmp.ne.s32.totalorder %s392, %s393
      %p405 = scmp.eq.s32.totalorder %s47, 5
      %p406 = por %p404, %p405
      %p408 = scmp.ne.s32.totalorder %s393, %s407
      %p409 = scmp.eq.s32.totalorder %s47, 0
      %p410 = por %p408, %p409
      %s412 = sadd.s32 %s411, 1
      %p415 = scmp.eq.s32.totalorder %s41, 5
      %p416 = scmp.ne.s32.totalorder %s411, %s413
      %p417 = scmp.eq.s32.totalorder %s41, 0
      %p418 = por %p416, %p417
      %p419 = scmp.ne.s32.totalorder %s411, %s413
      %p420 = scmp.eq.s32.totalorder %s46, 5
      %p421 = por %p419, %p420
      %p422 = scmp.ne.s32.totalorder %s413, %s414
      %p423 = scmp.eq.s32.totalorder %s46, 0
      %p424 = por %p422, %p423
      %p425 = scmp.ne.s32.totalorder %s413, %s414
      %p426 = scmp.eq.s32.totalorder %s47, 5
      %p427 = por %p425, %p426
      %p429 = scmp.ne.s32.totalorder %s414, %s428
      %p430 = scmp.eq.s32.totalorder %s47, 0
      %p431 = por %p429, %p430
      %s433 = sadd.s32 %s432, 1
      %p436 = scmp.eq.s32.totalorder %s41, 5
      %p437 = scmp.ne.s32.totalorder %s432, %s434
      %p438 = scmp.eq.s32.totalorder %s41, 0
      %p439 = por %p437, %p438
      %p440 = scmp.ne.s32.totalorder %s432, %s434
      %p441 = scmp.eq.s32.totalorder %s46, 5
      %p442 = por %p440, %p441
      %p443 = scmp.ne.s32.totalorder %s434, %s435
      %p444 = scmp.eq.s32.totalorder %s46, 0
      %p445 = por %p443, %p444
      %p446 = scmp.ne.s32.totalorder %s434, %s435
      %p447 = scmp.eq.s32.totalorder %s47, 5
      %p448 = por %p446, %p447
      %p450 = scmp.ne.s32.totalorder %s435, %s449
      %p451 = scmp.eq.s32.totalorder %s47, 0
      %p452 = por %p450, %p451
      %s454 = sadd.s32 %s453, 1
      %p457 = scmp.eq.s32.totalorder %s41, 5
      %p458 = scmp.ne.s32.totalorder %s453, %s455
      %p459 = scmp.eq.s32.totalorder %s41, 0
      %p460 = por %p458, %p459
      %p461 = scmp.ne.s32.totalorder %s453, %s455
      %p462 = scmp.eq.s32.totalorder %s46, 5
      %p463 = por %p461, %p462
      %p464 = scmp.ne.s32.totalorder %s455, %s456
      %p465 = scmp.eq.s32.totalorder %s46, 0
      %p466 = por %p464, %p465
      %p467 = scmp.ne.s32.totalorder %s455, %s456
      %p468 = scmp.eq.s32.totalorder %s47, 5
      %p469 = por %p467, %p468
      %p471 = scmp.ne.s32.totalorder %s456, %s470
      %p472 = scmp.eq.s32.totalorder %s47, 0
      %p473 = por %p471, %p472
      %s475 = sadd.s32 %s474, 1
      %p478 = scmp.eq.s32.totalorder %s41, 5
      %p479 = scmp.ne.s32.totalorder %s474, %s476
      %p480 = scmp.eq.s32.totalorder %s41, 0
      %p481 = por %p479, %p480
      %p482 = scmp.ne.s32.totalorder %s474, %s476
      %p483 = scmp.eq.s32.totalorder %s46, 5
      %p484 = por %p482, %p483
      %p485 = scmp.ne.s32.totalorder %s476, %s477
      %p486 = scmp.eq.s32.totalorder %s46, 0
      %p487 = por %p485, %p486
      %p488 = scmp.ne.s32.totalorder %s476, %s477
      %p489 = scmp.eq.s32.totalorder %s47, 5
      %p490 = por %p488, %p489
      %p492 = scmp.ne.s32.totalorder %s477, %s491
      %p493 = scmp.eq.s32.totalorder %s47, 0
      %p494 = por %p492, %p493
      %s495 = ssub.s32 %s48, %s60
      %s496 = ssub.s32 %s49, %s56
      %s497 = sor.u32 %s495, %s496
      %p498 = scmp.eq.s32.totalorder %s497, 0
      %s500 = sadd.s32 %s499, 1
      %s501 = scalar_select %p498, %s499, %s500
      %p504 = pneg %p498
      %p505 = scmp.eq.s32.totalorder %s41, 5
      %p506 = por %p504, %p505
      %p507 = scmp.ne.s32.totalorder %s499, %s502
      %p508 = scmp.eq.s32.totalorder %s41, 0
      %p509 = por %p507, %p508
      %p510 = scmp.ne.s32.totalorder %s499, %s502
      %p511 = scmp.eq.s32.totalorder %s46, 5
      %p512 = por %p510, %p511
      %p513 = scmp.ne.s32.totalorder %s502, %s503
      %p514 = scmp.eq.s32.totalorder %s46, 0
      %p515 = por %p513, %p514
      %p516 = scmp.ne.s32.totalorder %s502, %s503
      %p517 = scmp.eq.s32.totalorder %s47, 5
      %p518 = por %p516, %p517
      %p520 = scmp.ne.s32.totalorder %s503, %s519
      %p521 = scmp.eq.s32.totalorder %s47, 0
      %p522 = por %p520, %p521
      %p523 = scmp.le.s32.totalorder 1, %s41
      %p524 = scmp.lt.s32.totalorder %s41, 7
      %p525 = pnand %p523, %p524
      %p526 = pneg %p525
      // Predicated region
      $region9: #{msssim_loss_forward.1} parent=5 // pred_check
        _
      $region10: #{msssim_loss_forward.1} parent=5 // pred_check_branch
        %528 = sbr.rel (%p525) target = $region12
      $region11: #{msssim_loss_forward.1} parent=5 // pred_region
        %s529 = ssub.s32 %s41, 1
        // Predicated region
        $region13: #{msssim_loss_forward.1} parent=11 // pred_check
          %p530 = pneg %p130
        $region14: #{msssim_loss_forward.1} parent=11 // pred_check_branch
          %532 = sbr.rel (%p530) target = $region16
        $region15: #{msssim_loss_forward.1} parent=11 // pred_region
          %s534 = ssub.s32 5888, 5888
          %535 = vsyncadd [#allocation5], %s534
          %s536 = sshll.u32 [#allocation6], 4
          %s537 = int_to_ptr.vmem [resolvable:$true] %s536
          %542 = dma.hbm_to_vmem [thread:$0]  %s2, 5888, %s537, [#allocation5], 256, 256, 16
        $region16: #{msssim_loss_forward.1} parent=11 // pred_fallthru
          _
        // Predicated region
        $region17: #{msssim_loss_forward.1} parent=11 // pred_check
          %p543 = pneg %p151
        $region18: #{msssim_loss_forward.1} parent=11 // pred_check_branch
          %545 = sbr.rel (%p543) target = $region20
        $region19: #{msssim_loss_forward.1} parent=11 // pred_region
          %s547 = ssub.s32 6144, 6144
          %548 = vsyncadd [#allocation8], %s547
          %s549 = sshll.u32 [#allocation7], 4
          %s550 = int_to_ptr.vmem [resolvable:$true] %s549
          %555 = dma.hbm_to_vmem [thread:$0]  %s3, 6144, %s550, [#allocation8], 256, 256, 16
        $region20: #{msssim_loss_forward.1} parent=11 // pred_fallthru
          _
        // Predicated region
        $region21: #{msssim_loss_forward.1} parent=11 // pred_check
          %p556 = pneg %p172
        $region22: #{msssim_loss_forward.1} parent=11 // pred_check_branch
          %558 = sbr.rel (%p556) target = $region24
        $region23: #{msssim_loss_forward.1} parent=11 // pred_region
          %s560 = ssub.s32 1408, 1408
          %561 = vsyncadd [#allocation8], %s560
          %s562 = sshll.u32 [#allocation9], 4
          %s563 = int_to_ptr.vmem [resolvable:$true] %s562
          %568 = dma.hbm_to_vmem [thread:$0]  %s4, 1408, %s563, [#allocation8], 128, 128, 8
        $region24: #{msssim_loss_forward.1} parent=11 // pred_fallthru
          _
        // Predicated region
        $region25: #{msssim_loss_forward.1} parent=11 // pred_check
          %p569 = pneg %p193
        $region26: #{msssim_loss_forward.1} parent=11 // pred_check_branch
          %571 = sbr.rel (%p569) target = $region28
        $region27: #{msssim_loss_forward.1} parent=11 // pred_region
          %s573 = ssub.s32 1536, 1536
          %574 = vsyncadd [#allocation11], %s573
          %s575 = sshll.u32 [#allocation10], 4
          %s576 = int_to_ptr.vmem [resolvable:$true] %s575
          %581 = dma.hbm_to_vmem [thread:$0]  %s5, 1536, %s576, [#allocation11], 128, 128, 8
        $region28: #{msssim_loss_forward.1} parent=11 // pred_fallthru
          _
        // Predicated region
        $region29: #{msssim_loss_forward.1} parent=11 // pred_check
          %p582 = pneg %p214
        $region30: #{msssim_loss_forward.1} parent=11 // pred_check_branch
          %584 = sbr.rel (%p582) target = $region32
        $region31: #{msssim_loss_forward.1} parent=11 // pred_region
          %s586 = ssub.s32 640, 640
          %587 = vsyncadd [#allocation11], %s586
          %s588 = sshll.u32 [#allocation12], 4
          %s589 = int_to_ptr.vmem [resolvable:$true] %s588
          %594 = dma.hbm_to_vmem [thread:$0]  %s6, 640, %s589, [#allocation11], 128, 128, 8
        $region32: #{msssim_loss_forward.1} parent=11 // pred_fallthru
          _
        // Predicated region
        $region33: #{msssim_loss_forward.1} parent=11 // pred_check
          %p595 = pneg %p235
        $region34: #{msssim_loss_forward.1} parent=11 // pred_check_branch
          %597 = sbr.rel (%p595) target = $region36
        $region35: #{msssim_loss_forward.1} parent=11 // pred_region
          %s599 = ssub.s32 768, 768
          %600 = vsyncadd [#allocation14], %s599
          %s601 = sshll.u32 [#allocation13], 4
          %s602 = int_to_ptr.vmem [resolvable:$true] %s601
          %607 = dma.hbm_to_vmem [thread:$0]  %s7, 768, %s602, [#allocation14], 128, 128, 8
        $region36: #{msssim_loss_forward.1} parent=11 // pred_fallthru
          _
        // Predicated region
        $region37: #{msssim_loss_forward.1} parent=11 // pred_check
          %p608 = pneg %p256
        $region38: #{msssim_loss_forward.1} parent=11 // pred_check_branch
          %610 = sbr.rel (%p608) target = $region40
        $region39: #{msssim_loss_forward.1} parent=11 // pred_region
          %s612 = ssub.s32 256, 256
          %613 = vsyncadd [#allocation14], %s612
          %s614 = sshll.u32 [#allocation15], 4
          %s615 = int_to_ptr.vmem [resolvable:$true] %s614
          %620 = dma.hbm_to_vmem [thread:$0]  %s8, 256, %s615, [#allocation14], 128, 128, 8
        $region40: #{msssim_loss_forward.1} parent=11 // pred_fallthru
          _
        // Predicated region
        $region41: #{msssim_loss_forward.1} parent=11 // pred_check
          %p621 = pneg %p277
        $region42: #{msssim_loss_forward.1} parent=11 // pred_check_branch
          %623 = sbr.rel (%p621) target = $region44
        $region43: #{msssim_loss_forward.1} parent=11 // pred_region
          %s625 = ssub.s32 384, 384
          %626 = vsyncadd [#allocation17], %s625
          %s627 = sshll.u32 [#allocation16], 4
          %s628 = int_to_ptr.vmem [resolvable:$true] %s627
          %633 = dma.hbm_to_vmem [thread:$0]  %s9, 384, %s628, [#allocation17], 128, 128, 8
        $region44: #{msssim_loss_forward.1} parent=11 // pred_fallthru
          _
        // Predicated region
        $region45: #{msssim_loss_forward.1} parent=11 // pred_check
          %p634 = pneg %p298
        $region46: #{msssim_loss_forward.1} parent=11 // pred_check_branch
          %636 = sbr.rel (%p634) target = $region48
        $region47: #{msssim_loss_forward.1} parent=11 // pred_region
          %s638 = ssub.s32 32, 32
          %639 = vsyncadd [#allocation17], %s638
          %s641 = sshll.u32 [#allocation18], 4
          %s642 = int_to_ptr.vmem [resolvable:$true] %s641
          %644 = dma.hbm_to_vmem [thread:$0]  %s10, 32, %s642, [#allocation17]
        $region48: #{msssim_loss_forward.1} parent=11 // pred_fallthru
          _
        // Predicated region
        $region49: #{msssim_loss_forward.1} parent=11 // pred_check
          %p645 = pneg %p319
        $region50: #{msssim_loss_forward.1} parent=11 // pred_check_branch
          %647 = sbr.rel (%p645) target = $region52
        $region51: #{msssim_loss_forward.1} parent=11 // pred_region
          %s649 = ssub.s32 256, 256
          %650 = vsyncadd [#allocation20], %s649
          %s651 = sshll.u32 [#allocation19], 4
          %s652 = int_to_ptr.vmem [resolvable:$true] %s651
          %657 = dma.hbm_to_vmem [thread:$0]  %s11, 256, %s652, [#allocation20], 128, 128, 8
        $region52: #{msssim_loss_forward.1} parent=11 // pred_fallthru
          _
        // Predicated region
        $region53: #{msssim_loss_forward.1} parent=11 // pred_check
          %p658 = pneg %p340
        $region54: #{msssim_loss_forward.1} parent=11 // pred_check_branch
          %660 = sbr.rel (%p658) target = $region56
        $region55: #{msssim_loss_forward.1} parent=11 // pred_region
          %s662 = ssub.s32 3072, 3072
          %663 = vsyncadd [#allocation20], %s662
          %s664 = sshll.u32 [#allocation21], 4
          %s665 = int_to_ptr.vmem [resolvable:$true] %s664
          %670 = dma.hbm_to_vmem [thread:$0]  %s12, 3072, %s665, [#allocation20], 256, 256, 16
        $region56: #{msssim_loss_forward.1} parent=11 // pred_fallthru
          _
        // Predicated region
        $region57: #{msssim_loss_forward.1} parent=11 // pred_check
          %p671 = pneg %p361
        $region58: #{msssim_loss_forward.1} parent=11 // pred_check_branch
          %673 = sbr.rel (%p671) target = $region60
        $region59: #{msssim_loss_forward.1} parent=11 // pred_region
          %s675 = ssub.s32 3072, 3072
          %676 = vsyncadd [#allocation23], %s675
          %s677 = sshll.u32 [#allocation22], 4
          %s678 = int_to_ptr.vmem [resolvable:$true] %s677
          %683 = dma.hbm_to_vmem [thread:$0]  %s13, 3072, %s678, [#allocation23], 128, 128, 8
        $region60: #{msssim_loss_forward.1} parent=11 // pred_fallthru
          _
        // Predicated region
        $region61: #{msssim_loss_forward.1} parent=11 // pred_check
          %p684 = pneg %p382
        $region62: #{msssim_loss_forward.1} parent=11 // pred_check_branch
          %686 = sbr.rel (%p684) target = $region64
        $region63: #{msssim_loss_forward.1} parent=11 // pred_region
          %s688 = ssub.s32 768, 768
          %689 = vsyncadd [#allocation23], %s688
          %s690 = sshll.u32 [#allocation24], 4
          %s691 = int_to_ptr.vmem [resolvable:$true] %s690
          %696 = dma.hbm_to_vmem [thread:$0]  %s14, 768, %s691, [#allocation23], 128, 128, 8
        $region64: #{msssim_loss_forward.1} parent=11 // pred_fallthru
          _
        // Predicated region
        $region65: #{msssim_loss_forward.1} parent=11 // pred_check
          %p697 = pneg %p403
        $region66: #{msssim_loss_forward.1} parent=11 // pred_check_branch
          %699 = sbr.rel (%p697) target = $region68
        $region67: #{msssim_loss_forward.1} parent=11 // pred_region
          %s701 = ssub.s32 1536, 1536
          %702 = vsyncadd [#allocation26], %s701
          %s703 = sshll.u32 [#allocation25], 4
          %s704 = int_to_ptr.vmem [resolvable:$true] %s703
          %709 = dma.hbm_to_vmem [thread:$0]  %s15, 1536, %s704, [#allocation26], 128, 128, 8
        $region68: #{msssim_loss_forward.1} parent=11 // pred_fallthru
          _
        // Predicated region
        $region69: #{msssim_loss_forward.1} parent=11 // pred_check
          %p710 = pneg %p424
        $region70: #{msssim_loss_forward.1} parent=11 // pred_check_branch
          %712 = sbr.rel (%p710) target = $region72
        $region71: #{msssim_loss_forward.1} parent=11 // pred_region
          %s714 = ssub.s32 384, 384
          %715 = vsyncadd [#allocation26], %s714
          %s716 = sshll.u32 [#allocation27], 4
          %s717 = int_to_ptr.vmem [resolvable:$true] %s716
          %722 = dma.hbm_to_vmem [thread:$0]  %s16, 384, %s717, [#allocation26], 128, 128, 8
        $region72: #{msssim_loss_forward.1} parent=11 // pred_fallthru
          _
        // Predicated region
        $region73: #{msssim_loss_forward.1} parent=11 // pred_check
          %p723 = pneg %p445
        $region74: #{msssim_loss_forward.1} parent=11 // pred_check_branch
          %725 = sbr.rel (%p723) target = $region76
        $region75: #{msssim_loss_forward.1} parent=11 // pred_region
          %s727 = ssub.s32 768, 768
          %728 = vsyncadd [#allocation29], %s727
          %s729 = sshll.u32 [#allocation28], 4
          %s730 = int_to_ptr.vmem [resolvable:$true] %s729
          %735 = dma.hbm_to_vmem [thread:$0]  %s17, 768, %s730, [#allocation29], 128, 128, 8
        $region76: #{msssim_loss_forward.1} parent=11 // pred_fallthru
          _
        // Predicated region
        $region77: #{msssim_loss_forward.1} parent=11 // pred_check
          %p736 = pneg %p466
        $region78: #{msssim_loss_forward.1} parent=11 // pred_check_branch
          %738 = sbr.rel (%p736) target = $region80
        $region79: #{msssim_loss_forward.1} parent=11 // pred_region
          %s740 = ssub.s32 256, 256
          %741 = vsyncadd [#allocation29], %s740
          %s742 = sshll.u32 [#allocation30], 4
          %s743 = int_to_ptr.vmem [resolvable:$true] %s742
          %748 = dma.hbm_to_vmem [thread:$0]  %s18, 256, %s743, [#allocation29], 128, 128, 8
        $region80: #{msssim_loss_forward.1} parent=11 // pred_fallthru
          _
        // Predicated region
        $region81: #{msssim_loss_forward.1} parent=11 // pred_check
          %p749 = pneg %p487
        $region82: #{msssim_loss_forward.1} parent=11 // pred_check_branch
          %751 = sbr.rel (%p749) target = $region84
        $region83: #{msssim_loss_forward.1} parent=11 // pred_region
          %s753 = ssub.s32 384, 384
          %754 = vsyncadd [#allocation32], %s753
          %s755 = sshll.u32 [#allocation31], 4
          %s756 = int_to_ptr.vmem [resolvable:$true] %s755
          %761 = dma.hbm_to_vmem [thread:$0]  %s19, 384, %s756, [#allocation32], 128, 128, 8
        $region84: #{msssim_loss_forward.1} parent=11 // pred_fallthru
          _
      $region12: #{msssim_loss_forward.1} parent=5 // pred_fallthru
        _
      %p762 = scmp.lt.s32.totalorder %s41, 6
      // Predicated region
      $region85: #{msssim_loss_forward.1} parent=5 // pred_check
        %p763 = pneg %p762
      $region86: #{msssim_loss_forward.1} parent=5 // pred_check_branch
        %765 = sbr.rel (%p763) target = $region88
      $region87: #{msssim_loss_forward.1} parent=5 // pred_region
        // Predicated region
        $region89: #{msssim_loss_forward.1} parent=87 // pred_check
          %p766 = pneg %p75
        $region90: #{msssim_loss_forward.1} parent=87 // pred_check_branch
          %768 = sbr.rel (%p766) target = $region92
        $region91: #{msssim_loss_forward.1} parent=87 // pred_region
          %s769 = sand.u32 %s65, 1
          %s770 = scalar_lea.sflag [#allocation3], %s769
          %s771 = sand.u32 %s65, 1
          %s772 = smul.addr %s771, 384
          %s773 = scalar_lea.vmem [#allocation2], %s772
          %s775 = ssub.s32 6144, 6144
          %776 = vsyncadd %s770, %s775
          %s777 = smul.addr %s49, 48
          %s778 = smul.addr %s48, 144
          %s779 = sadd.s32 %s777, %s778
          %s780 = smul.addr %s779, 128
          %s781 = scalar_lea.hbm %s0, %s780
          %s782 = sshll.u32 %s773, 4
          %s783 = int_to_ptr.vmem [resolvable:$true] %s782
          %788 = dma.hbm_to_vmem [thread:$0]  %s781, 6144, %s783, %s770, 256, 256, 16
        $region92: #{msssim_loss_forward.1} parent=87 // pred_fallthru
          _
        // Predicated region
        $region93: #{msssim_loss_forward.1} parent=87 // pred_check
          %p789 = pneg %p103
        $region94: #{msssim_loss_forward.1} parent=87 // pred_check_branch
          %791 = sbr.rel (%p789) target = $region96
        $region95: #{msssim_loss_forward.1} parent=87 // pred_region
          %s792 = sand.u32 %s41, 1
          %s793 = scalar_lea.sflag [#allocation5], %s792
          %s794 = sand.u32 %s93, 1
          %s795 = smul.addr %s794, 384
          %s796 = scalar_lea.vmem [#allocation4], %s795
          %s798 = ssub.s32 6144, 6144
          %799 = vsyncadd %s793, %s798
          %s800 = smul.addr %s49, 48
          %s801 = smul.addr %s48, 144
          %s802 = sadd.s32 %s800, %s801
          %s803 = smul.addr %s802, 128
          %s804 = scalar_lea.hbm %s1, %s803
          %s805 = sshll.u32 %s796, 4
          %s806 = int_to_ptr.vmem [resolvable:$true] %s805
          %811 = dma.hbm_to_vmem [thread:$0]  %s804, 6144, %s806, %s793, 256, 256, 16
        $region96: #{msssim_loss_forward.1} parent=87 // pred_fallthru
          _
      $region88: #{msssim_loss_forward.1} parent=5 // pred_fallthru
        _
      %p812 = scmp.le.s32.totalorder 1, %s41
      %p813 = scmp.lt.s32.totalorder %s41, 7
      %p814 = pnand %p812, %p813
      %p815 = pneg %p814
      // Predicated region
      $region97: #{msssim_loss_forward.1} parent=5 // pred_check
        _
      $region98: #{msssim_loss_forward.1} parent=5 // pred_check_branch
        %817 = sbr.rel (%p814) target = $region100
      $region99: #{msssim_loss_forward.1} parent=5 // pred_region
        %s818 = ssub.s32 %s41, 1
        %s819 = sand.u32 %s68, 1
        %s820 = scalar_lea.sflag [#allocation3], %s819
        %s821 = sand.u32 %s68, 1
        %s822 = smul.addr %s821, 384
        %s823 = scalar_lea.vmem [#allocation2], %s822
        // Predicated region
        $region101: #{msssim_loss_forward.1} parent=99 // pred_check
          %p824 = pneg %p81
        $region102: #{msssim_loss_forward.1} parent=99 // pred_check_branch
          %826 = sbr.rel (%p824) target = $region104
        $region103: #{msssim_loss_forward.1} parent=99 // pred_region
          %827 = dma.done %s820, 6144
        $region104: #{msssim_loss_forward.1} parent=99 // pred_fallthru
          _
        %s828 = sand.u32 %s46, 1
        %s829 = scalar_lea.sflag [#allocation5], %s828
        %s830 = sand.u32 %s96, 1
        %s831 = smul.addr %s830, 384
        %s832 = scalar_lea.vmem [#allocation4], %s831
        // Predicated region
        $region105: #{msssim_loss_forward.1} parent=99 // pred_check
          %p833 = pneg %p109
        $region106: #{msssim_loss_forward.1} parent=99 // pred_check_branch
          %835 = sbr.rel (%p833) target = $region108
        $region107: #{msssim_loss_forward.1} parent=99 // pred_region
          %836 = dma.done %s829, 6144
        $region108: #{msssim_loss_forward.1} parent=99 // pred_fallthru
          _
        // Predicated region
        $region109: #{msssim_loss_forward.1} parent=99 // pred_check
          %p837 = pneg %p130
        $region110: #{msssim_loss_forward.1} parent=99 // pred_check_branch
          %839 = sbr.rel (%p837) target = $region112
        $region111: #{msssim_loss_forward.1} parent=99 // pred_region
          %840 = dma.done [#allocation5], 5888
        $region112: #{msssim_loss_forward.1} parent=99 // pred_fallthru
          _
        // Predicated region
        $region113: #{msssim_loss_forward.1} parent=99 // pred_check
          %p841 = pneg %p151
        $region114: #{msssim_loss_forward.1} parent=99 // pred_check_branch
          %843 = sbr.rel (%p841) target = $region116
        $region115: #{msssim_loss_forward.1} parent=99 // pred_region
          %844 = dma.done [#allocation8], 6144
        $region116: #{msssim_loss_forward.1} parent=99 // pred_fallthru
          _
        // Predicated region
        $region117: #{msssim_loss_forward.1} parent=99 // pred_check
          %p845 = pneg %p172
        $region118: #{msssim_loss_forward.1} parent=99 // pred_check_branch
          %847 = sbr.rel (%p845) target = $region120
        $region119: #{msssim_loss_forward.1} parent=99 // pred_region
          %848 = dma.done [#allocation8], 1408
        $region120: #{msssim_loss_forward.1} parent=99 // pred_fallthru
          _
        // Predicated region
        $region121: #{msssim_loss_forward.1} parent=99 // pred_check
          %p849 = pneg %p193
        $region122: #{msssim_loss_forward.1} parent=99 // pred_check_branch
          %851 = sbr.rel (%p849) target = $region124
        $region123: #{msssim_loss_forward.1} parent=99 // pred_region
          %852 = dma.done [#allocation11], 1536
        $region124: #{msssim_loss_forward.1} parent=99 // pred_fallthru
          _
        // Predicated region
        $region125: #{msssim_loss_forward.1} parent=99 // pred_check
          %p853 = pneg %p214
        $region126: #{msssim_loss_forward.1} parent=99 // pred_check_branch
          %855 = sbr.rel (%p853) target = $region128
        $region127: #{msssim_loss_forward.1} parent=99 // pred_region
          %856 = dma.done [#allocation11], 640
        $region128: #{msssim_loss_forward.1} parent=99 // pred_fallthru
          _
        // Predicated region
        $region129: #{msssim_loss_forward.1} parent=99 // pred_check
          %p857 = pneg %p235
        $region130: #{msssim_loss_forward.1} parent=99 // pred_check_branch
          %859 = sbr.rel (%p857) target = $region132
        $region131: #{msssim_loss_forward.1} parent=99 // pred_region
          %860 = dma.done [#allocation14], 768
        $region132: #{msssim_loss_forward.1} parent=99 // pred_fallthru
          _
        // Predicated region
        $region133: #{msssim_loss_forward.1} parent=99 // pred_check
          %p861 = pneg %p256
        $region134: #{msssim_loss_forward.1} parent=99 // pred_check_branch
          %863 = sbr.rel (%p861) target = $region136
        $region135: #{msssim_loss_forward.1} parent=99 // pred_region
          %864 = dma.done [#allocation14], 256
        $region136: #{msssim_loss_forward.1} parent=99 // pred_fallthru
          _
        // Predicated region
        $region137: #{msssim_loss_forward.1} parent=99 // pred_check
          %p865 = pneg %p277
        $region138: #{msssim_loss_forward.1} parent=99 // pred_check_branch
          %867 = sbr.rel (%p865) target = $region140
        $region139: #{msssim_loss_forward.1} parent=99 // pred_region
          %868 = dma.done [#allocation17], 384
        $region140: #{msssim_loss_forward.1} parent=99 // pred_fallthru
          _
        // Predicated region
        $region141: #{msssim_loss_forward.1} parent=99 // pred_check
          %p869 = pneg %p298
        $region142: #{msssim_loss_forward.1} parent=99 // pred_check_branch
          %871 = sbr.rel (%p869) target = $region144
        $region143: #{msssim_loss_forward.1} parent=99 // pred_region
          %872 = dma.done [#allocation17], 32
        $region144: #{msssim_loss_forward.1} parent=99 // pred_fallthru
          _
        // Predicated region
        $region145: #{msssim_loss_forward.1} parent=99 // pred_check
          %p873 = pneg %p319
        $region146: #{msssim_loss_forward.1} parent=99 // pred_check_branch
          %875 = sbr.rel (%p873) target = $region148
        $region147: #{msssim_loss_forward.1} parent=99 // pred_region
          %876 = dma.done [#allocation20], 256
        $region148: #{msssim_loss_forward.1} parent=99 // pred_fallthru
          _
        // Predicated region
        $region149: #{msssim_loss_forward.1} parent=99 // pred_check
          %p877 = pneg %p340
        $region150: #{msssim_loss_forward.1} parent=99 // pred_check_branch
          %879 = sbr.rel (%p877) target = $region152
        $region151: #{msssim_loss_forward.1} parent=99 // pred_region
          %880 = dma.done [#allocation20], 3072
        $region152: #{msssim_loss_forward.1} parent=99 // pred_fallthru
          _
        // Predicated region
        $region153: #{msssim_loss_forward.1} parent=99 // pred_check
          %p881 = pneg %p361
        $region154: #{msssim_loss_forward.1} parent=99 // pred_check_branch
          %883 = sbr.rel (%p881) target = $region156
        $region155: #{msssim_loss_forward.1} parent=99 // pred_region
          %884 = dma.done [#allocation23], 3072
        $region156: #{msssim_loss_forward.1} parent=99 // pred_fallthru
          _
        // Predicated region
        $region157: #{msssim_loss_forward.1} parent=99 // pred_check
          %p885 = pneg %p382
        $region158: #{msssim_loss_forward.1} parent=99 // pred_check_branch
          %887 = sbr.rel (%p885) target = $region160
        $region159: #{msssim_loss_forward.1} parent=99 // pred_region
          %888 = dma.done [#allocation23], 768
        $region160: #{msssim_loss_forward.1} parent=99 // pred_fallthru
          _
        // Predicated region
        $region161: #{msssim_loss_forward.1} parent=99 // pred_check
          %p889 = pneg %p403
        $region162: #{msssim_loss_forward.1} parent=99 // pred_check_branch
          %891 = sbr.rel (%p889) target = $region164
        $region163: #{msssim_loss_forward.1} parent=99 // pred_region
          %892 = dma.done [#allocation26], 1536
        $region164: #{msssim_loss_forward.1} parent=99 // pred_fallthru
          _
        // Predicated region
        $region165: #{msssim_loss_forward.1} parent=99 // pred_check
          %p893 = pneg %p424
        $region166: #{msssim_loss_forward.1} parent=99 // pred_check_branch
          %895 = sbr.rel (%p893) target = $region168
        $region167: #{msssim_loss_forward.1} parent=99 // pred_region
          %896 = dma.done [#allocation26], 384
        $region168: #{msssim_loss_forward.1} parent=99 // pred_fallthru
          _
        // Predicated region
        $region169: #{msssim_loss_forward.1} parent=99 // pred_check
          %p897 = pneg %p445
        $region170: #{msssim_loss_forward.1} parent=99 // pred_check_branch
          %899 = sbr.rel (%p897) target = $region172
        $region171: #{msssim_loss_forward.1} parent=99 // pred_region
          %900 = dma.done [#allocation29], 768
        $region172: #{msssim_loss_forward.1} parent=99 // pred_fallthru
          _
        // Predicated region
        $region173: #{msssim_loss_forward.1} parent=99 // pred_check
          %p901 = pneg %p466
        $region174: #{msssim_loss_forward.1} parent=99 // pred_check_branch
          %903 = sbr.rel (%p901) target = $region176
        $region175: #{msssim_loss_forward.1} parent=99 // pred_region
          %904 = dma.done [#allocation29], 256
        $region176: #{msssim_loss_forward.1} parent=99 // pred_fallthru
          _
        // Predicated region
        $region177: #{msssim_loss_forward.1} parent=99 // pred_check
          %p905 = pneg %p487
        $region178: #{msssim_loss_forward.1} parent=99 // pred_check_branch
          %907 = sbr.rel (%p905) target = $region180
        $region179: #{msssim_loss_forward.1} parent=99 // pred_region
          %908 = dma.done [#allocation32], 384
        $region180: #{msssim_loss_forward.1} parent=99 // pred_fallthru
          _
        %s909 = sand.u32 %s68, 1
        %s910 = scalar_lea.sflag [#allocation3], %s909
        %s911 = sand.u32 %s68, 1
        %s912 = smul.addr %s911, 384
        %s913 = scalar_lea.vmem [#allocation2], %s912
        %p914 = pneg %p81
        %p915 = pneg %p78
        %s916 = sand.u32 %s46, 1
        %s917 = scalar_lea.sflag [#allocation5], %s916
        %s918 = sand.u32 %s96, 1
        %s919 = smul.addr %s918, 384
        %s920 = scalar_lea.vmem [#allocation4], %s919
        %p921 = pneg %p109
        %p922 = pneg %p106
        %p923 = pneg %p130
        %p924 = pneg %p127
        %p925 = pneg %p151
        %p926 = pneg %p148
        %p927 = pneg %p172
        %p928 = pneg %p169
        %p929 = pneg %p193
        %p930 = pneg %p190
        %p931 = pneg %p214
        %p932 = pneg %p211
        %p933 = pneg %p235
        %p934 = pneg %p232
        %p935 = pneg %p256
        %p936 = pneg %p253
        %p937 = pneg %p277
        %p938 = pneg %p274
        %p939 = pneg %p298
        %p940 = pneg %p295
        %p941 = pneg %p319
        %p942 = pneg %p316
        %p943 = pneg %p340
        %p944 = pneg %p337
        %p945 = pneg %p361
        %p946 = pneg %p358
        %p947 = pneg %p382
        %p948 = pneg %p379
        %p949 = pneg %p403
        %p950 = pneg %p400
        %p951 = pneg %p424
        %p952 = pneg %p421
        %p953 = pneg %p445
        %p954 = pneg %p442
        %p955 = pneg %p466
        %p956 = pneg %p463
        %p957 = pneg %p487
        %p958 = pneg %p484
        %p959 = pneg %p515
        %p960 = pneg %p512
        %p961 = scmp.lt.s32.totalorder %s50, 1
        %s962 = scalar_select %p961, %s50, 1
        %p963 = scmp.lt.s32.totalorder %s51, 2
        %s964 = scalar_select %p963, %s51, 2
        %s965 = smul.addr %s962, 3
        %s966 = sadd.s32 %s964, %s965
        %s967 = smul.addr %s966, 8
        %s968 = scalar_lea.vmem %s20, %s967
        %p969 = scmp.lt.s32.totalorder %s50, 1
        %s970 = scalar_select %p969, %s50, 1
        %p971 = scmp.lt.s32.totalorder %s51, 2
        %s972 = scalar_select %p971, %s51, 2
        %s973 = smul.addr %s970, 3
        %s974 = sadd.s32 %s972, %s973
        %s975 = smul.addr %s974, 8
        %s976 = scalar_lea.vmem %s20, %s975
        %v977 = vld [vmem:[%s823] sm:$0xff]
        %v978 = vld [vmem:[%s823 + $0x8] sm:$0xff]
        %v979 = vld [vmem:[%s823 + $0x10] sm:$0xff]
        %v980 = vld [vmem:[%s823 + $0x18] sm:$0xff]
        %v981 = vld [vmem:[%s823 + $0x20] sm:$0xff]
        %v982 = vld [vmem:[%s823 + $0x28] sm:$0xff]
        %v983 = vld [vmem:[%s823 + $0x30] sm:$0xff]
        %v984 = vld [vmem:[%s823 + $0x38] sm:$0xff]
        %v985 = vld [vmem:[%s823 + $0x40] sm:$0xff]
        %v986 = vld [vmem:[%s823 + $0x48] sm:$0xff]
        %v987 = vld [vmem:[%s823 + $0x50] sm:$0xff]
        %v988 = vld [vmem:[%s823 + $0x58] sm:$0xff]
        %v989 = vld [vmem:[%s823 + $0x60] sm:$0xff]
        %v990 = vld [vmem:[%s823 + $0x68] sm:$0xff]
        %v991 = vld [vmem:[%s823 + $0x70] sm:$0xff]
        %v992 = vld [vmem:[%s823 + $0x78] sm:$0xff]
        %v993 = vld [vmem:[%s823 + $0x80] sm:$0xff]
        %v994 = vld [vmem:[%s823 + $0x88] sm:$0xff]
        %v995 = vld [vmem:[%s823 + $0x90] sm:$0xff]
        %v996 = vld [vmem:[%s823 + $0x98] sm:$0xff]
        %v997 = vld [vmem:[%s823 + $0xa0] sm:$0xff]
        %v998 = vld [vmem:[%s823 + $0xa8] sm:$0xff]
        %v999 = vld [vmem:[%s823 + $0xb0] sm:$0xff]
        %v1000 = vld [vmem:[%s823 + $0xb8] sm:$0xff]
        %v1001 = vld [vmem:[%s823 + $0xc0] sm:$0xff]
        %v1002 = vld [vmem:[%s823 + $0xc8] sm:$0xff]
        %v1003 = vld [vmem:[%s823 + $0xd0] sm:$0xff]
        %v1004 = vld [vmem:[%s823 + $0xd8] sm:$0xff]
        %v1005 = vld [vmem:[%s823 + $0xe0] sm:$0xff]
        %v1006 = vld [vmem:[%s823 + $0xe8] sm:$0xff]
        %v1007 = vld [vmem:[%s823 + $0xf0] sm:$0xff]
        %v1008 = vld [vmem:[%s823 + $0xf8] sm:$0xff]
        %v1009 = vld [vmem:[%s823 + $0x100] sm:$0xff]
        %v1010 = vld [vmem:[%s823 + $0x108] sm:$0xff]
        %v1011 = vld [vmem:[%s823 + $0x110] sm:$0xff]
        %v1012 = vld [vmem:[%s823 + $0x118] sm:$0xff]
        %v1013 = vld [vmem:[%s823 + $0x120] sm:$0xff]
        %v1014 = vld [vmem:[%s823 + $0x128] sm:$0xff]
        %v1015 = vld [vmem:[%s823 + $0x130] sm:$0xff]
        %v1016 = vld [vmem:[%s823 + $0x138] sm:$0xff]
        %v1017 = vld [vmem:[%s823 + $0x140] sm:$0xff]
        %v1018 = vld [vmem:[%s823 + $0x148] sm:$0xff]
        %v1019 = vld [vmem:[%s823 + $0x150] sm:$0xff]
        %v1020 = vld [vmem:[%s823 + $0x158] sm:$0xff]
        %v1021 = vld [vmem:[%s823 + $0x160] sm:$0xff]
        %v1022 = vld [vmem:[%s823 + $0x168] sm:$0xff]
        %v1023 = vld [vmem:[%s823 + $0x170] sm:$0xff]
        %v1024 = vld [vmem:[%s823 + $0x178] sm:$0xff]
        %v1025 = vld [vmem:[%s832] sm:$0xff]
        %v1026 = vld [vmem:[%s832 + $0x8] sm:$0xff]
        %v1027 = vld [vmem:[%s832 + $0x10] sm:$0xff]
        %v1028 = vld [vmem:[%s832 + $0x18] sm:$0xff]
        %v1029 = vld [vmem:[%s832 + $0x20] sm:$0xff]
        %v1030 = vld [vmem:[%s832 + $0x28] sm:$0xff]
        %v1031 = vld [vmem:[%s832 + $0x30] sm:$0xff]
        %v1032 = vld [vmem:[%s832 + $0x38] sm:$0xff]
        %v1033 = vld [vmem:[%s832 + $0x40] sm:$0xff]
        %v1034 = vld [vmem:[%s832 + $0x48] sm:$0xff]
        %v1035 = vld [vmem:[%s832 + $0x50] sm:$0xff]
        %v1036 = vld [vmem:[%s832 + $0x58] sm:$0xff]
        %v1037 = vld [vmem:[%s832 + $0x60] sm:$0xff]
        %v1038 = vld [vmem:[%s832 + $0x68] sm:$0xff]
        %v1039 = vld [vmem:[%s832 + $0x70] sm:$0xff]
        %v1040 = vld [vmem:[%s832 + $0x78] sm:$0xff]
        %v1041 = vld [vmem:[%s832 + $0x80] sm:$0xff]
        %v1042 = vld [vmem:[%s832 + $0x88] sm:$0xff]
        %v1043 = vld [vmem:[%s832 + $0x90] sm:$0xff]
        %v1044 = vld [vmem:[%s832 + $0x98] sm:$0xff]
        %v1045 = vld [vmem:[%s832 + $0xa0] sm:$0xff]
        %v1046 = vld [vmem:[%s832 + $0xa8] sm:$0xff]
        %v1047 = vld [vmem:[%s832 + $0xb0] sm:$0xff]
        %v1048 = vld [vmem:[%s832 + $0xb8] sm:$0xff]
        %v1049 = vld [vmem:[%s832 + $0xc0] sm:$0xff]
        %v1050 = vld [vmem:[%s832 + $0xc8] sm:$0xff]
        %v1051 = vld [vmem:[%s832 + $0xd0] sm:$0xff]
        %v1052 = vld [vmem:[%s832 + $0xd8] sm:$0xff]
        %v1053 = vld [vmem:[%s832 + $0xe0] sm:$0xff]
        %v1054 = vld [vmem:[%s832 + $0xe8] sm:$0xff]
        %v1055 = vld [vmem:[%s832 + $0xf0] sm:$0xff]
        %v1056 = vld [vmem:[%s832 + $0xf8] sm:$0xff]
        %v1057 = vld [vmem:[%s832 + $0x100] sm:$0xff]
        %v1058 = vld [vmem:[%s832 + $0x108] sm:$0xff]
        %v1059 = vld [vmem:[%s832 + $0x110] sm:$0xff]
        %v1060 = vld [vmem:[%s832 + $0x118] sm:$0xff]
        %v1061 = vld [vmem:[%s832 + $0x120] sm:$0xff]
        %v1062 = vld [vmem:[%s832 + $0x128] sm:$0xff]
        %v1063 = vld [vmem:[%s832 + $0x130] sm:$0xff]
        %v1064 = vld [vmem:[%s832 + $0x138] sm:$0xff]
        %v1065 = vld [vmem:[%s832 + $0x140] sm:$0xff]
        %v1066 = vld [vmem:[%s832 + $0x148] sm:$0xff]
        %v1067 = vld [vmem:[%s832 + $0x150] sm:$0xff]
        %v1068 = vld [vmem:[%s832 + $0x158] sm:$0xff]
        %v1069 = vld [vmem:[%s832 + $0x160] sm:$0xff]
        %v1070 = vld [vmem:[%s832 + $0x168] sm:$0xff]
        %v1071 = vld [vmem:[%s832 + $0x170] sm:$0xff]
        %v1072 = vld [vmem:[%s832 + $0x178] sm:$0xff]
        %v1073 = vsub.f32 %v977, %v1025
        %v1074 = vsub.f32 %v978, %v1026
        %v1075 = vsub.f32 %v979, %v1027
        %v1076 = vsub.f32 %v980, %v1028
        %v1077 = vsub.f32 %v981, %v1029
        %v1078 = vsub.f32 %v982, %v1030
        %v1079 = vsub.f32 %v983, %v1031
        %v1080 = vsub.f32 %v984, %v1032
        %v1081 = vsub.f32 %v985, %v1033
        %v1082 = vsub.f32 %v986, %v1034
        %v1083 = vsub.f32 %v987, %v1035
        %v1084 = vsub.f32 %v988, %v1036
        %v1085 = vsub.f32 %v989, %v1037
        %v1086 = vsub.f32 %v990, %v1038
        %v1087 = vsub.f32 %v991, %v1039
        %v1088 = vsub.f32 %v992, %v1040
        %v1089 = vsub.f32 %v993, %v1041
        %v1090 = vsub.f32 %v994, %v1042
        %v1091 = vsub.f32 %v995, %v1043
        %v1092 = vsub.f32 %v996, %v1044
        %v1093 = vsub.f32 %v997, %v1045
        %v1094 = vsub.f32 %v998, %v1046
        %v1095 = vsub.f32 %v999, %v1047
        %v1096 = vsub.f32 %v1000, %v1048
        %v1097 = vsub.f32 %v1001, %v1049
        %v1098 = vsub.f32 %v1002, %v1050
        %v1099 = vsub.f32 %v1003, %v1051
        %v1100 = vsub.f32 %v1004, %v1052
        %v1101 = vsub.f32 %v1005, %v1053
        %v1102 = vsub.f32 %v1006, %v1054
        %v1103 = vsub.f32 %v1007, %v1055
        %v1104 = vsub.f32 %v1008, %v1056
        %v1105 = vsub.f32 %v1009, %v1057
        %v1106 = vsub.f32 %v1010, %v1058
        %v1107 = vsub.f32 %v1011, %v1059
        %v1108 = vsub.f32 %v1012, %v1060
        %v1109 = vsub.f32 %v1013, %v1061
        %v1110 = vsub.f32 %v1014, %v1062
        %v1111 = vsub.f32 %v1015, %v1063
        %v1112 = vsub.f32 %v1016, %v1064
        %v1113 = vsub.f32 %v1017, %v1065
        %v1114 = vsub.f32 %v1018, %v1066
        %v1115 = vsub.f32 %v1019, %v1067
        %v1116 = vsub.f32 %v1020, %v1068
        %v1117 = vsub.f32 %v1021, %v1069
        %v1118 = vsub.f32 %v1022, %v1070
        %v1119 = vsub.f32 %v1023, %v1071
        %v1120 = vsub.f32 %v1024, %v1072
        %v1121 = vand.u32 2147483647, %v1073
        %v1122 = vand.u32 2147483647, %v1074
        %v1123 = vand.u32 2147483647, %v1075
        %v1124 = vand.u32 2147483647, %v1076
        %v1125 = vand.u32 2147483647, %v1077
        %v1126 = vand.u32 2147483647, %v1078
        %v1127 = vand.u32 2147483647, %v1079
        %v1128 = vand.u32 2147483647, %v1080
        %v1129 = vand.u32 2147483647, %v1081
        %v1130 = vand.u32 2147483647, %v1082
        %v1131 = vand.u32 2147483647, %v1083
        %v1132 = vand.u32 2147483647, %v1084
        %v1133 = vand.u32 2147483647, %v1085
        %v1134 = vand.u32 2147483647, %v1086
        %v1135 = vand.u32 2147483647, %v1087
        %v1136 = vand.u32 2147483647, %v1088
        %v1137 = vand.u32 2147483647, %v1089
        %v1138 = vand.u32 2147483647, %v1090
        %v1139 = vand.u32 2147483647, %v1091
        %v1140 = vand.u32 2147483647, %v1092
        %v1141 = vand.u32 2147483647, %v1093
        %v1142 = vand.u32 2147483647, %v1094
        %v1143 = vand.u32 2147483647, %v1095
        %v1144 = vand.u32 2147483647, %v1096
        %v1145 = vand.u32 2147483647, %v1097
        %v1146 = vand.u32 2147483647, %v1098
        %v1147 = vand.u32 2147483647, %v1099
        %v1148 = vand.u32 2147483647, %v1100
        %v1149 = vand.u32 2147483647, %v1101
        %v1150 = vand.u32 2147483647, %v1102
        %v1151 = vand.u32 2147483647, %v1103
        %v1152 = vand.u32 2147483647, %v1104
        %v1153 = vand.u32 2147483647, %v1105
        %v1154 = vand.u32 2147483647, %v1106
        %v1155 = vand.u32 2147483647, %v1107
        %v1156 = vand.u32 2147483647, %v1108
        %v1157 = vand.u32 2147483647, %v1109
        %v1158 = vand.u32 2147483647, %v1110
        %v1159 = vand.u32 2147483647, %v1111
        %v1160 = vand.u32 2147483647, %v1112
        %v1161 = vand.u32 2147483647, %v1113
        %v1162 = vand.u32 2147483647, %v1114
        %v1163 = vand.u32 2147483647, %v1115
        %v1164 = vand.u32 2147483647, %v1116
        %v1165 = vand.u32 2147483647, %v1117
        %v1166 = vand.u32 2147483647, %v1118
        %v1167 = vand.u32 2147483647, %v1119
        %v1168 = vand.u32 2147483647, %v1120
        %vm1169 = vcmask 523264
        %v1170 = vsel %vm1169, %v1122, 0.0
        %v1171 = vadd.f32 %v1121, %v1170
        %v1172 = vadd.f32 %v1171, %v1123
        %v1173 = vsel %vm1169, %v1124, 0.0
        %v1174 = vadd.f32 %v1172, %v1173
        %v1175 = vadd.f32 %v1174, %v1125
        %v1176 = vsel %vm1169, %v1126, 0.0
        %v1177 = vadd.f32 %v1175, %v1176
        %v1178 = vadd.f32 %v1177, %v1127
        %v1179 = vsel %vm1169, %v1128, 0.0
        %v1180 = vadd.f32 %v1178, %v1179
        %v1181 = vadd.f32 %v1180, %v1129
        %v1182 = vsel %vm1169, %v1130, 0.0
        %v1183 = vadd.f32 %v1181, %v1182
        %v1184 = vadd.f32 %v1183, %v1131
        %v1185 = vsel %vm1169, %v1132, 0.0
        %v1186 = vadd.f32 %v1184, %v1185
        %v1187 = vadd.f32 %v1186, %v1133
        %v1188 = vsel %vm1169, %v1134, 0.0
        %v1189 = vadd.f32 %v1187, %v1188
        %v1190 = vadd.f32 %v1189, %v1135
        %v1191 = vsel %vm1169, %v1136, 0.0
        %v1192 = vadd.f32 %v1190, %v1191
        %v1193 = vadd.f32 %v1192, %v1137
        %v1194 = vsel %vm1169, %v1138, 0.0
        %v1195 = vadd.f32 %v1193, %v1194
        %v1196 = vadd.f32 %v1195, %v1139
        %v1197 = vsel %vm1169, %v1140, 0.0
        %v1198 = vadd.f32 %v1196, %v1197
        %v1199 = vadd.f32 %v1198, %v1141
        %v1200 = vsel %vm1169, %v1142, 0.0
        %v1201 = vadd.f32 %v1199, %v1200
        %v1202 = vadd.f32 %v1201, %v1143
        %v1203 = vsel %vm1169, %v1144, 0.0
        %v1204 = vadd.f32 %v1202, %v1203
        %v1205 = vadd.f32 %v1204, %v1145
        %v1206 = vsel %vm1169, %v1146, 0.0
        %v1207 = vadd.f32 %v1205, %v1206
        %v1208 = vadd.f32 %v1207, %v1147
        %v1209 = vsel %vm1169, %v1148, 0.0
        %v1210 = vadd.f32 %v1208, %v1209
        %v1211 = vadd.f32 %v1210, %v1149
        %v1212 = vsel %vm1169, %v1150, 0.0
        %v1213 = vadd.f32 %v1211, %v1212
        %v1214 = vadd.f32 %v1213, %v1151
        %v1215 = vsel %vm1169, %v1152, 0.0
        %v1216 = vadd.f32 %v1214, %v1215
        %v1217 = vadd.f32 %v1216, %v1153
        %v1218 = vsel %vm1169, %v1154, 0.0
        %v1219 = vadd.f32 %v1217, %v1218
        %v1220 = vadd.f32 %v1219, %v1155
        %v1221 = vsel %vm1169, %v1156, 0.0
        %v1222 = vadd.f32 %v1220, %v1221
        %v1223 = vadd.f32 %v1222, %v1157
        %v1224 = vsel %vm1169, %v1158, 0.0
        %v1225 = vadd.f32 %v1223, %v1224
        %v1226 = vadd.f32 %v1225, %v1159
        %v1227 = vsel %vm1169, %v1160, 0.0
        %v1228 = vadd.f32 %v1226, %v1227
        %v1229 = vadd.f32 %v1228, %v1161
        %v1230 = vsel %vm1169, %v1162, 0.0
        %v1231 = vadd.f32 %v1229, %v1230
        %v1232 = vadd.f32 %v1231, %v1163
        %v1233 = vsel %vm1169, %v1164, 0.0
        %v1234 = vadd.f32 %v1232, %v1233
        %v1235 = vadd.f32 %v1234, %v1165
        %v1236 = vsel %vm1169, %v1166, 0.0
        %v1237 = vadd.f32 %v1235, %v1236
        %v1238 = vadd.f32 %v1237, %v1167
        %v1239 = vsel %vm1169, %v1168, 0.0
        %v1240 = vadd.f32 %v1238, %v1239
        %1241 = vadd.xlane.f32.xlu0 %v1240
        %v1242 = vpop.xlane.xlu0 %1241
        %v1243 = vrot.slane %v1242, 4
        %v1244 = vadd.f32 %v1242, %v1243
        %v1245 = vrot.slane %v1244, 2
        %v1246 = vadd.f32 %v1244, %v1245
        %v1247 = vrot.slane %v1246, 1
        %v1248 = vadd.f32 %v1246, %v1247
        %s1249 = vtos %v1248
        %v1250 = vld [vmem:[#allocation6] sm:$0xff]
        %v1251 = vld [vmem:[#allocation6 + $0x8] sm:$0xff]
        %v1252 = vld [vmem:[#allocation6 + $0x10] sm:$0xff]
        %v1253 = vld [vmem:[#allocation6 + $0x18] sm:$0xff]
        %v1254 = vld [vmem:[#allocation6 + $0x20] sm:$0xff]
        %v1255 = vld [vmem:[#allocation6 + $0x28] sm:$0xff]
        %v1256 = vld [vmem:[#allocation6 + $0x30] sm:$0xff]
        %v1257 = vld [vmem:[#allocation6 + $0x38] sm:$0xff]
        %v1258 = vld [vmem:[#allocation6 + $0x40] sm:$0xff]
        %v1259 = vld [vmem:[#allocation6 + $0x48] sm:$0xff]
        %v1260 = vld [vmem:[#allocation6 + $0x50] sm:$0xff]
        %v1261 = vld [vmem:[#allocation6 + $0x58] sm:$0xff]
        %v1262 = vld [vmem:[#allocation6 + $0x60] sm:$0xff]
        %v1263 = vld [vmem:[#allocation6 + $0x68] sm:$0xff]
        %v1264 = vld [vmem:[#allocation6 + $0x70] sm:$0xff]
        %v1265 = vld [vmem:[#allocation6 + $0x78] sm:$0xff]
        %v1266 = vld [vmem:[#allocation6 + $0x80] sm:$0xff]
        %v1267 = vld [vmem:[#allocation6 + $0x88] sm:$0xff]
        %v1268 = vld [vmem:[#allocation6 + $0x90] sm:$0xff]
        %v1269 = vld [vmem:[#allocation6 + $0x98] sm:$0xff]
        %v1270 = vld [vmem:[#allocation6 + $0xa0] sm:$0xff]
        %v1271 = vld [vmem:[#allocation6 + $0xa8] sm:$0xff]
        %v1272 = vld [vmem:[#allocation6 + $0xb0] sm:$0xff]
        %v1273 = vld [vmem:[#allocation6 + $0xb8] sm:$0xff]
        %v1274 = vld [vmem:[#allocation6 + $0xc0] sm:$0xff]
        %v1275 = vld [vmem:[#allocation6 + $0xc8] sm:$0xff]
        %v1276 = vld [vmem:[#allocation6 + $0xd0] sm:$0xff]
        %v1277 = vld [vmem:[#allocation6 + $0xd8] sm:$0xff]
        %v1278 = vld [vmem:[#allocation6 + $0xe0] sm:$0xff]
        %v1279 = vld [vmem:[#allocation6 + $0xe8] sm:$0xff]
        %v1280 = vld [vmem:[#allocation6 + $0xf0] sm:$0xff]
        %v1281 = vld [vmem:[#allocation6 + $0xf8] sm:$0xff]
        %v1282 = vld [vmem:[#allocation6 + $0x100] sm:$0xff]
        %v1283 = vld [vmem:[#allocation6 + $0x108] sm:$0xff]
        %v1284 = vld [vmem:[#allocation6 + $0x110] sm:$0xff]
        %v1285 = vld [vmem:[#allocation6 + $0x118] sm:$0xff]
        %v1286 = vld [vmem:[#allocation6 + $0x120] sm:$0xff]
        %v1287 = vld [vmem:[#allocation6 + $0x128] sm:$0xff]
        %v1288 = vld [vmem:[#allocation6 + $0x130] sm:$0xff]
        %v1289 = vld [vmem:[#allocation6 + $0x138] sm:$0xff]
        %v1290 = vld [vmem:[#allocation6 + $0x140] sm:$0xff]
        %v1291 = vld [vmem:[#allocation6 + $0x148] sm:$0xff]
        %v1292 = vld [vmem:[#allocation6 + $0x150] sm:$0xff]
        %v1293 = vld [vmem:[#allocation6 + $0x158] sm:$0xff]
        %v1294 = vld [vmem:[#allocation6 + $0x160] sm:$0x3f]
        %v1295 = vld [vmem:[#allocation6 + $0x168] sm:$0x3f]
        %v1296 = vld [vmem:[#allocation7] sm:$0xff]
        %v1297 = vld [vmem:[#allocation7 + $0x8] sm:$0xff]
        %v1298 = vld [vmem:[#allocation7 + $0x10] sm:$0xff]
        %v1299 = vld [vmem:[#allocation7 + $0x18] sm:$0xff]
        %v1300 = vld [vmem:[#allocation7 + $0x20] sm:$0xff]
        %v1301 = vld [vmem:[#allocation7 + $0x28] sm:$0xff]
        %v1302 = vld [vmem:[#allocation7 + $0x30] sm:$0xff]
        %v1303 = vld [vmem:[#allocation7 + $0x38] sm:$0xff]
        %v1304 = vld [vmem:[#allocation7 + $0x40] sm:$0xff]
        %v1305 = vld [vmem:[#allocation7 + $0x48] sm:$0xff]
        %v1306 = vld [vmem:[#allocation7 + $0x50] sm:$0xff]
        %v1307 = vld [vmem:[#allocation7 + $0x58] sm:$0xff]
        %v1308 = vld [vmem:[#allocation7 + $0x60] sm:$0xff]
        %v1309 = vld [vmem:[#allocation7 + $0x68] sm:$0xff]
        %v1310 = vld [vmem:[#allocation7 + $0x70] sm:$0xff]
        %v1311 = vld [vmem:[#allocation7 + $0x78] sm:$0xff]
        %v1312 = vld [vmem:[#allocation7 + $0x80] sm:$0xff]
        %v1313 = vld [vmem:[#allocation7 + $0x88] sm:$0xff]
        %v1314 = vld [vmem:[#allocation7 + $0x90] sm:$0xff]
        %v1315 = vld [vmem:[#allocation7 + $0x98] sm:$0xff]
        %v1316 = vld [vmem:[#allocation7 + $0xa0] sm:$0xff]
        %v1317 = vld [vmem:[#allocation7 + $0xa8] sm:$0xff]
        %v1318 = vld [vmem:[#allocation7 + $0xb0] sm:$0xff]
        %v1319 = vld [vmem:[#allocation7 + $0xb8] sm:$0xff]
        %v1320 = vld [vmem:[#allocation7 + $0xc0] sm:$0xff]
        %v1321 = vld [vmem:[#allocation7 + $0xc8] sm:$0xff]
        %v1322 = vld [vmem:[#allocation7 + $0xd0] sm:$0xff]
        %v1323 = vld [vmem:[#allocation7 + $0xd8] sm:$0xff]
        %v1324 = vld [vmem:[#allocation7 + $0xe0] sm:$0xff]
        %v1325 = vld [vmem:[#allocation7 + $0xe8] sm:$0xff]
        %v1326 = vld [vmem:[#allocation7 + $0xf0] sm:$0xff]
        %v1327 = vld [vmem:[#allocation7 + $0xf8] sm:$0xff]
        %v1328 = vld [vmem:[#allocation7 + $0x100] sm:$0xff]
        %v1329 = vld [vmem:[#allocation7 + $0x108] sm:$0xff]
        %v1330 = vld [vmem:[#allocation7 + $0x110] sm:$0xff]
        %v1331 = vld [vmem:[#allocation7 + $0x118] sm:$0xff]
        %v1332 = vld [vmem:[#allocation7 + $0x120] sm:$0xff]
        %v1333 = vld [vmem:[#allocation7 + $0x128] sm:$0xff]
        %v1334 = vld [vmem:[#allocation7 + $0x130] sm:$0xff]
        %v1335 = vld [vmem:[#allocation7 + $0x138] sm:$0xff]
        %v1336 = vld [vmem:[#allocation7 + $0x140] sm:$0xff]
        %v1337 = vld [vmem:[#allocation7 + $0x148] sm:$0xff]
        %v1338 = vld [vmem:[#allocation7 + $0x150] sm:$0xff]
        %v1339 = vld [vmem:[#allocation7 + $0x158] sm:$0xff]
        %v1340 = vld [vmem:[#allocation7 + $0x160] sm:$0xff]
        %v1341 = vld [vmem:[#allocation7 + $0x168] sm:$0xff]
        %v1342 = vld [vmem:[#allocation7 + $0x170] sm:$0xff]
        %v1343 = vld [vmem:[#allocation7 + $0x178] sm:$0xff]
        %v1344 = vmul.f32 %v977, %v977
        %v1345 = vmul.f32 %v978, %v978
        %v1346 = vmul.f32 %v979, %v979
        %v1347 = vmul.f32 %v980, %v980
        %v1348 = vmul.f32 %v981, %v981
        %v1349 = vmul.f32 %v982, %v982
        %v1350 = vmul.f32 %v983, %v983
        %v1351 = vmul.f32 %v984, %v984
        %v1352 = vmul.f32 %v985, %v985
        %v1353 = vmul.f32 %v986, %v986
        %v1354 = vmul.f32 %v987, %v987
        %v1355 = vmul.f32 %v988, %v988
        %v1356 = vmul.f32 %v989, %v989
        %v1357 = vmul.f32 %v990, %v990
        %v1358 = vmul.f32 %v991, %v991
        %v1359 = vmul.f32 %v992, %v992
        %v1360 = vmul.f32 %v993, %v993
        %v1361 = vmul.f32 %v994, %v994
        %v1362 = vmul.f32 %v995, %v995
        %v1363 = vmul.f32 %v996, %v996
        %v1364 = vmul.f32 %v997, %v997
        %v1365 = vmul.f32 %v998, %v998
        %v1366 = vmul.f32 %v999, %v999
        %v1367 = vmul.f32 %v1000, %v1000
        %v1368 = vmul.f32 %v1001, %v1001
        %v1369 = vmul.f32 %v1002, %v1002
        %v1370 = vmul.f32 %v1003, %v1003
        %v1371 = vmul.f32 %v1004, %v1004
        %v1372 = vmul.f32 %v1005, %v1005
        %v1373 = vmul.f32 %v1006, %v1006
        %v1374 = vmul.f32 %v1007, %v1007
        %v1375 = vmul.f32 %v1008, %v1008
        %v1376 = vmul.f32 %v1009, %v1009
        %v1377 = vmul.f32 %v1010, %v1010
        %v1378 = vmul.f32 %v1011, %v1011
        %v1379 = vmul.f32 %v1012, %v1012
        %v1380 = vmul.f32 %v1013, %v1013
        %v1381 = vmul.f32 %v1014, %v1014
        %v1382 = vmul.f32 %v1015, %v1015
        %v1383 = vmul.f32 %v1016, %v1016
        %v1384 = vmul.f32 %v1017, %v1017
        %v1385 = vmul.f32 %v1018, %v1018
        %v1386 = vmul.f32 %v1019, %v1019
        %v1387 = vmul.f32 %v1020, %v1020
        %v1388 = vmul.f32 %v1021, %v1021
        %v1389 = vmul.f32 %v1022, %v1022
        %v1390 = vmul.f32 %v1023, %v1023
        %v1391 = vmul.f32 %v1024, %v1024
        %v1392 = vmul.f32 %v1025, %v1025
        %v1393 = vmul.f32 %v1026, %v1026
        %v1394 = vmul.f32 %v1027, %v1027
        %v1395 = vmul.f32 %v1028, %v1028
        %v1396 = vmul.f32 %v1029, %v1029
        %v1397 = vmul.f32 %v1030, %v1030
        %v1398 = vmul.f32 %v1031, %v1031
        %v1399 = vmul.f32 %v1032, %v1032
        %v1400 = vmul.f32 %v1033, %v1033
        %v1401 = vmul.f32 %v1034, %v1034
        %v1402 = vmul.f32 %v1035, %v1035
        %v1403 = vmul.f32 %v1036, %v1036
        %v1404 = vmul.f32 %v1037, %v1037
        %v1405 = vmul.f32 %v1038, %v1038
        %v1406 = vmul.f32 %v1039, %v1039
        %v1407 = vmul.f32 %v1040, %v1040
        %v1408 = vmul.f32 %v1041, %v1041
        %v1409 = vmul.f32 %v1042, %v1042
        %v1410 = vmul.f32 %v1043, %v1043
        %v1411 = vmul.f32 %v1044, %v1044
        %v1412 = vmul.f32 %v1045, %v1045
        %v1413 = vmul.f32 %v1046, %v1046
        %v1414 = vmul.f32 %v1047, %v1047
        %v1415 = vmul.f32 %v1048, %v1048
        %v1416 = vmul.f32 %v1049, %v1049
        %v1417 = vmul.f32 %v1050, %v1050
        %v1418 = vmul.f32 %v1051, %v1051
        %v1419 = vmul.f32 %v1052, %v1052
        %v1420 = vmul.f32 %v1053, %v1053
        %v1421 = vmul.f32 %v1054, %v1054
        %v1422 = vmul.f32 %v1055, %v1055
        %v1423 = vmul.f32 %v1056, %v1056
        %v1424 = vmul.f32 %v1057, %v1057
        %v1425 = vmul.f32 %v1058, %v1058
        %v1426 = vmul.f32 %v1059, %v1059
        %v1427 = vmul.f32 %v1060, %v1060
        %v1428 = vmul.f32 %v1061, %v1061
        %v1429 = vmul.f32 %v1062, %v1062
        %v1430 = vmul.f32 %v1063, %v1063
        %v1431 = vmul.f32 %v1064, %v1064
        %v1432 = vmul.f32 %v1065, %v1065
        %v1433 = vmul.f32 %v1066, %v1066
        %v1434 = vmul.f32 %v1067, %v1067
        %v1435 = vmul.f32 %v1068, %v1068
        %v1436 = vmul.f32 %v1069, %v1069
        %v1437 = vmul.f32 %v1070, %v1070
        %v1438 = vmul.f32 %v1071, %v1071
        %v1439 = vmul.f32 %v1072, %v1072
        %v1440 = vmul.f32 %v977, %v1025
        %v1441 = vmul.f32 %v978, %v1026
        %v1442 = vmul.f32 %v979, %v1027
        %v1443 = vmul.f32 %v980, %v1028
        %v1444 = vmul.f32 %v981, %v1029
        %v1445 = vmul.f32 %v982, %v1030
        %v1446 = vmul.f32 %v983, %v1031
        %v1447 = vmul.f32 %v984, %v1032
        %v1448 = vmul.f32 %v985, %v1033
        %v1449 = vmul.f32 %v986, %v1034
        %v1450 = vmul.f32 %v987, %v1035
        %v1451 = vmul.f32 %v988, %v1036
        %v1452 = vmul.f32 %v989, %v1037
        %v1453 = vmul.f32 %v990, %v1038
        %v1454 = vmul.f32 %v991, %v1039
        %v1455 = vmul.f32 %v992, %v1040
        %v1456 = vmul.f32 %v993, %v1041
        %v1457 = vmul.f32 %v994, %v1042
        %v1458 = vmul.f32 %v995, %v1043
        %v1459 = vmul.f32 %v996, %v1044
        %v1460 = vmul.f32 %v997, %v1045
        %v1461 = vmul.f32 %v998, %v1046
        %v1462 = vmul.f32 %v999, %v1047
        %v1463 = vmul.f32 %v1000, %v1048
        %v1464 = vmul.f32 %v1001, %v1049
        %v1465 = vmul.f32 %v1002, %v1050
        %v1466 = vmul.f32 %v1003, %v1051
        %v1467 = vmul.f32 %v1004, %v1052
        %v1468 = vmul.f32 %v1005, %v1053
        %v1469 = vmul.f32 %v1006, %v1054
        %v1470 = vmul.f32 %v1007, %v1055
        %v1471 = vmul.f32 %v1008, %v1056
        %v1472 = vmul.f32 %v1009, %v1057
        %v1473 = vmul.f32 %v1010, %v1058
        %v1474 = vmul.f32 %v1011, %v1059
        %v1475 = vmul.f32 %v1012, %v1060
        %v1476 = vmul.f32 %v1013, %v1061
        %v1477 = vmul.f32 %v1014, %v1062
        %v1478 = vmul.f32 %v1015, %v1063
        %v1479 = vmul.f32 %v1016, %v1064
        %v1480 = vmul.f32 %v1017, %v1065
        %v1481 = vmul.f32 %v1018, %v1066
        %v1482 = vmul.f32 %v1019, %v1067
        %v1483 = vmul.f32 %v1020, %v1068
        %v1484 = vmul.f32 %v1021, %v1069
        %v1485 = vmul.f32 %v1022, %v1070
        %v1486 = vmul.f32 %v1023, %v1071
        %v1487 = vmul.f32 %v1024, %v1072
        %v1489 = vsel %vm1169, %v978, 0
        %v1492 = vsel %vm1169, %v980, 0
        %v1495 = vsel %vm1169, %v982, 0
        %v1498 = vsel %vm1169, %v984, 0
        %v1501 = vsel %vm1169, %v986, 0
        %v1504 = vsel %vm1169, %v988, 0
        %v1507 = vsel %vm1169, %v990, 0
        %v1510 = vsel %vm1169, %v992, 0
        %v1513 = vsel %vm1169, %v994, 0
        %v1516 = vsel %vm1169, %v996, 0
        %v1519 = vsel %vm1169, %v998, 0
        %v1522 = vsel %vm1169, %v1000, 0
        %v1525 = vsel %vm1169, %v1002, 0
        %v1528 = vsel %vm1169, %v1004, 0
        %v1531 = vsel %vm1169, %v1006, 0
        %v1534 = vsel %vm1169, %v1008, 0
        %v1537 = vsel %vm1169, %v1010, 0
        %v1540 = vsel %vm1169, %v1012, 0
        %v1543 = vsel %vm1169, %v1014, 0
        %v1546 = vsel %vm1169, %v1016, 0
        %v1549 = vsel %vm1169, %v1018, 0
        %v1552 = vsel %vm1169, %v1020, 0
        %v1555 = vsel %vm1169, %v1022, 0
        %v1558 = vsel %vm1169, %v1024, 0
        %v1561 = vsel %vm1169, %v1026, 0
        %v1564 = vsel %vm1169, %v1028, 0
        %v1567 = vsel %vm1169, %v1030, 0
        %v1570 = vsel %vm1169, %v1032, 0
        %v1573 = vsel %vm1169, %v1034, 0
        %v1576 = vsel %vm1169, %v1036, 0
        %v1579 = vsel %vm1169, %v1038, 0
        %v1582 = vsel %vm1169, %v1040, 0
        %v1585 = vsel %vm1169, %v1042, 0
        %v1588 = vsel %vm1169, %v1044, 0
        %v1591 = vsel %vm1169, %v1046, 0
        %v1594 = vsel %vm1169, %v1048, 0
        %v1597 = vsel %vm1169, %v1050, 0
        %v1600 = vsel %vm1169, %v1052, 0
        %v1603 = vsel %vm1169, %v1054, 0
        %v1606 = vsel %vm1169, %v1056, 0
        %v1609 = vsel %vm1169, %v1058, 0
        %v1612 = vsel %vm1169, %v1060, 0
        %v1615 = vsel %vm1169, %v1062, 0
        %v1618 = vsel %vm1169, %v1064, 0
        %v1621 = vsel %vm1169, %v1066, 0
        %v1624 = vsel %vm1169, %v1068, 0
        %v1627 = vsel %vm1169, %v1070, 0
        %v1630 = vsel %vm1169, %v1072, 0
        %v1633 = vsel %vm1169, %v1345, 0
        %v1636 = vsel %vm1169, %v1347, 0
        %v1639 = vsel %vm1169, %v1349, 0
        %v1642 = vsel %vm1169, %v1351, 0
        %v1645 = vsel %vm1169, %v1353, 0
        %v1648 = vsel %vm1169, %v1355, 0
        %v1651 = vsel %vm1169, %v1357, 0
        %v1654 = vsel %vm1169, %v1359, 0
        %v1657 = vsel %vm1169, %v1361, 0
        %v1660 = vsel %vm1169, %v1363, 0
        %v1663 = vsel %vm1169, %v1365, 0
        %v1666 = vsel %vm1169, %v1367, 0
        %v1669 = vsel %vm1169, %v1369, 0
        %v1672 = vsel %vm1169, %v1371, 0
        %v1675 = vsel %vm1169, %v1373, 0
        %v1678 = vsel %vm1169, %v1375, 0
        %v1681 = vsel %vm1169, %v1377, 0
        %v1684 = vsel %vm1169, %v1379, 0
        %v1687 = vsel %vm1169, %v1381, 0
        %v1690 = vsel %vm1169, %v1383, 0
        %v1693 = vsel %vm1169, %v1385, 0
        %v1696 = vsel %vm1169, %v1387, 0
        %v1699 = vsel %vm1169, %v1389, 0
        %v1702 = vsel %vm1169, %v1391, 0
        %v1705 = vsel %vm1169, %v1393, 0
        %v1708 = vsel %vm1169, %v1395, 0
        %v1711 = vsel %vm1169, %v1397, 0
        %v1714 = vsel %vm1169, %v1399, 0
        %v1717 = vsel %vm1169, %v1401, 0
        %v1720 = vsel %vm1169, %v1403, 0
        %v1723 = vsel %vm1169, %v1405, 0
        %v1726 = vsel %vm1169, %v1407, 0
        %v1729 = vsel %vm1169, %v1409, 0
        %v1732 = vsel %vm1169, %v1411, 0
        %v1735 = vsel %vm1169, %v1413, 0
        %v1738 = vsel %vm1169, %v1415, 0
        %v1741 = vsel %vm1169, %v1417, 0
        %v1744 = vsel %vm1169, %v1419, 0
        %v1747 = vsel %vm1169, %v1421, 0
        %v1750 = vsel %vm1169, %v1423, 0
        %v1753 = vsel %vm1169, %v1425, 0
        %v1756 = vsel %vm1169, %v1427, 0
        %v1759 = vsel %vm1169, %v1429, 0
        %v1762 = vsel %vm1169, %v1431, 0
        %v1765 = vsel %vm1169, %v1433, 0
        %v1768 = vsel %vm1169, %v1435, 0
        %v1771 = vsel %vm1169, %v1437, 0
        %v1774 = vsel %vm1169, %v1439, 0
        %v1777 = vsel %vm1169, %v1441, 0
        %v1780 = vsel %vm1169, %v1443, 0
        %v1783 = vsel %vm1169, %v1445, 0
        %v1786 = vsel %vm1169, %v1447, 0
        %v1789 = vsel %vm1169, %v1449, 0
        %v1792 = vsel %vm1169, %v1451, 0
        %v1795 = vsel %vm1169, %v1453, 0
        %v1798 = vsel %vm1169, %v1455, 0
        %v1801 = vsel %vm1169, %v1457, 0
        %v1804 = vsel %vm1169, %v1459, 0
        %v1807 = vsel %vm1169, %v1461, 0
        %v1810 = vsel %vm1169, %v1463, 0
        %v1813 = vsel %vm1169, %v1465, 0
        %v1816 = vsel %vm1169, %v1467, 0
        %v1819 = vsel %vm1169, %v1469, 0
        %v1822 = vsel %vm1169, %v1471, 0
        %v1825 = vsel %vm1169, %v1473, 0
        %v1828 = vsel %vm1169, %v1475, 0
        %v1831 = vsel %vm1169, %v1477, 0
        %v1834 = vsel %vm1169, %v1479, 0
        %v1837 = vsel %vm1169, %v1481, 0
        %v1840 = vsel %vm1169, %v1483, 0
        %v1843 = vsel %vm1169, %v1485, 0
        %v1846 = vsel %vm1169, %v1487, 0
        %1848 = vmatprep.subr.mxu0 %v1327
        %1849 = vmatpush1.msra.mxu0 %v1326
        %1850 = vmatprep.subr.mxu0 %v1325
        %1851 = vmatpush1.msra.mxu0 %v1324
        %1852 = vmatprep.subr.mxu0 %v1323
        %1853 = vmatpush1.msra.mxu0 %v1322
        %1854 = vmatprep.subr.mxu0 %v1321
        %1855 = vmatpush1.msra.mxu0 %v1320
        %1856 = vmatprep.subr.mxu0 %v1319
        %1857 = vmatpush1.msra.mxu0 %v1318
        %1858 = vmatprep.subr.mxu0 %v1317
        %1859 = vmatpush1.msra.mxu0 %v1316
        %1860 = vmatprep.subr.mxu0 %v1315
        %1861 = vmatpush1.msra.mxu0 %v1314
        %1862 = vmatprep.subr.mxu0 %v1313
        %1863 = vmatpush1.msra.mxu0 %v1312
        %1864 = vmatprep.subr.mxu0 %v1311
        %1865 = vmatpush1.msra.mxu0 %v1310
        %1866 = vmatprep.subr.mxu0 %v1309
        %1867 = vmatpush1.msra.mxu0 %v1308
        %1868 = vmatprep.subr.mxu0 %v1307
        %1869 = vmatpush1.msra.mxu0 %v1306
        %1870 = vmatprep.subr.mxu0 %v1305
        %1871 = vmatpush1.msra.mxu0 %v1304
        %1872 = vmatprep.subr.mxu0 %v1303
        %1873 = vmatpush1.msra.mxu0 %v1302
        %1874 = vmatprep.subr.mxu0 %v1301
        %1875 = vmatpush1.msra.mxu0 %v1300
        %1876 = vmatprep.subr.mxu0 %v1299
        %1877 = vmatpush1.msra.mxu0 %v1298
        %1878 = vmatprep.subr.mxu0 %v1297
        %1879 = vmatpush1.msra.mxu0 %v1296
        %1880 = vmatprep.subr.mxu0 0.0
        %1881 = vmatpush2.msra.mxu0 0.0
        %1882 = vmatprep.subr.mxu0 0.0
        %1883 = vmatpush2.msra.mxu0 0.0
        %1884 = vmatprep.subr.mxu0 0.0
        %1885 = vmatpush2.msra.mxu0 0.0
        %1886 = vmatprep.subr.mxu0 0.0
        %1887 = vmatpush2.msra.mxu0 0.0
        %1888 = vmatprep.subr.mxu0 0.0
        %1889 = vmatpush2.msra.mxu0 0.0
        %1890 = vmatprep.subr.mxu0 0.0
        %1891 = vmatpush2.msra.mxu0 0.0
        %1892 = vmatprep.subr.mxu0 0.0
        %1893 = vmatpush2.msra.mxu0 0.0
        %1894 = vmatprep.subr.mxu0 0.0
        %1895 = vmatpush2.msra.mxu0 0.0
        %1896 = vmatprep.subr.mxu0 %v1343
        %1897 = vmatpush2.msra.mxu0 %v1342
        %1898 = vmatprep.subr.mxu0 %v1341
        %1899 = vmatpush2.msra.mxu0 %v1340
        %1900 = vmatprep.subr.mxu0 %v1339
        %1901 = vmatpush2.msra.mxu0 %v1338
        %1902 = vmatprep.subr.mxu0 %v1337
        %1903 = vmatpush2.msra.mxu0 %v1336
        %1904 = vmatprep.subr.mxu0 %v1335
        %1905 = vmatpush2.msra.mxu0 %v1334
        %1906 = vmatprep.subr.mxu0 %v1333
        %1907 = vmatpush2.msra.mxu0 %v1332
        %1908 = vmatprep.subr.mxu0 %v1331
        %1909 = vmatpush2.msra.mxu0 %v1330
        %1910 = vmatprep.subr.mxu0 %v1329
        %1911 = vmatpush2.msra.mxu0 %v1328
        %1912 = vmatprep.mubr.f32.mxu0 %v1489
        %1913 = vmatmul.mubr.f32.gmra.mxu0 %v977
        %v1914 = vpop.f32.mrf.mxu0
        %v1915 = vadd.f32 0.0, %v1914
        %v1916 = vpop.f32.mrf.mxu0
        %v1917 = vadd.f32 0.0, %v1916
        %1918 = vmatprep.mubr.f32.mxu0 %v1492
        %1919 = vmatmul.mubr.f32.gmra.mxu0 %v979
        %v1920 = vpop.f32.mrf.mxu0
        %v1921 = vadd.f32 0.0, %v1920
        %v1922 = vpop.f32.mrf.mxu0
        %v1923 = vadd.f32 0.0, %v1922
        %1924 = vmatprep.mubr.f32.mxu0 %v1495
        %1925 = vmatmul.mubr.f32.gmra.mxu0 %v981
        %v1926 = vpop.f32.mrf.mxu0
        %v1927 = vadd.f32 0.0, %v1926
        %v1928 = vpop.f32.mrf.mxu0
        %v1929 = vadd.f32 0.0, %v1928
        %1930 = vmatprep.mubr.f32.mxu0 %v1498
        %1931 = vmatmul.mubr.f32.gmra.mxu0 %v983
        %v1932 = vpop.f32.mrf.mxu0
        %v1933 = vadd.f32 0.0, %v1932
        %v1934 = vpop.f32.mrf.mxu0
        %v1935 = vadd.f32 0.0, %v1934
        %1936 = vmatprep.mubr.f32.mxu0 %v1501
        %1937 = vmatmul.mubr.f32.gmra.mxu0 %v985
        %v1938 = vpop.f32.mrf.mxu0
        %v1939 = vadd.f32 0.0, %v1938
        %v1940 = vpop.f32.mrf.mxu0
        %v1941 = vadd.f32 0.0, %v1940
        %1942 = vmatprep.mubr.f32.mxu0 %v1504
        %1943 = vmatmul.mubr.f32.gmra.mxu0 %v987
        %v1944 = vpop.f32.mrf.mxu0
        %v1945 = vadd.f32 0.0, %v1944
        %v1946 = vpop.f32.mrf.mxu0
        %v1947 = vadd.f32 0.0, %v1946
        %1948 = vmatprep.mubr.f32.mxu0 %v1507
        %1949 = vmatmul.mubr.f32.gmra.mxu0 %v989
        %v1950 = vpop.f32.mrf.mxu0
        %v1951 = vadd.f32 0.0, %v1950
        %v1952 = vpop.f32.mrf.mxu0
        %v1953 = vadd.f32 0.0, %v1952
        %1954 = vmatprep.mubr.f32.mxu0 %v1510
        %1955 = vmatmul.mubr.f32.gmra.mxu0 %v991
        %v1956 = vpop.f32.mrf.mxu0
        %v1957 = vadd.f32 0.0, %v1956
        %v1958 = vpop.f32.mrf.mxu0
        %v1959 = vadd.f32 0.0, %v1958
        %1960 = vmatprep.mubr.f32.mxu0 %v1513
        %1961 = vmatmul.mubr.f32.gmra.mxu0 %v993
        %v1962 = vpop.f32.mrf.mxu0
        %v1963 = vadd.f32 0.0, %v1962
        %v1964 = vpop.f32.mrf.mxu0
        %v1965 = vadd.f32 0.0, %v1964
        %1966 = vmatprep.mubr.f32.mxu0 %v1516
        %1967 = vmatmul.mubr.f32.gmra.mxu0 %v995
        %v1968 = vpop.f32.mrf.mxu0
        %v1969 = vadd.f32 0.0, %v1968
        %v1970 = vpop.f32.mrf.mxu0
        %v1971 = vadd.f32 0.0, %v1970
        %1972 = vmatprep.mubr.f32.mxu0 %v1519
        %1973 = vmatmul.mubr.f32.gmra.mxu0 %v997
        %v1974 = vpop.f32.mrf.mxu0
        %v1975 = vadd.f32 0.0, %v1974
        %v1976 = vpop.f32.mrf.mxu0
        %v1977 = vadd.f32 0.0, %v1976
        %1978 = vmatprep.mubr.f32.mxu0 %v1522
        %1979 = vmatmul.mubr.f32.gmra.mxu0 %v999
        %v1980 = vpop.f32.mrf.mxu0
        %v1981 = vadd.f32 0.0, %v1980
        %v1982 = vpop.f32.mrf.mxu0
        %v1983 = vadd.f32 0.0, %v1982
        %1984 = vmatprep.mubr.f32.mxu0 %v1525
        %1985 = vmatmul.mubr.f32.gmra.mxu0 %v1001
        %v1986 = vpop.f32.mrf.mxu0
        %v1987 = vadd.f32 0.0, %v1986
        %v1988 = vpop.f32.mrf.mxu0
        %v1989 = vadd.f32 0.0, %v1988
        %1990 = vmatprep.mubr.f32.mxu0 %v1528
        %1991 = vmatmul.mubr.f32.gmra.mxu0 %v1003
        %v1992 = vpop.f32.mrf.mxu0
        %v1993 = vadd.f32 0.0, %v1992
        %v1994 = vpop.f32.mrf.mxu0
        %v1995 = vadd.f32 0.0, %v1994
        %1996 = vmatprep.mubr.f32.mxu0 %v1531
        %1997 = vmatmul.mubr.f32.gmra.mxu0 %v1005
        %v1998 = vpop.f32.mrf.mxu0
        %v1999 = vadd.f32 0.0, %v1998
        %v2000 = vpop.f32.mrf.mxu0
        %v2001 = vadd.f32 0.0, %v2000
        %2002 = vmatprep.mubr.f32.mxu0 %v1534
        %2003 = vmatmul.mubr.f32.gmra.mxu0 %v1007
        %v2004 = vpop.f32.mrf.mxu0
        %v2005 = vadd.f32 0.0, %v2004
        %v2006 = vpop.f32.mrf.mxu0
        %v2007 = vadd.f32 0.0, %v2006
        %2008 = vmatprep.mubr.f32.mxu0 %v1537
        %2009 = vmatmul.mubr.f32.gmra.mxu0 %v1009
        %v2010 = vpop.f32.mrf.mxu0
        %v2011 = vadd.f32 0.0, %v2010
        %v2012 = vpop.f32.mrf.mxu0
        %v2013 = vadd.f32 0.0, %v2012
        %2014 = vmatprep.mubr.f32.mxu0 %v1540
        %2015 = vmatmul.mubr.f32.gmra.mxu0 %v1011
        %v2016 = vpop.f32.mrf.mxu0
        %v2017 = vadd.f32 0.0, %v2016
        %v2018 = vpop.f32.mrf.mxu0
        %v2019 = vadd.f32 0.0, %v2018
        %2020 = vmatprep.mubr.f32.mxu0 %v1543
        %2021 = vmatmul.mubr.f32.gmra.mxu0 %v1013
        %v2022 = vpop.f32.mrf.mxu0
        %v2023 = vadd.f32 0.0, %v2022
        %v2024 = vpop.f32.mrf.mxu0
        %v2025 = vadd.f32 0.0, %v2024
        %2026 = vmatprep.mubr.f32.mxu0 %v1546
        %2027 = vmatmul.mubr.f32.gmra.mxu0 %v1015
        %v2028 = vpop.f32.mrf.mxu0
        %v2029 = vadd.f32 0.0, %v2028
        %v2030 = vpop.f32.mrf.mxu0
        %v2031 = vadd.f32 0.0, %v2030
        %2032 = vmatprep.mubr.f32.mxu0 %v1549
        %2033 = vmatmul.mubr.f32.gmra.mxu0 %v1017
        %v2034 = vpop.f32.mrf.mxu0
        %v2035 = vadd.f32 0.0, %v2034
        %v2036 = vpop.f32.mrf.mxu0
        %v2037 = vadd.f32 0.0, %v2036
        %2038 = vmatprep.mubr.f32.mxu0 %v1552
        %2039 = vmatmul.mubr.f32.gmra.mxu0 %v1019
        %v2040 = vpop.f32.mrf.mxu0
        %v2041 = vadd.f32 0.0, %v2040
        %v2042 = vpop.f32.mrf.mxu0
        %v2043 = vadd.f32 0.0, %v2042
        %2044 = vmatprep.mubr.f32.mxu0 %v1555
        %2045 = vmatmul.mubr.f32.gmra.mxu0 %v1021
        %v2046 = vpop.f32.mrf.mxu0
        %v2047 = vadd.f32 0.0, %v2046
        %v2048 = vpop.f32.mrf.mxu0
        %v2049 = vadd.f32 0.0, %v2048
        %2050 = vmatprep.mubr.f32.mxu0 %v1558
        %2051 = vmatmul.mubr.f32.gmra.mxu0 %v1023
        %v2052 = vpop.f32.mrf.mxu0
        %v2053 = vadd.f32 0.0, %v2052
        %v2054 = vpop.f32.mrf.mxu0
        %v2055 = vadd.f32 0.0, %v2054
        %2056 = vmatprep.mubr.f32.mxu0 %v1561
        %2057 = vmatmul.mubr.f32.gmra.mxu0 %v1025
        %v2058 = vpop.f32.mrf.mxu0
        %v2059 = vadd.f32 0.0, %v2058
        %v2060 = vpop.f32.mrf.mxu0
        %v2061 = vadd.f32 0.0, %v2060
        %2062 = vmatprep.mubr.f32.mxu0 %v1564
        %2063 = vmatmul.mubr.f32.gmra.mxu0 %v1027
        %v2064 = vpop.f32.mrf.mxu0
        %v2065 = vadd.f32 0.0, %v2064
        %v2066 = vpop.f32.mrf.mxu0
        %v2067 = vadd.f32 0.0, %v2066
        %2068 = vmatprep.mubr.f32.mxu0 %v1567
        %2069 = vmatmul.mubr.f32.gmra.mxu0 %v1029
        %v2070 = vpop.f32.mrf.mxu0
        %v2071 = vadd.f32 0.0, %v2070
        %v2072 = vpop.f32.mrf.mxu0
        %v2073 = vadd.f32 0.0, %v2072
        %2074 = vmatprep.mubr.f32.mxu0 %v1570
        %2075 = vmatmul.mubr.f32.gmra.mxu0 %v1031
        %v2076 = vpop.f32.mrf.mxu0
        %v2077 = vadd.f32 0.0, %v2076
        %v2078 = vpop.f32.mrf.mxu0
        %v2079 = vadd.f32 0.0, %v2078
        %2080 = vmatprep.mubr.f32.mxu0 %v1573
        %2081 = vmatmul.mubr.f32.gmra.mxu0 %v1033
        %v2082 = vpop.f32.mrf.mxu0
        %v2083 = vadd.f32 0.0, %v2082
        %v2084 = vpop.f32.mrf.mxu0
        %v2085 = vadd.f32 0.0, %v2084
        %2086 = vmatprep.mubr.f32.mxu0 %v1576
        %2087 = vmatmul.mubr.f32.gmra.mxu0 %v1035
        %v2088 = vpop.f32.mrf.mxu0
        %v2089 = vadd.f32 0.0, %v2088
        %v2090 = vpop.f32.mrf.mxu0
        %v2091 = vadd.f32 0.0, %v2090
        %2092 = vmatprep.mubr.f32.mxu0 %v1579
        %2093 = vmatmul.mubr.f32.gmra.mxu0 %v1037
        %v2094 = vpop.f32.mrf.mxu0
        %v2095 = vadd.f32 0.0, %v2094
        %v2096 = vpop.f32.mrf.mxu0
        %v2097 = vadd.f32 0.0, %v2096
        %2098 = vmatprep.mubr.f32.mxu0 %v1582
        %2099 = vmatmul.mubr.f32.gmra.mxu0 %v1039
        %v2100 = vpop.f32.mrf.mxu0
        %v2101 = vadd.f32 0.0, %v2100
        %v2102 = vpop.f32.mrf.mxu0
        %v2103 = vadd.f32 0.0, %v2102
        %2104 = vmatprep.mubr.f32.mxu0 %v1585
        %2105 = vmatmul.mubr.f32.gmra.mxu0 %v1041
        %v2106 = vpop.f32.mrf.mxu0
        %v2107 = vadd.f32 0.0, %v2106
        %v2108 = vpop.f32.mrf.mxu0
        %v2109 = vadd.f32 0.0, %v2108
        %2110 = vmatprep.mubr.f32.mxu0 %v1588
        %2111 = vmatmul.mubr.f32.gmra.mxu0 %v1043
        %v2112 = vpop.f32.mrf.mxu0
        %v2113 = vadd.f32 0.0, %v2112
        %v2114 = vpop.f32.mrf.mxu0
        %v2115 = vadd.f32 0.0, %v2114
        %2116 = vmatprep.mubr.f32.mxu0 %v1591
        %2117 = vmatmul.mubr.f32.gmra.mxu0 %v1045
        %v2118 = vpop.f32.mrf.mxu0
        %v2119 = vadd.f32 0.0, %v2118
        %v2120 = vpop.f32.mrf.mxu0
        %v2121 = vadd.f32 0.0, %v2120
        %2122 = vmatprep.mubr.f32.mxu0 %v1594
        %2123 = vmatmul.mubr.f32.gmra.mxu0 %v1047
        %v2124 = vpop.f32.mrf.mxu0
        %v2125 = vadd.f32 0.0, %v2124
        %v2126 = vpop.f32.mrf.mxu0
        %v2127 = vadd.f32 0.0, %v2126
        %2128 = vmatprep.mubr.f32.mxu0 %v1597
        %2129 = vmatmul.mubr.f32.gmra.mxu0 %v1049
        %v2130 = vpop.f32.mrf.mxu0
        %v2131 = vadd.f32 0.0, %v2130
        %v2132 = vpop.f32.mrf.mxu0
        %v2133 = vadd.f32 0.0, %v2132
        %2134 = vmatprep.mubr.f32.mxu0 %v1600
        %2135 = vmatmul.mubr.f32.gmra.mxu0 %v1051
        %v2136 = vpop.f32.mrf.mxu0
        %v2137 = vadd.f32 0.0, %v2136
        %v2138 = vpop.f32.mrf.mxu0
        %v2139 = vadd.f32 0.0, %v2138
        %2140 = vmatprep.mubr.f32.mxu0 %v1603
        %2141 = vmatmul.mubr.f32.gmra.mxu0 %v1053
        %v2142 = vpop.f32.mrf.mxu0
        %v2143 = vadd.f32 0.0, %v2142
        %v2144 = vpop.f32.mrf.mxu0
        %v2145 = vadd.f32 0.0, %v2144
        %2146 = vmatprep.mubr.f32.mxu0 %v1606
        %2147 = vmatmul.mubr.f32.gmra.mxu0 %v1055
        %v2148 = vpop.f32.mrf.mxu0
        %v2149 = vadd.f32 0.0, %v2148
        %v2150 = vpop.f32.mrf.mxu0
        %v2151 = vadd.f32 0.0, %v2150
        %2152 = vmatprep.mubr.f32.mxu0 %v1609
        %2153 = vmatmul.mubr.f32.gmra.mxu0 %v1057
        %v2154 = vpop.f32.mrf.mxu0
        %v2155 = vadd.f32 0.0, %v2154
        %v2156 = vpop.f32.mrf.mxu0
        %v2157 = vadd.f32 0.0, %v2156
        %2158 = vmatprep.mubr.f32.mxu0 %v1612
        %2159 = vmatmul.mubr.f32.gmra.mxu0 %v1059
        %v2160 = vpop.f32.mrf.mxu0
        %v2161 = vadd.f32 0.0, %v2160
        %v2162 = vpop.f32.mrf.mxu0
        %v2163 = vadd.f32 0.0, %v2162
        %2164 = vmatprep.mubr.f32.mxu0 %v1615
        %2165 = vmatmul.mubr.f32.gmra.mxu0 %v1061
        %v2166 = vpop.f32.mrf.mxu0
        %v2167 = vadd.f32 0.0, %v2166
        %v2168 = vpop.f32.mrf.mxu0
        %v2169 = vadd.f32 0.0, %v2168
        %2170 = vmatprep.mubr.f32.mxu0 %v1618
        %2171 = vmatmul.mubr.f32.gmra.mxu0 %v1063
        %v2172 = vpop.f32.mrf.mxu0
        %v2173 = vadd.f32 0.0, %v2172
        %v2174 = vpop.f32.mrf.mxu0
        %v2175 = vadd.f32 0.0, %v2174
        %2176 = vmatprep.mubr.f32.mxu0 %v1621
        %2177 = vmatmul.mubr.f32.gmra.mxu0 %v1065
        %v2178 = vpop.f32.mrf.mxu0
        %v2179 = vadd.f32 0.0, %v2178
        %v2180 = vpop.f32.mrf.mxu0
        %v2181 = vadd.f32 0.0, %v2180
        %2182 = vmatprep.mubr.f32.mxu0 %v1624
        %2183 = vmatmul.mubr.f32.gmra.mxu0 %v1067
        %v2184 = vpop.f32.mrf.mxu0
        %v2185 = vadd.f32 0.0, %v2184
        %v2186 = vpop.f32.mrf.mxu0
        %v2187 = vadd.f32 0.0, %v2186
        %2188 = vmatprep.mubr.f32.mxu0 %v1627
        %2189 = vmatmul.mubr.f32.gmra.mxu0 %v1069
        %v2190 = vpop.f32.mrf.mxu0
        %v2191 = vadd.f32 0.0, %v2190
        %v2192 = vpop.f32.mrf.mxu0
        %v2193 = vadd.f32 0.0, %v2192
        %2194 = vmatprep.mubr.f32.mxu0 %v1630
        %2195 = vmatmul.mubr.f32.gmra.mxu0 %v1071
        %v2196 = vpop.f32.mrf.mxu0
        %v2197 = vadd.f32 0.0, %v2196
        %v2198 = vpop.f32.mrf.mxu0
        %v2199 = vadd.f32 0.0, %v2198
        %2200 = vmatprep.mubr.f32.mxu0 %v1633
        %2201 = vmatmul.mubr.f32.gmra.mxu0 %v1344
        %v2202 = vpop.f32.mrf.mxu0
        %v2203 = vadd.f32 0.0, %v2202
        %v2204 = vpop.f32.mrf.mxu0
        %v2205 = vadd.f32 0.0, %v2204
        %2206 = vmatprep.mubr.f32.mxu0 %v1636
        %2207 = vmatmul.mubr.f32.gmra.mxu0 %v1346
        %v2208 = vpop.f32.mrf.mxu0
        %v2209 = vadd.f32 0.0, %v2208
        %v2210 = vpop.f32.mrf.mxu0
        %v2211 = vadd.f32 0.0, %v2210
        %2212 = vmatprep.mubr.f32.mxu0 %v1639
        %2213 = vmatmul.mubr.f32.gmra.mxu0 %v1348
        %v2214 = vpop.f32.mrf.mxu0
        %v2215 = vadd.f32 0.0, %v2214
        %v2216 = vpop.f32.mrf.mxu0
        %v2217 = vadd.f32 0.0, %v2216
        %2218 = vmatprep.mubr.f32.mxu0 %v1642
        %2219 = vmatmul.mubr.f32.gmra.mxu0 %v1350
        %v2220 = vpop.f32.mrf.mxu0
        %v2221 = vadd.f32 0.0, %v2220
        %v2222 = vpop.f32.mrf.mxu0
        %v2223 = vadd.f32 0.0, %v2222
        %2224 = vmatprep.mubr.f32.mxu0 %v1645
        %2225 = vmatmul.mubr.f32.gmra.mxu0 %v1352
        %v2226 = vpop.f32.mrf.mxu0
        %v2227 = vadd.f32 0.0, %v2226
        %v2228 = vpop.f32.mrf.mxu0
        %v2229 = vadd.f32 0.0, %v2228
        %2230 = vmatprep.mubr.f32.mxu0 %v1648
        %2231 = vmatmul.mubr.f32.gmra.mxu0 %v1354
        %v2232 = vpop.f32.mrf.mxu0
        %v2233 = vadd.f32 0.0, %v2232
        %v2234 = vpop.f32.mrf.mxu0
        %v2235 = vadd.f32 0.0, %v2234
        %2236 = vmatprep.mubr.f32.mxu0 %v1651
        %2237 = vmatmul.mubr.f32.gmra.mxu0 %v1356
        %v2238 = vpop.f32.mrf.mxu0
        %v2239 = vadd.f32 0.0, %v2238
        %v2240 = vpop.f32.mrf.mxu0
        %v2241 = vadd.f32 0.0, %v2240
        %2242 = vmatprep.mubr.f32.mxu0 %v1654
        %2243 = vmatmul.mubr.f32.gmra.mxu0 %v1358
        %v2244 = vpop.f32.mrf.mxu0
        %v2245 = vadd.f32 0.0, %v2244
        %v2246 = vpop.f32.mrf.mxu0
        %v2247 = vadd.f32 0.0, %v2246
        %2248 = vmatprep.mubr.f32.mxu0 %v1657
        %2249 = vmatmul.mubr.f32.gmra.mxu0 %v1360
        %v2250 = vpop.f32.mrf.mxu0
        %v2251 = vadd.f32 0.0, %v2250
        %v2252 = vpop.f32.mrf.mxu0
        %v2253 = vadd.f32 0.0, %v2252
        %2254 = vmatprep.mubr.f32.mxu0 %v1660
        %2255 = vmatmul.mubr.f32.gmra.mxu0 %v1362
        %v2256 = vpop.f32.mrf.mxu0
        %v2257 = vadd.f32 0.0, %v2256
        %v2258 = vpop.f32.mrf.mxu0
        %v2259 = vadd.f32 0.0, %v2258
        %2260 = vmatprep.mubr.f32.mxu0 %v1663
        %2261 = vmatmul.mubr.f32.gmra.mxu0 %v1364
        %v2262 = vpop.f32.mrf.mxu0
        %v2263 = vadd.f32 0.0, %v2262
        %v2264 = vpop.f32.mrf.mxu0
        %v2265 = vadd.f32 0.0, %v2264
        %2266 = vmatprep.mubr.f32.mxu0 %v1666
        %2267 = vmatmul.mubr.f32.gmra.mxu0 %v1366
        %v2268 = vpop.f32.mrf.mxu0
        %v2269 = vadd.f32 0.0, %v2268
        %v2270 = vpop.f32.mrf.mxu0
        %v2271 = vadd.f32 0.0, %v2270
        %2272 = vmatprep.mubr.f32.mxu0 %v1669
        %2273 = vmatmul.mubr.f32.gmra.mxu0 %v1368
        %v2274 = vpop.f32.mrf.mxu0
        %v2275 = vadd.f32 0.0, %v2274
        %v2276 = vpop.f32.mrf.mxu0
        %v2277 = vadd.f32 0.0, %v2276
        %2278 = vmatprep.mubr.f32.mxu0 %v1672
        %2279 = vmatmul.mubr.f32.gmra.mxu0 %v1370
        %v2280 = vpop.f32.mrf.mxu0
        %v2281 = vadd.f32 0.0, %v2280
        %v2282 = vpop.f32.mrf.mxu0
        %v2283 = vadd.f32 0.0, %v2282
        %2284 = vmatprep.mubr.f32.mxu0 %v1675
        %2285 = vmatmul.mubr.f32.gmra.mxu0 %v1372
        %v2286 = vpop.f32.mrf.mxu0
        %v2287 = vadd.f32 0.0, %v2286
        %v2288 = vpop.f32.mrf.mxu0
        %v2289 = vadd.f32 0.0, %v2288
        %2290 = vmatprep.mubr.f32.mxu0 %v1678
        %2291 = vmatmul.mubr.f32.gmra.mxu0 %v1374
        %v2292 = vpop.f32.mrf.mxu0
        %v2293 = vadd.f32 0.0, %v2292
        %v2294 = vpop.f32.mrf.mxu0
        %v2295 = vadd.f32 0.0, %v2294
        %2296 = vmatprep.mubr.f32.mxu0 %v1681
        %2297 = vmatmul.mubr.f32.gmra.mxu0 %v1376
        %v2298 = vpop.f32.mrf.mxu0
        %v2299 = vadd.f32 0.0, %v2298
        %v2300 = vpop.f32.mrf.mxu0
        %v2301 = vadd.f32 0.0, %v2300
        %2302 = vmatprep.mubr.f32.mxu0 %v1684
        %2303 = vmatmul.mubr.f32.gmra.mxu0 %v1378
        %v2304 = vpop.f32.mrf.mxu0
        %v2305 = vadd.f32 0.0, %v2304
        %v2306 = vpop.f32.mrf.mxu0
        %v2307 = vadd.f32 0.0, %v2306
        %2308 = vmatprep.mubr.f32.mxu0 %v1687
        %2309 = vmatmul.mubr.f32.gmra.mxu0 %v1380
        %v2310 = vpop.f32.mrf.mxu0
        %v2311 = vadd.f32 0.0, %v2310
        %v2312 = vpop.f32.mrf.mxu0
        %v2313 = vadd.f32 0.0, %v2312
        %2314 = vmatprep.mubr.f32.mxu0 %v1690
        %2315 = vmatmul.mubr.f32.gmra.mxu0 %v1382
        %v2316 = vpop.f32.mrf.mxu0
        %v2317 = vadd.f32 0.0, %v2316
        %v2318 = vpop.f32.mrf.mxu0
        %v2319 = vadd.f32 0.0, %v2318
        %2320 = vmatprep.mubr.f32.mxu0 %v1693
        %2321 = vmatmul.mubr.f32.gmra.mxu0 %v1384
        %v2322 = vpop.f32.mrf.mxu0
        %v2323 = vadd.f32 0.0, %v2322
        %v2324 = vpop.f32.mrf.mxu0
        %v2325 = vadd.f32 0.0, %v2324
        %2326 = vmatprep.mubr.f32.mxu0 %v1696
        %2327 = vmatmul.mubr.f32.gmra.mxu0 %v1386
        %v2328 = vpop.f32.mrf.mxu0
        %v2329 = vadd.f32 0.0, %v2328
        %v2330 = vpop.f32.mrf.mxu0
        %v2331 = vadd.f32 0.0, %v2330
        %2332 = vmatprep.mubr.f32.mxu0 %v1699
        %2333 = vmatmul.mubr.f32.gmra.mxu0 %v1388
        %v2334 = vpop.f32.mrf.mxu0
        %v2335 = vadd.f32 0.0, %v2334
        %v2336 = vpop.f32.mrf.mxu0
        %v2337 = vadd.f32 0.0, %v2336
        %2338 = vmatprep.mubr.f32.mxu0 %v1702
        %2339 = vmatmul.mubr.f32.gmra.mxu0 %v1390
        %v2340 = vpop.f32.mrf.mxu0
        %v2341 = vadd.f32 0.0, %v2340
        %v2342 = vpop.f32.mrf.mxu0
        %v2343 = vadd.f32 0.0, %v2342
        %2344 = vmatprep.mubr.f32.mxu0 %v1705
        %2345 = vmatmul.mubr.f32.gmra.mxu0 %v1392
        %v2346 = vpop.f32.mrf.mxu0
        %v2347 = vadd.f32 0.0, %v2346
        %v2348 = vpop.f32.mrf.mxu0
        %v2349 = vadd.f32 0.0, %v2348
        %2350 = vmatprep.mubr.f32.mxu0 %v1708
        %2351 = vmatmul.mubr.f32.gmra.mxu0 %v1394
        %v2352 = vpop.f32.mrf.mxu0
        %v2353 = vadd.f32 0.0, %v2352
        %v2354 = vpop.f32.mrf.mxu0
        %v2355 = vadd.f32 0.0, %v2354
        %2356 = vmatprep.mubr.f32.mxu0 %v1711
        %2357 = vmatmul.mubr.f32.gmra.mxu0 %v1396
        %v2358 = vpop.f32.mrf.mxu0
        %v2359 = vadd.f32 0.0, %v2358
        %v2360 = vpop.f32.mrf.mxu0
        %v2361 = vadd.f32 0.0, %v2360
        %2362 = vmatprep.mubr.f32.mxu0 %v1714
        %2363 = vmatmul.mubr.f32.gmra.mxu0 %v1398
        %v2364 = vpop.f32.mrf.mxu0
        %v2365 = vadd.f32 0.0, %v2364
        %v2366 = vpop.f32.mrf.mxu0
        %v2367 = vadd.f32 0.0, %v2366
        %2368 = vmatprep.mubr.f32.mxu0 %v1717
        %2369 = vmatmul.mubr.f32.gmra.mxu0 %v1400
        %v2370 = vpop.f32.mrf.mxu0
        %v2371 = vadd.f32 0.0, %v2370
        %v2372 = vpop.f32.mrf.mxu0
        %v2373 = vadd.f32 0.0, %v2372
        %2374 = vmatprep.mubr.f32.mxu0 %v1720
        %2375 = vmatmul.mubr.f32.gmra.mxu0 %v1402
        %v2376 = vpop.f32.mrf.mxu0
        %v2377 = vadd.f32 0.0, %v2376
        %v2378 = vpop.f32.mrf.mxu0
        %v2379 = vadd.f32 0.0, %v2378
        %2380 = vmatprep.mubr.f32.mxu0 %v1723
        %2381 = vmatmul.mubr.f32.gmra.mxu0 %v1404
        %v2382 = vpop.f32.mrf.mxu0
        %v2383 = vadd.f32 0.0, %v2382
        %v2384 = vpop.f32.mrf.mxu0
        %v2385 = vadd.f32 0.0, %v2384
        %2386 = vmatprep.mubr.f32.mxu0 %v1726
        %2387 = vmatmul.mubr.f32.gmra.mxu0 %v1406
        %v2388 = vpop.f32.mrf.mxu0
        %v2389 = vadd.f32 0.0, %v2388
        %v2390 = vpop.f32.mrf.mxu0
        %v2391 = vadd.f32 0.0, %v2390
        %2392 = vmatprep.mubr.f32.mxu0 %v1729
        %2393 = vmatmul.mubr.f32.gmra.mxu0 %v1408
        %v2394 = vpop.f32.mrf.mxu0
        %v2395 = vadd.f32 0.0, %v2394
        %v2396 = vpop.f32.mrf.mxu0
        %v2397 = vadd.f32 0.0, %v2396
        %2398 = vmatprep.mubr.f32.mxu0 %v1732
        %2399 = vmatmul.mubr.f32.gmra.mxu0 %v1410
        %v2400 = vpop.f32.mrf.mxu0
        %v2401 = vadd.f32 0.0, %v2400
        %v2402 = vpop.f32.mrf.mxu0
        %v2403 = vadd.f32 0.0, %v2402
        %2404 = vmatprep.mubr.f32.mxu0 %v1735
        %2405 = vmatmul.mubr.f32.gmra.mxu0 %v1412
        %v2406 = vpop.f32.mrf.mxu0
        %v2407 = vadd.f32 0.0, %v2406
        %v2408 = vpop.f32.mrf.mxu0
        %v2409 = vadd.f32 0.0, %v2408
        %2410 = vmatprep.mubr.f32.mxu0 %v1738
        %2411 = vmatmul.mubr.f32.gmra.mxu0 %v1414
        %v2412 = vpop.f32.mrf.mxu0
        %v2413 = vadd.f32 0.0, %v2412
        %v2414 = vpop.f32.mrf.mxu0
        %v2415 = vadd.f32 0.0, %v2414
        %2416 = vmatprep.mubr.f32.mxu0 %v1741
        %2417 = vmatmul.mubr.f32.gmra.mxu0 %v1416
        %v2418 = vpop.f32.mrf.mxu0
        %v2419 = vadd.f32 0.0, %v2418
        %v2420 = vpop.f32.mrf.mxu0
        %v2421 = vadd.f32 0.0, %v2420
        %2422 = vmatprep.mubr.f32.mxu0 %v1744
        %2423 = vmatmul.mubr.f32.gmra.mxu0 %v1418
        %v2424 = vpop.f32.mrf.mxu0
        %v2425 = vadd.f32 0.0, %v2424
        %v2426 = vpop.f32.mrf.mxu0
        %v2427 = vadd.f32 0.0, %v2426
        %2428 = vmatprep.mubr.f32.mxu0 %v1747
        %2429 = vmatmul.mubr.f32.gmra.mxu0 %v1420
        %v2430 = vpop.f32.mrf.mxu0
        %v2431 = vadd.f32 0.0, %v2430
        %v2432 = vpop.f32.mrf.mxu0
        %v2433 = vadd.f32 0.0, %v2432
        %2434 = vmatprep.mubr.f32.mxu0 %v1750
        %2435 = vmatmul.mubr.f32.gmra.mxu0 %v1422
        %v2436 = vpop.f32.mrf.mxu0
        %v2437 = vadd.f32 0.0, %v2436
        %v2438 = vpop.f32.mrf.mxu0
        %v2439 = vadd.f32 0.0, %v2438
        %2440 = vmatprep.mubr.f32.mxu0 %v1753
        %2441 = vmatmul.mubr.f32.gmra.mxu0 %v1424
        %v2442 = vpop.f32.mrf.mxu0
        %v2443 = vadd.f32 0.0, %v2442
        %v2444 = vpop.f32.mrf.mxu0
        %v2445 = vadd.f32 0.0, %v2444
        %2446 = vmatprep.mubr.f32.mxu0 %v1756
        %2447 = vmatmul.mubr.f32.gmra.mxu0 %v1426
        %v2448 = vpop.f32.mrf.mxu0
        %v2449 = vadd.f32 0.0, %v2448
        %v2450 = vpop.f32.mrf.mxu0
        %v2451 = vadd.f32 0.0, %v2450
        %2452 = vmatprep.mubr.f32.mxu0 %v1759
        %2453 = vmatmul.mubr.f32.gmra.mxu0 %v1428
        %v2454 = vpop.f32.mrf.mxu0
        %v2455 = vadd.f32 0.0, %v2454
        %v2456 = vpop.f32.mrf.mxu0
        %v2457 = vadd.f32 0.0, %v2456
        %2458 = vmatprep.mubr.f32.mxu0 %v1762
        %2459 = vmatmul.mubr.f32.gmra.mxu0 %v1430
        %v2460 = vpop.f32.mrf.mxu0
        %v2461 = vadd.f32 0.0, %v2460
        %v2462 = vpop.f32.mrf.mxu0
        %v2463 = vadd.f32 0.0, %v2462
        %2464 = vmatprep.mubr.f32.mxu0 %v1765
        %2465 = vmatmul.mubr.f32.gmra.mxu0 %v1432
        %v2466 = vpop.f32.mrf.mxu0
        %v2467 = vadd.f32 0.0, %v2466
        %v2468 = vpop.f32.mrf.mxu0
        %v2469 = vadd.f32 0.0, %v2468
        %2470 = vmatprep.mubr.f32.mxu0 %v1768
        %2471 = vmatmul.mubr.f32.gmra.mxu0 %v1434
        %v2472 = vpop.f32.mrf.mxu0
        %v2473 = vadd.f32 0.0, %v2472
        %v2474 = vpop.f32.mrf.mxu0
        %v2475 = vadd.f32 0.0, %v2474
        %2476 = vmatprep.mubr.f32.mxu0 %v1771
        %2477 = vmatmul.mubr.f32.gmra.mxu0 %v1436
        %v2478 = vpop.f32.mrf.mxu0
        %v2479 = vadd.f32 0.0, %v2478
        %v2480 = vpop.f32.mrf.mxu0
        %v2481 = vadd.f32 0.0, %v2480
        %2482 = vmatprep.mubr.f32.mxu0 %v1774
        %2483 = vmatmul.mubr.f32.gmra.mxu0 %v1438
        %v2484 = vpop.f32.mrf.mxu0
        %v2485 = vadd.f32 0.0, %v2484
        %v2486 = vpop.f32.mrf.mxu0
        %v2487 = vadd.f32 0.0, %v2486
        %2488 = vmatprep.mubr.f32.mxu0 %v1777
        %2489 = vmatmul.mubr.f32.gmra.mxu0 %v1440
        %v2490 = vpop.f32.mrf.mxu0
        %v2491 = vadd.f32 0.0, %v2490
        %v2492 = vpop.f32.mrf.mxu0
        %v2493 = vadd.f32 0.0, %v2492
        %2494 = vmatprep.mubr.f32.mxu0 %v1780
        %2495 = vmatmul.mubr.f32.gmra.mxu0 %v1442
        %v2496 = vpop.f32.mrf.mxu0
        %v2497 = vadd.f32 0.0, %v2496
        %v2498 = vpop.f32.mrf.mxu0
        %v2499 = vadd.f32 0.0, %v2498
        %2500 = vmatprep.mubr.f32.mxu0 %v1783
        %2501 = vmatmul.mubr.f32.gmra.mxu0 %v1444
        %v2502 = vpop.f32.mrf.mxu0
        %v2503 = vadd.f32 0.0, %v2502
        %v2504 = vpop.f32.mrf.mxu0
        %v2505 = vadd.f32 0.0, %v2504
        %2506 = vmatprep.mubr.f32.mxu0 %v1786
        %2507 = vmatmul.mubr.f32.gmra.mxu0 %v1446
        %v2508 = vpop.f32.mrf.mxu0
        %v2509 = vadd.f32 0.0, %v2508
        %v2510 = vpop.f32.mrf.mxu0
        %v2511 = vadd.f32 0.0, %v2510
        %2512 = vmatprep.mubr.f32.mxu0 %v1789
        %2513 = vmatmul.mubr.f32.gmra.mxu0 %v1448
        %v2514 = vpop.f32.mrf.mxu0
        %v2515 = vadd.f32 0.0, %v2514
        %v2516 = vpop.f32.mrf.mxu0
        %v2517 = vadd.f32 0.0, %v2516
        %2518 = vmatprep.mubr.f32.mxu0 %v1792
        %2519 = vmatmul.mubr.f32.gmra.mxu0 %v1450
        %v2520 = vpop.f32.mrf.mxu0
        %v2521 = vadd.f32 0.0, %v2520
        %v2522 = vpop.f32.mrf.mxu0
        %v2523 = vadd.f32 0.0, %v2522
        %2524 = vmatprep.mubr.f32.mxu0 %v1795
        %2525 = vmatmul.mubr.f32.gmra.mxu0 %v1452
        %v2526 = vpop.f32.mrf.mxu0
        %v2527 = vadd.f32 0.0, %v2526
        %v2528 = vpop.f32.mrf.mxu0
        %v2529 = vadd.f32 0.0, %v2528
        %2530 = vmatprep.mubr.f32.mxu0 %v1798
        %2531 = vmatmul.mubr.f32.gmra.mxu0 %v1454
        %v2532 = vpop.f32.mrf.mxu0
        %v2533 = vadd.f32 0.0, %v2532
        %v2534 = vpop.f32.mrf.mxu0
        %v2535 = vadd.f32 0.0, %v2534
        %2536 = vmatprep.mubr.f32.mxu0 %v1801
        %2537 = vmatmul.mubr.f32.gmra.mxu0 %v1456
        %v2538 = vpop.f32.mrf.mxu0
        %v2539 = vadd.f32 0.0, %v2538
        %v2540 = vpop.f32.mrf.mxu0
        %v2541 = vadd.f32 0.0, %v2540
        %2542 = vmatprep.mubr.f32.mxu0 %v1804
        %2543 = vmatmul.mubr.f32.gmra.mxu0 %v1458
        %v2544 = vpop.f32.mrf.mxu0
        %v2545 = vadd.f32 0.0, %v2544
        %v2546 = vpop.f32.mrf.mxu0
        %v2547 = vadd.f32 0.0, %v2546
        %2548 = vmatprep.mubr.f32.mxu0 %v1807
        %2549 = vmatmul.mubr.f32.gmra.mxu0 %v1460
        %v2550 = vpop.f32.mrf.mxu0
        %v2551 = vadd.f32 0.0, %v2550
        %v2552 = vpop.f32.mrf.mxu0
        %v2553 = vadd.f32 0.0, %v2552
        %2554 = vmatprep.mubr.f32.mxu0 %v1810
        %2555 = vmatmul.mubr.f32.gmra.mxu0 %v1462
        %v2556 = vpop.f32.mrf.mxu0
        %v2557 = vadd.f32 0.0, %v2556
        %v2558 = vpop.f32.mrf.mxu0
        %v2559 = vadd.f32 0.0, %v2558
        %2560 = vmatprep.mubr.f32.mxu0 %v1813
        %2561 = vmatmul.mubr.f32.gmra.mxu0 %v1464
        %v2562 = vpop.f32.mrf.mxu0
        %v2563 = vadd.f32 0.0, %v2562
        %v2564 = vpop.f32.mrf.mxu0
        %v2565 = vadd.f32 0.0, %v2564
        %2566 = vmatprep.mubr.f32.mxu0 %v1816
        %2567 = vmatmul.mubr.f32.gmra.mxu0 %v1466
        %v2568 = vpop.f32.mrf.mxu0
        %v2569 = vadd.f32 0.0, %v2568
        %v2570 = vpop.f32.mrf.mxu0
        %v2571 = vadd.f32 0.0, %v2570
        %2572 = vmatprep.mubr.f32.mxu0 %v1819
        %2573 = vmatmul.mubr.f32.gmra.mxu0 %v1468
        %v2574 = vpop.f32.mrf.mxu0
        %v2575 = vadd.f32 0.0, %v2574
        %v2576 = vpop.f32.mrf.mxu0
        %v2577 = vadd.f32 0.0, %v2576
        %2578 = vmatprep.mubr.f32.mxu0 %v1822
        %2579 = vmatmul.mubr.f32.gmra.mxu0 %v1470
        %v2580 = vpop.f32.mrf.mxu0
        %v2581 = vadd.f32 0.0, %v2580
        %v2582 = vpop.f32.mrf.mxu0
        %v2583 = vadd.f32 0.0, %v2582
        %2584 = vmatprep.mubr.f32.mxu0 %v1825
        %2585 = vmatmul.mubr.f32.gmra.mxu0 %v1472
        %v2586 = vpop.f32.mrf.mxu0
        %v2587 = vadd.f32 0.0, %v2586
        %v2588 = vpop.f32.mrf.mxu0
        %v2589 = vadd.f32 0.0, %v2588
        %2590 = vmatprep.mubr.f32.mxu0 %v1828
        %2591 = vmatmul.mubr.f32.gmra.mxu0 %v1474
        %v2592 = vpop.f32.mrf.mxu0
        %v2593 = vadd.f32 0.0, %v2592
        %v2594 = vpop.f32.mrf.mxu0
        %v2595 = vadd.f32 0.0, %v2594
        %2596 = vmatprep.mubr.f32.mxu0 %v1831
        %2597 = vmatmul.mubr.f32.gmra.mxu0 %v1476
        %v2598 = vpop.f32.mrf.mxu0
        %v2599 = vadd.f32 0.0, %v2598
        %v2600 = vpop.f32.mrf.mxu0
        %v2601 = vadd.f32 0.0, %v2600
        %2602 = vmatprep.mubr.f32.mxu0 %v1834
        %2603 = vmatmul.mubr.f32.gmra.mxu0 %v1478
        %v2604 = vpop.f32.mrf.mxu0
        %v2605 = vadd.f32 0.0, %v2604
        %v2606 = vpop.f32.mrf.mxu0
        %v2607 = vadd.f32 0.0, %v2606
        %2608 = vmatprep.mubr.f32.mxu0 %v1837
        %2609 = vmatmul.mubr.f32.gmra.mxu0 %v1480
        %v2610 = vpop.f32.mrf.mxu0
        %v2611 = vadd.f32 0.0, %v2610
        %v2612 = vpop.f32.mrf.mxu0
        %v2613 = vadd.f32 0.0, %v2612
        %2614 = vmatprep.mubr.f32.mxu0 %v1840
        %2615 = vmatmul.mubr.f32.gmra.mxu0 %v1482
        %v2616 = vpop.f32.mrf.mxu0
        %v2617 = vadd.f32 0.0, %v2616
        %v2618 = vpop.f32.mrf.mxu0
        %v2619 = vadd.f32 0.0, %v2618
        %2620 = vmatprep.mubr.f32.mxu0 %v1843
        %2621 = vmatmul.mubr.f32.gmra.mxu0 %v1484
        %v2622 = vpop.f32.mrf.mxu0
        %v2623 = vadd.f32 0.0, %v2622
        %v2624 = vpop.f32.mrf.mxu0
        %v2625 = vadd.f32 0.0, %v2624
        %2626 = vmatprep.mubr.f32.mxu0 %v1846
        %2627 = vmatmul.mubr.f32.gmra.mxu0 %v1486
        %v2628 = vpop.f32.mrf.mxu0
        %v2629 = vadd.f32 0.0, %v2628
        %v2630 = vpop.f32.mrf.mxu0
        %v2631 = vadd.f32 0.0, %v2630
        %2632 = vdwg.mxu0
        %v2634 = vsel %vm1169, %v1251, 0
        %v2637 = vsel %vm1169, %v1253, 0
        %v2640 = vsel %vm1169, %v1255, 0
        %v2643 = vsel %vm1169, %v1257, 0
        %v2646 = vsel %vm1169, %v1259, 0
        %v2649 = vsel %vm1169, %v1261, 0
        %v2652 = vsel %vm1169, %v1263, 0
        %v2655 = vsel %vm1169, %v1265, 0
        %v2658 = vsel %vm1169, %v1267, 0
        %v2661 = vsel %vm1169, %v1269, 0
        %v2664 = vsel %vm1169, %v1271, 0
        %v2667 = vsel %vm1169, %v1273, 0
        %v2670 = vsel %vm1169, %v1275, 0
        %v2673 = vsel %vm1169, %v1277, 0
        %v2676 = vsel %vm1169, %v1279, 0
        %v2679 = vsel %vm1169, %v1281, 0
        %v2682 = vsel %vm1169, %v1283, 0
        %v2685 = vsel %vm1169, %v1285, 0
        %v2688 = vsel %vm1169, %v1287, 0
        %v2691 = vsel %vm1169, %v1289, 0
        %v2694 = vsel %vm1169, %v1291, 0
        %v2697 = vsel %vm1169, %v1293, 0
        %v2700 = vsel %vm1169, %v1295, 0
        %2702 = vmatprep.subr.mxu0 %v2007
        %2703 = vmatpush1.msra.mxu0 %v2005
        %2704 = vmatprep.subr.mxu0 %v2001
        %2705 = vmatpush1.msra.mxu0 %v1999
        %2706 = vmatprep.subr.mxu0 %v1995
        %2707 = vmatpush1.msra.mxu0 %v1993
        %2708 = vmatprep.subr.mxu0 %v1989
        %2709 = vmatpush1.msra.mxu0 %v1987
        %2710 = vmatprep.subr.mxu0 %v1983
        %2711 = vmatpush1.msra.mxu0 %v1981
        %2712 = vmatprep.subr.mxu0 %v1977
        %2713 = vmatpush1.msra.mxu0 %v1975
        %2714 = vmatprep.subr.mxu0 %v1971
        %2715 = vmatpush1.msra.mxu0 %v1969
        %2716 = vmatprep.subr.mxu0 %v1965
        %2717 = vmatpush1.msra.mxu0 %v1963
        %2718 = vmatprep.subr.mxu0 %v1959
        %2719 = vmatpush1.msra.mxu0 %v1957
        %2720 = vmatprep.subr.mxu0 %v1953
        %2721 = vmatpush1.msra.mxu0 %v1951
        %2722 = vmatprep.subr.mxu0 %v1947
        %2723 = vmatpush1.msra.mxu0 %v1945
        %2724 = vmatprep.subr.mxu0 %v1941
        %2725 = vmatpush1.msra.mxu0 %v1939
        %2726 = vmatprep.subr.mxu0 %v1935
        %2727 = vmatpush1.msra.mxu0 %v1933
        %2728 = vmatprep.subr.mxu0 %v1929
        %2729 = vmatpush1.msra.mxu0 %v1927
        %2730 = vmatprep.subr.mxu0 %v1923
        %2731 = vmatpush1.msra.mxu0 %v1921
        %2732 = vmatprep.subr.mxu0 %v1917
        %2733 = vmatpush1.msra.mxu0 %v1915
        %2734 = vmatprep.subr.mxu0 0.0
        %2735 = vmatpush2.msra.mxu0 0.0
        %2736 = vmatprep.subr.mxu0 0.0
        %2737 = vmatpush2.msra.mxu0 0.0
        %2738 = vmatprep.subr.mxu0 0.0
        %2739 = vmatpush2.msra.mxu0 0.0
        %2740 = vmatprep.subr.mxu0 0.0
        %2741 = vmatpush2.msra.mxu0 0.0
        %2742 = vmatprep.subr.mxu0 0.0
        %2743 = vmatpush2.msra.mxu0 0.0
        %2744 = vmatprep.subr.mxu0 0.0
        %2745 = vmatpush2.msra.mxu0 0.0
        %2746 = vmatprep.subr.mxu0 0.0
        %2747 = vmatpush2.msra.mxu0 0.0
        %2748 = vmatprep.subr.mxu0 0.0
        %2749 = vmatpush2.msra.mxu0 0.0
        %2750 = vmatprep.subr.mxu0 %v2055
        %2751 = vmatpush2.msra.mxu0 %v2053
        %2752 = vmatprep.subr.mxu0 %v2049
        %2753 = vmatpush2.msra.mxu0 %v2047
        %2754 = vmatprep.subr.mxu0 %v2043
        %2755 = vmatpush2.msra.mxu0 %v2041
        %2756 = vmatprep.subr.mxu0 %v2037
        %2757 = vmatpush2.msra.mxu0 %v2035
        %2758 = vmatprep.subr.mxu0 %v2031
        %2759 = vmatpush2.msra.mxu0 %v2029
        %2760 = vmatprep.subr.mxu0 %v2025
        %2761 = vmatpush2.msra.mxu0 %v2023
        %2762 = vmatprep.subr.mxu0 %v2019
        %2763 = vmatpush2.msra.mxu0 %v2017
        %2764 = vmatprep.subr.mxu0 %v2013
        %2765 = vmatpush2.msra.mxu0 %v2011
        %2766 = vmatprep.mubr.f32.mxu0 %v2634
        %2767 = vmatmul.mubr.f32.gmra.mxu0 %v1250
        %v2768 = vpop.f32.mrf.mxu0
        %v2769 = vadd.f32 0.0, %v2768
        %v2770 = vpop.f32.mrf.mxu0
        %v2771 = vadd.f32 0.0, %v2770
        %2772 = vmatprep.mubr.f32.mxu0 %v2637
        %2773 = vmatmul.mubr.f32.gmra.mxu0 %v1252
        %v2774 = vpop.f32.mrf.mxu0
        %v2775 = vadd.f32 0.0, %v2774
        %v2776 = vpop.f32.mrf.mxu0
        %v2777 = vadd.f32 0.0, %v2776
        %2778 = vmatprep.mubr.f32.mxu0 %v2640
        %2779 = vmatmul.mubr.f32.gmra.mxu0 %v1254
        %v2780 = vpop.f32.mrf.mxu0
        %v2781 = vadd.f32 0.0, %v2780
        %v2782 = vpop.f32.mrf.mxu0
        %v2783 = vadd.f32 0.0, %v2782
        %2784 = vmatprep.mubr.f32.mxu0 %v2643
        %2785 = vmatmul.mubr.f32.gmra.mxu0 %v1256
        %v2786 = vpop.f32.mrf.mxu0
        %v2787 = vadd.f32 0.0, %v2786
        %v2788 = vpop.f32.mrf.mxu0
        %v2789 = vadd.f32 0.0, %v2788
        %2790 = vmatprep.mubr.f32.mxu0 %v2646
        %2791 = vmatmul.mubr.f32.gmra.mxu0 %v1258
        %v2792 = vpop.f32.mrf.mxu0
        %v2793 = vadd.f32 0.0, %v2792
        %v2794 = vpop.f32.mrf.mxu0
        %v2795 = vadd.f32 0.0, %v2794
        %2796 = vmatprep.mubr.f32.mxu0 %v2649
        %2797 = vmatmul.mubr.f32.gmra.mxu0 %v1260
        %v2798 = vpop.f32.mrf.mxu0
        %v2799 = vadd.f32 0.0, %v2798
        %v2800 = vpop.f32.mrf.mxu0
        %v2801 = vadd.f32 0.0, %v2800
        %2802 = vmatprep.mubr.f32.mxu0 %v2652
        %2803 = vmatmul.mubr.f32.gmra.mxu0 %v1262
        %v2804 = vpop.f32.mrf.mxu0
        %v2805 = vadd.f32 0.0, %v2804
        %v2806 = vpop.f32.mrf.mxu0
        %v2807 = vadd.f32 0.0, %v2806
        %2808 = vmatprep.mubr.f32.mxu0 %v2655
        %2809 = vmatmul.mubr.f32.gmra.mxu0 %v1264
        %v2810 = vpop.f32.mrf.mxu0
        %v2811 = vadd.f32 0.0, %v2810
        %v2812 = vpop.f32.mrf.mxu0
        %v2813 = vadd.f32 0.0, %v2812
        %2814 = vmatprep.mubr.f32.mxu0 %v2658
        %2815 = vmatmul.mubr.f32.gmra.mxu0 %v1266
        %v2816 = vpop.f32.mrf.mxu0
        %v2817 = vadd.f32 0.0, %v2816
        %v2818 = vpop.f32.mrf.mxu0
        %v2819 = vadd.f32 0.0, %v2818
        %2820 = vmatprep.mubr.f32.mxu0 %v2661
        %2821 = vmatmul.mubr.f32.gmra.mxu0 %v1268
        %v2822 = vpop.f32.mrf.mxu0
        %v2823 = vadd.f32 0.0, %v2822
        %v2824 = vpop.f32.mrf.mxu0
        %v2825 = vadd.f32 0.0, %v2824
        %2826 = vmatprep.mubr.f32.mxu0 %v2664
        %2827 = vmatmul.mubr.f32.gmra.mxu0 %v1270
        %v2828 = vpop.f32.mrf.mxu0
        %v2829 = vadd.f32 0.0, %v2828
        %v2830 = vpop.f32.mrf.mxu0
        %v2831 = vadd.f32 0.0, %v2830
        %2832 = vmatprep.mubr.f32.mxu0 %v2667
        %2833 = vmatmul.mubr.f32.gmra.mxu0 %v1272
        %v2834 = vpop.f32.mrf.mxu0
        %v2835 = vadd.f32 0.0, %v2834
        %v2836 = vpop.f32.mrf.mxu0
        %v2837 = vadd.f32 0.0, %v2836
        %2838 = vmatprep.mubr.f32.mxu0 %v2670
        %2839 = vmatmul.mubr.f32.gmra.mxu0 %v1274
        %v2840 = vpop.f32.mrf.mxu0
        %v2841 = vadd.f32 0.0, %v2840
        %v2842 = vpop.f32.mrf.mxu0
        %v2843 = vadd.f32 0.0, %v2842
        %2844 = vmatprep.mubr.f32.mxu0 %v2673
        %2845 = vmatmul.mubr.f32.gmra.mxu0 %v1276
        %v2846 = vpop.f32.mrf.mxu0
        %v2847 = vadd.f32 0.0, %v2846
        %v2848 = vpop.f32.mrf.mxu0
        %v2849 = vadd.f32 0.0, %v2848
        %2850 = vmatprep.mubr.f32.mxu0 %v2676
        %2851 = vmatmul.mubr.f32.gmra.mxu0 %v1278
        %v2852 = vpop.f32.mrf.mxu0
        %v2853 = vadd.f32 0.0, %v2852
        %v2854 = vpop.f32.mrf.mxu0
        %v2855 = vadd.f32 0.0, %v2854
        %2856 = vmatprep.mubr.f32.mxu0 %v2679
        %2857 = vmatmul.mubr.f32.gmra.mxu0 %v1280
        %v2858 = vpop.f32.mrf.mxu0
        %v2859 = vadd.f32 0.0, %v2858
        %v2860 = vpop.f32.mrf.mxu0
        %v2861 = vadd.f32 0.0, %v2860
        %2862 = vmatprep.mubr.f32.mxu0 %v2682
        %2863 = vmatmul.mubr.f32.gmra.mxu0 %v1282
        %v2864 = vpop.f32.mrf.mxu0
        %v2865 = vadd.f32 0.0, %v2864
        %v2866 = vpop.f32.mrf.mxu0
        %v2867 = vadd.f32 0.0, %v2866
        %2868 = vmatprep.mubr.f32.mxu0 %v2685
        %2869 = vmatmul.mubr.f32.gmra.mxu0 %v1284
        %v2870 = vpop.f32.mrf.mxu0
        %v2871 = vadd.f32 0.0, %v2870
        %v2872 = vpop.f32.mrf.mxu0
        %v2873 = vadd.f32 0.0, %v2872
        %2874 = vmatprep.mubr.f32.mxu0 %v2688
        %2875 = vmatmul.mubr.f32.gmra.mxu0 %v1286
        %v2876 = vpop.f32.mrf.mxu0
        %v2877 = vadd.f32 0.0, %v2876
        %v2878 = vpop.f32.mrf.mxu0
        %v2879 = vadd.f32 0.0, %v2878
        %2880 = vmatprep.mubr.f32.mxu0 %v2691
        %2881 = vmatmul.mubr.f32.gmra.mxu0 %v1288
        %v2882 = vpop.f32.mrf.mxu0
        %v2883 = vadd.f32 0.0, %v2882
        %v2884 = vpop.f32.mrf.mxu0
        %v2885 = vadd.f32 0.0, %v2884
        %2886 = vmatprep.mubr.f32.mxu0 %v2694
        %2887 = vmatmul.mubr.f32.gmra.mxu0 %v1290
        %v2888 = vpop.f32.mrf.mxu0
        %v2889 = vadd.f32 0.0, %v2888
        %v2890 = vpop.f32.mrf.mxu0
        %v2891 = vadd.f32 0.0, %v2890
        %2892 = vmatprep.mubr.f32.mxu0 %v2697
        %2893 = vmatmul.mubr.f32.gmra.mxu0 %v1292
        %v2894 = vpop.f32.mrf.mxu0
        %v2895 = vadd.f32 0.0, %v2894
        %v2896 = vpop.f32.mrf.mxu0
        %v2897 = vadd.f32 0.0, %v2896
        %2898 = vmatprep.mubr.f32.mxu0 %v2700
        %2899 = vmatmul.mubr.f32.gmra.mxu0 %v1294
        %v2900 = vpop.f32.mrf.mxu0
        %v2901 = vadd.f32 0.0, %v2900
        %v2902 = vpop.f32.mrf.mxu0
        %v2903 = vadd.f32 0.0, %v2902
        %2904 = vdwg.mxu0
        %2905 = vmatprep.subr.mxu0 %v2151
        %2906 = vmatpush1.msra.mxu0 %v2149
        %2907 = vmatprep.subr.mxu0 %v2145
        %2908 = vmatpush1.msra.mxu0 %v2143
        %2909 = vmatprep.subr.mxu0 %v2139
        %2910 = vmatpush1.msra.mxu0 %v2137
        %2911 = vmatprep.subr.mxu0 %v2133
        %2912 = vmatpush1.msra.mxu0 %v2131
        %2913 = vmatprep.subr.mxu0 %v2127
        %2914 = vmatpush1.msra.mxu0 %v2125
        %2915 = vmatprep.subr.mxu0 %v2121
        %2916 = vmatpush1.msra.mxu0 %v2119
        %2917 = vmatprep.subr.mxu0 %v2115
        %2918 = vmatpush1.msra.mxu0 %v2113
        %2919 = vmatprep.subr.mxu0 %v2109
        %2920 = vmatpush1.msra.mxu0 %v2107
        %2921 = vmatprep.subr.mxu0 %v2103
        %2922 = vmatpush1.msra.mxu0 %v2101
        %2923 = vmatprep.subr.mxu0 %v2097
        %2924 = vmatpush1.msra.mxu0 %v2095
        %2925 = vmatprep.subr.mxu0 %v2091
        %2926 = vmatpush1.msra.mxu0 %v2089
        %2927 = vmatprep.subr.mxu0 %v2085
        %2928 = vmatpush1.msra.mxu0 %v2083
        %2929 = vmatprep.subr.mxu0 %v2079
        %2930 = vmatpush1.msra.mxu0 %v2077
        %2931 = vmatprep.subr.mxu0 %v2073
        %2932 = vmatpush1.msra.mxu0 %v2071
        %2933 = vmatprep.subr.mxu0 %v2067
        %2934 = vmatpush1.msra.mxu0 %v2065
        %2935 = vmatprep.subr.mxu0 %v2061
        %2936 = vmatpush1.msra.mxu0 %v2059
        %2937 = vmatprep.subr.mxu0 0.0
        %2938 = vmatpush2.msra.mxu0 0.0
        %2939 = vmatprep.subr.mxu0 0.0
        %2940 = vmatpush2.msra.mxu0 0.0
        %2941 = vmatprep.subr.mxu0 0.0
        %2942 = vmatpush2.msra.mxu0 0.0
        %2943 = vmatprep.subr.mxu0 0.0
        %2944 = vmatpush2.msra.mxu0 0.0
        %2945 = vmatprep.subr.mxu0 0.0
        %2946 = vmatpush2.msra.mxu0 0.0
        %2947 = vmatprep.subr.mxu0 0.0
        %2948 = vmatpush2.msra.mxu0 0.0
        %2949 = vmatprep.subr.mxu0 0.0
        %2950 = vmatpush2.msra.mxu0 0.0
        %2951 = vmatprep.subr.mxu0 0.0
        %2952 = vmatpush2.msra.mxu0 0.0
        %2953 = vmatprep.subr.mxu0 %v2199
        %2954 = vmatpush2.msra.mxu0 %v2197
        %2955 = vmatprep.subr.mxu0 %v2193
        %2956 = vmatpush2.msra.mxu0 %v2191
        %2957 = vmatprep.subr.mxu0 %v2187
        %2958 = vmatpush2.msra.mxu0 %v2185
        %2959 = vmatprep.subr.mxu0 %v2181
        %2960 = vmatpush2.msra.mxu0 %v2179
        %2961 = vmatprep.subr.mxu0 %v2175
        %2962 = vmatpush2.msra.mxu0 %v2173
        %2963 = vmatprep.subr.mxu0 %v2169
        %2964 = vmatpush2.msra.mxu0 %v2167
        %2965 = vmatprep.subr.mxu0 %v2163
        %2966 = vmatpush2.msra.mxu0 %v2161
        %2967 = vmatprep.subr.mxu0 %v2157
        %2968 = vmatpush2.msra.mxu0 %v2155
        %2969 = vmatprep.mubr.f32.mxu0 %v2634
        %2970 = vmatmul.mubr.f32.gmra.mxu0 %v1250
        %v2971 = vpop.f32.mrf.mxu0
        %v2972 = vadd.f32 0.0, %v2971
        %v2973 = vpop.f32.mrf.mxu0
        %v2974 = vadd.f32 0.0, %v2973
        %2975 = vmatprep.mubr.f32.mxu0 %v2637
        %2976 = vmatmul.mubr.f32.gmra.mxu0 %v1252
        %v2977 = vpop.f32.mrf.mxu0
        %v2978 = vadd.f32 0.0, %v2977
        %v2979 = vpop.f32.mrf.mxu0
        %v2980 = vadd.f32 0.0, %v2979
        %2981 = vmatprep.mubr.f32.mxu0 %v2640
        %2982 = vmatmul.mubr.f32.gmra.mxu0 %v1254
        %v2983 = vpop.f32.mrf.mxu0
        %v2984 = vadd.f32 0.0, %v2983
        %v2985 = vpop.f32.mrf.mxu0
        %v2986 = vadd.f32 0.0, %v2985
        %2987 = vmatprep.mubr.f32.mxu0 %v2643
        %2988 = vmatmul.mubr.f32.gmra.mxu0 %v1256
        %v2989 = vpop.f32.mrf.mxu0
        %v2990 = vadd.f32 0.0, %v2989
        %v2991 = vpop.f32.mrf.mxu0
        %v2992 = vadd.f32 0.0, %v2991
        %2993 = vmatprep.mubr.f32.mxu0 %v2646
        %2994 = vmatmul.mubr.f32.gmra.mxu0 %v1258
        %v2995 = vpop.f32.mrf.mxu0
        %v2996 = vadd.f32 0.0, %v2995
        %v2997 = vpop.f32.mrf.mxu0
        %v2998 = vadd.f32 0.0, %v2997
        %2999 = vmatprep.mubr.f32.mxu0 %v2649
        %3000 = vmatmul.mubr.f32.gmra.mxu0 %v1260
        %v3001 = vpop.f32.mrf.mxu0
        %v3002 = vadd.f32 0.0, %v3001
        %v3003 = vpop.f32.mrf.mxu0
        %v3004 = vadd.f32 0.0, %v3003
        %3005 = vmatprep.mubr.f32.mxu0 %v2652
        %3006 = vmatmul.mubr.f32.gmra.mxu0 %v1262
        %v3007 = vpop.f32.mrf.mxu0
        %v3008 = vadd.f32 0.0, %v3007
        %v3009 = vpop.f32.mrf.mxu0
        %v3010 = vadd.f32 0.0, %v3009
        %3011 = vmatprep.mubr.f32.mxu0 %v2655
        %3012 = vmatmul.mubr.f32.gmra.mxu0 %v1264
        %v3013 = vpop.f32.mrf.mxu0
        %v3014 = vadd.f32 0.0, %v3013
        %v3015 = vpop.f32.mrf.mxu0
        %v3016 = vadd.f32 0.0, %v3015
        %3017 = vmatprep.mubr.f32.mxu0 %v2658
        %3018 = vmatmul.mubr.f32.gmra.mxu0 %v1266
        %v3019 = vpop.f32.mrf.mxu0
        %v3020 = vadd.f32 0.0, %v3019
        %v3021 = vpop.f32.mrf.mxu0
        %v3022 = vadd.f32 0.0, %v3021
        %3023 = vmatprep.mubr.f32.mxu0 %v2661
        %3024 = vmatmul.mubr.f32.gmra.mxu0 %v1268
        %v3025 = vpop.f32.mrf.mxu0
        %v3026 = vadd.f32 0.0, %v3025
        %v3027 = vpop.f32.mrf.mxu0
        %v3028 = vadd.f32 0.0, %v3027
        %3029 = vmatprep.mubr.f32.mxu0 %v2664
        %3030 = vmatmul.mubr.f32.gmra.mxu0 %v1270
        %v3031 = vpop.f32.mrf.mxu0
        %v3032 = vadd.f32 0.0, %v3031
        %v3033 = vpop.f32.mrf.mxu0
        %v3034 = vadd.f32 0.0, %v3033
        %3035 = vmatprep.mubr.f32.mxu0 %v2667
        %3036 = vmatmul.mubr.f32.gmra.mxu0 %v1272
        %v3037 = vpop.f32.mrf.mxu0
        %v3038 = vadd.f32 0.0, %v3037
        %v3039 = vpop.f32.mrf.mxu0
        %v3040 = vadd.f32 0.0, %v3039
        %3041 = vmatprep.mubr.f32.mxu0 %v2670
        %3042 = vmatmul.mubr.f32.gmra.mxu0 %v1274
        %v3043 = vpop.f32.mrf.mxu0
        %v3044 = vadd.f32 0.0, %v3043
        %v3045 = vpop.f32.mrf.mxu0
        %v3046 = vadd.f32 0.0, %v3045
        %3047 = vmatprep.mubr.f32.mxu0 %v2673
        %3048 = vmatmul.mubr.f32.gmra.mxu0 %v1276
        %v3049 = vpop.f32.mrf.mxu0
        %v3050 = vadd.f32 0.0, %v3049
        %v3051 = vpop.f32.mrf.mxu0
        %v3052 = vadd.f32 0.0, %v3051
        %3053 = vmatprep.mubr.f32.mxu0 %v2676
        %3054 = vmatmul.mubr.f32.gmra.mxu0 %v1278
        %v3055 = vpop.f32.mrf.mxu0
        %v3056 = vadd.f32 0.0, %v3055
        %v3057 = vpop.f32.mrf.mxu0
        %v3058 = vadd.f32 0.0, %v3057
        %3059 = vmatprep.mubr.f32.mxu0 %v2679
        %3060 = vmatmul.mubr.f32.gmra.mxu0 %v1280
        %v3061 = vpop.f32.mrf.mxu0
        %v3062 = vadd.f32 0.0, %v3061
        %v3063 = vpop.f32.mrf.mxu0
        %v3064 = vadd.f32 0.0, %v3063
        %3065 = vmatprep.mubr.f32.mxu0 %v2682
        %3066 = vmatmul.mubr.f32.gmra.mxu0 %v1282
        %v3067 = vpop.f32.mrf.mxu0
        %v3068 = vadd.f32 0.0, %v3067
        %v3069 = vpop.f32.mrf.mxu0
        %v3070 = vadd.f32 0.0, %v3069
        %3071 = vmatprep.mubr.f32.mxu0 %v2685
        %3072 = vmatmul.mubr.f32.gmra.mxu0 %v1284
        %v3073 = vpop.f32.mrf.mxu0
        %v3074 = vadd.f32 0.0, %v3073
        %v3075 = vpop.f32.mrf.mxu0
        %v3076 = vadd.f32 0.0, %v3075
        %3077 = vmatprep.mubr.f32.mxu0 %v2688
        %3078 = vmatmul.mubr.f32.gmra.mxu0 %v1286
        %v3079 = vpop.f32.mrf.mxu0
        %v3080 = vadd.f32 0.0, %v3079
        %v3081 = vpop.f32.mrf.mxu0
        %v3082 = vadd.f32 0.0, %v3081
        %3083 = vmatprep.mubr.f32.mxu0 %v2691
        %3084 = vmatmul.mubr.f32.gmra.mxu0 %v1288
        %v3085 = vpop.f32.mrf.mxu0
        %v3086 = vadd.f32 0.0, %v3085
        %v3087 = vpop.f32.mrf.mxu0
        %v3088 = vadd.f32 0.0, %v3087
        %3089 = vmatprep.mubr.f32.mxu0 %v2694
        %3090 = vmatmul.mubr.f32.gmra.mxu0 %v1290
        %v3091 = vpop.f32.mrf.mxu0
        %v3092 = vadd.f32 0.0, %v3091
        %v3093 = vpop.f32.mrf.mxu0
        %v3094 = vadd.f32 0.0, %v3093
        %3095 = vmatprep.mubr.f32.mxu0 %v2697
        %3096 = vmatmul.mubr.f32.gmra.mxu0 %v1292
        %v3097 = vpop.f32.mrf.mxu0
        %v3098 = vadd.f32 0.0, %v3097
        %v3099 = vpop.f32.mrf.mxu0
        %v3100 = vadd.f32 0.0, %v3099
        %3101 = vmatprep.mubr.f32.mxu0 %v2700
        %3102 = vmatmul.mubr.f32.gmra.mxu0 %v1294
        %v3103 = vpop.f32.mrf.mxu0
        %v3104 = vadd.f32 0.0, %v3103
        %v3105 = vpop.f32.mrf.mxu0
        %v3106 = vadd.f32 0.0, %v3105
        %3107 = vdwg.mxu0
        %3108 = vmatprep.subr.mxu0 %v2295
        %3109 = vmatpush1.msra.mxu0 %v2293
        %3110 = vmatprep.subr.mxu0 %v2289
        %3111 = vmatpush1.msra.mxu0 %v2287
        %3112 = vmatprep.subr.mxu0 %v2283
        %3113 = vmatpush1.msra.mxu0 %v2281
        %3114 = vmatprep.subr.mxu0 %v2277
        %3115 = vmatpush1.msra.mxu0 %v2275
        %3116 = vmatprep.subr.mxu0 %v2271
        %3117 = vmatpush1.msra.mxu0 %v2269
        %3118 = vmatprep.subr.mxu0 %v2265
        %3119 = vmatpush1.msra.mxu0 %v2263
        %3120 = vmatprep.subr.mxu0 %v2259
        %3121 = vmatpush1.msra.mxu0 %v2257
        %3122 = vmatprep.subr.mxu0 %v2253
        %3123 = vmatpush1.msra.mxu0 %v2251
        %3124 = vmatprep.subr.mxu0 %v2247
        %3125 = vmatpush1.msra.mxu0 %v2245
        %3126 = vmatprep.subr.mxu0 %v2241
        %3127 = vmatpush1.msra.mxu0 %v2239
        %3128 = vmatprep.subr.mxu0 %v2235
        %3129 = vmatpush1.msra.mxu0 %v2233
        %3130 = vmatprep.subr.mxu0 %v2229
        %3131 = vmatpush1.msra.mxu0 %v2227
        %3132 = vmatprep.subr.mxu0 %v2223
        %3133 = vmatpush1.msra.mxu0 %v2221
        %3134 = vmatprep.subr.mxu0 %v2217
        %3135 = vmatpush1.msra.mxu0 %v2215
        %3136 = vmatprep.subr.mxu0 %v2211
        %3137 = vmatpush1.msra.mxu0 %v2209
        %3138 = vmatprep.subr.mxu0 %v2205
        %3139 = vmatpush1.msra.mxu0 %v2203
        %3140 = vmatprep.subr.mxu0 0.0
        %3141 = vmatpush2.msra.mxu0 0.0
        %3142 = vmatprep.subr.mxu0 0.0
        %3143 = vmatpush2.msra.mxu0 0.0
        %3144 = vmatprep.subr.mxu0 0.0
        %3145 = vmatpush2.msra.mxu0 0.0
        %3146 = vmatprep.subr.mxu0 0.0
        %3147 = vmatpush2.msra.mxu0 0.0
        %3148 = vmatprep.subr.mxu0 0.0
        %3149 = vmatpush2.msra.mxu0 0.0
        %3150 = vmatprep.subr.mxu0 0.0
        %3151 = vmatpush2.msra.mxu0 0.0
        %3152 = vmatprep.subr.mxu0 0.0
        %3153 = vmatpush2.msra.mxu0 0.0
        %3154 = vmatprep.subr.mxu0 0.0
        %3155 = vmatpush2.msra.mxu0 0.0
        %3156 = vmatprep.subr.mxu0 %v2343
        %3157 = vmatpush2.msra.mxu0 %v2341
        %3158 = vmatprep.subr.mxu0 %v2337
        %3159 = vmatpush2.msra.mxu0 %v2335
        %3160 = vmatprep.subr.mxu0 %v2331
        %3161 = vmatpush2.msra.mxu0 %v2329
        %3162 = vmatprep.subr.mxu0 %v2325
        %3163 = vmatpush2.msra.mxu0 %v2323
        %3164 = vmatprep.subr.mxu0 %v2319
        %3165 = vmatpush2.msra.mxu0 %v2317
        %3166 = vmatprep.subr.mxu0 %v2313
        %3167 = vmatpush2.msra.mxu0 %v2311
        %3168 = vmatprep.subr.mxu0 %v2307
        %3169 = vmatpush2.msra.mxu0 %v2305
        %3170 = vmatprep.subr.mxu0 %v2301
        %3171 = vmatpush2.msra.mxu0 %v2299
        %3172 = vmatprep.mubr.f32.mxu0 %v2634
        %3173 = vmatmul.mubr.f32.gmra.mxu0 %v1250
        %v3174 = vpop.f32.mrf.mxu0
        %v3175 = vadd.f32 0.0, %v3174
        %v3176 = vpop.f32.mrf.mxu0
        %v3177 = vadd.f32 0.0, %v3176
        %3178 = vmatprep.mubr.f32.mxu0 %v2637
        %3179 = vmatmul.mubr.f32.gmra.mxu0 %v1252
        %v3180 = vpop.f32.mrf.mxu0
        %v3181 = vadd.f32 0.0, %v3180
        %v3182 = vpop.f32.mrf.mxu0
        %v3183 = vadd.f32 0.0, %v3182
        %3184 = vmatprep.mubr.f32.mxu0 %v2640
        %3185 = vmatmul.mubr.f32.gmra.mxu0 %v1254
        %v3186 = vpop.f32.mrf.mxu0
        %v3187 = vadd.f32 0.0, %v3186
        %v3188 = vpop.f32.mrf.mxu0
        %v3189 = vadd.f32 0.0, %v3188
        %3190 = vmatprep.mubr.f32.mxu0 %v2643
        %3191 = vmatmul.mubr.f32.gmra.mxu0 %v1256
        %v3192 = vpop.f32.mrf.mxu0
        %v3193 = vadd.f32 0.0, %v3192
        %v3194 = vpop.f32.mrf.mxu0
        %v3195 = vadd.f32 0.0, %v3194
        %3196 = vmatprep.mubr.f32.mxu0 %v2646
        %3197 = vmatmul.mubr.f32.gmra.mxu0 %v1258
        %v3198 = vpop.f32.mrf.mxu0
        %v3199 = vadd.f32 0.0, %v3198
        %v3200 = vpop.f32.mrf.mxu0
        %v3201 = vadd.f32 0.0, %v3200
        %3202 = vmatprep.mubr.f32.mxu0 %v2649
        %3203 = vmatmul.mubr.f32.gmra.mxu0 %v1260
        %v3204 = vpop.f32.mrf.mxu0
        %v3205 = vadd.f32 0.0, %v3204
        %v3206 = vpop.f32.mrf.mxu0
        %v3207 = vadd.f32 0.0, %v3206
        %3208 = vmatprep.mubr.f32.mxu0 %v2652
        %3209 = vmatmul.mubr.f32.gmra.mxu0 %v1262
        %v3210 = vpop.f32.mrf.mxu0
        %v3211 = vadd.f32 0.0, %v3210
        %v3212 = vpop.f32.mrf.mxu0
        %v3213 = vadd.f32 0.0, %v3212
        %3214 = vmatprep.mubr.f32.mxu0 %v2655
        %3215 = vmatmul.mubr.f32.gmra.mxu0 %v1264
        %v3216 = vpop.f32.mrf.mxu0
        %v3217 = vadd.f32 0.0, %v3216
        %v3218 = vpop.f32.mrf.mxu0
        %v3219 = vadd.f32 0.0, %v3218
        %3220 = vmatprep.mubr.f32.mxu0 %v2658
        %3221 = vmatmul.mubr.f32.gmra.mxu0 %v1266
        %v3222 = vpop.f32.mrf.mxu0
        %v3223 = vadd.f32 0.0, %v3222
        %v3224 = vpop.f32.mrf.mxu0
        %v3225 = vadd.f32 0.0, %v3224
        %3226 = vmatprep.mubr.f32.mxu0 %v2661
        %3227 = vmatmul.mubr.f32.gmra.mxu0 %v1268
        %v3228 = vpop.f32.mrf.mxu0
        %v3229 = vadd.f32 0.0, %v3228
        %v3230 = vpop.f32.mrf.mxu0
        %v3231 = vadd.f32 0.0, %v3230
        %3232 = vmatprep.mubr.f32.mxu0 %v2664
        %3233 = vmatmul.mubr.f32.gmra.mxu0 %v1270
        %v3234 = vpop.f32.mrf.mxu0
        %v3235 = vadd.f32 0.0, %v3234
        %v3236 = vpop.f32.mrf.mxu0
        %v3237 = vadd.f32 0.0, %v3236
        %3238 = vmatprep.mubr.f32.mxu0 %v2667
        %3239 = vmatmul.mubr.f32.gmra.mxu0 %v1272
        %v3240 = vpop.f32.mrf.mxu0
        %v3241 = vadd.f32 0.0, %v3240
        %v3242 = vpop.f32.mrf.mxu0
        %v3243 = vadd.f32 0.0, %v3242
        %3244 = vmatprep.mubr.f32.mxu0 %v2670
        %3245 = vmatmul.mubr.f32.gmra.mxu0 %v1274
        %v3246 = vpop.f32.mrf.mxu0
        %v3247 = vadd.f32 0.0, %v3246
        %v3248 = vpop.f32.mrf.mxu0
        %v3249 = vadd.f32 0.0, %v3248
        %3250 = vmatprep.mubr.f32.mxu0 %v2673
        %3251 = vmatmul.mubr.f32.gmra.mxu0 %v1276
        %v3252 = vpop.f32.mrf.mxu0
        %v3253 = vadd.f32 0.0, %v3252
        %v3254 = vpop.f32.mrf.mxu0
        %v3255 = vadd.f32 0.0, %v3254
        %3256 = vmatprep.mubr.f32.mxu0 %v2676
        %3257 = vmatmul.mubr.f32.gmra.mxu0 %v1278
        %v3258 = vpop.f32.mrf.mxu0
        %v3259 = vadd.f32 0.0, %v3258
        %v3260 = vpop.f32.mrf.mxu0
        %v3261 = vadd.f32 0.0, %v3260
        %3262 = vmatprep.mubr.f32.mxu0 %v2679
        %3263 = vmatmul.mubr.f32.gmra.mxu0 %v1280
        %v3264 = vpop.f32.mrf.mxu0
        %v3265 = vadd.f32 0.0, %v3264
        %v3266 = vpop.f32.mrf.mxu0
        %v3267 = vadd.f32 0.0, %v3266
        %3268 = vmatprep.mubr.f32.mxu0 %v2682
        %3269 = vmatmul.mubr.f32.gmra.mxu0 %v1282
        %v3270 = vpop.f32.mrf.mxu0
        %v3271 = vadd.f32 0.0, %v3270
        %v3272 = vpop.f32.mrf.mxu0
        %v3273 = vadd.f32 0.0, %v3272
        %3274 = vmatprep.mubr.f32.mxu0 %v2685
        %3275 = vmatmul.mubr.f32.gmra.mxu0 %v1284
        %v3276 = vpop.f32.mrf.mxu0
        %v3277 = vadd.f32 0.0, %v3276
        %v3278 = vpop.f32.mrf.mxu0
        %v3279 = vadd.f32 0.0, %v3278
        %3280 = vmatprep.mubr.f32.mxu0 %v2688
        %3281 = vmatmul.mubr.f32.gmra.mxu0 %v1286
        %v3282 = vpop.f32.mrf.mxu0
        %v3283 = vadd.f32 0.0, %v3282
        %v3284 = vpop.f32.mrf.mxu0
        %v3285 = vadd.f32 0.0, %v3284
        %3286 = vmatprep.mubr.f32.mxu0 %v2691
        %3287 = vmatmul.mubr.f32.gmra.mxu0 %v1288
        %v3288 = vpop.f32.mrf.mxu0
        %v3289 = vadd.f32 0.0, %v3288
        %v3290 = vpop.f32.mrf.mxu0
        %v3291 = vadd.f32 0.0, %v3290
        %3292 = vmatprep.mubr.f32.mxu0 %v2694
        %3293 = vmatmul.mubr.f32.gmra.mxu0 %v1290
        %v3294 = vpop.f32.mrf.mxu0
        %v3295 = vadd.f32 0.0, %v3294
        %v3296 = vpop.f32.mrf.mxu0
        %v3297 = vadd.f32 0.0, %v3296
        %3298 = vmatprep.mubr.f32.mxu0 %v2697
        %3299 = vmatmul.mubr.f32.gmra.mxu0 %v1292
        %v3300 = vpop.f32.mrf.mxu0
        %v3301 = vadd.f32 0.0, %v3300
        %v3302 = vpop.f32.mrf.mxu0
        %v3303 = vadd.f32 0.0, %v3302
        %3304 = vmatprep.mubr.f32.mxu0 %v2700
        %3305 = vmatmul.mubr.f32.gmra.mxu0 %v1294
        %v3306 = vpop.f32.mrf.mxu0
        %v3307 = vadd.f32 0.0, %v3306
        %v3308 = vpop.f32.mrf.mxu0
        %v3309 = vadd.f32 0.0, %v3308
        %3310 = vdwg.mxu0
        %3311 = vmatprep.subr.mxu0 %v2439
        %3312 = vmatpush1.msra.mxu0 %v2437
        %3313 = vmatprep.subr.mxu0 %v2433
        %3314 = vmatpush1.msra.mxu0 %v2431
        %3315 = vmatprep.subr.mxu0 %v2427
        %3316 = vmatpush1.msra.mxu0 %v2425
        %3317 = vmatprep.subr.mxu0 %v2421
        %3318 = vmatpush1.msra.mxu0 %v2419
        %3319 = vmatprep.subr.mxu0 %v2415
        %3320 = vmatpush1.msra.mxu0 %v2413
        %3321 = vmatprep.subr.mxu0 %v2409
        %3322 = vmatpush1.msra.mxu0 %v2407
        %3323 = vmatprep.subr.mxu0 %v2403
        %3324 = vmatpush1.msra.mxu0 %v2401
        %3325 = vmatprep.subr.mxu0 %v2397
        %3326 = vmatpush1.msra.mxu0 %v2395
        %3327 = vmatprep.subr.mxu0 %v2391
        %3328 = vmatpush1.msra.mxu0 %v2389
        %3329 = vmatprep.subr.mxu0 %v2385
        %3330 = vmatpush1.msra.mxu0 %v2383
        %3331 = vmatprep.subr.mxu0 %v2379
        %3332 = vmatpush1.msra.mxu0 %v2377
        %3333 = vmatprep.subr.mxu0 %v2373
        %3334 = vmatpush1.msra.mxu0 %v2371
        %3335 = vmatprep.subr.mxu0 %v2367
        %3336 = vmatpush1.msra.mxu0 %v2365
        %3337 = vmatprep.subr.mxu0 %v2361
        %3338 = vmatpush1.msra.mxu0 %v2359
        %3339 = vmatprep.subr.mxu0 %v2355
        %3340 = vmatpush1.msra.mxu0 %v2353
        %3341 = vmatprep.subr.mxu0 %v2349
        %3342 = vmatpush1.msra.mxu0 %v2347
        %3343 = vmatprep.subr.mxu0 0.0
        %3344 = vmatpush2.msra.mxu0 0.0
        %3345 = vmatprep.subr.mxu0 0.0
        %3346 = vmatpush2.msra.mxu0 0.0
        %3347 = vmatprep.subr.mxu0 0.0
        %3348 = vmatpush2.msra.mxu0 0.0
        %3349 = vmatprep.subr.mxu0 0.0
        %3350 = vmatpush2.msra.mxu0 0.0
        %3351 = vmatprep.subr.mxu0 0.0
        %3352 = vmatpush2.msra.mxu0 0.0
        %3353 = vmatprep.subr.mxu0 0.0
        %3354 = vmatpush2.msra.mxu0 0.0
        %3355 = vmatprep.subr.mxu0 0.0
        %3356 = vmatpush2.msra.mxu0 0.0
        %3357 = vmatprep.subr.mxu0 0.0
        %3358 = vmatpush2.msra.mxu0 0.0
        %3359 = vmatprep.subr.mxu0 %v2487
        %3360 = vmatpush2.msra.mxu0 %v2485
        %3361 = vmatprep.subr.mxu0 %v2481
        %3362 = vmatpush2.msra.mxu0 %v2479
        %3363 = vmatprep.subr.mxu0 %v2475
        %3364 = vmatpush2.msra.mxu0 %v2473
        %3365 = vmatprep.subr.mxu0 %v2469
        %3366 = vmatpush2.msra.mxu0 %v2467
        %3367 = vmatprep.subr.mxu0 %v2463
        %3368 = vmatpush2.msra.mxu0 %v2461
        %3369 = vmatprep.subr.mxu0 %v2457
        %3370 = vmatpush2.msra.mxu0 %v2455
        %3371 = vmatprep.subr.mxu0 %v2451
        %3372 = vmatpush2.msra.mxu0 %v2449
        %3373 = vmatprep.subr.mxu0 %v2445
        %3374 = vmatpush2.msra.mxu0 %v2443
        %3375 = vmatprep.mubr.f32.mxu0 %v2634
        %3376 = vmatmul.mubr.f32.gmra.mxu0 %v1250
        %v3377 = vpop.f32.mrf.mxu0
        %v3378 = vadd.f32 0.0, %v3377
        %v3379 = vpop.f32.mrf.mxu0
        %v3380 = vadd.f32 0.0, %v3379
        %3381 = vmatprep.mubr.f32.mxu0 %v2637
        %3382 = vmatmul.mubr.f32.gmra.mxu0 %v1252
        %v3383 = vpop.f32.mrf.mxu0
        %v3384 = vadd.f32 0.0, %v3383
        %v3385 = vpop.f32.mrf.mxu0
        %v3386 = vadd.f32 0.0, %v3385
        %3387 = vmatprep.mubr.f32.mxu0 %v2640
        %3388 = vmatmul.mubr.f32.gmra.mxu0 %v1254
        %v3389 = vpop.f32.mrf.mxu0
        %v3390 = vadd.f32 0.0, %v3389
        %v3391 = vpop.f32.mrf.mxu0
        %v3392 = vadd.f32 0.0, %v3391
        %3393 = vmatprep.mubr.f32.mxu0 %v2643
        %3394 = vmatmul.mubr.f32.gmra.mxu0 %v1256
        %v3395 = vpop.f32.mrf.mxu0
        %v3396 = vadd.f32 0.0, %v3395
        %v3397 = vpop.f32.mrf.mxu0
        %v3398 = vadd.f32 0.0, %v3397
        %3399 = vmatprep.mubr.f32.mxu0 %v2646
        %3400 = vmatmul.mubr.f32.gmra.mxu0 %v1258
        %v3401 = vpop.f32.mrf.mxu0
        %v3402 = vadd.f32 0.0, %v3401
        %v3403 = vpop.f32.mrf.mxu0
        %v3404 = vadd.f32 0.0, %v3403
        %3405 = vmatprep.mubr.f32.mxu0 %v2649
        %3406 = vmatmul.mubr.f32.gmra.mxu0 %v1260
        %v3407 = vpop.f32.mrf.mxu0
        %v3408 = vadd.f32 0.0, %v3407
        %v3409 = vpop.f32.mrf.mxu0
        %v3410 = vadd.f32 0.0, %v3409
        %3411 = vmatprep.mubr.f32.mxu0 %v2652
        %3412 = vmatmul.mubr.f32.gmra.mxu0 %v1262
        %v3413 = vpop.f32.mrf.mxu0
        %v3414 = vadd.f32 0.0, %v3413
        %v3415 = vpop.f32.mrf.mxu0
        %v3416 = vadd.f32 0.0, %v3415
        %3417 = vmatprep.mubr.f32.mxu0 %v2655
        %3418 = vmatmul.mubr.f32.gmra.mxu0 %v1264
        %v3419 = vpop.f32.mrf.mxu0
        %v3420 = vadd.f32 0.0, %v3419
        %v3421 = vpop.f32.mrf.mxu0
        %v3422 = vadd.f32 0.0, %v3421
        %3423 = vmatprep.mubr.f32.mxu0 %v2658
        %3424 = vmatmul.mubr.f32.gmra.mxu0 %v1266
        %v3425 = vpop.f32.mrf.mxu0
        %v3426 = vadd.f32 0.0, %v3425
        %v3427 = vpop.f32.mrf.mxu0
        %v3428 = vadd.f32 0.0, %v3427
        %3429 = vmatprep.mubr.f32.mxu0 %v2661
        %3430 = vmatmul.mubr.f32.gmra.mxu0 %v1268
        %v3431 = vpop.f32.mrf.mxu0
        %v3432 = vadd.f32 0.0, %v3431
        %v3433 = vpop.f32.mrf.mxu0
        %v3434 = vadd.f32 0.0, %v3433
        %3435 = vmatprep.mubr.f32.mxu0 %v2664
        %3436 = vmatmul.mubr.f32.gmra.mxu0 %v1270
        %v3437 = vpop.f32.mrf.mxu0
        %v3438 = vadd.f32 0.0, %v3437
        %v3439 = vpop.f32.mrf.mxu0
        %v3440 = vadd.f32 0.0, %v3439
        %3441 = vmatprep.mubr.f32.mxu0 %v2667
        %3442 = vmatmul.mubr.f32.gmra.mxu0 %v1272
        %v3443 = vpop.f32.mrf.mxu0
        %v3444 = vadd.f32 0.0, %v3443
        %v3445 = vpop.f32.mrf.mxu0
        %v3446 = vadd.f32 0.0, %v3445
        %3447 = vmatprep.mubr.f32.mxu0 %v2670
        %3448 = vmatmul.mubr.f32.gmra.mxu0 %v1274
        %v3449 = vpop.f32.mrf.mxu0
        %v3450 = vadd.f32 0.0, %v3449
        %v3451 = vpop.f32.mrf.mxu0
        %v3452 = vadd.f32 0.0, %v3451
        %3453 = vmatprep.mubr.f32.mxu0 %v2673
        %3454 = vmatmul.mubr.f32.gmra.mxu0 %v1276
        %v3455 = vpop.f32.mrf.mxu0
        %v3456 = vadd.f32 0.0, %v3455
        %v3457 = vpop.f32.mrf.mxu0
        %v3458 = vadd.f32 0.0, %v3457
        %3459 = vmatprep.mubr.f32.mxu0 %v2676
        %3460 = vmatmul.mubr.f32.gmra.mxu0 %v1278
        %v3461 = vpop.f32.mrf.mxu0
        %v3462 = vadd.f32 0.0, %v3461
        %v3463 = vpop.f32.mrf.mxu0
        %v3464 = vadd.f32 0.0, %v3463
        %3465 = vmatprep.mubr.f32.mxu0 %v2679
        %3466 = vmatmul.mubr.f32.gmra.mxu0 %v1280
        %v3467 = vpop.f32.mrf.mxu0
        %v3468 = vadd.f32 0.0, %v3467
        %v3469 = vpop.f32.mrf.mxu0
        %v3470 = vadd.f32 0.0, %v3469
        %3471 = vmatprep.mubr.f32.mxu0 %v2682
        %3472 = vmatmul.mubr.f32.gmra.mxu0 %v1282
        %v3473 = vpop.f32.mrf.mxu0
        %v3474 = vadd.f32 0.0, %v3473
        %v3475 = vpop.f32.mrf.mxu0
        %v3476 = vadd.f32 0.0, %v3475
        %3477 = vmatprep.mubr.f32.mxu0 %v2685
        %3478 = vmatmul.mubr.f32.gmra.mxu0 %v1284
        %v3479 = vpop.f32.mrf.mxu0
        %v3480 = vadd.f32 0.0, %v3479
        %v3481 = vpop.f32.mrf.mxu0
        %v3482 = vadd.f32 0.0, %v3481
        %3483 = vmatprep.mubr.f32.mxu0 %v2688
        %3484 = vmatmul.mubr.f32.gmra.mxu0 %v1286
        %v3485 = vpop.f32.mrf.mxu0
        %v3486 = vadd.f32 0.0, %v3485
        %v3487 = vpop.f32.mrf.mxu0
        %v3488 = vadd.f32 0.0, %v3487
        %3489 = vmatprep.mubr.f32.mxu0 %v2691
        %3490 = vmatmul.mubr.f32.gmra.mxu0 %v1288
        %v3491 = vpop.f32.mrf.mxu0
        %v3492 = vadd.f32 0.0, %v3491
        %v3493 = vpop.f32.mrf.mxu0
        %v3494 = vadd.f32 0.0, %v3493
        %3495 = vmatprep.mubr.f32.mxu0 %v2694
        %3496 = vmatmul.mubr.f32.gmra.mxu0 %v1290
        %v3497 = vpop.f32.mrf.mxu0
        %v3498 = vadd.f32 0.0, %v3497
        %v3499 = vpop.f32.mrf.mxu0
        %v3500 = vadd.f32 0.0, %v3499
        %3501 = vmatprep.mubr.f32.mxu0 %v2697
        %3502 = vmatmul.mubr.f32.gmra.mxu0 %v1292
        %v3503 = vpop.f32.mrf.mxu0
        %v3504 = vadd.f32 0.0, %v3503
        %v3505 = vpop.f32.mrf.mxu0
        %v3506 = vadd.f32 0.0, %v3505
        %3507 = vmatprep.mubr.f32.mxu0 %v2700
        %3508 = vmatmul.mubr.f32.gmra.mxu0 %v1294
        %v3509 = vpop.f32.mrf.mxu0
        %v3510 = vadd.f32 0.0, %v3509
        %v3511 = vpop.f32.mrf.mxu0
        %v3512 = vadd.f32 0.0, %v3511
        %3513 = vdwg.mxu0
        %3514 = vmatprep.subr.mxu0 %v2583
        %3515 = vmatpush1.msra.mxu0 %v2581
        %3516 = vmatprep.subr.mxu0 %v2577
        %3517 = vmatpush1.msra.mxu0 %v2575
        %3518 = vmatprep.subr.mxu0 %v2571
        %3519 = vmatpush1.msra.mxu0 %v2569
        %3520 = vmatprep.subr.mxu0 %v2565
        %3521 = vmatpush1.msra.mxu0 %v2563
        %3522 = vmatprep.subr.mxu0 %v2559
        %3523 = vmatpush1.msra.mxu0 %v2557
        %3524 = vmatprep.subr.mxu0 %v2553
        %3525 = vmatpush1.msra.mxu0 %v2551
        %3526 = vmatprep.subr.mxu0 %v2547
        %3527 = vmatpush1.msra.mxu0 %v2545
        %3528 = vmatprep.subr.mxu0 %v2541
        %3529 = vmatpush1.msra.mxu0 %v2539
        %3530 = vmatprep.subr.mxu0 %v2535
        %3531 = vmatpush1.msra.mxu0 %v2533
        %3532 = vmatprep.subr.mxu0 %v2529
        %3533 = vmatpush1.msra.mxu0 %v2527
        %3534 = vmatprep.subr.mxu0 %v2523
        %3535 = vmatpush1.msra.mxu0 %v2521
        %3536 = vmatprep.subr.mxu0 %v2517
        %3537 = vmatpush1.msra.mxu0 %v2515
        %3538 = vmatprep.subr.mxu0 %v2511
        %3539 = vmatpush1.msra.mxu0 %v2509
        %3540 = vmatprep.subr.mxu0 %v2505
        %3541 = vmatpush1.msra.mxu0 %v2503
        %3542 = vmatprep.subr.mxu0 %v2499
        %3543 = vmatpush1.msra.mxu0 %v2497
        %3544 = vmatprep.subr.mxu0 %v2493
        %3545 = vmatpush1.msra.mxu0 %v2491
        %3546 = vmatprep.subr.mxu0 0.0
        %3547 = vmatpush2.msra.mxu0 0.0
        %3548 = vmatprep.subr.mxu0 0.0
        %3549 = vmatpush2.msra.mxu0 0.0
        %3550 = vmatprep.subr.mxu0 0.0
        %3551 = vmatpush2.msra.mxu0 0.0
        %3552 = vmatprep.subr.mxu0 0.0
        %3553 = vmatpush2.msra.mxu0 0.0
        %3554 = vmatprep.subr.mxu0 0.0
        %3555 = vmatpush2.msra.mxu0 0.0
        %3556 = vmatprep.subr.mxu0 0.0
        %3557 = vmatpush2.msra.mxu0 0.0
        %3558 = vmatprep.subr.mxu0 0.0
        %3559 = vmatpush2.msra.mxu0 0.0
        %3560 = vmatprep.subr.mxu0 0.0
        %3561 = vmatpush2.msra.mxu0 0.0
        %3562 = vmatprep.subr.mxu0 %v2631
        %3563 = vmatpush2.msra.mxu0 %v2629
        %3564 = vmatprep.subr.mxu0 %v2625
        %3565 = vmatpush2.msra.mxu0 %v2623
        %3566 = vmatprep.subr.mxu0 %v2619
        %3567 = vmatpush2.msra.mxu0 %v2617
        %3568 = vmatprep.subr.mxu0 %v2613
        %3569 = vmatpush2.msra.mxu0 %v2611
        %3570 = vmatprep.subr.mxu0 %v2607
        %3571 = vmatpush2.msra.mxu0 %v2605
        %3572 = vmatprep.subr.mxu0 %v2601
        %3573 = vmatpush2.msra.mxu0 %v2599
        %3574 = vmatprep.subr.mxu0 %v2595
        %3575 = vmatpush2.msra.mxu0 %v2593
        %3576 = vmatprep.subr.mxu0 %v2589
        %3577 = vmatpush2.msra.mxu0 %v2587
        %3578 = vmatprep.mubr.f32.mxu0 %v2634
        %3579 = vmatmul.mubr.f32.gmra.mxu0 %v1250
        %v3580 = vpop.f32.mrf.mxu0
        %v3581 = vadd.f32 0.0, %v3580
        %v3582 = vpop.f32.mrf.mxu0
        %v3583 = vadd.f32 0.0, %v3582
        %3584 = vmatprep.mubr.f32.mxu0 %v2637
        %3585 = vmatmul.mubr.f32.gmra.mxu0 %v1252
        %v3586 = vpop.f32.mrf.mxu0
        %v3587 = vadd.f32 0.0, %v3586
        %v3588 = vpop.f32.mrf.mxu0
        %v3589 = vadd.f32 0.0, %v3588
        %3590 = vmatprep.mubr.f32.mxu0 %v2640
        %3591 = vmatmul.mubr.f32.gmra.mxu0 %v1254
        %v3592 = vpop.f32.mrf.mxu0
        %v3593 = vadd.f32 0.0, %v3592
        %v3594 = vpop.f32.mrf.mxu0
        %v3595 = vadd.f32 0.0, %v3594
        %3596 = vmatprep.mubr.f32.mxu0 %v2643
        %3597 = vmatmul.mubr.f32.gmra.mxu0 %v1256
        %v3598 = vpop.f32.mrf.mxu0
        %v3599 = vadd.f32 0.0, %v3598
        %v3600 = vpop.f32.mrf.mxu0
        %v3601 = vadd.f32 0.0, %v3600
        %3602 = vmatprep.mubr.f32.mxu0 %v2646
        %3603 = vmatmul.mubr.f32.gmra.mxu0 %v1258
        %v3604 = vpop.f32.mrf.mxu0
        %v3605 = vadd.f32 0.0, %v3604
        %v3606 = vpop.f32.mrf.mxu0
        %v3607 = vadd.f32 0.0, %v3606
        %3608 = vmatprep.mubr.f32.mxu0 %v2649
        %3609 = vmatmul.mubr.f32.gmra.mxu0 %v1260
        %v3610 = vpop.f32.mrf.mxu0
        %v3611 = vadd.f32 0.0, %v3610
        %v3612 = vpop.f32.mrf.mxu0
        %v3613 = vadd.f32 0.0, %v3612
        %3614 = vmatprep.mubr.f32.mxu0 %v2652
        %3615 = vmatmul.mubr.f32.gmra.mxu0 %v1262
        %v3616 = vpop.f32.mrf.mxu0
        %v3617 = vadd.f32 0.0, %v3616
        %v3618 = vpop.f32.mrf.mxu0
        %v3619 = vadd.f32 0.0, %v3618
        %3620 = vmatprep.mubr.f32.mxu0 %v2655
        %3621 = vmatmul.mubr.f32.gmra.mxu0 %v1264
        %v3622 = vpop.f32.mrf.mxu0
        %v3623 = vadd.f32 0.0, %v3622
        %v3624 = vpop.f32.mrf.mxu0
        %v3625 = vadd.f32 0.0, %v3624
        %3626 = vmatprep.mubr.f32.mxu0 %v2658
        %3627 = vmatmul.mubr.f32.gmra.mxu0 %v1266
        %v3628 = vpop.f32.mrf.mxu0
        %v3629 = vadd.f32 0.0, %v3628
        %v3630 = vpop.f32.mrf.mxu0
        %v3631 = vadd.f32 0.0, %v3630
        %3632 = vmatprep.mubr.f32.mxu0 %v2661
        %3633 = vmatmul.mubr.f32.gmra.mxu0 %v1268
        %v3634 = vpop.f32.mrf.mxu0
        %v3635 = vadd.f32 0.0, %v3634
        %v3636 = vpop.f32.mrf.mxu0
        %v3637 = vadd.f32 0.0, %v3636
        %3638 = vmatprep.mubr.f32.mxu0 %v2664
        %3639 = vmatmul.mubr.f32.gmra.mxu0 %v1270
        %v3640 = vpop.f32.mrf.mxu0
        %v3641 = vadd.f32 0.0, %v3640
        %v3642 = vpop.f32.mrf.mxu0
        %v3643 = vadd.f32 0.0, %v3642
        %3644 = vmatprep.mubr.f32.mxu0 %v2667
        %3645 = vmatmul.mubr.f32.gmra.mxu0 %v1272
        %v3646 = vpop.f32.mrf.mxu0
        %v3647 = vadd.f32 0.0, %v3646
        %v3648 = vpop.f32.mrf.mxu0
        %v3649 = vadd.f32 0.0, %v3648
        %3650 = vmatprep.mubr.f32.mxu0 %v2670
        %3651 = vmatmul.mubr.f32.gmra.mxu0 %v1274
        %v3652 = vpop.f32.mrf.mxu0
        %v3653 = vadd.f32 0.0, %v3652
        %v3654 = vpop.f32.mrf.mxu0
        %v3655 = vadd.f32 0.0, %v3654
        %3656 = vmatprep.mubr.f32.mxu0 %v2673
        %3657 = vmatmul.mubr.f32.gmra.mxu0 %v1276
        %v3658 = vpop.f32.mrf.mxu0
        %v3659 = vadd.f32 0.0, %v3658
        %v3660 = vpop.f32.mrf.mxu0
        %v3661 = vadd.f32 0.0, %v3660
        %3662 = vmatprep.mubr.f32.mxu0 %v2676
        %3663 = vmatmul.mubr.f32.gmra.mxu0 %v1278
        %v3664 = vpop.f32.mrf.mxu0
        %v3665 = vadd.f32 0.0, %v3664
        %v3666 = vpop.f32.mrf.mxu0
        %v3667 = vadd.f32 0.0, %v3666
        %3668 = vmatprep.mubr.f32.mxu0 %v2679
        %3669 = vmatmul.mubr.f32.gmra.mxu0 %v1280
        %v3670 = vpop.f32.mrf.mxu0
        %v3671 = vadd.f32 0.0, %v3670
        %v3672 = vpop.f32.mrf.mxu0
        %v3673 = vadd.f32 0.0, %v3672
        %3674 = vmatprep.mubr.f32.mxu0 %v2682
        %3675 = vmatmul.mubr.f32.gmra.mxu0 %v1282
        %v3676 = vpop.f32.mrf.mxu0
        %v3677 = vadd.f32 0.0, %v3676
        %v3678 = vpop.f32.mrf.mxu0
        %v3679 = vadd.f32 0.0, %v3678
        %3680 = vmatprep.mubr.f32.mxu0 %v2685
        %3681 = vmatmul.mubr.f32.gmra.mxu0 %v1284
        %v3682 = vpop.f32.mrf.mxu0
        %v3683 = vadd.f32 0.0, %v3682
        %v3684 = vpop.f32.mrf.mxu0
        %v3685 = vadd.f32 0.0, %v3684
        %3686 = vmatprep.mubr.f32.mxu0 %v2688
        %3687 = vmatmul.mubr.f32.gmra.mxu0 %v1286
        %v3688 = vpop.f32.mrf.mxu0
        %v3689 = vadd.f32 0.0, %v3688
        %v3690 = vpop.f32.mrf.mxu0
        %v3691 = vadd.f32 0.0, %v3690
        %3692 = vmatprep.mubr.f32.mxu0 %v2691
        %3693 = vmatmul.mubr.f32.gmra.mxu0 %v1288
        %v3694 = vpop.f32.mrf.mxu0
        %v3695 = vadd.f32 0.0, %v3694
        %v3696 = vpop.f32.mrf.mxu0
        %v3697 = vadd.f32 0.0, %v3696
        %3698 = vmatprep.mubr.f32.mxu0 %v2694
        %3699 = vmatmul.mubr.f32.gmra.mxu0 %v1290
        %v3700 = vpop.f32.mrf.mxu0
        %v3701 = vadd.f32 0.0, %v3700
        %v3702 = vpop.f32.mrf.mxu0
        %v3703 = vadd.f32 0.0, %v3702
        %3704 = vmatprep.mubr.f32.mxu0 %v2697
        %3705 = vmatmul.mubr.f32.gmra.mxu0 %v1292
        %v3706 = vpop.f32.mrf.mxu0
        %v3707 = vadd.f32 0.0, %v3706
        %v3708 = vpop.f32.mrf.mxu0
        %v3709 = vadd.f32 0.0, %v3708
        %3710 = vmatprep.mubr.f32.mxu0 %v2700
        %3711 = vmatmul.mubr.f32.gmra.mxu0 %v1294
        %v3712 = vpop.f32.mrf.mxu0
        %v3713 = vadd.f32 0.0, %v3712
        %v3714 = vpop.f32.mrf.mxu0
        %v3715 = vadd.f32 0.0, %v3714
        %3716 = vdwg.mxu0
        %v3717 = vmul.f32 %v2769, %v2769
        %v3718 = vmul.f32 %v2771, %v2771
        %v3719 = vmul.f32 %v2775, %v2775
        %v3720 = vmul.f32 %v2777, %v2777
        %v3721 = vmul.f32 %v2781, %v2781
        %v3722 = vmul.f32 %v2783, %v2783
        %v3723 = vmul.f32 %v2787, %v2787
        %v3724 = vmul.f32 %v2789, %v2789
        %v3725 = vmul.f32 %v2793, %v2793
        %v3726 = vmul.f32 %v2795, %v2795
        %v3727 = vmul.f32 %v2799, %v2799
        %v3728 = vmul.f32 %v2801, %v2801
        %v3729 = vmul.f32 %v2805, %v2805
        %v3730 = vmul.f32 %v2807, %v2807
        %v3731 = vmul.f32 %v2811, %v2811
        %v3732 = vmul.f32 %v2813, %v2813
        %v3733 = vmul.f32 %v2817, %v2817
        %v3734 = vmul.f32 %v2819, %v2819
        %v3735 = vmul.f32 %v2823, %v2823
        %v3736 = vmul.f32 %v2825, %v2825
        %v3737 = vmul.f32 %v2829, %v2829
        %v3738 = vmul.f32 %v2831, %v2831
        %v3739 = vmul.f32 %v2835, %v2835
        %v3740 = vmul.f32 %v2837, %v2837
        %v3741 = vmul.f32 %v2841, %v2841
        %v3742 = vmul.f32 %v2843, %v2843
        %v3743 = vmul.f32 %v2847, %v2847
        %v3744 = vmul.f32 %v2849, %v2849
        %v3745 = vmul.f32 %v2853, %v2853
        %v3746 = vmul.f32 %v2855, %v2855
        %v3747 = vmul.f32 %v2859, %v2859
        %v3748 = vmul.f32 %v2861, %v2861
        %v3749 = vmul.f32 %v2865, %v2865
        %v3750 = vmul.f32 %v2867, %v2867
        %v3751 = vmul.f32 %v2871, %v2871
        %v3752 = vmul.f32 %v2873, %v2873
        %v3753 = vmul.f32 %v2877, %v2877
        %v3754 = vmul.f32 %v2879, %v2879
        %v3755 = vmul.f32 %v2883, %v2883
        %v3756 = vmul.f32 %v2885, %v2885
        %v3757 = vmul.f32 %v2889, %v2889
        %v3758 = vmul.f32 %v2891, %v2891
        %v3759 = vmul.f32 %v2895, %v2895
        %v3760 = vmul.f32 %v2897, %v2897
        %v3761 = vmul.f32 %v2901, %v2901
        %v3762 = vmul.f32 %v2903, %v2903
        %v3763 = vsub.f32 %v3175, %v3717
        %v3764 = vsub.f32 %v3177, %v3718
        %v3765 = vsub.f32 %v3181, %v3719
        %v3766 = vsub.f32 %v3183, %v3720
        %v3767 = vsub.f32 %v3187, %v3721
        %v3768 = vsub.f32 %v3189, %v3722
        %v3769 = vsub.f32 %v3193, %v3723
        %v3770 = vsub.f32 %v3195, %v3724
        %v3771 = vsub.f32 %v3199, %v3725
        %v3772 = vsub.f32 %v3201, %v3726
        %v3773 = vsub.f32 %v3205, %v3727
        %v3774 = vsub.f32 %v3207, %v3728
        %v3775 = vsub.f32 %v3211, %v3729
        %v3776 = vsub.f32 %v3213, %v3730
        %v3777 = vsub.f32 %v3217, %v3731
        %v3778 = vsub.f32 %v3219, %v3732
        %v3779 = vsub.f32 %v3223, %v3733
        %v3780 = vsub.f32 %v3225, %v3734
        %v3781 = vsub.f32 %v3229, %v3735
        %v3782 = vsub.f32 %v3231, %v3736
        %v3783 = vsub.f32 %v3235, %v3737
        %v3784 = vsub.f32 %v3237, %v3738
        %v3785 = vsub.f32 %v3241, %v3739
        %v3786 = vsub.f32 %v3243, %v3740
        %v3787 = vsub.f32 %v3247, %v3741
        %v3788 = vsub.f32 %v3249, %v3742
        %v3789 = vsub.f32 %v3253, %v3743
        %v3790 = vsub.f32 %v3255, %v3744
        %v3791 = vsub.f32 %v3259, %v3745
        %v3792 = vsub.f32 %v3261, %v3746
        %v3793 = vsub.f32 %v3265, %v3747
        %v3794 = vsub.f32 %v3267, %v3748
        %v3795 = vsub.f32 %v3271, %v3749
        %v3796 = vsub.f32 %v3273, %v3750
        %v3797 = vsub.f32 %v3277, %v3751
        %v3798 = vsub.f32 %v3279, %v3752
        %v3799 = vsub.f32 %v3283, %v3753
        %v3800 = vsub.f32 %v3285, %v3754
        %v3801 = vsub.f32 %v3289, %v3755
        %v3802 = vsub.f32 %v3291, %v3756
        %v3803 = vsub.f32 %v3295, %v3757
        %v3804 = vsub.f32 %v3297, %v3758
        %v3805 = vsub.f32 %v3301, %v3759
        %v3806 = vsub.f32 %v3303, %v3760
        %v3807 = vsub.f32 %v3307, %v3761
        %v3808 = vsub.f32 %v3309, %v3762
        %v3809 = vmul.f32 %v2972, %v2972
        %v3810 = vmul.f32 %v2974, %v2974
        %v3811 = vmul.f32 %v2978, %v2978
        %v3812 = vmul.f32 %v2980, %v2980
        %v3813 = vmul.f32 %v2984, %v2984
        %v3814 = vmul.f32 %v2986, %v2986
        %v3815 = vmul.f32 %v2990, %v2990
        %v3816 = vmul.f32 %v2992, %v2992
        %v3817 = vmul.f32 %v2996, %v2996
        %v3818 = vmul.f32 %v2998, %v2998
        %v3819 = vmul.f32 %v3002, %v3002
        %v3820 = vmul.f32 %v3004, %v3004
        %v3821 = vmul.f32 %v3008, %v3008
        %v3822 = vmul.f32 %v3010, %v3010
        %v3823 = vmul.f32 %v3014, %v3014
        %v3824 = vmul.f32 %v3016, %v3016
        %v3825 = vmul.f32 %v3020, %v3020
        %v3826 = vmul.f32 %v3022, %v3022
        %v3827 = vmul.f32 %v3026, %v3026
        %v3828 = vmul.f32 %v3028, %v3028
        %v3829 = vmul.f32 %v3032, %v3032
        %v3830 = vmul.f32 %v3034, %v3034
        %v3831 = vmul.f32 %v3038, %v3038
        %v3832 = vmul.f32 %v3040, %v3040
        %v3833 = vmul.f32 %v3044, %v3044
        %v3834 = vmul.f32 %v3046, %v3046
        %v3835 = vmul.f32 %v3050, %v3050
        %v3836 = vmul.f32 %v3052, %v3052
        %v3837 = vmul.f32 %v3056, %v3056
        %v3838 = vmul.f32 %v3058, %v3058
        %v3839 = vmul.f32 %v3062, %v3062
        %v3840 = vmul.f32 %v3064, %v3064
        %v3841 = vmul.f32 %v3068, %v3068
        %v3842 = vmul.f32 %v3070, %v3070
        %v3843 = vmul.f32 %v3074, %v3074
        %v3844 = vmul.f32 %v3076, %v3076
        %v3845 = vmul.f32 %v3080, %v3080
        %v3846 = vmul.f32 %v3082, %v3082
        %v3847 = vmul.f32 %v3086, %v3086
        %v3848 = vmul.f32 %v3088, %v3088
        %v3849 = vmul.f32 %v3092, %v3092
        %v3850 = vmul.f32 %v3094, %v3094
        %v3851 = vmul.f32 %v3098, %v3098
        %v3852 = vmul.f32 %v3100, %v3100
        %v3853 = vmul.f32 %v3104, %v3104
        %v3854 = vmul.f32 %v3106, %v3106
        %v3855 = vsub.f32 %v3378, %v3809
        %v3856 = vsub.f32 %v3380, %v3810
        %v3857 = vsub.f32 %v3384, %v3811
        %v3858 = vsub.f32 %v3386, %v3812
        %v3859 = vsub.f32 %v3390, %v3813
        %v3860 = vsub.f32 %v3392, %v3814
        %v3861 = vsub.f32 %v3396, %v3815
        %v3862 = vsub.f32 %v3398, %v3816
        %v3863 = vsub.f32 %v3402, %v3817
        %v3864 = vsub.f32 %v3404, %v3818
        %v3865 = vsub.f32 %v3408, %v3819
        %v3866 = vsub.f32 %v3410, %v3820
        %v3867 = vsub.f32 %v3414, %v3821
        %v3868 = vsub.f32 %v3416, %v3822
        %v3869 = vsub.f32 %v3420, %v3823
        %v3870 = vsub.f32 %v3422, %v3824
        %v3871 = vsub.f32 %v3426, %v3825
        %v3872 = vsub.f32 %v3428, %v3826
        %v3873 = vsub.f32 %v3432, %v3827
        %v3874 = vsub.f32 %v3434, %v3828
        %v3875 = vsub.f32 %v3438, %v3829
        %v3876 = vsub.f32 %v3440, %v3830
        %v3877 = vsub.f32 %v3444, %v3831
        %v3878 = vsub.f32 %v3446, %v3832
        %v3879 = vsub.f32 %v3450, %v3833
        %v3880 = vsub.f32 %v3452, %v3834
        %v3881 = vsub.f32 %v3456, %v3835
        %v3882 = vsub.f32 %v3458, %v3836
        %v3883 = vsub.f32 %v3462, %v3837
        %v3884 = vsub.f32 %v3464, %v3838
        %v3885 = vsub.f32 %v3468, %v3839
        %v3886 = vsub.f32 %v3470, %v3840
        %v3887 = vsub.f32 %v3474, %v3841
        %v3888 = vsub.f32 %v3476, %v3842
        %v3889 = vsub.f32 %v3480, %v3843
        %v3890 = vsub.f32 %v3482, %v3844
        %v3891 = vsub.f32 %v3486, %v3845
        %v3892 = vsub.f32 %v3488, %v3846
        %v3893 = vsub.f32 %v3492, %v3847
        %v3894 = vsub.f32 %v3494, %v3848
        %v3895 = vsub.f32 %v3498, %v3849
        %v3896 = vsub.f32 %v3500, %v3850
        %v3897 = vsub.f32 %v3504, %v3851
        %v3898 = vsub.f32 %v3506, %v3852
        %v3899 = vsub.f32 %v3510, %v3853
        %v3900 = vsub.f32 %v3512, %v3854
        %v3901 = vmul.f32 %v2769, %v2972
        %v3902 = vmul.f32 %v2771, %v2974
        %v3903 = vmul.f32 %v2775, %v2978
        %v3904 = vmul.f32 %v2777, %v2980
        %v3905 = vmul.f32 %v2781, %v2984
        %v3906 = vmul.f32 %v2783, %v2986
        %v3907 = vmul.f32 %v2787, %v2990
        %v3908 = vmul.f32 %v2789, %v2992
        %v3909 = vmul.f32 %v2793, %v2996
        %v3910 = vmul.f32 %v2795, %v2998
        %v3911 = vmul.f32 %v2799, %v3002
        %v3912 = vmul.f32 %v2801, %v3004
        %v3913 = vmul.f32 %v2805, %v3008
        %v3914 = vmul.f32 %v2807, %v3010
        %v3915 = vmul.f32 %v2811, %v3014
        %v3916 = vmul.f32 %v2813, %v3016
        %v3917 = vmul.f32 %v2817, %v3020
        %v3918 = vmul.f32 %v2819, %v3022
        %v3919 = vmul.f32 %v2823, %v3026
        %v3920 = vmul.f32 %v2825, %v3028
        %v3921 = vmul.f32 %v2829, %v3032
        %v3922 = vmul.f32 %v2831, %v3034
        %v3923 = vmul.f32 %v2835, %v3038
        %v3924 = vmul.f32 %v2837, %v3040
        %v3925 = vmul.f32 %v2841, %v3044
        %v3926 = vmul.f32 %v2843, %v3046
        %v3927 = vmul.f32 %v2847, %v3050
        %v3928 = vmul.f32 %v2849, %v3052
        %v3929 = vmul.f32 %v2853, %v3056
        %v3930 = vmul.f32 %v2855, %v3058
        %v3931 = vmul.f32 %v2859, %v3062
        %v3932 = vmul.f32 %v2861, %v3064
        %v3933 = vmul.f32 %v2865, %v3068
        %v3934 = vmul.f32 %v2867, %v3070
        %v3935 = vmul.f32 %v2871, %v3074
        %v3936 = vmul.f32 %v2873, %v3076
        %v3937 = vmul.f32 %v2877, %v3080
        %v3938 = vmul.f32 %v2879, %v3082
        %v3939 = vmul.f32 %v2883, %v3086
        %v3940 = vmul.f32 %v2885, %v3088
        %v3941 = vmul.f32 %v2889, %v3092
        %v3942 = vmul.f32 %v2891, %v3094
        %v3943 = vmul.f32 %v2895, %v3098
        %v3944 = vmul.f32 %v2897, %v3100
        %v3945 = vmul.f32 %v2901, %v3104
        %v3946 = vmul.f32 %v2903, %v3106
        %v3947 = vsub.f32 %v3581, %v3901
        %v3948 = vsub.f32 %v3583, %v3902
        %v3949 = vsub.f32 %v3587, %v3903
        %v3950 = vsub.f32 %v3589, %v3904
        %v3951 = vsub.f32 %v3593, %v3905
        %v3952 = vsub.f32 %v3595, %v3906
        %v3953 = vsub.f32 %v3599, %v3907
        %v3954 = vsub.f32 %v3601, %v3908
        %v3955 = vsub.f32 %v3605, %v3909
        %v3956 = vsub.f32 %v3607, %v3910
        %v3957 = vsub.f32 %v3611, %v3911
        %v3958 = vsub.f32 %v3613, %v3912
        %v3959 = vsub.f32 %v3617, %v3913
        %v3960 = vsub.f32 %v3619, %v3914
        %v3961 = vsub.f32 %v3623, %v3915
        %v3962 = vsub.f32 %v3625, %v3916
        %v3963 = vsub.f32 %v3629, %v3917
        %v3964 = vsub.f32 %v3631, %v3918
        %v3965 = vsub.f32 %v3635, %v3919
        %v3966 = vsub.f32 %v3637, %v3920
        %v3967 = vsub.f32 %v3641, %v3921
        %v3968 = vsub.f32 %v3643, %v3922
        %v3969 = vsub.f32 %v3647, %v3923
        %v3970 = vsub.f32 %v3649, %v3924
        %v3971 = vsub.f32 %v3653, %v3925
        %v3972 = vsub.f32 %v3655, %v3926
        %v3973 = vsub.f32 %v3659, %v3927
        %v3974 = vsub.f32 %v3661, %v3928
        %v3975 = vsub.f32 %v3665, %v3929
        %v3976 = vsub.f32 %v3667, %v3930
        %v3977 = vsub.f32 %v3671, %v3931
        %v3978 = vsub.f32 %v3673, %v3932
        %v3979 = vsub.f32 %v3677, %v3933
        %v3980 = vsub.f32 %v3679, %v3934
        %v3981 = vsub.f32 %v3683, %v3935
        %v3982 = vsub.f32 %v3685, %v3936
        %v3983 = vsub.f32 %v3689, %v3937
        %v3984 = vsub.f32 %v3691, %v3938
        %v3985 = vsub.f32 %v3695, %v3939
        %v3986 = vsub.f32 %v3697, %v3940
        %v3987 = vsub.f32 %v3701, %v3941
        %v3988 = vsub.f32 %v3703, %v3942
        %v3989 = vsub.f32 %v3707, %v3943
        %v3990 = vsub.f32 %v3709, %v3944
        %v3991 = vsub.f32 %v3713, %v3945
        %v3992 = vsub.f32 %v3715, %v3946
        %v3993 = vmul.f32 %v3947, 2.0
        %v3994 = vmul.f32 %v3948, 2.0
        %v3995 = vmul.f32 %v3949, 2.0
        %v3996 = vmul.f32 %v3950, 2.0
        %v3997 = vmul.f32 %v3951, 2.0
        %v3998 = vmul.f32 %v3952, 2.0
        %v3999 = vmul.f32 %v3953, 2.0
        %v4000 = vmul.f32 %v3954, 2.0
        %v4001 = vmul.f32 %v3955, 2.0
        %v4002 = vmul.f32 %v3956, 2.0
        %v4003 = vmul.f32 %v3957, 2.0
        %v4004 = vmul.f32 %v3958, 2.0
        %v4005 = vmul.f32 %v3959, 2.0
        %v4006 = vmul.f32 %v3960, 2.0
        %v4007 = vmul.f32 %v3961, 2.0
        %v4008 = vmul.f32 %v3962, 2.0
        %v4009 = vmul.f32 %v3963, 2.0
        %v4010 = vmul.f32 %v3964, 2.0
        %v4011 = vmul.f32 %v3965, 2.0
        %v4012 = vmul.f32 %v3966, 2.0
        %v4013 = vmul.f32 %v3967, 2.0
        %v4014 = vmul.f32 %v3968, 2.0
        %v4015 = vmul.f32 %v3969, 2.0
        %v4016 = vmul.f32 %v3970, 2.0
        %v4017 = vmul.f32 %v3971, 2.0
        %v4018 = vmul.f32 %v3972, 2.0
        %v4019 = vmul.f32 %v3973, 2.0
        %v4020 = vmul.f32 %v3974, 2.0
        %v4021 = vmul.f32 %v3975, 2.0
        %v4022 = vmul.f32 %v3976, 2.0
        %v4023 = vmul.f32 %v3977, 2.0
        %v4024 = vmul.f32 %v3978, 2.0
        %v4025 = vmul.f32 %v3979, 2.0
        %v4026 = vmul.f32 %v3980, 2.0
        %v4027 = vmul.f32 %v3981, 2.0
        %v4028 = vmul.f32 %v3982, 2.0
        %v4029 = vmul.f32 %v3983, 2.0
        %v4030 = vmul.f32 %v3984, 2.0
        %v4031 = vmul.f32 %v3985, 2.0
        %v4032 = vmul.f32 %v3986, 2.0
        %v4033 = vmul.f32 %v3987, 2.0
        %v4034 = vmul.f32 %v3988, 2.0
        %v4035 = vmul.f32 %v3989, 2.0
        %v4036 = vmul.f32 %v3990, 2.0
        %v4037 = vmul.f32 %v3991, 2.0
        %v4038 = vmul.f32 %v3992, 2.0
        %v4039 = vadd.f32 %v3993, 0.0009
        %v4040 = vadd.f32 %v3994, 0.0009
        %v4041 = vadd.f32 %v3995, 0.0009
        %v4042 = vadd.f32 %v3996, 0.0009
        %v4043 = vadd.f32 %v3997, 0.0009
        %v4044 = vadd.f32 %v3998, 0.0009
        %v4045 = vadd.f32 %v3999, 0.0009
        %v4046 = vadd.f32 %v4000, 0.0009
        %v4047 = vadd.f32 %v4001, 0.0009
        %v4048 = vadd.f32 %v4002, 0.0009
        %v4049 = vadd.f32 %v4003, 0.0009
        %v4050 = vadd.f32 %v4004, 0.0009
        %v4051 = vadd.f32 %v4005, 0.0009
        %v4052 = vadd.f32 %v4006, 0.0009
        %v4053 = vadd.f32 %v4007, 0.0009
        %v4054 = vadd.f32 %v4008, 0.0009
        %v4055 = vadd.f32 %v4009, 0.0009
        %v4056 = vadd.f32 %v4010, 0.0009
        %v4057 = vadd.f32 %v4011, 0.0009
        %v4058 = vadd.f32 %v4012, 0.0009
        %v4059 = vadd.f32 %v4013, 0.0009
        %v4060 = vadd.f32 %v4014, 0.0009
        %v4061 = vadd.f32 %v4015, 0.0009
        %v4062 = vadd.f32 %v4016, 0.0009
        %v4063 = vadd.f32 %v4017, 0.0009
        %v4064 = vadd.f32 %v4018, 0.0009
        %v4065 = vadd.f32 %v4019, 0.0009
        %v4066 = vadd.f32 %v4020, 0.0009
        %v4067 = vadd.f32 %v4021, 0.0009
        %v4068 = vadd.f32 %v4022, 0.0009
        %v4069 = vadd.f32 %v4023, 0.0009
        %v4070 = vadd.f32 %v4024, 0.0009
        %v4071 = vadd.f32 %v4025, 0.0009
        %v4072 = vadd.f32 %v4026, 0.0009
        %v4073 = vadd.f32 %v4027, 0.0009
        %v4074 = vadd.f32 %v4028, 0.0009
        %v4075 = vadd.f32 %v4029, 0.0009
        %v4076 = vadd.f32 %v4030, 0.0009
        %v4077 = vadd.f32 %v4031, 0.0009
        %v4078 = vadd.f32 %v4032, 0.0009
        %v4079 = vadd.f32 %v4033, 0.0009
        %v4080 = vadd.f32 %v4034, 0.0009
        %v4081 = vadd.f32 %v4035, 0.0009
        %v4082 = vadd.f32 %v4036, 0.0009
        %v4083 = vadd.f32 %v4037, 0.0009
        %v4084 = vadd.f32 %v4038, 0.0009
        %v4085 = vadd.f32 %v3763, %v3855
        %v4086 = vadd.f32 %v3764, %v3856
        %v4087 = vadd.f32 %v3765, %v3857
        %v4088 = vadd.f32 %v3766, %v3858
        %v4089 = vadd.f32 %v3767, %v3859
        %v4090 = vadd.f32 %v3768, %v3860
        %v4091 = vadd.f32 %v3769, %v3861
        %v4092 = vadd.f32 %v3770, %v3862
        %v4093 = vadd.f32 %v3771, %v3863
        %v4094 = vadd.f32 %v3772, %v3864
        %v4095 = vadd.f32 %v3773, %v3865
        %v4096 = vadd.f32 %v3774, %v3866
        %v4097 = vadd.f32 %v3775, %v3867
        %v4098 = vadd.f32 %v3776, %v3868
        %v4099 = vadd.f32 %v3777, %v3869
        %v4100 = vadd.f32 %v3778, %v3870
        %v4101 = vadd.f32 %v3779, %v3871
        %v4102 = vadd.f32 %v3780, %v3872
        %v4103 = vadd.f32 %v3781, %v3873
        %v4104 = vadd.f32 %v3782, %v3874
        %v4105 = vadd.f32 %v3783, %v3875
        %v4106 = vadd.f32 %v3784, %v3876
        %v4107 = vadd.f32 %v3785, %v3877
        %v4108 = vadd.f32 %v3786, %v3878
        %v4109 = vadd.f32 %v3787, %v3879
        %v4110 = vadd.f32 %v3788, %v3880
        %v4111 = vadd.f32 %v3789, %v3881
        %v4112 = vadd.f32 %v3790, %v3882
        %v4113 = vadd.f32 %v3791, %v3883
        %v4114 = vadd.f32 %v3792, %v3884
        %v4115 = vadd.f32 %v3793, %v3885
        %v4116 = vadd.f32 %v3794, %v3886
        %v4117 = vadd.f32 %v3795, %v3887
        %v4118 = vadd.f32 %v3796, %v3888
        %v4119 = vadd.f32 %v3797, %v3889
        %v4120 = vadd.f32 %v3798, %v3890
        %v4121 = vadd.f32 %v3799, %v3891
        %v4122 = vadd.f32 %v3800, %v3892
        %v4123 = vadd.f32 %v3801, %v3893
        %v4124 = vadd.f32 %v3802, %v3894
        %v4125 = vadd.f32 %v3803, %v3895
        %v4126 = vadd.f32 %v3804, %v3896
        %v4127 = vadd.f32 %v3805, %v3897
        %v4128 = vadd.f32 %v3806, %v3898
        %v4129 = vadd.f32 %v3807, %v3899
        %v4130 = vadd.f32 %v3808, %v3900
        %v4131 = vadd.f32 %v4085, 0.0009
        %v4132 = vadd.f32 %v4086, 0.0009
        %v4133 = vadd.f32 %v4087, 0.0009
        %v4134 = vadd.f32 %v4088, 0.0009
        %v4135 = vadd.f32 %v4089, 0.0009
        %v4136 = vadd.f32 %v4090, 0.0009
        %v4137 = vadd.f32 %v4091, 0.0009
        %v4138 = vadd.f32 %v4092, 0.0009
        %v4139 = vadd.f32 %v4093, 0.0009
        %v4140 = vadd.f32 %v4094, 0.0009
        %v4141 = vadd.f32 %v4095, 0.0009
        %v4142 = vadd.f32 %v4096, 0.0009
        %v4143 = vadd.f32 %v4097, 0.0009
        %v4144 = vadd.f32 %v4098, 0.0009
        %v4145 = vadd.f32 %v4099, 0.0009
        %v4146 = vadd.f32 %v4100, 0.0009
        %v4147 = vadd.f32 %v4101, 0.0009
        %v4148 = vadd.f32 %v4102, 0.0009
        %v4149 = vadd.f32 %v4103, 0.0009
        %v4150 = vadd.f32 %v4104, 0.0009
        %v4151 = vadd.f32 %v4105, 0.0009
        %v4152 = vadd.f32 %v4106, 0.0009
        %v4153 = vadd.f32 %v4107, 0.0009
        %v4154 = vadd.f32 %v4108, 0.0009
        %v4155 = vadd.f32 %v4109, 0.0009
        %v4156 = vadd.f32 %v4110, 0.0009
        %v4157 = vadd.f32 %v4111, 0.0009
        %v4158 = vadd.f32 %v4112, 0.0009
        %v4159 = vadd.f32 %v4113, 0.0009
        %v4160 = vadd.f32 %v4114, 0.0009
        %v4161 = vadd.f32 %v4115, 0.0009
        %v4162 = vadd.f32 %v4116, 0.0009
        %v4163 = vadd.f32 %v4117, 0.0009
        %v4164 = vadd.f32 %v4118, 0.0009
        %v4165 = vadd.f32 %v4119, 0.0009
        %v4166 = vadd.f32 %v4120, 0.0009
        %v4167 = vadd.f32 %v4121, 0.0009
        %v4168 = vadd.f32 %v4122, 0.0009
        %v4169 = vadd.f32 %v4123, 0.0009
        %v4170 = vadd.f32 %v4124, 0.0009
        %v4171 = vadd.f32 %v4125, 0.0009
        %v4172 = vadd.f32 %v4126, 0.0009
        %v4173 = vadd.f32 %v4127, 0.0009
        %v4174 = vadd.f32 %v4128, 0.0009
        %v4175 = vadd.f32 %v4129, 0.0009
        %v4176 = vadd.f32 %v4130, 0.0009
        %v4177 = vrcp.pop %v4131
        %v4178 = vmul.f32 %v4039, %v4177
        %v4179 = vrcp.pop %v4132
        %v4180 = vmul.f32 %v4040, %v4179
        %v4181 = vrcp.pop %v4133
        %v4182 = vmul.f32 %v4041, %v4181
        %v4183 = vrcp.pop %v4134
        %v4184 = vmul.f32 %v4042, %v4183
        %v4185 = vrcp.pop %v4135
        %v4186 = vmul.f32 %v4043, %v4185
        %v4187 = vrcp.pop %v4136
        %v4188 = vmul.f32 %v4044, %v4187
        %v4189 = vrcp.pop %v4137
        %v4190 = vmul.f32 %v4045, %v4189
        %v4191 = vrcp.pop %v4138
        %v4192 = vmul.f32 %v4046, %v4191
        %v4193 = vrcp.pop %v4139
        %v4194 = vmul.f32 %v4047, %v4193
        %v4195 = vrcp.pop %v4140
        %v4196 = vmul.f32 %v4048, %v4195
        %v4197 = vrcp.pop %v4141
        %v4198 = vmul.f32 %v4049, %v4197
        %v4199 = vrcp.pop %v4142
        %v4200 = vmul.f32 %v4050, %v4199
        %v4201 = vrcp.pop %v4143
        %v4202 = vmul.f32 %v4051, %v4201
        %v4203 = vrcp.pop %v4144
        %v4204 = vmul.f32 %v4052, %v4203
        %v4205 = vrcp.pop %v4145
        %v4206 = vmul.f32 %v4053, %v4205
        %v4207 = vrcp.pop %v4146
        %v4208 = vmul.f32 %v4054, %v4207
        %v4209 = vrcp.pop %v4147
        %v4210 = vmul.f32 %v4055, %v4209
        %v4211 = vrcp.pop %v4148
        %v4212 = vmul.f32 %v4056, %v4211
        %v4213 = vrcp.pop %v4149
        %v4214 = vmul.f32 %v4057, %v4213
        %v4215 = vrcp.pop %v4150
        %v4216 = vmul.f32 %v4058, %v4215
        %v4217 = vrcp.pop %v4151
        %v4218 = vmul.f32 %v4059, %v4217
        %v4219 = vrcp.pop %v4152
        %v4220 = vmul.f32 %v4060, %v4219
        %v4221 = vrcp.pop %v4153
        %v4222 = vmul.f32 %v4061, %v4221
        %v4223 = vrcp.pop %v4154
        %v4224 = vmul.f32 %v4062, %v4223
        %v4225 = vrcp.pop %v4155
        %v4226 = vmul.f32 %v4063, %v4225
        %v4227 = vrcp.pop %v4156
        %v4228 = vmul.f32 %v4064, %v4227
        %v4229 = vrcp.pop %v4157
        %v4230 = vmul.f32 %v4065, %v4229
        %v4231 = vrcp.pop %v4158
        %v4232 = vmul.f32 %v4066, %v4231
        %v4233 = vrcp.pop %v4159
        %v4234 = vmul.f32 %v4067, %v4233
        %v4235 = vrcp.pop %v4160
        %v4236 = vmul.f32 %v4068, %v4235
        %v4237 = vrcp.pop %v4161
        %v4238 = vmul.f32 %v4069, %v4237
        %v4239 = vrcp.pop %v4162
        %v4240 = vmul.f32 %v4070, %v4239
        %v4241 = vrcp.pop %v4163
        %v4242 = vmul.f32 %v4071, %v4241
        %v4243 = vrcp.pop %v4164
        %v4244 = vmul.f32 %v4072, %v4243
        %v4245 = vrcp.pop %v4165
        %v4246 = vmul.f32 %v4073, %v4245
        %v4247 = vrcp.pop %v4166
        %v4248 = vmul.f32 %v4074, %v4247
        %v4249 = vrcp.pop %v4167
        %v4250 = vmul.f32 %v4075, %v4249
        %v4251 = vrcp.pop %v4168
        %v4252 = vmul.f32 %v4076, %v4251
        %v4253 = vrcp.pop %v4169
        %v4254 = vmul.f32 %v4077, %v4253
        %v4255 = vrcp.pop %v4170
        %v4256 = vmul.f32 %v4078, %v4255
        %v4257 = vrcp.pop %v4171
        %v4258 = vmul.f32 %v4079, %v4257
        %v4259 = vrcp.pop %v4172
        %v4260 = vmul.f32 %v4080, %v4259
        %v4261 = vrcp.pop %v4173
        %v4262 = vmul.f32 %v4081, %v4261
        %v4263 = vrcp.pop %v4174
        %v4264 = vmul.f32 %v4082, %v4263
        %v4265 = vrcp.pop %v4175
        %v4266 = vmul.f32 %v4083, %v4265
        %v4267 = vrcp.pop %v4176
        %v4268 = vmul.f32 %v4084, %v4267
        %v4269 = vadd.f32 %v4178, %v4180
        %v4270 = vadd.f32 %v4269, %v4182
        %v4271 = vadd.f32 %v4270, %v4184
        %v4272 = vadd.f32 %v4271, %v4186
        %v4273 = vadd.f32 %v4272, %v4188
        %v4274 = vadd.f32 %v4273, %v4190
        %v4275 = vadd.f32 %v4274, %v4192
        %v4276 = vadd.f32 %v4275, %v4194
        %v4277 = vadd.f32 %v4276, %v4196
        %v4278 = vadd.f32 %v4277, %v4198
        %v4279 = vadd.f32 %v4278, %v4200
        %v4280 = vadd.f32 %v4279, %v4202
        %v4281 = vadd.f32 %v4280, %v4204
        %v4282 = vadd.f32 %v4281, %v4206
        %v4283 = vadd.f32 %v4282, %v4208
        %v4284 = vadd.f32 %v4283, %v4210
        %v4285 = vadd.f32 %v4284, %v4212
        %v4286 = vadd.f32 %v4285, %v4214
        %v4287 = vadd.f32 %v4286, %v4216
        %v4288 = vadd.f32 %v4287, %v4218
        %v4289 = vadd.f32 %v4288, %v4220
        %v4290 = vadd.f32 %v4289, %v4222
        %v4291 = vadd.f32 %v4290, %v4224
        %v4292 = vadd.f32 %v4291, %v4226
        %v4293 = vadd.f32 %v4292, %v4228
        %v4294 = vadd.f32 %v4293, %v4230
        %v4295 = vadd.f32 %v4294, %v4232
        %v4296 = vadd.f32 %v4295, %v4234
        %v4297 = vadd.f32 %v4296, %v4236
        %v4298 = vadd.f32 %v4297, %v4238
        %v4299 = vadd.f32 %v4298, %v4240
        %v4300 = vadd.f32 %v4299, %v4242
        %v4301 = vadd.f32 %v4300, %v4244
        %v4302 = vadd.f32 %v4301, %v4246
        %v4303 = vadd.f32 %v4302, %v4248
        %v4304 = vadd.f32 %v4303, %v4250
        %v4305 = vadd.f32 %v4304, %v4252
        %v4306 = vadd.f32 %v4305, %v4254
        %v4307 = vadd.f32 %v4306, %v4256
        %v4308 = vadd.f32 %v4307, %v4258
        %v4309 = vadd.f32 %v4308, %v4260
        %v4310 = vadd.f32 %v4309, %v4262
        %v4311 = vadd.f32 %v4310, %v4264
        %vm4312 = vcmask 1045504
        %v4313 = vsel %vm4312, %v4266, 0.0
        %v4314 = vadd.f32 %v4311, %v4313
        %v4315 = vsel %vm4312, %v4268, 0.0
        %v4316 = vadd.f32 %v4314, %v4315
        %4317 = vadd.xlane.f32.xlu0 %v4316
        %v4318 = vpop.xlane.xlu0 %4317
        %v4319 = vrot.slane %v4318, 4
        %v4320 = vadd.f32 %v4318, %v4319
        %v4321 = vrot.slane %v4320, 2
        %v4322 = vadd.f32 %v4320, %v4321
        %v4323 = vrot.slane %v4322, 1
        %v4324 = vadd.f32 %v4322, %v4323
        %s4325 = vtos %v4324
        %s4326 = ssub.f32 %s4325, 13468.0
        %s4327 = smul.f32 %s4326, 3.018959e-05
        %s4328 = smax.f32 %s4327, 0.0
        %v4329 = vld [vmem:[#allocation21] sm:$0xff]
        %v4330 = vld [vmem:[#allocation21 + $0x8] sm:$0xff]
        %v4331 = vld [vmem:[#allocation21 + $0x10] sm:$0xff]
        %v4332 = vld [vmem:[#allocation21 + $0x18] sm:$0xff]
        %v4333 = vld [vmem:[#allocation21 + $0x20] sm:$0xff]
        %v4334 = vld [vmem:[#allocation21 + $0x28] sm:$0xff]
        %v4335 = vld [vmem:[#allocation21 + $0x30] sm:$0xff]
        %v4336 = vld [vmem:[#allocation21 + $0x38] sm:$0xff]
        %v4337 = vld [vmem:[#allocation21 + $0x40] sm:$0xff]
        %v4338 = vld [vmem:[#allocation21 + $0x48] sm:$0xff]
        %v4339 = vld [vmem:[#allocation21 + $0x50] sm:$0xff]
        %v4340 = vld [vmem:[#allocation21 + $0x58] sm:$0xff]
        %v4341 = vld [vmem:[#allocation21 + $0x60] sm:$0xff]
        %v4342 = vld [vmem:[#allocation21 + $0x68] sm:$0xff]
        %v4343 = vld [vmem:[#allocation21 + $0x70] sm:$0xff]
        %v4344 = vld [vmem:[#allocation21 + $0x78] sm:$0xff]
        %v4345 = vld [vmem:[#allocation21 + $0x80] sm:$0xff]
        %v4346 = vld [vmem:[#allocation21 + $0x88] sm:$0xff]
        %v4347 = vld [vmem:[#allocation21 + $0x90] sm:$0xff]
        %v4348 = vld [vmem:[#allocation21 + $0x98] sm:$0xff]
        %v4349 = vld [vmem:[#allocation21 + $0xa0] sm:$0xff]
        %v4350 = vld [vmem:[#allocation21 + $0xa8] sm:$0xff]
        %v4351 = vld [vmem:[#allocation21 + $0xb0] sm:$0xff]
        %v4352 = vld [vmem:[#allocation21 + $0xb8] sm:$0xff]
        %v4353 = vld [vmem:[#allocation22] sm:$0xff]
        %v4354 = vld [vmem:[#allocation22 + $0x8] sm:$0xff]
        %v4355 = vld [vmem:[#allocation22 + $0x10] sm:$0xff]
        %v4356 = vld [vmem:[#allocation22 + $0x18] sm:$0xff]
        %v4357 = vld [vmem:[#allocation22 + $0x20] sm:$0xff]
        %v4358 = vld [vmem:[#allocation22 + $0x28] sm:$0xff]
        %v4359 = vld [vmem:[#allocation22 + $0x30] sm:$0xff]
        %v4360 = vld [vmem:[#allocation22 + $0x38] sm:$0xff]
        %v4361 = vld [vmem:[#allocation22 + $0x40] sm:$0xff]
        %v4362 = vld [vmem:[#allocation22 + $0x48] sm:$0xff]
        %v4363 = vld [vmem:[#allocation22 + $0x50] sm:$0xff]
        %v4364 = vld [vmem:[#allocation22 + $0x58] sm:$0xff]
        %v4365 = vld [vmem:[#allocation22 + $0x60] sm:$0xff]
        %v4366 = vld [vmem:[#allocation22 + $0x68] sm:$0xff]
        %v4367 = vld [vmem:[#allocation22 + $0x70] sm:$0xff]
        %v4368 = vld [vmem:[#allocation22 + $0x78] sm:$0xff]
        %v4369 = vld [vmem:[#allocation22 + $0x80] sm:$0xff]
        %v4370 = vld [vmem:[#allocation22 + $0x88] sm:$0xff]
        %v4371 = vld [vmem:[#allocation22 + $0x90] sm:$0xff]
        %v4372 = vld [vmem:[#allocation22 + $0x98] sm:$0xff]
        %v4373 = vld [vmem:[#allocation22 + $0xa0] sm:$0xff]
        %v4374 = vld [vmem:[#allocation22 + $0xa8] sm:$0xff]
        %v4375 = vld [vmem:[#allocation22 + $0xb0] sm:$0xff]
        %v4376 = vld [vmem:[#allocation22 + $0xb8] sm:$0xff]
        %4377 = vmatprep.subr.mxu0 0.0
        %4378 = vmatpush1.msra.mxu0 %v4368
        %4379 = vmatprep.subr.mxu0 0.0
        %4380 = vmatpush1.msra.mxu0 %v4367
        %4381 = vmatprep.subr.mxu0 0.0
        %4382 = vmatpush1.msra.mxu0 %v4366
        %4383 = vmatprep.subr.mxu0 0.0
        %4384 = vmatpush1.msra.mxu0 %v4365
        %4385 = vmatprep.subr.mxu0 0.0
        %4386 = vmatpush1.msra.mxu0 %v4364
        %4387 = vmatprep.subr.mxu0 0.0
        %4388 = vmatpush1.msra.mxu0 %v4363
        %4389 = vmatprep.subr.mxu0 0.0
        %4390 = vmatpush1.msra.mxu0 %v4362
        %4391 = vmatprep.subr.mxu0 0.0
        %4392 = vmatpush1.msra.mxu0 %v4361
        %4393 = vmatprep.subr.mxu0 0.0
        %4394 = vmatpush1.msra.mxu0 %v4360
        %4395 = vmatprep.subr.mxu0 0.0
        %4396 = vmatpush1.msra.mxu0 %v4359
        %4397 = vmatprep.subr.mxu0 0.0
        %4398 = vmatpush1.msra.mxu0 %v4358
        %4399 = vmatprep.subr.mxu0 0.0
        %4400 = vmatpush1.msra.mxu0 %v4357
        %4401 = vmatprep.subr.mxu0 0.0
        %4402 = vmatpush1.msra.mxu0 %v4356
        %4403 = vmatprep.subr.mxu0 0.0
        %4404 = vmatpush1.msra.mxu0 %v4355
        %4405 = vmatprep.subr.mxu0 0.0
        %4406 = vmatpush1.msra.mxu0 %v4354
        %4407 = vmatprep.subr.mxu0 0.0
        %4408 = vmatpush1.msra.mxu0 %v4353
        %4409 = vmatprep.subr.mxu0 0.0
        %4410 = vmatpush2.msra.mxu0 0.0
        %4411 = vmatprep.subr.mxu0 0.0
        %4412 = vmatpush2.msra.mxu0 0.0
        %4413 = vmatprep.subr.mxu0 0.0
        %4414 = vmatpush2.msra.mxu0 0.0
        %4415 = vmatprep.subr.mxu0 0.0
        %4416 = vmatpush2.msra.mxu0 0.0
        %4417 = vmatprep.subr.mxu0 0.0
        %4418 = vmatpush2.msra.mxu0 0.0
        %4419 = vmatprep.subr.mxu0 0.0
        %4420 = vmatpush2.msra.mxu0 0.0
        %4421 = vmatprep.subr.mxu0 0.0
        %4422 = vmatpush2.msra.mxu0 0.0
        %4423 = vmatprep.subr.mxu0 0.0
        %4424 = vmatpush2.msra.mxu0 0.0
        %4425 = vmatprep.subr.mxu0 0.0
        %4426 = vmatpush2.msra.mxu0 %v4376
        %4427 = vmatprep.subr.mxu0 0.0
        %4428 = vmatpush2.msra.mxu0 %v4375
        %4429 = vmatprep.subr.mxu0 0.0
        %4430 = vmatpush2.msra.mxu0 %v4374
        %4431 = vmatprep.subr.mxu0 0.0
        %4432 = vmatpush2.msra.mxu0 %v4373
        %4433 = vmatprep.subr.mxu0 0.0
        %4434 = vmatpush2.msra.mxu0 %v4372
        %4435 = vmatprep.subr.mxu0 0.0
        %4436 = vmatpush2.msra.mxu0 %v4371
        %4437 = vmatprep.subr.mxu0 0.0
        %4438 = vmatpush2.msra.mxu0 %v4370
        %4439 = vmatprep.subr.mxu0 0.0
        %4440 = vmatpush2.msra.mxu0 %v4369
        %4441 = vmatprep.mubr.f32.mxu0 %v1489
        %4442 = vmatmul.mubr.f32.gmra.mxu0 %v977
        %v4443 = vpop.f32.mrf.mxu0
        %v4444 = vadd.f32 0.0, %v4443
        %v4445 = vpop.f32.mrf.mxu0
        %4446 = vmatprep.mubr.f32.mxu0 %v1492
        %4447 = vmatmul.mubr.f32.gmra.mxu0 %v979
        %v4448 = vpop.f32.mrf.mxu0
        %v4449 = vadd.f32 0.0, %v4448
        %v4450 = vpop.f32.mrf.mxu0
        %4451 = vmatprep.mubr.f32.mxu0 %v1495
        %4452 = vmatmul.mubr.f32.gmra.mxu0 %v981
        %v4453 = vpop.f32.mrf.mxu0
        %v4454 = vadd.f32 0.0, %v4453
        %v4455 = vpop.f32.mrf.mxu0
        %4456 = vmatprep.mubr.f32.mxu0 %v1498
        %4457 = vmatmul.mubr.f32.gmra.mxu0 %v983
        %v4458 = vpop.f32.mrf.mxu0
        %v4459 = vadd.f32 0.0, %v4458
        %v4460 = vpop.f32.mrf.mxu0
        %4461 = vmatprep.mubr.f32.mxu0 %v1501
        %4462 = vmatmul.mubr.f32.gmra.mxu0 %v985
        %v4463 = vpop.f32.mrf.mxu0
        %v4464 = vadd.f32 0.0, %v4463
        %v4465 = vpop.f32.mrf.mxu0
        %4466 = vmatprep.mubr.f32.mxu0 %v1504
        %4467 = vmatmul.mubr.f32.gmra.mxu0 %v987
        %v4468 = vpop.f32.mrf.mxu0
        %v4469 = vadd.f32 0.0, %v4468
        %v4470 = vpop.f32.mrf.mxu0
        %4471 = vmatprep.mubr.f32.mxu0 %v1507
        %4472 = vmatmul.mubr.f32.gmra.mxu0 %v989
        %v4473 = vpop.f32.mrf.mxu0
        %v4474 = vadd.f32 0.0, %v4473
        %v4475 = vpop.f32.mrf.mxu0
        %4476 = vmatprep.mubr.f32.mxu0 %v1510
        %4477 = vmatmul.mubr.f32.gmra.mxu0 %v991
        %v4478 = vpop.f32.mrf.mxu0
        %v4479 = vadd.f32 0.0, %v4478
        %v4480 = vpop.f32.mrf.mxu0
        %4481 = vmatprep.mubr.f32.mxu0 %v1513
        %4482 = vmatmul.mubr.f32.gmra.mxu0 %v993
        %v4483 = vpop.f32.mrf.mxu0
        %v4484 = vadd.f32 0.0, %v4483
        %v4485 = vpop.f32.mrf.mxu0
        %4486 = vmatprep.mubr.f32.mxu0 %v1516
        %4487 = vmatmul.mubr.f32.gmra.mxu0 %v995
        %v4488 = vpop.f32.mrf.mxu0
        %v4489 = vadd.f32 0.0, %v4488
        %v4490 = vpop.f32.mrf.mxu0
        %4491 = vmatprep.mubr.f32.mxu0 %v1519
        %4492 = vmatmul.mubr.f32.gmra.mxu0 %v997
        %v4493 = vpop.f32.mrf.mxu0
        %v4494 = vadd.f32 0.0, %v4493
        %v4495 = vpop.f32.mrf.mxu0
        %4496 = vmatprep.mubr.f32.mxu0 %v1522
        %4497 = vmatmul.mubr.f32.gmra.mxu0 %v999
        %v4498 = vpop.f32.mrf.mxu0
        %v4499 = vadd.f32 0.0, %v4498
        %v4500 = vpop.f32.mrf.mxu0
        %4501 = vmatprep.mubr.f32.mxu0 %v1525
        %4502 = vmatmul.mubr.f32.gmra.mxu0 %v1001
        %v4503 = vpop.f32.mrf.mxu0
        %v4504 = vadd.f32 0.0, %v4503
        %v4505 = vpop.f32.mrf.mxu0
        %4506 = vmatprep.mubr.f32.mxu0 %v1528
        %4507 = vmatmul.mubr.f32.gmra.mxu0 %v1003
        %v4508 = vpop.f32.mrf.mxu0
        %v4509 = vadd.f32 0.0, %v4508
        %v4510 = vpop.f32.mrf.mxu0
        %4511 = vmatprep.mubr.f32.mxu0 %v1531
        %4512 = vmatmul.mubr.f32.gmra.mxu0 %v1005
        %v4513 = vpop.f32.mrf.mxu0
        %v4514 = vadd.f32 0.0, %v4513
        %v4515 = vpop.f32.mrf.mxu0
        %4516 = vmatprep.mubr.f32.mxu0 %v1534
        %4517 = vmatmul.mubr.f32.gmra.mxu0 %v1007
        %v4518 = vpop.f32.mrf.mxu0
        %v4519 = vadd.f32 0.0, %v4518
        %v4520 = vpop.f32.mrf.mxu0
        %4521 = vmatprep.mubr.f32.mxu0 %v1537
        %4522 = vmatmul.mubr.f32.gmra.mxu0 %v1009
        %v4523 = vpop.f32.mrf.mxu0
        %v4524 = vadd.f32 0.0, %v4523
        %v4525 = vpop.f32.mrf.mxu0
        %4526 = vmatprep.mubr.f32.mxu0 %v1540
        %4527 = vmatmul.mubr.f32.gmra.mxu0 %v1011
        %v4528 = vpop.f32.mrf.mxu0
        %v4529 = vadd.f32 0.0, %v4528
        %v4530 = vpop.f32.mrf.mxu0
        %4531 = vmatprep.mubr.f32.mxu0 %v1543
        %4532 = vmatmul.mubr.f32.gmra.mxu0 %v1013
        %v4533 = vpop.f32.mrf.mxu0
        %v4534 = vadd.f32 0.0, %v4533
        %v4535 = vpop.f32.mrf.mxu0
        %4536 = vmatprep.mubr.f32.mxu0 %v1546
        %4537 = vmatmul.mubr.f32.gmra.mxu0 %v1015
        %v4538 = vpop.f32.mrf.mxu0
        %v4539 = vadd.f32 0.0, %v4538
        %v4540 = vpop.f32.mrf.mxu0
        %4541 = vmatprep.mubr.f32.mxu0 %v1549
        %4542 = vmatmul.mubr.f32.gmra.mxu0 %v1017
        %v4543 = vpop.f32.mrf.mxu0
        %v4544 = vadd.f32 0.0, %v4543
        %v4545 = vpop.f32.mrf.mxu0
        %4546 = vmatprep.mubr.f32.mxu0 %v1552
        %4547 = vmatmul.mubr.f32.gmra.mxu0 %v1019
        %v4548 = vpop.f32.mrf.mxu0
        %v4549 = vadd.f32 0.0, %v4548
        %v4550 = vpop.f32.mrf.mxu0
        %4551 = vmatprep.mubr.f32.mxu0 %v1555
        %4552 = vmatmul.mubr.f32.gmra.mxu0 %v1021
        %v4553 = vpop.f32.mrf.mxu0
        %v4554 = vadd.f32 0.0, %v4553
        %v4555 = vpop.f32.mrf.mxu0
        %4556 = vmatprep.mubr.f32.mxu0 %v1558
        %4557 = vmatmul.mubr.f32.gmra.mxu0 %v1023
        %v4558 = vpop.f32.mrf.mxu0
        %v4559 = vadd.f32 0.0, %v4558
        %v4560 = vpop.f32.mrf.mxu0
        %4561 = vdwg.mxu0
        %v4563 = vsel %vm1169, %v4330, 0
        %v4566 = vsel %vm1169, %v4332, 0
        %v4569 = vsel %vm1169, %v4334, 0
        %v4572 = vsel %vm1169, %v4336, 0
        %v4575 = vsel %vm1169, %v4338, 0
        %v4578 = vsel %vm1169, %v4340, 0
        %v4581 = vsel %vm1169, %v4342, 0
        %v4584 = vsel %vm1169, %v4344, 0
        %v4587 = vsel %vm1169, %v4346, 0
        %v4590 = vsel %vm1169, %v4348, 0
        %v4593 = vsel %vm1169, %v4350, 0
        %v4596 = vsel %vm1169, %v4352, 0
        %4598 = vmatprep.subr.mxu0 0.0
        %4599 = vmatpush1.msra.mxu0 %v4519
        %4600 = vmatprep.subr.mxu0 0.0
        %4601 = vmatpush1.msra.mxu0 %v4514
        %4602 = vmatprep.subr.mxu0 0.0
        %4603 = vmatpush1.msra.mxu0 %v4509
        %4604 = vmatprep.subr.mxu0 0.0
        %4605 = vmatpush1.msra.mxu0 %v4504
        %4606 = vmatprep.subr.mxu0 0.0
        %4607 = vmatpush1.msra.mxu0 %v4499
        %4608 = vmatprep.subr.mxu0 0.0
        %4609 = vmatpush1.msra.mxu0 %v4494
        %4610 = vmatprep.subr.mxu0 0.0
        %4611 = vmatpush1.msra.mxu0 %v4489
        %4612 = vmatprep.subr.mxu0 0.0
        %4613 = vmatpush1.msra.mxu0 %v4484
        %4614 = vmatprep.subr.mxu0 0.0
        %4615 = vmatpush1.msra.mxu0 %v4479
        %4616 = vmatprep.subr.mxu0 0.0
        %4617 = vmatpush1.msra.mxu0 %v4474
        %4618 = vmatprep.subr.mxu0 0.0
        %4619 = vmatpush1.msra.mxu0 %v4469
        %4620 = vmatprep.subr.mxu0 0.0
        %4621 = vmatpush1.msra.mxu0 %v4464
        %4622 = vmatprep.subr.mxu0 0.0
        %4623 = vmatpush1.msra.mxu0 %v4459
        %4624 = vmatprep.subr.mxu0 0.0
        %4625 = vmatpush1.msra.mxu0 %v4454
        %4626 = vmatprep.subr.mxu0 0.0
        %4627 = vmatpush1.msra.mxu0 %v4449
        %4628 = vmatprep.subr.mxu0 0.0
        %4629 = vmatpush1.msra.mxu0 %v4444
        %4630 = vmatprep.subr.mxu0 0.0
        %4631 = vmatpush2.msra.mxu0 0.0
        %4632 = vmatprep.subr.mxu0 0.0
        %4633 = vmatpush2.msra.mxu0 0.0
        %4634 = vmatprep.subr.mxu0 0.0
        %4635 = vmatpush2.msra.mxu0 0.0
        %4636 = vmatprep.subr.mxu0 0.0
        %4637 = vmatpush2.msra.mxu0 0.0
        %4638 = vmatprep.subr.mxu0 0.0
        %4639 = vmatpush2.msra.mxu0 0.0
        %4640 = vmatprep.subr.mxu0 0.0
        %4641 = vmatpush2.msra.mxu0 0.0
        %4642 = vmatprep.subr.mxu0 0.0
        %4643 = vmatpush2.msra.mxu0 0.0
        %4644 = vmatprep.subr.mxu0 0.0
        %4645 = vmatpush2.msra.mxu0 0.0
        %4646 = vmatprep.subr.mxu0 0.0
        %4647 = vmatpush2.msra.mxu0 %v4559
        %4648 = vmatprep.subr.mxu0 0.0
        %4649 = vmatpush2.msra.mxu0 %v4554
        %4650 = vmatprep.subr.mxu0 0.0
        %4651 = vmatpush2.msra.mxu0 %v4549
        %4652 = vmatprep.subr.mxu0 0.0
        %4653 = vmatpush2.msra.mxu0 %v4544
        %4654 = vmatprep.subr.mxu0 0.0
        %4655 = vmatpush2.msra.mxu0 %v4539
        %4656 = vmatprep.subr.mxu0 0.0
        %4657 = vmatpush2.msra.mxu0 %v4534
        %4658 = vmatprep.subr.mxu0 0.0
        %4659 = vmatpush2.msra.mxu0 %v4529
        %4660 = vmatprep.subr.mxu0 0.0
        %4661 = vmatpush2.msra.mxu0 %v4524
        %4662 = vmatprep.mubr.f32.mxu0 %v4563
        %4663 = vmatmul.mubr.f32.gmra.mxu0 %v4329
        %v4664 = vpop.f32.mrf.mxu0
        %v4665 = vadd.f32 0.0, %v4664
        %v4666 = vpop.f32.mrf.mxu0
        %4667 = vmatprep.mubr.f32.mxu0 %v4566
        %4668 = vmatmul.mubr.f32.gmra.mxu0 %v4331
        %v4669 = vpop.f32.mrf.mxu0
        %v4670 = vadd.f32 0.0, %v4669
        %v4671 = vpop.f32.mrf.mxu0
        %4672 = vmatprep.mubr.f32.mxu0 %v4569
        %4673 = vmatmul.mubr.f32.gmra.mxu0 %v4333
        %v4674 = vpop.f32.mrf.mxu0
        %v4675 = vadd.f32 0.0, %v4674
        %v4676 = vpop.f32.mrf.mxu0
        %4677 = vmatprep.mubr.f32.mxu0 %v4572
        %4678 = vmatmul.mubr.f32.gmra.mxu0 %v4335
        %v4679 = vpop.f32.mrf.mxu0
        %v4680 = vadd.f32 0.0, %v4679
        %v4681 = vpop.f32.mrf.mxu0
        %4682 = vmatprep.mubr.f32.mxu0 %v4575
        %4683 = vmatmul.mubr.f32.gmra.mxu0 %v4337
        %v4684 = vpop.f32.mrf.mxu0
        %v4685 = vadd.f32 0.0, %v4684
        %v4686 = vpop.f32.mrf.mxu0
        %4687 = vmatprep.mubr.f32.mxu0 %v4578
        %4688 = vmatmul.mubr.f32.gmra.mxu0 %v4339
        %v4689 = vpop.f32.mrf.mxu0
        %v4690 = vadd.f32 0.0, %v4689
        %v4691 = vpop.f32.mrf.mxu0
        %4692 = vmatprep.mubr.f32.mxu0 %v4581
        %4693 = vmatmul.mubr.f32.gmra.mxu0 %v4341
        %v4694 = vpop.f32.mrf.mxu0
        %v4695 = vadd.f32 0.0, %v4694
        %v4696 = vpop.f32.mrf.mxu0
        %4697 = vmatprep.mubr.f32.mxu0 %v4584
        %4698 = vmatmul.mubr.f32.gmra.mxu0 %v4343
        %v4699 = vpop.f32.mrf.mxu0
        %v4700 = vadd.f32 0.0, %v4699
        %v4701 = vpop.f32.mrf.mxu0
        %4702 = vmatprep.mubr.f32.mxu0 %v4587
        %4703 = vmatmul.mubr.f32.gmra.mxu0 %v4345
        %v4704 = vpop.f32.mrf.mxu0
        %v4705 = vadd.f32 0.0, %v4704
        %v4706 = vpop.f32.mrf.mxu0
        %4707 = vmatprep.mubr.f32.mxu0 %v4590
        %4708 = vmatmul.mubr.f32.gmra.mxu0 %v4347
        %v4709 = vpop.f32.mrf.mxu0
        %v4710 = vadd.f32 0.0, %v4709
        %v4711 = vpop.f32.mrf.mxu0
        %4712 = vmatprep.mubr.f32.mxu0 %v4593
        %4713 = vmatmul.mubr.f32.gmra.mxu0 %v4349
        %v4714 = vpop.f32.mrf.mxu0
        %v4715 = vadd.f32 0.0, %v4714
        %v4716 = vpop.f32.mrf.mxu0
        %4717 = vmatprep.mubr.f32.mxu0 %v4596
        %4718 = vmatmul.mubr.f32.gmra.mxu0 %v4351
        %v4719 = vpop.f32.mrf.mxu0
        %v4720 = vadd.f32 0.0, %v4719
        %v4721 = vpop.f32.mrf.mxu0
        %4722 = vdwg.mxu0
        %4723 = vmatprep.subr.mxu0 0.0
        %4724 = vmatpush1.msra.mxu0 %v4368
        %4725 = vmatprep.subr.mxu0 0.0
        %4726 = vmatpush1.msra.mxu0 %v4367
        %4727 = vmatprep.subr.mxu0 0.0
        %4728 = vmatpush1.msra.mxu0 %v4366
        %4729 = vmatprep.subr.mxu0 0.0
        %4730 = vmatpush1.msra.mxu0 %v4365
        %4731 = vmatprep.subr.mxu0 0.0
        %4732 = vmatpush1.msra.mxu0 %v4364
        %4733 = vmatprep.subr.mxu0 0.0
        %4734 = vmatpush1.msra.mxu0 %v4363
        %4735 = vmatprep.subr.mxu0 0.0
        %4736 = vmatpush1.msra.mxu0 %v4362
        %4737 = vmatprep.subr.mxu0 0.0
        %4738 = vmatpush1.msra.mxu0 %v4361
        %4739 = vmatprep.subr.mxu0 0.0
        %4740 = vmatpush1.msra.mxu0 %v4360
        %4741 = vmatprep.subr.mxu0 0.0
        %4742 = vmatpush1.msra.mxu0 %v4359
        %4743 = vmatprep.subr.mxu0 0.0
        %4744 = vmatpush1.msra.mxu0 %v4358
        %4745 = vmatprep.subr.mxu0 0.0
        %4746 = vmatpush1.msra.mxu0 %v4357
        %4747 = vmatprep.subr.mxu0 0.0
        %4748 = vmatpush1.msra.mxu0 %v4356
        %4749 = vmatprep.subr.mxu0 0.0
        %4750 = vmatpush1.msra.mxu0 %v4355
        %4751 = vmatprep.subr.mxu0 0.0
        %4752 = vmatpush1.msra.mxu0 %v4354
        %4753 = vmatprep.subr.mxu0 0.0
        %4754 = vmatpush1.msra.mxu0 %v4353
        %4755 = vmatprep.subr.mxu0 0.0
        %4756 = vmatpush2.msra.mxu0 0.0
        %4757 = vmatprep.subr.mxu0 0.0
        %4758 = vmatpush2.msra.mxu0 0.0
        %4759 = vmatprep.subr.mxu0 0.0
        %4760 = vmatpush2.msra.mxu0 0.0
        %4761 = vmatprep.subr.mxu0 0.0
        %4762 = vmatpush2.msra.mxu0 0.0
        %4763 = vmatprep.subr.mxu0 0.0
        %4764 = vmatpush2.msra.mxu0 0.0
        %4765 = vmatprep.subr.mxu0 0.0
        %4766 = vmatpush2.msra.mxu0 0.0
        %4767 = vmatprep.subr.mxu0 0.0
        %4768 = vmatpush2.msra.mxu0 0.0
        %4769 = vmatprep.subr.mxu0 0.0
        %4770 = vmatpush2.msra.mxu0 0.0
        %4771 = vmatprep.subr.mxu0 0.0
        %4772 = vmatpush2.msra.mxu0 %v4376
        %4773 = vmatprep.subr.mxu0 0.0
        %4774 = vmatpush2.msra.mxu0 %v4375
        %4775 = vmatprep.subr.mxu0 0.0
        %4776 = vmatpush2.msra.mxu0 %v4374
        %4777 = vmatprep.subr.mxu0 0.0
        %4778 = vmatpush2.msra.mxu0 %v4373
        %4779 = vmatprep.subr.mxu0 0.0
        %4780 = vmatpush2.msra.mxu0 %v4372
        %4781 = vmatprep.subr.mxu0 0.0
        %4782 = vmatpush2.msra.mxu0 %v4371
        %4783 = vmatprep.subr.mxu0 0.0
        %4784 = vmatpush2.msra.mxu0 %v4370
        %4785 = vmatprep.subr.mxu0 0.0
        %4786 = vmatpush2.msra.mxu0 %v4369
        %4787 = vmatprep.mubr.f32.mxu0 %v1561
        %4788 = vmatmul.mubr.f32.gmra.mxu0 %v1025
        %v4789 = vpop.f32.mrf.mxu0
        %v4790 = vadd.f32 0.0, %v4789
        %v4791 = vpop.f32.mrf.mxu0
        %4792 = vmatprep.mubr.f32.mxu0 %v1564
        %4793 = vmatmul.mubr.f32.gmra.mxu0 %v1027
        %v4794 = vpop.f32.mrf.mxu0
        %v4795 = vadd.f32 0.0, %v4794
        %v4796 = vpop.f32.mrf.mxu0
        %4797 = vmatprep.mubr.f32.mxu0 %v1567
        %4798 = vmatmul.mubr.f32.gmra.mxu0 %v1029
        %v4799 = vpop.f32.mrf.mxu0
        %v4800 = vadd.f32 0.0, %v4799
        %v4801 = vpop.f32.mrf.mxu0
        %4802 = vmatprep.mubr.f32.mxu0 %v1570
        %4803 = vmatmul.mubr.f32.gmra.mxu0 %v1031
        %v4804 = vpop.f32.mrf.mxu0
        %v4805 = vadd.f32 0.0, %v4804
        %v4806 = vpop.f32.mrf.mxu0
        %4807 = vmatprep.mubr.f32.mxu0 %v1573
        %4808 = vmatmul.mubr.f32.gmra.mxu0 %v1033
        %v4809 = vpop.f32.mrf.mxu0
        %v4810 = vadd.f32 0.0, %v4809
        %v4811 = vpop.f32.mrf.mxu0
        %4812 = vmatprep.mubr.f32.mxu0 %v1576
        %4813 = vmatmul.mubr.f32.gmra.mxu0 %v1035
        %v4814 = vpop.f32.mrf.mxu0
        %v4815 = vadd.f32 0.0, %v4814
        %v4816 = vpop.f32.mrf.mxu0
        %4817 = vmatprep.mubr.f32.mxu0 %v1579
        %4818 = vmatmul.mubr.f32.gmra.mxu0 %v1037
        %v4819 = vpop.f32.mrf.mxu0
        %v4820 = vadd.f32 0.0, %v4819
        %v4821 = vpop.f32.mrf.mxu0
        %4822 = vmatprep.mubr.f32.mxu0 %v1582
        %4823 = vmatmul.mubr.f32.gmra.mxu0 %v1039
        %v4824 = vpop.f32.mrf.mxu0
        %v4825 = vadd.f32 0.0, %v4824
        %v4826 = vpop.f32.mrf.mxu0
        %4827 = vmatprep.mubr.f32.mxu0 %v1585
        %4828 = vmatmul.mubr.f32.gmra.mxu0 %v1041
        %v4829 = vpop.f32.mrf.mxu0
        %v4830 = vadd.f32 0.0, %v4829
        %v4831 = vpop.f32.mrf.mxu0
        %4832 = vmatprep.mubr.f32.mxu0 %v1588
        %4833 = vmatmul.mubr.f32.gmra.mxu0 %v1043
        %v4834 = vpop.f32.mrf.mxu0
        %v4835 = vadd.f32 0.0, %v4834
        %v4836 = vpop.f32.mrf.mxu0
        %4837 = vmatprep.mubr.f32.mxu0 %v1591
        %4838 = vmatmul.mubr.f32.gmra.mxu0 %v1045
        %v4839 = vpop.f32.mrf.mxu0
        %v4840 = vadd.f32 0.0, %v4839
        %v4841 = vpop.f32.mrf.mxu0
        %4842 = vmatprep.mubr.f32.mxu0 %v1594
        %4843 = vmatmul.mubr.f32.gmra.mxu0 %v1047
        %v4844 = vpop.f32.mrf.mxu0
        %v4845 = vadd.f32 0.0, %v4844
        %v4846 = vpop.f32.mrf.mxu0
        %4847 = vmatprep.mubr.f32.mxu0 %v1597
        %4848 = vmatmul.mubr.f32.gmra.mxu0 %v1049
        %v4849 = vpop.f32.mrf.mxu0
        %v4850 = vadd.f32 0.0, %v4849
        %v4851 = vpop.f32.mrf.mxu0
        %4852 = vmatprep.mubr.f32.mxu0 %v1600
        %4853 = vmatmul.mubr.f32.gmra.mxu0 %v1051
        %v4854 = vpop.f32.mrf.mxu0
        %v4855 = vadd.f32 0.0, %v4854
        %v4856 = vpop.f32.mrf.mxu0
        %4857 = vmatprep.mubr.f32.mxu0 %v1603
        %4858 = vmatmul.mubr.f32.gmra.mxu0 %v1053
        %v4859 = vpop.f32.mrf.mxu0
        %v4860 = vadd.f32 0.0, %v4859
        %v4861 = vpop.f32.mrf.mxu0
        %4862 = vmatprep.mubr.f32.mxu0 %v1606
        %4863 = vmatmul.mubr.f32.gmra.mxu0 %v1055
        %v4864 = vpop.f32.mrf.mxu0
        %v4865 = vadd.f32 0.0, %v4864
        %v4866 = vpop.f32.mrf.mxu0
        %4867 = vmatprep.mubr.f32.mxu0 %v1609
        %4868 = vmatmul.mubr.f32.gmra.mxu0 %v1057
        %v4869 = vpop.f32.mrf.mxu0
        %v4870 = vadd.f32 0.0, %v4869
        %v4871 = vpop.f32.mrf.mxu0
        %4872 = vmatprep.mubr.f32.mxu0 %v1612
        %4873 = vmatmul.mubr.f32.gmra.mxu0 %v1059
        %v4874 = vpop.f32.mrf.mxu0
        %v4875 = vadd.f32 0.0, %v4874
        %v4876 = vpop.f32.mrf.mxu0
        %4877 = vmatprep.mubr.f32.mxu0 %v1615
        %4878 = vmatmul.mubr.f32.gmra.mxu0 %v1061
        %v4879 = vpop.f32.mrf.mxu0
        %v4880 = vadd.f32 0.0, %v4879
        %v4881 = vpop.f32.mrf.mxu0
        %4882 = vmatprep.mubr.f32.mxu0 %v1618
        %4883 = vmatmul.mubr.f32.gmra.mxu0 %v1063
        %v4884 = vpop.f32.mrf.mxu0
        %v4885 = vadd.f32 0.0, %v4884
        %v4886 = vpop.f32.mrf.mxu0
        %4887 = vmatprep.mubr.f32.mxu0 %v1621
        %4888 = vmatmul.mubr.f32.gmra.mxu0 %v1065
        %v4889 = vpop.f32.mrf.mxu0
        %v4890 = vadd.f32 0.0, %v4889
        %v4891 = vpop.f32.mrf.mxu0
        %4892 = vmatprep.mubr.f32.mxu0 %v1624
        %4893 = vmatmul.mubr.f32.gmra.mxu0 %v1067
        %v4894 = vpop.f32.mrf.mxu0
        %v4895 = vadd.f32 0.0, %v4894
        %v4896 = vpop.f32.mrf.mxu0
        %4897 = vmatprep.mubr.f32.mxu0 %v1627
        %4898 = vmatmul.mubr.f32.gmra.mxu0 %v1069
        %v4899 = vpop.f32.mrf.mxu0
        %v4900 = vadd.f32 0.0, %v4899
        %v4901 = vpop.f32.mrf.mxu0
        %4902 = vmatprep.mubr.f32.mxu0 %v1630
        %4903 = vmatmul.mubr.f32.gmra.mxu0 %v1071
        %v4904 = vpop.f32.mrf.mxu0
        %v4905 = vadd.f32 0.0, %v4904
        %v4906 = vpop.f32.mrf.mxu0
        %4907 = vdwg.mxu0
        %4908 = vmatprep.subr.mxu0 0.0
        %4909 = vmatpush1.msra.mxu0 %v4865
        %4910 = vmatprep.subr.mxu0 0.0
        %4911 = vmatpush1.msra.mxu0 %v4860
        %4912 = vmatprep.subr.mxu0 0.0
        %4913 = vmatpush1.msra.mxu0 %v4855
        %4914 = vmatprep.subr.mxu0 0.0
        %4915 = vmatpush1.msra.mxu0 %v4850
        %4916 = vmatprep.subr.mxu0 0.0
        %4917 = vmatpush1.msra.mxu0 %v4845
        %4918 = vmatprep.subr.mxu0 0.0
        %4919 = vmatpush1.msra.mxu0 %v4840
        %4920 = vmatprep.subr.mxu0 0.0
        %4921 = vmatpush1.msra.mxu0 %v4835
        %4922 = vmatprep.subr.mxu0 0.0
        %4923 = vmatpush1.msra.mxu0 %v4830
        %4924 = vmatprep.subr.mxu0 0.0
        %4925 = vmatpush1.msra.mxu0 %v4825
        %4926 = vmatprep.subr.mxu0 0.0
        %4927 = vmatpush1.msra.mxu0 %v4820
        %4928 = vmatprep.subr.mxu0 0.0
        %4929 = vmatpush1.msra.mxu0 %v4815
        %4930 = vmatprep.subr.mxu0 0.0
        %4931 = vmatpush1.msra.mxu0 %v4810
        %4932 = vmatprep.subr.mxu0 0.0
        %4933 = vmatpush1.msra.mxu0 %v4805
        %4934 = vmatprep.subr.mxu0 0.0
        %4935 = vmatpush1.msra.mxu0 %v4800
        %4936 = vmatprep.subr.mxu0 0.0
        %4937 = vmatpush1.msra.mxu0 %v4795
        %4938 = vmatprep.subr.mxu0 0.0
        %4939 = vmatpush1.msra.mxu0 %v4790
        %4940 = vmatprep.subr.mxu0 0.0
        %4941 = vmatpush2.msra.mxu0 0.0
        %4942 = vmatprep.subr.mxu0 0.0
        %4943 = vmatpush2.msra.mxu0 0.0
        %4944 = vmatprep.subr.mxu0 0.0
        %4945 = vmatpush2.msra.mxu0 0.0
        %4946 = vmatprep.subr.mxu0 0.0
        %4947 = vmatpush2.msra.mxu0 0.0
        %4948 = vmatprep.subr.mxu0 0.0
        %4949 = vmatpush2.msra.mxu0 0.0
        %4950 = vmatprep.subr.mxu0 0.0
        %4951 = vmatpush2.msra.mxu0 0.0
        %4952 = vmatprep.subr.mxu0 0.0
        %4953 = vmatpush2.msra.mxu0 0.0
        %4954 = vmatprep.subr.mxu0 0.0
        %4955 = vmatpush2.msra.mxu0 0.0
        %4956 = vmatprep.subr.mxu0 0.0
        %4957 = vmatpush2.msra.mxu0 %v4905
        %4958 = vmatprep.subr.mxu0 0.0
        %4959 = vmatpush2.msra.mxu0 %v4900
        %4960 = vmatprep.subr.mxu0 0.0
        %4961 = vmatpush2.msra.mxu0 %v4895
        %4962 = vmatprep.subr.mxu0 0.0
        %4963 = vmatpush2.msra.mxu0 %v4890
        %4964 = vmatprep.subr.mxu0 0.0
        %4965 = vmatpush2.msra.mxu0 %v4885
        %4966 = vmatprep.subr.mxu0 0.0
        %4967 = vmatpush2.msra.mxu0 %v4880
        %4968 = vmatprep.subr.mxu0 0.0
        %4969 = vmatpush2.msra.mxu0 %v4875
        %4970 = vmatprep.subr.mxu0 0.0
        %4971 = vmatpush2.msra.mxu0 %v4870
        %4972 = vmatprep.mubr.f32.mxu0 %v4563
        %4973 = vmatmul.mubr.f32.gmra.mxu0 %v4329
        %v4974 = vpop.f32.mrf.mxu0
        %v4975 = vadd.f32 0.0, %v4974
        %v4976 = vpop.f32.mrf.mxu0
        %4977 = vmatprep.mubr.f32.mxu0 %v4566
        %4978 = vmatmul.mubr.f32.gmra.mxu0 %v4331
        %v4979 = vpop.f32.mrf.mxu0
        %v4980 = vadd.f32 0.0, %v4979
        %v4981 = vpop.f32.mrf.mxu0
        %4982 = vmatprep.mubr.f32.mxu0 %v4569
        %4983 = vmatmul.mubr.f32.gmra.mxu0 %v4333
        %v4984 = vpop.f32.mrf.mxu0
        %v4985 = vadd.f32 0.0, %v4984
        %v4986 = vpop.f32.mrf.mxu0
        %4987 = vmatprep.mubr.f32.mxu0 %v4572
        %4988 = vmatmul.mubr.f32.gmra.mxu0 %v4335
        %v4989 = vpop.f32.mrf.mxu0
        %v4990 = vadd.f32 0.0, %v4989
        %v4991 = vpop.f32.mrf.mxu0
        %4992 = vmatprep.mubr.f32.mxu0 %v4575
        %4993 = vmatmul.mubr.f32.gmra.mxu0 %v4337
        %v4994 = vpop.f32.mrf.mxu0
        %v4995 = vadd.f32 0.0, %v4994
        %v4996 = vpop.f32.mrf.mxu0
        %4997 = vmatprep.mubr.f32.mxu0 %v4578
        %4998 = vmatmul.mubr.f32.gmra.mxu0 %v4339
        %v4999 = vpop.f32.mrf.mxu0
        %v5000 = vadd.f32 0.0, %v4999
        %v5001 = vpop.f32.mrf.mxu0
        %5002 = vmatprep.mubr.f32.mxu0 %v4581
        %5003 = vmatmul.mubr.f32.gmra.mxu0 %v4341
        %v5004 = vpop.f32.mrf.mxu0
        %v5005 = vadd.f32 0.0, %v5004
        %v5006 = vpop.f32.mrf.mxu0
        %5007 = vmatprep.mubr.f32.mxu0 %v4584
        %5008 = vmatmul.mubr.f32.gmra.mxu0 %v4343
        %v5009 = vpop.f32.mrf.mxu0
        %v5010 = vadd.f32 0.0, %v5009
        %v5011 = vpop.f32.mrf.mxu0
        %5012 = vmatprep.mubr.f32.mxu0 %v4587
        %5013 = vmatmul.mubr.f32.gmra.mxu0 %v4345
        %v5014 = vpop.f32.mrf.mxu0
        %v5015 = vadd.f32 0.0, %v5014
        %v5016 = vpop.f32.mrf.mxu0
        %5017 = vmatprep.mubr.f32.mxu0 %v4590
        %5018 = vmatmul.mubr.f32.gmra.mxu0 %v4347
        %v5019 = vpop.f32.mrf.mxu0
        %v5020 = vadd.f32 0.0, %v5019
        %v5021 = vpop.f32.mrf.mxu0
        %5022 = vmatprep.mubr.f32.mxu0 %v4593
        %5023 = vmatmul.mubr.f32.gmra.mxu0 %v4349
        %v5024 = vpop.f32.mrf.mxu0
        %v5025 = vadd.f32 0.0, %v5024
        %v5026 = vpop.f32.mrf.mxu0
        %5027 = vmatprep.mubr.f32.mxu0 %v4596
        %5028 = vmatmul.mubr.f32.gmra.mxu0 %v4351
        %v5029 = vpop.f32.mrf.mxu0
        %v5030 = vadd.f32 0.0, %v5029
        %v5031 = vpop.f32.mrf.mxu0
        %5032 = vdwg.mxu0
        %v5033 = vld [vmem:[#allocation9] sm:$0xff]
        %v5034 = vld [vmem:[#allocation9 + $0x8] sm:$0xff]
        %v5035 = vld [vmem:[#allocation9 + $0x10] sm:$0xff]
        %v5036 = vld [vmem:[#allocation9 + $0x18] sm:$0xff]
        %v5037 = vld [vmem:[#allocation9 + $0x20] sm:$0xff]
        %v5038 = vld [vmem:[#allocation9 + $0x28] sm:$0xff]
        %v5039 = vld [vmem:[#allocation9 + $0x30] sm:$0xff]
        %v5040 = vld [vmem:[#allocation9 + $0x38] sm:$0xff]
        %v5041 = vld [vmem:[#allocation9 + $0x40] sm:$0xff]
        %v5042 = vld [vmem:[#allocation9 + $0x48] sm:$0xff]
        %v5043 = vld [vmem:[#allocation9 + $0x50] sm:$0x3f]
        %v5044 = vld [vmem:[#allocation10] sm:$0xff]
        %v5045 = vld [vmem:[#allocation10 + $0x8] sm:$0xff]
        %v5046 = vld [vmem:[#allocation10 + $0x10] sm:$0xff]
        %v5047 = vld [vmem:[#allocation10 + $0x18] sm:$0xff]
        %v5048 = vld [vmem:[#allocation10 + $0x20] sm:$0xff]
        %v5049 = vld [vmem:[#allocation10 + $0x28] sm:$0xff]
        %v5050 = vld [vmem:[#allocation10 + $0x30] sm:$0xff]
        %v5051 = vld [vmem:[#allocation10 + $0x38] sm:$0xff]
        %v5052 = vld [vmem:[#allocation10 + $0x40] sm:$0xff]
        %v5053 = vld [vmem:[#allocation10 + $0x48] sm:$0xff]
        %v5054 = vld [vmem:[#allocation10 + $0x50] sm:$0xff]
        %v5055 = vld [vmem:[#allocation10 + $0x58] sm:$0xff]
        %v5056 = vmul.f32 %v4665, %v4665
        %v5057 = vmul.f32 %v4670, %v4670
        %v5058 = vmul.f32 %v4675, %v4675
        %v5059 = vmul.f32 %v4680, %v4680
        %v5060 = vmul.f32 %v4685, %v4685
        %v5061 = vmul.f32 %v4690, %v4690
        %v5062 = vmul.f32 %v4695, %v4695
        %v5063 = vmul.f32 %v4700, %v4700
        %v5064 = vmul.f32 %v4705, %v4705
        %v5065 = vmul.f32 %v4710, %v4710
        %v5066 = vmul.f32 %v4715, %v4715
        %v5067 = vmul.f32 %v4720, %v4720
        %v5068 = vmul.f32 %v4975, %v4975
        %v5069 = vmul.f32 %v4980, %v4980
        %v5070 = vmul.f32 %v4985, %v4985
        %v5071 = vmul.f32 %v4990, %v4990
        %v5072 = vmul.f32 %v4995, %v4995
        %v5073 = vmul.f32 %v5000, %v5000
        %v5074 = vmul.f32 %v5005, %v5005
        %v5075 = vmul.f32 %v5010, %v5010
        %v5076 = vmul.f32 %v5015, %v5015
        %v5077 = vmul.f32 %v5020, %v5020
        %v5078 = vmul.f32 %v5025, %v5025
        %v5079 = vmul.f32 %v5030, %v5030
        %v5080 = vmul.f32 %v4665, %v4975
        %v5081 = vmul.f32 %v4670, %v4980
        %v5082 = vmul.f32 %v4675, %v4985
        %v5083 = vmul.f32 %v4680, %v4990
        %v5084 = vmul.f32 %v4685, %v4995
        %v5085 = vmul.f32 %v4690, %v5000
        %v5086 = vmul.f32 %v4695, %v5005
        %v5087 = vmul.f32 %v4700, %v5010
        %v5088 = vmul.f32 %v4705, %v5015
        %v5089 = vmul.f32 %v4710, %v5020
        %v5090 = vmul.f32 %v4715, %v5025
        %v5091 = vmul.f32 %v4720, %v5030
        %vm5092 = vcmask 785408
        %v5094 = vsel %vm5092, %v4665, 0
        %v5097 = vsel %vm5092, %v4670, 0
        %v5100 = vsel %vm5092, %v4675, 0
        %v5103 = vsel %vm5092, %v4680, 0
        %v5106 = vsel %vm5092, %v4685, 0
        %v5109 = vsel %vm5092, %v4690, 0
        %v5112 = vsel %vm5092, %v4695, 0
        %v5115 = vsel %vm5092, %v4700, 0
        %v5118 = vsel %vm5092, %v4705, 0
        %v5121 = vsel %vm5092, %v4710, 0
        %v5124 = vsel %vm5092, %v4715, 0
        %v5127 = vsel %vm5092, %v4720, 0
        %v5130 = vsel %vm5092, %v4975, 0
        %v5133 = vsel %vm5092, %v4980, 0
        %v5136 = vsel %vm5092, %v4985, 0
        %v5139 = vsel %vm5092, %v4990, 0
        %v5142 = vsel %vm5092, %v4995, 0
        %v5145 = vsel %vm5092, %v5000, 0
        %v5148 = vsel %vm5092, %v5005, 0
        %v5151 = vsel %vm5092, %v5010, 0
        %v5154 = vsel %vm5092, %v5015, 0
        %v5157 = vsel %vm5092, %v5020, 0
        %v5160 = vsel %vm5092, %v5025, 0
        %v5163 = vsel %vm5092, %v5030, 0
        %v5166 = vsel %vm5092, %v5056, 0
        %v5169 = vsel %vm5092, %v5057, 0
        %v5172 = vsel %vm5092, %v5058, 0
        %v5175 = vsel %vm5092, %v5059, 0
        %v5178 = vsel %vm5092, %v5060, 0
        %v5181 = vsel %vm5092, %v5061, 0
        %v5184 = vsel %vm5092, %v5062, 0
        %v5187 = vsel %vm5092, %v5063, 0
        %v5190 = vsel %vm5092, %v5064, 0
        %v5193 = vsel %vm5092, %v5065, 0
        %v5196 = vsel %vm5092, %v5066, 0
        %v5199 = vsel %vm5092, %v5067, 0
        %v5202 = vsel %vm5092, %v5068, 0
        %v5205 = vsel %vm5092, %v5069, 0
        %v5208 = vsel %vm5092, %v5070, 0
        %v5211 = vsel %vm5092, %v5071, 0
        %v5214 = vsel %vm5092, %v5072, 0
        %v5217 = vsel %vm5092, %v5073, 0
        %v5220 = vsel %vm5092, %v5074, 0
        %v5223 = vsel %vm5092, %v5075, 0
        %v5226 = vsel %vm5092, %v5076, 0
        %v5229 = vsel %vm5092, %v5077, 0
        %v5232 = vsel %vm5092, %v5078, 0
        %v5235 = vsel %vm5092, %v5079, 0
        %v5238 = vsel %vm5092, %v5080, 0
        %v5241 = vsel %vm5092, %v5081, 0
        %v5244 = vsel %vm5092, %v5082, 0
        %v5247 = vsel %vm5092, %v5083, 0
        %v5250 = vsel %vm5092, %v5084, 0
        %v5253 = vsel %vm5092, %v5085, 0
        %v5256 = vsel %vm5092, %v5086, 0
        %v5259 = vsel %vm5092, %v5087, 0
        %v5262 = vsel %vm5092, %v5088, 0
        %v5265 = vsel %vm5092, %v5089, 0
        %v5268 = vsel %vm5092, %v5090, 0
        %v5271 = vsel %vm5092, %v5091, 0
        %5273 = vmatprep.subr.mxu0 0.0
        %5274 = vmatpush1.msra.mxu0 0.0
        %5275 = vmatprep.subr.mxu0 0.0
        %5276 = vmatpush1.msra.mxu0 0.0
        %5277 = vmatprep.subr.mxu0 0.0
        %5278 = vmatpush1.msra.mxu0 0.0
        %5279 = vmatprep.subr.mxu0 0.0
        %5280 = vmatpush1.msra.mxu0 0.0
        %5281 = vmatprep.subr.mxu0 0.0
        %5282 = vmatpush1.msra.mxu0 %v5055
        %5283 = vmatprep.subr.mxu0 0.0
        %5284 = vmatpush1.msra.mxu0 %v5054
        %5285 = vmatprep.subr.mxu0 0.0
        %5286 = vmatpush1.msra.mxu0 %v5053
        %5287 = vmatprep.subr.mxu0 0.0
        %5288 = vmatpush1.msra.mxu0 %v5052
        %5289 = vmatprep.subr.mxu0 0.0
        %5290 = vmatpush1.msra.mxu0 %v5051
        %5291 = vmatprep.subr.mxu0 0.0
        %5292 = vmatpush1.msra.mxu0 %v5050
        %5293 = vmatprep.subr.mxu0 0.0
        %5294 = vmatpush1.msra.mxu0 %v5049
        %5295 = vmatprep.subr.mxu0 0.0
        %5296 = vmatpush1.msra.mxu0 %v5048
        %5297 = vmatprep.subr.mxu0 0.0
        %5298 = vmatpush1.msra.mxu0 %v5047
        %5299 = vmatprep.subr.mxu0 0.0
        %5300 = vmatpush1.msra.mxu0 %v5046
        %5301 = vmatprep.subr.mxu0 0.0
        %5302 = vmatpush1.msra.mxu0 %v5045
        %5303 = vmatprep.subr.mxu0 0.0
        %5304 = vmatpush1.msra.mxu0 %v5044
        %5305 = vmatprep.subr.mxu0 0.0
        %5306 = vmatpush2.msra.mxu0 0.0
        %5307 = vmatprep.subr.mxu0 0.0
        %5308 = vmatpush2.msra.mxu0 0.0
        %5309 = vmatprep.subr.mxu0 0.0
        %5310 = vmatpush2.msra.mxu0 0.0
        %5311 = vmatprep.subr.mxu0 0.0
        %5312 = vmatpush2.msra.mxu0 0.0
        %5313 = vmatprep.subr.mxu0 0.0
        %5314 = vmatpush2.msra.mxu0 0.0
        %5315 = vmatprep.subr.mxu0 0.0
        %5316 = vmatpush2.msra.mxu0 0.0
        %5317 = vmatprep.subr.mxu0 0.0
        %5318 = vmatpush2.msra.mxu0 0.0
        %5319 = vmatprep.subr.mxu0 0.0
        %5320 = vmatpush2.msra.mxu0 0.0
        %5321 = vmatprep.subr.mxu0 0.0
        %5322 = vmatpush2.msra.mxu0 0.0
        %5323 = vmatprep.subr.mxu0 0.0
        %5324 = vmatpush2.msra.mxu0 0.0
        %5325 = vmatprep.subr.mxu0 0.0
        %5326 = vmatpush2.msra.mxu0 0.0
        %5327 = vmatprep.subr.mxu0 0.0
        %5328 = vmatpush2.msra.mxu0 0.0
        %5329 = vmatprep.subr.mxu0 0.0
        %5330 = vmatpush2.msra.mxu0 0.0
        %5331 = vmatprep.subr.mxu0 0.0
        %5332 = vmatpush2.msra.mxu0 0.0
        %5333 = vmatprep.subr.mxu0 0.0
        %5334 = vmatpush2.msra.mxu0 0.0
        %5335 = vmatprep.subr.mxu0 0.0
        %5336 = vmatpush2.msra.mxu0 0.0
        %5337 = vmatprep.mubr.f32.mxu0 0.0
        %5338 = vmatmul.mubr.f32.gmra.mxu0 %v5094
        %v5339 = vpop.f32.mrf.mxu0
        %v5340 = vadd.f32 0.0, %v5339
        %v5341 = vpop.f32.mrf.mxu0
        %5342 = vmatprep.mubr.f32.mxu0 0.0
        %5343 = vmatmul.mubr.f32.gmra.mxu0 %v5097
        %v5344 = vpop.f32.mrf.mxu0
        %v5345 = vadd.f32 0.0, %v5344
        %v5346 = vpop.f32.mrf.mxu0
        %5347 = vmatprep.mubr.f32.mxu0 0.0
        %5348 = vmatmul.mubr.f32.gmra.mxu0 %v5100
        %v5349 = vpop.f32.mrf.mxu0
        %v5350 = vadd.f32 0.0, %v5349
        %v5351 = vpop.f32.mrf.mxu0
        %5352 = vmatprep.mubr.f32.mxu0 0.0
        %5353 = vmatmul.mubr.f32.gmra.mxu0 %v5103
        %v5354 = vpop.f32.mrf.mxu0
        %v5355 = vadd.f32 0.0, %v5354
        %v5356 = vpop.f32.mrf.mxu0
        %5357 = vmatprep.mubr.f32.mxu0 0.0
        %5358 = vmatmul.mubr.f32.gmra.mxu0 %v5106
        %v5359 = vpop.f32.mrf.mxu0
        %v5360 = vadd.f32 0.0, %v5359
        %v5361 = vpop.f32.mrf.mxu0
        %5362 = vmatprep.mubr.f32.mxu0 0.0
        %5363 = vmatmul.mubr.f32.gmra.mxu0 %v5109
        %v5364 = vpop.f32.mrf.mxu0
        %v5365 = vadd.f32 0.0, %v5364
        %v5366 = vpop.f32.mrf.mxu0
        %5367 = vmatprep.mubr.f32.mxu0 0.0
        %5368 = vmatmul.mubr.f32.gmra.mxu0 %v5112
        %v5369 = vpop.f32.mrf.mxu0
        %v5370 = vadd.f32 0.0, %v5369
        %v5371 = vpop.f32.mrf.mxu0
        %5372 = vmatprep.mubr.f32.mxu0 0.0
        %5373 = vmatmul.mubr.f32.gmra.mxu0 %v5115
        %v5374 = vpop.f32.mrf.mxu0
        %v5375 = vadd.f32 0.0, %v5374
        %v5376 = vpop.f32.mrf.mxu0
        %5377 = vmatprep.mubr.f32.mxu0 0.0
        %5378 = vmatmul.mubr.f32.gmra.mxu0 %v5118
        %v5379 = vpop.f32.mrf.mxu0
        %v5380 = vadd.f32 0.0, %v5379
        %v5381 = vpop.f32.mrf.mxu0
        %5382 = vmatprep.mubr.f32.mxu0 0.0
        %5383 = vmatmul.mubr.f32.gmra.mxu0 %v5121
        %v5384 = vpop.f32.mrf.mxu0
        %v5385 = vadd.f32 0.0, %v5384
        %v5386 = vpop.f32.mrf.mxu0
        %5387 = vmatprep.mubr.f32.mxu0 0.0
        %5388 = vmatmul.mubr.f32.gmra.mxu0 %v5124
        %v5389 = vpop.f32.mrf.mxu0
        %v5390 = vadd.f32 0.0, %v5389
        %v5391 = vpop.f32.mrf.mxu0
        %5392 = vmatprep.mubr.f32.mxu0 0.0
        %5393 = vmatmul.mubr.f32.gmra.mxu0 %v5127
        %v5394 = vpop.f32.mrf.mxu0
        %v5395 = vadd.f32 0.0, %v5394
        %v5396 = vpop.f32.mrf.mxu0
        %5397 = vmatprep.mubr.f32.mxu0 0.0
        %5398 = vmatmul.mubr.f32.gmra.mxu0 %v5130
        %v5399 = vpop.f32.mrf.mxu0
        %v5400 = vadd.f32 0.0, %v5399
        %v5401 = vpop.f32.mrf.mxu0
        %5402 = vmatprep.mubr.f32.mxu0 0.0
        %5403 = vmatmul.mubr.f32.gmra.mxu0 %v5133
        %v5404 = vpop.f32.mrf.mxu0
        %v5405 = vadd.f32 0.0, %v5404
        %v5406 = vpop.f32.mrf.mxu0
        %5407 = vmatprep.mubr.f32.mxu0 0.0
        %5408 = vmatmul.mubr.f32.gmra.mxu0 %v5136
        %v5409 = vpop.f32.mrf.mxu0
        %v5410 = vadd.f32 0.0, %v5409
        %v5411 = vpop.f32.mrf.mxu0
        %5412 = vmatprep.mubr.f32.mxu0 0.0
        %5413 = vmatmul.mubr.f32.gmra.mxu0 %v5139
        %v5414 = vpop.f32.mrf.mxu0
        %v5415 = vadd.f32 0.0, %v5414
        %v5416 = vpop.f32.mrf.mxu0
        %5417 = vmatprep.mubr.f32.mxu0 0.0
        %5418 = vmatmul.mubr.f32.gmra.mxu0 %v5142
        %v5419 = vpop.f32.mrf.mxu0
        %v5420 = vadd.f32 0.0, %v5419
        %v5421 = vpop.f32.mrf.mxu0
        %5422 = vmatprep.mubr.f32.mxu0 0.0
        %5423 = vmatmul.mubr.f32.gmra.mxu0 %v5145
        %v5424 = vpop.f32.mrf.mxu0
        %v5425 = vadd.f32 0.0, %v5424
        %v5426 = vpop.f32.mrf.mxu0
        %5427 = vmatprep.mubr.f32.mxu0 0.0
        %5428 = vmatmul.mubr.f32.gmra.mxu0 %v5148
        %v5429 = vpop.f32.mrf.mxu0
        %v5430 = vadd.f32 0.0, %v5429
        %v5431 = vpop.f32.mrf.mxu0
        %5432 = vmatprep.mubr.f32.mxu0 0.0
        %5433 = vmatmul.mubr.f32.gmra.mxu0 %v5151
        %v5434 = vpop.f32.mrf.mxu0
        %v5435 = vadd.f32 0.0, %v5434
        %v5436 = vpop.f32.mrf.mxu0
        %5437 = vmatprep.mubr.f32.mxu0 0.0
        %5438 = vmatmul.mubr.f32.gmra.mxu0 %v5154
        %v5439 = vpop.f32.mrf.mxu0
        %v5440 = vadd.f32 0.0, %v5439
        %v5441 = vpop.f32.mrf.mxu0
        %5442 = vmatprep.mubr.f32.mxu0 0.0
        %5443 = vmatmul.mubr.f32.gmra.mxu0 %v5157
        %v5444 = vpop.f32.mrf.mxu0
        %v5445 = vadd.f32 0.0, %v5444
        %v5446 = vpop.f32.mrf.mxu0
        %5447 = vmatprep.mubr.f32.mxu0 0.0
        %5448 = vmatmul.mubr.f32.gmra.mxu0 %v5160
        %v5449 = vpop.f32.mrf.mxu0
        %v5450 = vadd.f32 0.0, %v5449
        %v5451 = vpop.f32.mrf.mxu0
        %5452 = vmatprep.mubr.f32.mxu0 0.0
        %5453 = vmatmul.mubr.f32.gmra.mxu0 %v5163
        %v5454 = vpop.f32.mrf.mxu0
        %v5455 = vadd.f32 0.0, %v5454
        %v5456 = vpop.f32.mrf.mxu0
        %5457 = vmatprep.mubr.f32.mxu0 0.0
        %5458 = vmatmul.mubr.f32.gmra.mxu0 %v5166
        %v5459 = vpop.f32.mrf.mxu0
        %v5460 = vadd.f32 0.0, %v5459
        %v5461 = vpop.f32.mrf.mxu0
        %5462 = vmatprep.mubr.f32.mxu0 0.0
        %5463 = vmatmul.mubr.f32.gmra.mxu0 %v5169
        %v5464 = vpop.f32.mrf.mxu0
        %v5465 = vadd.f32 0.0, %v5464
        %v5466 = vpop.f32.mrf.mxu0
        %5467 = vmatprep.mubr.f32.mxu0 0.0
        %5468 = vmatmul.mubr.f32.gmra.mxu0 %v5172
        %v5469 = vpop.f32.mrf.mxu0
        %v5470 = vadd.f32 0.0, %v5469
        %v5471 = vpop.f32.mrf.mxu0
        %5472 = vmatprep.mubr.f32.mxu0 0.0
        %5473 = vmatmul.mubr.f32.gmra.mxu0 %v5175
        %v5474 = vpop.f32.mrf.mxu0
        %v5475 = vadd.f32 0.0, %v5474
        %v5476 = vpop.f32.mrf.mxu0
        %5477 = vmatprep.mubr.f32.mxu0 0.0
        %5478 = vmatmul.mubr.f32.gmra.mxu0 %v5178
        %v5479 = vpop.f32.mrf.mxu0
        %v5480 = vadd.f32 0.0, %v5479
        %v5481 = vpop.f32.mrf.mxu0
        %5482 = vmatprep.mubr.f32.mxu0 0.0
        %5483 = vmatmul.mubr.f32.gmra.mxu0 %v5181
        %v5484 = vpop.f32.mrf.mxu0
        %v5485 = vadd.f32 0.0, %v5484
        %v5486 = vpop.f32.mrf.mxu0
        %5487 = vmatprep.mubr.f32.mxu0 0.0
        %5488 = vmatmul.mubr.f32.gmra.mxu0 %v5184
        %v5489 = vpop.f32.mrf.mxu0
        %v5490 = vadd.f32 0.0, %v5489
        %v5491 = vpop.f32.mrf.mxu0
        %5492 = vmatprep.mubr.f32.mxu0 0.0
        %5493 = vmatmul.mubr.f32.gmra.mxu0 %v5187
        %v5494 = vpop.f32.mrf.mxu0
        %v5495 = vadd.f32 0.0, %v5494
        %v5496 = vpop.f32.mrf.mxu0
        %5497 = vmatprep.mubr.f32.mxu0 0.0
        %5498 = vmatmul.mubr.f32.gmra.mxu0 %v5190
        %v5499 = vpop.f32.mrf.mxu0
        %v5500 = vadd.f32 0.0, %v5499
        %v5501 = vpop.f32.mrf.mxu0
        %5502 = vmatprep.mubr.f32.mxu0 0.0
        %5503 = vmatmul.mubr.f32.gmra.mxu0 %v5193
        %v5504 = vpop.f32.mrf.mxu0
        %v5505 = vadd.f32 0.0, %v5504
        %v5506 = vpop.f32.mrf.mxu0
        %5507 = vmatprep.mubr.f32.mxu0 0.0
        %5508 = vmatmul.mubr.f32.gmra.mxu0 %v5196
        %v5509 = vpop.f32.mrf.mxu0
        %v5510 = vadd.f32 0.0, %v5509
        %v5511 = vpop.f32.mrf.mxu0
        %5512 = vmatprep.mubr.f32.mxu0 0.0
        %5513 = vmatmul.mubr.f32.gmra.mxu0 %v5199
        %v5514 = vpop.f32.mrf.mxu0
        %v5515 = vadd.f32 0.0, %v5514
        %v5516 = vpop.f32.mrf.mxu0
        %5517 = vmatprep.mubr.f32.mxu0 0.0
        %5518 = vmatmul.mubr.f32.gmra.mxu0 %v5202
        %v5519 = vpop.f32.mrf.mxu0
        %v5520 = vadd.f32 0.0, %v5519
        %v5521 = vpop.f32.mrf.mxu0
        %5522 = vmatprep.mubr.f32.mxu0 0.0
        %5523 = vmatmul.mubr.f32.gmra.mxu0 %v5205
        %v5524 = vpop.f32.mrf.mxu0
        %v5525 = vadd.f32 0.0, %v5524
        %v5526 = vpop.f32.mrf.mxu0
        %5527 = vmatprep.mubr.f32.mxu0 0.0
        %5528 = vmatmul.mubr.f32.gmra.mxu0 %v5208
        %v5529 = vpop.f32.mrf.mxu0
        %v5530 = vadd.f32 0.0, %v5529
        %v5531 = vpop.f32.mrf.mxu0
        %5532 = vmatprep.mubr.f32.mxu0 0.0
        %5533 = vmatmul.mubr.f32.gmra.mxu0 %v5211
        %v5534 = vpop.f32.mrf.mxu0
        %v5535 = vadd.f32 0.0, %v5534
        %v5536 = vpop.f32.mrf.mxu0
        %5537 = vmatprep.mubr.f32.mxu0 0.0
        %5538 = vmatmul.mubr.f32.gmra.mxu0 %v5214
        %v5539 = vpop.f32.mrf.mxu0
        %v5540 = vadd.f32 0.0, %v5539
        %v5541 = vpop.f32.mrf.mxu0
        %5542 = vmatprep.mubr.f32.mxu0 0.0
        %5543 = vmatmul.mubr.f32.gmra.mxu0 %v5217
        %v5544 = vpop.f32.mrf.mxu0
        %v5545 = vadd.f32 0.0, %v5544
        %v5546 = vpop.f32.mrf.mxu0
        %5547 = vmatprep.mubr.f32.mxu0 0.0
        %5548 = vmatmul.mubr.f32.gmra.mxu0 %v5220
        %v5549 = vpop.f32.mrf.mxu0
        %v5550 = vadd.f32 0.0, %v5549
        %v5551 = vpop.f32.mrf.mxu0
        %5552 = vmatprep.mubr.f32.mxu0 0.0
        %5553 = vmatmul.mubr.f32.gmra.mxu0 %v5223
        %v5554 = vpop.f32.mrf.mxu0
        %v5555 = vadd.f32 0.0, %v5554
        %v5556 = vpop.f32.mrf.mxu0
        %5557 = vmatprep.mubr.f32.mxu0 0.0
        %5558 = vmatmul.mubr.f32.gmra.mxu0 %v5226
        %v5559 = vpop.f32.mrf.mxu0
        %v5560 = vadd.f32 0.0, %v5559
        %v5561 = vpop.f32.mrf.mxu0
        %5562 = vmatprep.mubr.f32.mxu0 0.0
        %5563 = vmatmul.mubr.f32.gmra.mxu0 %v5229
        %v5564 = vpop.f32.mrf.mxu0
        %v5565 = vadd.f32 0.0, %v5564
        %v5566 = vpop.f32.mrf.mxu0
        %5567 = vmatprep.mubr.f32.mxu0 0.0
        %5568 = vmatmul.mubr.f32.gmra.mxu0 %v5232
        %v5569 = vpop.f32.mrf.mxu0
        %v5570 = vadd.f32 0.0, %v5569
        %v5571 = vpop.f32.mrf.mxu0
        %5572 = vmatprep.mubr.f32.mxu0 0.0
        %5573 = vmatmul.mubr.f32.gmra.mxu0 %v5235
        %v5574 = vpop.f32.mrf.mxu0
        %v5575 = vadd.f32 0.0, %v5574
        %v5576 = vpop.f32.mrf.mxu0
        %5577 = vmatprep.mubr.f32.mxu0 0.0
        %5578 = vmatmul.mubr.f32.gmra.mxu0 %v5238
        %v5579 = vpop.f32.mrf.mxu0
        %v5580 = vadd.f32 0.0, %v5579
        %v5581 = vpop.f32.mrf.mxu0
        %5582 = vmatprep.mubr.f32.mxu0 0.0
        %5583 = vmatmul.mubr.f32.gmra.mxu0 %v5241
        %v5584 = vpop.f32.mrf.mxu0
        %v5585 = vadd.f32 0.0, %v5584
        %v5586 = vpop.f32.mrf.mxu0
        %5587 = vmatprep.mubr.f32.mxu0 0.0
        %5588 = vmatmul.mubr.f32.gmra.mxu0 %v5244
        %v5589 = vpop.f32.mrf.mxu0
        %v5590 = vadd.f32 0.0, %v5589
        %v5591 = vpop.f32.mrf.mxu0
        %5592 = vmatprep.mubr.f32.mxu0 0.0
        %5593 = vmatmul.mubr.f32.gmra.mxu0 %v5247
        %v5594 = vpop.f32.mrf.mxu0
        %v5595 = vadd.f32 0.0, %v5594
        %v5596 = vpop.f32.mrf.mxu0
        %5597 = vmatprep.mubr.f32.mxu0 0.0
        %5598 = vmatmul.mubr.f32.gmra.mxu0 %v5250
        %v5599 = vpop.f32.mrf.mxu0
        %v5600 = vadd.f32 0.0, %v5599
        %v5601 = vpop.f32.mrf.mxu0
        %5602 = vmatprep.mubr.f32.mxu0 0.0
        %5603 = vmatmul.mubr.f32.gmra.mxu0 %v5253
        %v5604 = vpop.f32.mrf.mxu0
        %v5605 = vadd.f32 0.0, %v5604
        %v5606 = vpop.f32.mrf.mxu0
        %5607 = vmatprep.mubr.f32.mxu0 0.0
        %5608 = vmatmul.mubr.f32.gmra.mxu0 %v5256
        %v5609 = vpop.f32.mrf.mxu0
        %v5610 = vadd.f32 0.0, %v5609
        %v5611 = vpop.f32.mrf.mxu0
        %5612 = vmatprep.mubr.f32.mxu0 0.0
        %5613 = vmatmul.mubr.f32.gmra.mxu0 %v5259
        %v5614 = vpop.f32.mrf.mxu0
        %v5615 = vadd.f32 0.0, %v5614
        %v5616 = vpop.f32.mrf.mxu0
        %5617 = vmatprep.mubr.f32.mxu0 0.0
        %5618 = vmatmul.mubr.f32.gmra.mxu0 %v5262
        %v5619 = vpop.f32.mrf.mxu0
        %v5620 = vadd.f32 0.0, %v5619
        %v5621 = vpop.f32.mrf.mxu0
        %5622 = vmatprep.mubr.f32.mxu0 0.0
        %5623 = vmatmul.mubr.f32.gmra.mxu0 %v5265
        %v5624 = vpop.f32.mrf.mxu0
        %v5625 = vadd.f32 0.0, %v5624
        %v5626 = vpop.f32.mrf.mxu0
        %5627 = vmatprep.mubr.f32.mxu0 0.0
        %5628 = vmatmul.mubr.f32.gmra.mxu0 %v5268
        %v5629 = vpop.f32.mrf.mxu0
        %v5630 = vadd.f32 0.0, %v5629
        %v5631 = vpop.f32.mrf.mxu0
        %5632 = vmatprep.mubr.f32.mxu0 0.0
        %5633 = vmatmul.mubr.f32.gmra.mxu0 %v5271
        %v5634 = vpop.f32.mrf.mxu0
        %v5635 = vadd.f32 0.0, %v5634
        %v5636 = vpop.f32.mrf.mxu0
        %5637 = vdwg.mxu0
        %v5639 = vsel %vm5092, %v5033, 0
        %v5642 = vsel %vm5092, %v5034, 0
        %v5645 = vsel %vm5092, %v5035, 0
        %v5648 = vsel %vm5092, %v5036, 0
        %v5651 = vsel %vm5092, %v5037, 0
        %v5654 = vsel %vm5092, %v5038, 0
        %v5657 = vsel %vm5092, %v5039, 0
        %v5660 = vsel %vm5092, %v5040, 0
        %v5663 = vsel %vm5092, %v5041, 0
        %v5666 = vsel %vm5092, %v5042, 0
        %v5669 = vsel %vm5092, %v5043, 0
        %5671 = vmatprep.subr.mxu0 0.0
        %5672 = vmatpush1.msra.mxu0 0.0
        %5673 = vmatprep.subr.mxu0 0.0
        %5674 = vmatpush1.msra.mxu0 0.0
        %5675 = vmatprep.subr.mxu0 0.0
        %5676 = vmatpush1.msra.mxu0 0.0
        %5677 = vmatprep.subr.mxu0 0.0
        %5678 = vmatpush1.msra.mxu0 0.0
        %5679 = vmatprep.subr.mxu0 0.0
        %5680 = vmatpush1.msra.mxu0 %v5395
        %5681 = vmatprep.subr.mxu0 0.0
        %5682 = vmatpush1.msra.mxu0 %v5390
        %5683 = vmatprep.subr.mxu0 0.0
        %5684 = vmatpush1.msra.mxu0 %v5385
        %5685 = vmatprep.subr.mxu0 0.0
        %5686 = vmatpush1.msra.mxu0 %v5380
        %5687 = vmatprep.subr.mxu0 0.0
        %5688 = vmatpush1.msra.mxu0 %v5375
        %5689 = vmatprep.subr.mxu0 0.0
        %5690 = vmatpush1.msra.mxu0 %v5370
        %5691 = vmatprep.subr.mxu0 0.0
        %5692 = vmatpush1.msra.mxu0 %v5365
        %5693 = vmatprep.subr.mxu0 0.0
        %5694 = vmatpush1.msra.mxu0 %v5360
        %5695 = vmatprep.subr.mxu0 0.0
        %5696 = vmatpush1.msra.mxu0 %v5355
        %5697 = vmatprep.subr.mxu0 0.0
        %5698 = vmatpush1.msra.mxu0 %v5350
        %5699 = vmatprep.subr.mxu0 0.0
        %5700 = vmatpush1.msra.mxu0 %v5345
        %5701 = vmatprep.subr.mxu0 0.0
        %5702 = vmatpush1.msra.mxu0 %v5340
        %5703 = vmatprep.subr.mxu0 0.0
        %5704 = vmatpush2.msra.mxu0 0.0
        %5705 = vmatprep.subr.mxu0 0.0
        %5706 = vmatpush2.msra.mxu0 0.0
        %5707 = vmatprep.subr.mxu0 0.0
        %5708 = vmatpush2.msra.mxu0 0.0
        %5709 = vmatprep.subr.mxu0 0.0
        %5710 = vmatpush2.msra.mxu0 0.0
        %5711 = vmatprep.subr.mxu0 0.0
        %5712 = vmatpush2.msra.mxu0 0.0
        %5713 = vmatprep.subr.mxu0 0.0
        %5714 = vmatpush2.msra.mxu0 0.0
        %5715 = vmatprep.subr.mxu0 0.0
        %5716 = vmatpush2.msra.mxu0 0.0
        %5717 = vmatprep.subr.mxu0 0.0
        %5718 = vmatpush2.msra.mxu0 0.0
        %5719 = vmatprep.subr.mxu0 0.0
        %5720 = vmatpush2.msra.mxu0 0.0
        %5721 = vmatprep.subr.mxu0 0.0
        %5722 = vmatpush2.msra.mxu0 0.0
        %5723 = vmatprep.subr.mxu0 0.0
        %5724 = vmatpush2.msra.mxu0 0.0
        %5725 = vmatprep.subr.mxu0 0.0
        %5726 = vmatpush2.msra.mxu0 0.0
        %5727 = vmatprep.subr.mxu0 0.0
        %5728 = vmatpush2.msra.mxu0 0.0
        %5729 = vmatprep.subr.mxu0 0.0
        %5730 = vmatpush2.msra.mxu0 0.0
        %5731 = vmatprep.subr.mxu0 0.0
        %5732 = vmatpush2.msra.mxu0 0.0
        %5733 = vmatprep.subr.mxu0 0.0
        %5734 = vmatpush2.msra.mxu0 0.0
        %5735 = vmatprep.mubr.f32.mxu0 0.0
        %5736 = vmatmul.mubr.f32.gmra.mxu0 %v5639
        %v5737 = vpop.f32.mrf.mxu0
        %v5738 = vadd.f32 0.0, %v5737
        %v5739 = vpop.f32.mrf.mxu0
        %5740 = vmatprep.mubr.f32.mxu0 0.0
        %5741 = vmatmul.mubr.f32.gmra.mxu0 %v5642
        %v5742 = vpop.f32.mrf.mxu0
        %v5743 = vadd.f32 0.0, %v5742
        %v5744 = vpop.f32.mrf.mxu0
        %5745 = vmatprep.mubr.f32.mxu0 0.0
        %5746 = vmatmul.mubr.f32.gmra.mxu0 %v5645
        %v5747 = vpop.f32.mrf.mxu0
        %v5748 = vadd.f32 0.0, %v5747
        %v5749 = vpop.f32.mrf.mxu0
        %5750 = vmatprep.mubr.f32.mxu0 0.0
        %5751 = vmatmul.mubr.f32.gmra.mxu0 %v5648
        %v5752 = vpop.f32.mrf.mxu0
        %v5753 = vadd.f32 0.0, %v5752
        %v5754 = vpop.f32.mrf.mxu0
        %5755 = vmatprep.mubr.f32.mxu0 0.0
        %5756 = vmatmul.mubr.f32.gmra.mxu0 %v5651
        %v5757 = vpop.f32.mrf.mxu0
        %v5758 = vadd.f32 0.0, %v5757
        %v5759 = vpop.f32.mrf.mxu0
        %5760 = vmatprep.mubr.f32.mxu0 0.0
        %5761 = vmatmul.mubr.f32.gmra.mxu0 %v5654
        %v5762 = vpop.f32.mrf.mxu0
        %v5763 = vadd.f32 0.0, %v5762
        %v5764 = vpop.f32.mrf.mxu0
        %5765 = vmatprep.mubr.f32.mxu0 0.0
        %5766 = vmatmul.mubr.f32.gmra.mxu0 %v5657
        %v5767 = vpop.f32.mrf.mxu0
        %v5768 = vadd.f32 0.0, %v5767
        %v5769 = vpop.f32.mrf.mxu0
        %5770 = vmatprep.mubr.f32.mxu0 0.0
        %5771 = vmatmul.mubr.f32.gmra.mxu0 %v5660
        %v5772 = vpop.f32.mrf.mxu0
        %v5773 = vadd.f32 0.0, %v5772
        %v5774 = vpop.f32.mrf.mxu0
        %5775 = vmatprep.mubr.f32.mxu0 0.0
        %5776 = vmatmul.mubr.f32.gmra.mxu0 %v5663
        %v5777 = vpop.f32.mrf.mxu0
        %v5778 = vadd.f32 0.0, %v5777
        %v5779 = vpop.f32.mrf.mxu0
        %5780 = vmatprep.mubr.f32.mxu0 0.0
        %5781 = vmatmul.mubr.f32.gmra.mxu0 %v5666
        %v5782 = vpop.f32.mrf.mxu0
        %v5783 = vadd.f32 0.0, %v5782
        %v5784 = vpop.f32.mrf.mxu0
        %5785 = vmatprep.mubr.f32.mxu0 0.0
        %5786 = vmatmul.mubr.f32.gmra.mxu0 %v5669
        %v5787 = vpop.f32.mrf.mxu0
        %v5788 = vadd.f32 0.0, %v5787
        %v5789 = vpop.f32.mrf.mxu0
        %5790 = vdwg.mxu0
        %5791 = vmatprep.subr.mxu0 0.0
        %5792 = vmatpush1.msra.mxu0 0.0
        %5793 = vmatprep.subr.mxu0 0.0
        %5794 = vmatpush1.msra.mxu0 0.0
        %5795 = vmatprep.subr.mxu0 0.0
        %5796 = vmatpush1.msra.mxu0 0.0
        %5797 = vmatprep.subr.mxu0 0.0
        %5798 = vmatpush1.msra.mxu0 0.0
        %5799 = vmatprep.subr.mxu0 0.0
        %5800 = vmatpush1.msra.mxu0 %v5455
        %5801 = vmatprep.subr.mxu0 0.0
        %5802 = vmatpush1.msra.mxu0 %v5450
        %5803 = vmatprep.subr.mxu0 0.0
        %5804 = vmatpush1.msra.mxu0 %v5445
        %5805 = vmatprep.subr.mxu0 0.0
        %5806 = vmatpush1.msra.mxu0 %v5440
        %5807 = vmatprep.subr.mxu0 0.0
        %5808 = vmatpush1.msra.mxu0 %v5435
        %5809 = vmatprep.subr.mxu0 0.0
        %5810 = vmatpush1.msra.mxu0 %v5430
        %5811 = vmatprep.subr.mxu0 0.0
        %5812 = vmatpush1.msra.mxu0 %v5425
        %5813 = vmatprep.subr.mxu0 0.0
        %5814 = vmatpush1.msra.mxu0 %v5420
        %5815 = vmatprep.subr.mxu0 0.0
        %5816 = vmatpush1.msra.mxu0 %v5415
        %5817 = vmatprep.subr.mxu0 0.0
        %5818 = vmatpush1.msra.mxu0 %v5410
        %5819 = vmatprep.subr.mxu0 0.0
        %5820 = vmatpush1.msra.mxu0 %v5405
        %5821 = vmatprep.subr.mxu0 0.0
        %5822 = vmatpush1.msra.mxu0 %v5400
        %5823 = vmatprep.subr.mxu0 0.0
        %5824 = vmatpush2.msra.mxu0 0.0
        %5825 = vmatprep.subr.mxu0 0.0
        %5826 = vmatpush2.msra.mxu0 0.0
        %5827 = vmatprep.subr.mxu0 0.0
        %5828 = vmatpush2.msra.mxu0 0.0
        %5829 = vmatprep.subr.mxu0 0.0
        %5830 = vmatpush2.msra.mxu0 0.0
        %5831 = vmatprep.subr.mxu0 0.0
        %5832 = vmatpush2.msra.mxu0 0.0
        %5833 = vmatprep.subr.mxu0 0.0
        %5834 = vmatpush2.msra.mxu0 0.0
        %5835 = vmatprep.subr.mxu0 0.0
        %5836 = vmatpush2.msra.mxu0 0.0
        %5837 = vmatprep.subr.mxu0 0.0
        %5838 = vmatpush2.msra.mxu0 0.0
        %5839 = vmatprep.subr.mxu0 0.0
        %5840 = vmatpush2.msra.mxu0 0.0
        %5841 = vmatprep.subr.mxu0 0.0
        %5842 = vmatpush2.msra.mxu0 0.0
        %5843 = vmatprep.subr.mxu0 0.0
        %5844 = vmatpush2.msra.mxu0 0.0
        %5845 = vmatprep.subr.mxu0 0.0
        %5846 = vmatpush2.msra.mxu0 0.0
        %5847 = vmatprep.subr.mxu0 0.0
        %5848 = vmatpush2.msra.mxu0 0.0
        %5849 = vmatprep.subr.mxu0 0.0
        %5850 = vmatpush2.msra.mxu0 0.0
        %5851 = vmatprep.subr.mxu0 0.0
        %5852 = vmatpush2.msra.mxu0 0.0
        %5853 = vmatprep.subr.mxu0 0.0
        %5854 = vmatpush2.msra.mxu0 0.0
        %5855 = vmatprep.mubr.f32.mxu0 0.0
        %5856 = vmatmul.mubr.f32.gmra.mxu0 %v5639
        %v5857 = vpop.f32.mrf.mxu0
        %v5858 = vadd.f32 0.0, %v5857
        %v5859 = vpop.f32.mrf.mxu0
        %5860 = vmatprep.mubr.f32.mxu0 0.0
        %5861 = vmatmul.mubr.f32.gmra.mxu0 %v5642
        %v5862 = vpop.f32.mrf.mxu0
        %v5863 = vadd.f32 0.0, %v5862
        %v5864 = vpop.f32.mrf.mxu0
        %5865 = vmatprep.mubr.f32.mxu0 0.0
        %5866 = vmatmul.mubr.f32.gmra.mxu0 %v5645
        %v5867 = vpop.f32.mrf.mxu0
        %v5868 = vadd.f32 0.0, %v5867
        %v5869 = vpop.f32.mrf.mxu0
        %5870 = vmatprep.mubr.f32.mxu0 0.0
        %5871 = vmatmul.mubr.f32.gmra.mxu0 %v5648
        %v5872 = vpop.f32.mrf.mxu0
        %v5873 = vadd.f32 0.0, %v5872
        %v5874 = vpop.f32.mrf.mxu0
        %5875 = vmatprep.mubr.f32.mxu0 0.0
        %5876 = vmatmul.mubr.f32.gmra.mxu0 %v5651
        %v5877 = vpop.f32.mrf.mxu0
        %v5878 = vadd.f32 0.0, %v5877
        %v5879 = vpop.f32.mrf.mxu0
        %5880 = vmatprep.mubr.f32.mxu0 0.0
        %5881 = vmatmul.mubr.f32.gmra.mxu0 %v5654
        %v5882 = vpop.f32.mrf.mxu0
        %v5883 = vadd.f32 0.0, %v5882
        %v5884 = vpop.f32.mrf.mxu0
        %5885 = vmatprep.mubr.f32.mxu0 0.0
        %5886 = vmatmul.mubr.f32.gmra.mxu0 %v5657
        %v5887 = vpop.f32.mrf.mxu0
        %v5888 = vadd.f32 0.0, %v5887
        %v5889 = vpop.f32.mrf.mxu0
        %5890 = vmatprep.mubr.f32.mxu0 0.0
        %5891 = vmatmul.mubr.f32.gmra.mxu0 %v5660
        %v5892 = vpop.f32.mrf.mxu0
        %v5893 = vadd.f32 0.0, %v5892
        %v5894 = vpop.f32.mrf.mxu0
        %5895 = vmatprep.mubr.f32.mxu0 0.0
        %5896 = vmatmul.mubr.f32.gmra.mxu0 %v5663
        %v5897 = vpop.f32.mrf.mxu0
        %v5898 = vadd.f32 0.0, %v5897
        %v5899 = vpop.f32.mrf.mxu0
        %5900 = vmatprep.mubr.f32.mxu0 0.0
        %5901 = vmatmul.mubr.f32.gmra.mxu0 %v5666
        %v5902 = vpop.f32.mrf.mxu0
        %v5903 = vadd.f32 0.0, %v5902
        %v5904 = vpop.f32.mrf.mxu0
        %5905 = vmatprep.mubr.f32.mxu0 0.0
        %5906 = vmatmul.mubr.f32.gmra.mxu0 %v5669
        %v5907 = vpop.f32.mrf.mxu0
        %v5908 = vadd.f32 0.0, %v5907
        %v5909 = vpop.f32.mrf.mxu0
        %5910 = vdwg.mxu0
        %5911 = vmatprep.subr.mxu0 0.0
        %5912 = vmatpush1.msra.mxu0 0.0
        %5913 = vmatprep.subr.mxu0 0.0
        %5914 = vmatpush1.msra.mxu0 0.0
        %5915 = vmatprep.subr.mxu0 0.0
        %5916 = vmatpush1.msra.mxu0 0.0
        %5917 = vmatprep.subr.mxu0 0.0
        %5918 = vmatpush1.msra.mxu0 0.0
        %5919 = vmatprep.subr.mxu0 0.0
        %5920 = vmatpush1.msra.mxu0 %v5515
        %5921 = vmatprep.subr.mxu0 0.0
        %5922 = vmatpush1.msra.mxu0 %v5510
        %5923 = vmatprep.subr.mxu0 0.0
        %5924 = vmatpush1.msra.mxu0 %v5505
        %5925 = vmatprep.subr.mxu0 0.0
        %5926 = vmatpush1.msra.mxu0 %v5500
        %5927 = vmatprep.subr.mxu0 0.0
        %5928 = vmatpush1.msra.mxu0 %v5495
        %5929 = vmatprep.subr.mxu0 0.0
        %5930 = vmatpush1.msra.mxu0 %v5490
        %5931 = vmatprep.subr.mxu0 0.0
        %5932 = vmatpush1.msra.mxu0 %v5485
        %5933 = vmatprep.subr.mxu0 0.0
        %5934 = vmatpush1.msra.mxu0 %v5480
        %5935 = vmatprep.subr.mxu0 0.0
        %5936 = vmatpush1.msra.mxu0 %v5475
        %5937 = vmatprep.subr.mxu0 0.0
        %5938 = vmatpush1.msra.mxu0 %v5470
        %5939 = vmatprep.subr.mxu0 0.0
        %5940 = vmatpush1.msra.mxu0 %v5465
        %5941 = vmatprep.subr.mxu0 0.0
        %5942 = vmatpush1.msra.mxu0 %v5460
        %5943 = vmatprep.subr.mxu0 0.0
        %5944 = vmatpush2.msra.mxu0 0.0
        %5945 = vmatprep.subr.mxu0 0.0
        %5946 = vmatpush2.msra.mxu0 0.0
        %5947 = vmatprep.subr.mxu0 0.0
        %5948 = vmatpush2.msra.mxu0 0.0
        %5949 = vmatprep.subr.mxu0 0.0
        %5950 = vmatpush2.msra.mxu0 0.0
        %5951 = vmatprep.subr.mxu0 0.0
        %5952 = vmatpush2.msra.mxu0 0.0
        %5953 = vmatprep.subr.mxu0 0.0
        %5954 = vmatpush2.msra.mxu0 0.0
        %5955 = vmatprep.subr.mxu0 0.0
        %5956 = vmatpush2.msra.mxu0 0.0
        %5957 = vmatprep.subr.mxu0 0.0
        %5958 = vmatpush2.msra.mxu0 0.0
        %5959 = vmatprep.subr.mxu0 0.0
        %5960 = vmatpush2.msra.mxu0 0.0
        %5961 = vmatprep.subr.mxu0 0.0
        %5962 = vmatpush2.msra.mxu0 0.0
        %5963 = vmatprep.subr.mxu0 0.0
        %5964 = vmatpush2.msra.mxu0 0.0
        %5965 = vmatprep.subr.mxu0 0.0
        %5966 = vmatpush2.msra.mxu0 0.0
        %5967 = vmatprep.subr.mxu0 0.0
        %5968 = vmatpush2.msra.mxu0 0.0
        %5969 = vmatprep.subr.mxu0 0.0
        %5970 = vmatpush2.msra.mxu0 0.0
        %5971 = vmatprep.subr.mxu0 0.0
        %5972 = vmatpush2.msra.mxu0 0.0
        %5973 = vmatprep.subr.mxu0 0.0
        %5974 = vmatpush2.msra.mxu0 0.0
        %5975 = vmatprep.mubr.f32.mxu0 0.0
        %5976 = vmatmul.mubr.f32.gmra.mxu0 %v5639
        %v5977 = vpop.f32.mrf.mxu0
        %v5978 = vadd.f32 0.0, %v5977
        %v5979 = vpop.f32.mrf.mxu0
        %5980 = vmatprep.mubr.f32.mxu0 0.0
        %5981 = vmatmul.mubr.f32.gmra.mxu0 %v5642
        %v5982 = vpop.f32.mrf.mxu0
        %v5983 = vadd.f32 0.0, %v5982
        %v5984 = vpop.f32.mrf.mxu0
        %5985 = vmatprep.mubr.f32.mxu0 0.0
        %5986 = vmatmul.mubr.f32.gmra.mxu0 %v5645
        %v5987 = vpop.f32.mrf.mxu0
        %v5988 = vadd.f32 0.0, %v5987
        %v5989 = vpop.f32.mrf.mxu0
        %5990 = vmatprep.mubr.f32.mxu0 0.0
        %5991 = vmatmul.mubr.f32.gmra.mxu0 %v5648
        %v5992 = vpop.f32.mrf.mxu0
        %v5993 = vadd.f32 0.0, %v5992
        %v5994 = vpop.f32.mrf.mxu0
        %5995 = vmatprep.mubr.f32.mxu0 0.0
        %5996 = vmatmul.mubr.f32.gmra.mxu0 %v5651
        %v5997 = vpop.f32.mrf.mxu0
        %v5998 = vadd.f32 0.0, %v5997
        %v5999 = vpop.f32.mrf.mxu0
        %6000 = vmatprep.mubr.f32.mxu0 0.0
        %6001 = vmatmul.mubr.f32.gmra.mxu0 %v5654
        %v6002 = vpop.f32.mrf.mxu0
        %v6003 = vadd.f32 0.0, %v6002
        %v6004 = vpop.f32.mrf.mxu0
        %6005 = vmatprep.mubr.f32.mxu0 0.0
        %6006 = vmatmul.mubr.f32.gmra.mxu0 %v5657
        %v6007 = vpop.f32.mrf.mxu0
        %v6008 = vadd.f32 0.0, %v6007
        %v6009 = vpop.f32.mrf.mxu0
        %6010 = vmatprep.mubr.f32.mxu0 0.0
        %6011 = vmatmul.mubr.f32.gmra.mxu0 %v5660
        %v6012 = vpop.f32.mrf.mxu0
        %v6013 = vadd.f32 0.0, %v6012
        %v6014 = vpop.f32.mrf.mxu0
        %6015 = vmatprep.mubr.f32.mxu0 0.0
        %6016 = vmatmul.mubr.f32.gmra.mxu0 %v5663
        %v6017 = vpop.f32.mrf.mxu0
        %v6018 = vadd.f32 0.0, %v6017
        %v6019 = vpop.f32.mrf.mxu0
        %6020 = vmatprep.mubr.f32.mxu0 0.0
        %6021 = vmatmul.mubr.f32.gmra.mxu0 %v5666
        %v6022 = vpop.f32.mrf.mxu0
        %v6023 = vadd.f32 0.0, %v6022
        %v6024 = vpop.f32.mrf.mxu0
        %6025 = vmatprep.mubr.f32.mxu0 0.0
        %6026 = vmatmul.mubr.f32.gmra.mxu0 %v5669
        %v6027 = vpop.f32.mrf.mxu0
        %v6028 = vadd.f32 0.0, %v6027
        %v6029 = vpop.f32.mrf.mxu0
        %6030 = vdwg.mxu0
        %6031 = vmatprep.subr.mxu0 0.0
        %6032 = vmatpush1.msra.mxu0 0.0
        %6033 = vmatprep.subr.mxu0 0.0
        %6034 = vmatpush1.msra.mxu0 0.0
        %6035 = vmatprep.subr.mxu0 0.0
        %6036 = vmatpush1.msra.mxu0 0.0
        %6037 = vmatprep.subr.mxu0 0.0
        %6038 = vmatpush1.msra.mxu0 0.0
        %6039 = vmatprep.subr.mxu0 0.0
        %6040 = vmatpush1.msra.mxu0 %v5575
        %6041 = vmatprep.subr.mxu0 0.0
        %6042 = vmatpush1.msra.mxu0 %v5570
        %6043 = vmatprep.subr.mxu0 0.0
        %6044 = vmatpush1.msra.mxu0 %v5565
        %6045 = vmatprep.subr.mxu0 0.0
        %6046 = vmatpush1.msra.mxu0 %v5560
        %6047 = vmatprep.subr.mxu0 0.0
        %6048 = vmatpush1.msra.mxu0 %v5555
        %6049 = vmatprep.subr.mxu0 0.0
        %6050 = vmatpush1.msra.mxu0 %v5550
        %6051 = vmatprep.subr.mxu0 0.0
        %6052 = vmatpush1.msra.mxu0 %v5545
        %6053 = vmatprep.subr.mxu0 0.0
        %6054 = vmatpush1.msra.mxu0 %v5540
        %6055 = vmatprep.subr.mxu0 0.0
        %6056 = vmatpush1.msra.mxu0 %v5535
        %6057 = vmatprep.subr.mxu0 0.0
        %6058 = vmatpush1.msra.mxu0 %v5530
        %6059 = vmatprep.subr.mxu0 0.0
        %6060 = vmatpush1.msra.mxu0 %v5525
        %6061 = vmatprep.subr.mxu0 0.0
        %6062 = vmatpush1.msra.mxu0 %v5520
        %6063 = vmatprep.subr.mxu0 0.0
        %6064 = vmatpush2.msra.mxu0 0.0
        %6065 = vmatprep.subr.mxu0 0.0
        %6066 = vmatpush2.msra.mxu0 0.0
        %6067 = vmatprep.subr.mxu0 0.0
        %6068 = vmatpush2.msra.mxu0 0.0
        %6069 = vmatprep.subr.mxu0 0.0
        %6070 = vmatpush2.msra.mxu0 0.0
        %6071 = vmatprep.subr.mxu0 0.0
        %6072 = vmatpush2.msra.mxu0 0.0
        %6073 = vmatprep.subr.mxu0 0.0
        %6074 = vmatpush2.msra.mxu0 0.0
        %6075 = vmatprep.subr.mxu0 0.0
        %6076 = vmatpush2.msra.mxu0 0.0
        %6077 = vmatprep.subr.mxu0 0.0
        %6078 = vmatpush2.msra.mxu0 0.0
        %6079 = vmatprep.subr.mxu0 0.0
        %6080 = vmatpush2.msra.mxu0 0.0
        %6081 = vmatprep.subr.mxu0 0.0
        %6082 = vmatpush2.msra.mxu0 0.0
        %6083 = vmatprep.subr.mxu0 0.0
        %6084 = vmatpush2.msra.mxu0 0.0
        %6085 = vmatprep.subr.mxu0 0.0
        %6086 = vmatpush2.msra.mxu0 0.0
        %6087 = vmatprep.subr.mxu0 0.0
        %6088 = vmatpush2.msra.mxu0 0.0
        %6089 = vmatprep.subr.mxu0 0.0
        %6090 = vmatpush2.msra.mxu0 0.0
        %6091 = vmatprep.subr.mxu0 0.0
        %6092 = vmatpush2.msra.mxu0 0.0
        %6093 = vmatprep.subr.mxu0 0.0
        %6094 = vmatpush2.msra.mxu0 0.0
        %6095 = vmatprep.mubr.f32.mxu0 0.0
        %6096 = vmatmul.mubr.f32.gmra.mxu0 %v5639
        %v6097 = vpop.f32.mrf.mxu0
        %v6098 = vadd.f32 0.0, %v6097
        %v6099 = vpop.f32.mrf.mxu0
        %6100 = vmatprep.mubr.f32.mxu0 0.0
        %6101 = vmatmul.mubr.f32.gmra.mxu0 %v5642
        %v6102 = vpop.f32.mrf.mxu0
        %v6103 = vadd.f32 0.0, %v6102
        %v6104 = vpop.f32.mrf.mxu0
        %6105 = vmatprep.mubr.f32.mxu0 0.0
        %6106 = vmatmul.mubr.f32.gmra.mxu0 %v5645
        %v6107 = vpop.f32.mrf.mxu0
        %v6108 = vadd.f32 0.0, %v6107
        %v6109 = vpop.f32.mrf.mxu0
        %6110 = vmatprep.mubr.f32.mxu0 0.0
        %6111 = vmatmul.mubr.f32.gmra.mxu0 %v5648
        %v6112 = vpop.f32.mrf.mxu0
        %v6113 = vadd.f32 0.0, %v6112
        %v6114 = vpop.f32.mrf.mxu0
        %6115 = vmatprep.mubr.f32.mxu0 0.0
        %6116 = vmatmul.mubr.f32.gmra.mxu0 %v5651
        %v6117 = vpop.f32.mrf.mxu0
        %v6118 = vadd.f32 0.0, %v6117
        %v6119 = vpop.f32.mrf.mxu0
        %6120 = vmatprep.mubr.f32.mxu0 0.0
        %6121 = vmatmul.mubr.f32.gmra.mxu0 %v5654
        %v6122 = vpop.f32.mrf.mxu0
        %v6123 = vadd.f32 0.0, %v6122
        %v6124 = vpop.f32.mrf.mxu0
        %6125 = vmatprep.mubr.f32.mxu0 0.0
        %6126 = vmatmul.mubr.f32.gmra.mxu0 %v5657
        %v6127 = vpop.f32.mrf.mxu0
        %v6128 = vadd.f32 0.0, %v6127
        %v6129 = vpop.f32.mrf.mxu0
        %6130 = vmatprep.mubr.f32.mxu0 0.0
        %6131 = vmatmul.mubr.f32.gmra.mxu0 %v5660
        %v6132 = vpop.f32.mrf.mxu0
        %v6133 = vadd.f32 0.0, %v6132
        %v6134 = vpop.f32.mrf.mxu0
        %6135 = vmatprep.mubr.f32.mxu0 0.0
        %6136 = vmatmul.mubr.f32.gmra.mxu0 %v5663
        %v6137 = vpop.f32.mrf.mxu0
        %v6138 = vadd.f32 0.0, %v6137
        %v6139 = vpop.f32.mrf.mxu0
        %6140 = vmatprep.mubr.f32.mxu0 0.0
        %6141 = vmatmul.mubr.f32.gmra.mxu0 %v5666
        %v6142 = vpop.f32.mrf.mxu0
        %v6143 = vadd.f32 0.0, %v6142
        %v6144 = vpop.f32.mrf.mxu0
        %6145 = vmatprep.mubr.f32.mxu0 0.0
        %6146 = vmatmul.mubr.f32.gmra.mxu0 %v5669
        %v6147 = vpop.f32.mrf.mxu0
        %v6148 = vadd.f32 0.0, %v6147
        %v6149 = vpop.f32.mrf.mxu0
        %6150 = vdwg.mxu0
        %6151 = vmatprep.subr.mxu0 0.0
        %6152 = vmatpush1.msra.mxu0 0.0
        %6153 = vmatprep.subr.mxu0 0.0
        %6154 = vmatpush1.msra.mxu0 0.0
        %6155 = vmatprep.subr.mxu0 0.0
        %6156 = vmatpush1.msra.mxu0 0.0
        %6157 = vmatprep.subr.mxu0 0.0
        %6158 = vmatpush1.msra.mxu0 0.0
        %6159 = vmatprep.subr.mxu0 0.0
        %6160 = vmatpush1.msra.mxu0 %v5635
        %6161 = vmatprep.subr.mxu0 0.0
        %6162 = vmatpush1.msra.mxu0 %v5630
        %6163 = vmatprep.subr.mxu0 0.0
        %6164 = vmatpush1.msra.mxu0 %v5625
        %6165 = vmatprep.subr.mxu0 0.0
        %6166 = vmatpush1.msra.mxu0 %v5620
        %6167 = vmatprep.subr.mxu0 0.0
        %6168 = vmatpush1.msra.mxu0 %v5615
        %6169 = vmatprep.subr.mxu0 0.0
        %6170 = vmatpush1.msra.mxu0 %v5610
        %6171 = vmatprep.subr.mxu0 0.0
        %6172 = vmatpush1.msra.mxu0 %v5605
        %6173 = vmatprep.subr.mxu0 0.0
        %6174 = vmatpush1.msra.mxu0 %v5600
        %6175 = vmatprep.subr.mxu0 0.0
        %6176 = vmatpush1.msra.mxu0 %v5595
        %6177 = vmatprep.subr.mxu0 0.0
        %6178 = vmatpush1.msra.mxu0 %v5590
        %6179 = vmatprep.subr.mxu0 0.0
        %6180 = vmatpush1.msra.mxu0 %v5585
        %6181 = vmatprep.subr.mxu0 0.0
        %6182 = vmatpush1.msra.mxu0 %v5580
        %6183 = vmatprep.subr.mxu0 0.0
        %6184 = vmatpush2.msra.mxu0 0.0
        %6185 = vmatprep.subr.mxu0 0.0
        %6186 = vmatpush2.msra.mxu0 0.0
        %6187 = vmatprep.subr.mxu0 0.0
        %6188 = vmatpush2.msra.mxu0 0.0
        %6189 = vmatprep.subr.mxu0 0.0
        %6190 = vmatpush2.msra.mxu0 0.0
        %6191 = vmatprep.subr.mxu0 0.0
        %6192 = vmatpush2.msra.mxu0 0.0
        %6193 = vmatprep.subr.mxu0 0.0
        %6194 = vmatpush2.msra.mxu0 0.0
        %6195 = vmatprep.subr.mxu0 0.0
        %6196 = vmatpush2.msra.mxu0 0.0
        %6197 = vmatprep.subr.mxu0 0.0
        %6198 = vmatpush2.msra.mxu0 0.0
        %6199 = vmatprep.subr.mxu0 0.0
        %6200 = vmatpush2.msra.mxu0 0.0
        %6201 = vmatprep.subr.mxu0 0.0
        %6202 = vmatpush2.msra.mxu0 0.0
        %6203 = vmatprep.subr.mxu0 0.0
        %6204 = vmatpush2.msra.mxu0 0.0
        %6205 = vmatprep.subr.mxu0 0.0
        %6206 = vmatpush2.msra.mxu0 0.0
        %6207 = vmatprep.subr.mxu0 0.0
        %6208 = vmatpush2.msra.mxu0 0.0
        %6209 = vmatprep.subr.mxu0 0.0
        %6210 = vmatpush2.msra.mxu0 0.0
        %6211 = vmatprep.subr.mxu0 0.0
        %6212 = vmatpush2.msra.mxu0 0.0
        %6213 = vmatprep.subr.mxu0 0.0
        %6214 = vmatpush2.msra.mxu0 0.0
        %6215 = vmatprep.mubr.f32.mxu0 0.0
        %6216 = vmatmul.mubr.f32.gmra.mxu0 %v5639
        %v6217 = vpop.f32.mrf.mxu0
        %v6218 = vadd.f32 0.0, %v6217
        %v6219 = vpop.f32.mrf.mxu0
        %6220 = vmatprep.mubr.f32.mxu0 0.0
        %6221 = vmatmul.mubr.f32.gmra.mxu0 %v5642
        %v6222 = vpop.f32.mrf.mxu0
        %v6223 = vadd.f32 0.0, %v6222
        %v6224 = vpop.f32.mrf.mxu0
        %6225 = vmatprep.mubr.f32.mxu0 0.0
        %6226 = vmatmul.mubr.f32.gmra.mxu0 %v5645
        %v6227 = vpop.f32.mrf.mxu0
        %v6228 = vadd.f32 0.0, %v6227
        %v6229 = vpop.f32.mrf.mxu0
        %6230 = vmatprep.mubr.f32.mxu0 0.0
        %6231 = vmatmul.mubr.f32.gmra.mxu0 %v5648
        %v6232 = vpop.f32.mrf.mxu0
        %v6233 = vadd.f32 0.0, %v6232
        %v6234 = vpop.f32.mrf.mxu0
        %6235 = vmatprep.mubr.f32.mxu0 0.0
        %6236 = vmatmul.mubr.f32.gmra.mxu0 %v5651
        %v6237 = vpop.f32.mrf.mxu0
        %v6238 = vadd.f32 0.0, %v6237
        %v6239 = vpop.f32.mrf.mxu0
        %6240 = vmatprep.mubr.f32.mxu0 0.0
        %6241 = vmatmul.mubr.f32.gmra.mxu0 %v5654
        %v6242 = vpop.f32.mrf.mxu0
        %v6243 = vadd.f32 0.0, %v6242
        %v6244 = vpop.f32.mrf.mxu0
        %6245 = vmatprep.mubr.f32.mxu0 0.0
        %6246 = vmatmul.mubr.f32.gmra.mxu0 %v5657
        %v6247 = vpop.f32.mrf.mxu0
        %v6248 = vadd.f32 0.0, %v6247
        %v6249 = vpop.f32.mrf.mxu0
        %6250 = vmatprep.mubr.f32.mxu0 0.0
        %6251 = vmatmul.mubr.f32.gmra.mxu0 %v5660
        %v6252 = vpop.f32.mrf.mxu0
        %v6253 = vadd.f32 0.0, %v6252
        %v6254 = vpop.f32.mrf.mxu0
        %6255 = vmatprep.mubr.f32.mxu0 0.0
        %6256 = vmatmul.mubr.f32.gmra.mxu0 %v5663
        %v6257 = vpop.f32.mrf.mxu0
        %v6258 = vadd.f32 0.0, %v6257
        %v6259 = vpop.f32.mrf.mxu0
        %6260 = vmatprep.mubr.f32.mxu0 0.0
        %6261 = vmatmul.mubr.f32.gmra.mxu0 %v5666
        %v6262 = vpop.f32.mrf.mxu0
        %v6263 = vadd.f32 0.0, %v6262
        %v6264 = vpop.f32.mrf.mxu0
        %6265 = vmatprep.mubr.f32.mxu0 0.0
        %6266 = vmatmul.mubr.f32.gmra.mxu0 %v5669
        %v6267 = vpop.f32.mrf.mxu0
        %v6268 = vadd.f32 0.0, %v6267
        %v6269 = vpop.f32.mrf.mxu0
        %6270 = vdwg.mxu0
        %v6271 = vmul.f32 %v5738, %v5738
        %v6272 = vmul.f32 %v5743, %v5743
        %v6273 = vmul.f32 %v5748, %v5748
        %v6274 = vmul.f32 %v5753, %v5753
        %v6275 = vmul.f32 %v5758, %v5758
        %v6276 = vmul.f32 %v5763, %v5763
        %v6277 = vmul.f32 %v5768, %v5768
        %v6278 = vmul.f32 %v5773, %v5773
        %v6279 = vmul.f32 %v5778, %v5778
        %v6280 = vmul.f32 %v5783, %v5783
        %v6281 = vmul.f32 %v5788, %v5788
        %v6282 = vsub.f32 %v5978, %v6271
        %v6283 = vsub.f32 %v5983, %v6272
        %v6284 = vsub.f32 %v5988, %v6273
        %v6285 = vsub.f32 %v5993, %v6274
        %v6286 = vsub.f32 %v5998, %v6275
        %v6287 = vsub.f32 %v6003, %v6276
        %v6288 = vsub.f32 %v6008, %v6277
        %v6289 = vsub.f32 %v6013, %v6278
        %v6290 = vsub.f32 %v6018, %v6279
        %v6291 = vsub.f32 %v6023, %v6280
        %v6292 = vsub.f32 %v6028, %v6281
        %v6293 = vmul.f32 %v5858, %v5858
        %v6294 = vmul.f32 %v5863, %v5863
        %v6295 = vmul.f32 %v5868, %v5868
        %v6296 = vmul.f32 %v5873, %v5873
        %v6297 = vmul.f32 %v5878, %v5878
        %v6298 = vmul.f32 %v5883, %v5883
        %v6299 = vmul.f32 %v5888, %v5888
        %v6300 = vmul.f32 %v5893, %v5893
        %v6301 = vmul.f32 %v5898, %v5898
        %v6302 = vmul.f32 %v5903, %v5903
        %v6303 = vmul.f32 %v5908, %v5908
        %v6304 = vsub.f32 %v6098, %v6293
        %v6305 = vsub.f32 %v6103, %v6294
        %v6306 = vsub.f32 %v6108, %v6295
        %v6307 = vsub.f32 %v6113, %v6296
        %v6308 = vsub.f32 %v6118, %v6297
        %v6309 = vsub.f32 %v6123, %v6298
        %v6310 = vsub.f32 %v6128, %v6299
        %v6311 = vsub.f32 %v6133, %v6300
        %v6312 = vsub.f32 %v6138, %v6301
        %v6313 = vsub.f32 %v6143, %v6302
        %v6314 = vsub.f32 %v6148, %v6303
        %v6315 = vmul.f32 %v5738, %v5858
        %v6316 = vmul.f32 %v5743, %v5863
        %v6317 = vmul.f32 %v5748, %v5868
        %v6318 = vmul.f32 %v5753, %v5873
        %v6319 = vmul.f32 %v5758, %v5878
        %v6320 = vmul.f32 %v5763, %v5883
        %v6321 = vmul.f32 %v5768, %v5888
        %v6322 = vmul.f32 %v5773, %v5893
        %v6323 = vmul.f32 %v5778, %v5898
        %v6324 = vmul.f32 %v5783, %v5903
        %v6325 = vmul.f32 %v5788, %v5908
        %v6326 = vsub.f32 %v6218, %v6315
        %v6327 = vsub.f32 %v6223, %v6316
        %v6328 = vsub.f32 %v6228, %v6317
        %v6329 = vsub.f32 %v6233, %v6318
        %v6330 = vsub.f32 %v6238, %v6319
        %v6331 = vsub.f32 %v6243, %v6320
        %v6332 = vsub.f32 %v6248, %v6321
        %v6333 = vsub.f32 %v6253, %v6322
        %v6334 = vsub.f32 %v6258, %v6323
        %v6335 = vsub.f32 %v6263, %v6324
        %v6336 = vsub.f32 %v6268, %v6325
        %v6337 = vmul.f32 %v6326, 2.0
        %v6338 = vmul.f32 %v6327, 2.0
        %v6339 = vmul.f32 %v6328, 2.0
        %v6340 = vmul.f32 %v6329, 2.0
        %v6341 = vmul.f32 %v6330, 2.0
        %v6342 = vmul.f32 %v6331, 2.0
        %v6343 = vmul.f32 %v6332, 2.0
        %v6344 = vmul.f32 %v6333, 2.0
        %v6345 = vmul.f32 %v6334, 2.0
        %v6346 = vmul.f32 %v6335, 2.0
        %v6347 = vmul.f32 %v6336, 2.0
        %v6348 = vadd.f32 %v6337, 0.0009
        %v6349 = vadd.f32 %v6338, 0.0009
        %v6350 = vadd.f32 %v6339, 0.0009
        %v6351 = vadd.f32 %v6340, 0.0009
        %v6352 = vadd.f32 %v6341, 0.0009
        %v6353 = vadd.f32 %v6342, 0.0009
        %v6354 = vadd.f32 %v6343, 0.0009
        %v6355 = vadd.f32 %v6344, 0.0009
        %v6356 = vadd.f32 %v6345, 0.0009
        %v6357 = vadd.f32 %v6346, 0.0009
        %v6358 = vadd.f32 %v6347, 0.0009
        %v6359 = vadd.f32 %v6282, %v6304
        %v6360 = vadd.f32 %v6283, %v6305
        %v6361 = vadd.f32 %v6284, %v6306
        %v6362 = vadd.f32 %v6285, %v6307
        %v6363 = vadd.f32 %v6286, %v6308
        %v6364 = vadd.f32 %v6287, %v6309
        %v6365 = vadd.f32 %v6288, %v6310
        %v6366 = vadd.f32 %v6289, %v6311
        %v6367 = vadd.f32 %v6290, %v6312
        %v6368 = vadd.f32 %v6291, %v6313
        %v6369 = vadd.f32 %v6292, %v6314
        %v6370 = vadd.f32 %v6359, 0.0009
        %v6371 = vadd.f32 %v6360, 0.0009
        %v6372 = vadd.f32 %v6361, 0.0009
        %v6373 = vadd.f32 %v6362, 0.0009
        %v6374 = vadd.f32 %v6363, 0.0009
        %v6375 = vadd.f32 %v6364, 0.0009
        %v6376 = vadd.f32 %v6365, 0.0009
        %v6377 = vadd.f32 %v6366, 0.0009
        %v6378 = vadd.f32 %v6367, 0.0009
        %v6379 = vadd.f32 %v6368, 0.0009
        %v6380 = vadd.f32 %v6369, 0.0009
        %v6381 = vrcp.pop %v6370
        %v6382 = vmul.f32 %v6348, %v6381
        %v6383 = vrcp.pop %v6371
        %v6384 = vmul.f32 %v6349, %v6383
        %v6385 = vrcp.pop %v6372
        %v6386 = vmul.f32 %v6350, %v6385
        %v6387 = vrcp.pop %v6373
        %v6388 = vmul.f32 %v6351, %v6387
        %v6389 = vrcp.pop %v6374
        %v6390 = vmul.f32 %v6352, %v6389
        %v6391 = vrcp.pop %v6375
        %v6392 = vmul.f32 %v6353, %v6391
        %v6393 = vrcp.pop %v6376
        %v6394 = vmul.f32 %v6354, %v6393
        %v6395 = vrcp.pop %v6377
        %v6396 = vmul.f32 %v6355, %v6395
        %v6397 = vrcp.pop %v6378
        %v6398 = vmul.f32 %v6356, %v6397
        %v6399 = vrcp.pop %v6379
        %v6400 = vmul.f32 %v6357, %v6399
        %v6401 = vrcp.pop %v6380
        %v6402 = vmul.f32 %v6358, %v6401
        %v6403 = vadd.f32 %v6382, %v6384
        %v6404 = vadd.f32 %v6403, %v6386
        %v6405 = vadd.f32 %v6404, %v6388
        %v6406 = vadd.f32 %v6405, %v6390
        %v6407 = vadd.f32 %v6406, %v6392
        %v6408 = vadd.f32 %v6407, %v6394
        %v6409 = vadd.f32 %v6408, %v6396
        %v6410 = vadd.f32 %v6409, %v6398
        %v6411 = vadd.f32 %v6410, %v6400
        %v6412 = vsel %vm4312, %v6402, 0.0
        %v6413 = vadd.f32 %v6411, %v6412
        %6414 = vadd.xlane.f32.xlu0 %v6413
        %v6415 = vpop.xlane.xlu0 %6414
        %v6416 = vrot.slane %v6415, 4
        %v6417 = vadd.f32 %v6415, %v6416
        %v6418 = vrot.slane %v6417, 2
        %v6419 = vadd.f32 %v6417, %v6418
        %v6420 = vrot.slane %v6419, 1
        %v6421 = vadd.f32 %v6419, %v6420
        %s6422 = vtos %v6421
        %s6423 = ssub.f32 %s6422, 3612.0
        %s6424 = smul.f32 %s6423, 0.00013520822
        %s6425 = smax.f32 %s6424, 0.0
        %v6426 = vld [vmem:[#allocation24] sm:$0xff]
        %v6427 = vld [vmem:[#allocation24 + $0x8] sm:$0xff]
        %v6428 = vld [vmem:[#allocation24 + $0x10] sm:$0xff]
        %v6429 = vld [vmem:[#allocation24 + $0x18] sm:$0xff]
        %v6430 = vld [vmem:[#allocation24 + $0x20] sm:$0xff]
        %v6431 = vld [vmem:[#allocation24 + $0x28] sm:$0xff]
        %v6432 = vld [vmem:[#allocation25] sm:$0xff]
        %v6433 = vld [vmem:[#allocation25 + $0x8] sm:$0xff]
        %v6434 = vld [vmem:[#allocation25 + $0x10] sm:$0xff]
        %v6435 = vld [vmem:[#allocation25 + $0x18] sm:$0xff]
        %v6436 = vld [vmem:[#allocation25 + $0x20] sm:$0xff]
        %v6437 = vld [vmem:[#allocation25 + $0x28] sm:$0xff]
        %v6438 = vld [vmem:[#allocation25 + $0x30] sm:$0xff]
        %v6439 = vld [vmem:[#allocation25 + $0x38] sm:$0xff]
        %v6440 = vld [vmem:[#allocation25 + $0x40] sm:$0xff]
        %v6441 = vld [vmem:[#allocation25 + $0x48] sm:$0xff]
        %v6442 = vld [vmem:[#allocation25 + $0x50] sm:$0xff]
        %v6443 = vld [vmem:[#allocation25 + $0x58] sm:$0xff]
        %6444 = vmatprep.subr.mxu0 0.0
        %6445 = vmatpush1.msra.mxu0 0.0
        %6446 = vmatprep.subr.mxu0 0.0
        %6447 = vmatpush1.msra.mxu0 0.0
        %6448 = vmatprep.subr.mxu0 0.0
        %6449 = vmatpush1.msra.mxu0 0.0
        %6450 = vmatprep.subr.mxu0 0.0
        %6451 = vmatpush1.msra.mxu0 0.0
        %6452 = vmatprep.subr.mxu0 0.0
        %6453 = vmatpush1.msra.mxu0 %v6443
        %6454 = vmatprep.subr.mxu0 0.0
        %6455 = vmatpush1.msra.mxu0 %v6442
        %6456 = vmatprep.subr.mxu0 0.0
        %6457 = vmatpush1.msra.mxu0 %v6441
        %6458 = vmatprep.subr.mxu0 0.0
        %6459 = vmatpush1.msra.mxu0 %v6440
        %6460 = vmatprep.subr.mxu0 0.0
        %6461 = vmatpush1.msra.mxu0 %v6439
        %6462 = vmatprep.subr.mxu0 0.0
        %6463 = vmatpush1.msra.mxu0 %v6438
        %6464 = vmatprep.subr.mxu0 0.0
        %6465 = vmatpush1.msra.mxu0 %v6437
        %6466 = vmatprep.subr.mxu0 0.0
        %6467 = vmatpush1.msra.mxu0 %v6436
        %6468 = vmatprep.subr.mxu0 0.0
        %6469 = vmatpush1.msra.mxu0 %v6435
        %6470 = vmatprep.subr.mxu0 0.0
        %6471 = vmatpush1.msra.mxu0 %v6434
        %6472 = vmatprep.subr.mxu0 0.0
        %6473 = vmatpush1.msra.mxu0 %v6433
        %6474 = vmatprep.subr.mxu0 0.0
        %6475 = vmatpush1.msra.mxu0 %v6432
        %6476 = vmatprep.subr.mxu0 0.0
        %6477 = vmatpush2.msra.mxu0 0.0
        %6478 = vmatprep.subr.mxu0 0.0
        %6479 = vmatpush2.msra.mxu0 0.0
        %6480 = vmatprep.subr.mxu0 0.0
        %6481 = vmatpush2.msra.mxu0 0.0
        %6482 = vmatprep.subr.mxu0 0.0
        %6483 = vmatpush2.msra.mxu0 0.0
        %6484 = vmatprep.subr.mxu0 0.0
        %6485 = vmatpush2.msra.mxu0 0.0
        %6486 = vmatprep.subr.mxu0 0.0
        %6487 = vmatpush2.msra.mxu0 0.0
        %6488 = vmatprep.subr.mxu0 0.0
        %6489 = vmatpush2.msra.mxu0 0.0
        %6490 = vmatprep.subr.mxu0 0.0
        %6491 = vmatpush2.msra.mxu0 0.0
        %6492 = vmatprep.subr.mxu0 0.0
        %6493 = vmatpush2.msra.mxu0 0.0
        %6494 = vmatprep.subr.mxu0 0.0
        %6495 = vmatpush2.msra.mxu0 0.0
        %6496 = vmatprep.subr.mxu0 0.0
        %6497 = vmatpush2.msra.mxu0 0.0
        %6498 = vmatprep.subr.mxu0 0.0
        %6499 = vmatpush2.msra.mxu0 0.0
        %6500 = vmatprep.subr.mxu0 0.0
        %6501 = vmatpush2.msra.mxu0 0.0
        %6502 = vmatprep.subr.mxu0 0.0
        %6503 = vmatpush2.msra.mxu0 0.0
        %6504 = vmatprep.subr.mxu0 0.0
        %6505 = vmatpush2.msra.mxu0 0.0
        %6506 = vmatprep.subr.mxu0 0.0
        %6507 = vmatpush2.msra.mxu0 0.0
        %6508 = vmatprep.mubr.f32.mxu0 0.0
        %6509 = vmatmul.mubr.f32.gmra.mxu0 %v5094
        %v6510 = vpop.f32.mrf.mxu0
        %v6511 = vadd.f32 0.0, %v6510
        %v6512 = vpop.f32.mrf.mxu0
        %6513 = vmatprep.mubr.f32.mxu0 0.0
        %6514 = vmatmul.mubr.f32.gmra.mxu0 %v5097
        %v6515 = vpop.f32.mrf.mxu0
        %v6516 = vadd.f32 0.0, %v6515
        %v6517 = vpop.f32.mrf.mxu0
        %6518 = vmatprep.mubr.f32.mxu0 0.0
        %6519 = vmatmul.mubr.f32.gmra.mxu0 %v5100
        %v6520 = vpop.f32.mrf.mxu0
        %v6521 = vadd.f32 0.0, %v6520
        %v6522 = vpop.f32.mrf.mxu0
        %6523 = vmatprep.mubr.f32.mxu0 0.0
        %6524 = vmatmul.mubr.f32.gmra.mxu0 %v5103
        %v6525 = vpop.f32.mrf.mxu0
        %v6526 = vadd.f32 0.0, %v6525
        %v6527 = vpop.f32.mrf.mxu0
        %6528 = vmatprep.mubr.f32.mxu0 0.0
        %6529 = vmatmul.mubr.f32.gmra.mxu0 %v5106
        %v6530 = vpop.f32.mrf.mxu0
        %v6531 = vadd.f32 0.0, %v6530
        %v6532 = vpop.f32.mrf.mxu0
        %6533 = vmatprep.mubr.f32.mxu0 0.0
        %6534 = vmatmul.mubr.f32.gmra.mxu0 %v5109
        %v6535 = vpop.f32.mrf.mxu0
        %v6536 = vadd.f32 0.0, %v6535
        %v6537 = vpop.f32.mrf.mxu0
        %6538 = vmatprep.mubr.f32.mxu0 0.0
        %6539 = vmatmul.mubr.f32.gmra.mxu0 %v5112
        %v6540 = vpop.f32.mrf.mxu0
        %v6541 = vadd.f32 0.0, %v6540
        %v6542 = vpop.f32.mrf.mxu0
        %6543 = vmatprep.mubr.f32.mxu0 0.0
        %6544 = vmatmul.mubr.f32.gmra.mxu0 %v5115
        %v6545 = vpop.f32.mrf.mxu0
        %v6546 = vadd.f32 0.0, %v6545
        %v6547 = vpop.f32.mrf.mxu0
        %6548 = vmatprep.mubr.f32.mxu0 0.0
        %6549 = vmatmul.mubr.f32.gmra.mxu0 %v5118
        %v6550 = vpop.f32.mrf.mxu0
        %v6551 = vadd.f32 0.0, %v6550
        %v6552 = vpop.f32.mrf.mxu0
        %6553 = vmatprep.mubr.f32.mxu0 0.0
        %6554 = vmatmul.mubr.f32.gmra.mxu0 %v5121
        %v6555 = vpop.f32.mrf.mxu0
        %v6556 = vadd.f32 0.0, %v6555
        %v6557 = vpop.f32.mrf.mxu0
        %6558 = vmatprep.mubr.f32.mxu0 0.0
        %6559 = vmatmul.mubr.f32.gmra.mxu0 %v5124
        %v6560 = vpop.f32.mrf.mxu0
        %v6561 = vadd.f32 0.0, %v6560
        %v6562 = vpop.f32.mrf.mxu0
        %6563 = vmatprep.mubr.f32.mxu0 0.0
        %6564 = vmatmul.mubr.f32.gmra.mxu0 %v5127
        %v6565 = vpop.f32.mrf.mxu0
        %v6566 = vadd.f32 0.0, %v6565
        %v6567 = vpop.f32.mrf.mxu0
        %6568 = vdwg.mxu0
        %v6570 = vsel %vm5092, %v6426, 0
        %v6573 = vsel %vm5092, %v6427, 0
        %v6576 = vsel %vm5092, %v6428, 0
        %v6579 = vsel %vm5092, %v6429, 0
        %v6582 = vsel %vm5092, %v6430, 0
        %v6585 = vsel %vm5092, %v6431, 0
        %6587 = vmatprep.subr.mxu0 0.0
        %6588 = vmatpush1.msra.mxu0 0.0
        %6589 = vmatprep.subr.mxu0 0.0
        %6590 = vmatpush1.msra.mxu0 0.0
        %6591 = vmatprep.subr.mxu0 0.0
        %6592 = vmatpush1.msra.mxu0 0.0
        %6593 = vmatprep.subr.mxu0 0.0
        %6594 = vmatpush1.msra.mxu0 0.0
        %6595 = vmatprep.subr.mxu0 0.0
        %6596 = vmatpush1.msra.mxu0 %v6566
        %6597 = vmatprep.subr.mxu0 0.0
        %6598 = vmatpush1.msra.mxu0 %v6561
        %6599 = vmatprep.subr.mxu0 0.0
        %6600 = vmatpush1.msra.mxu0 %v6556
        %6601 = vmatprep.subr.mxu0 0.0
        %6602 = vmatpush1.msra.mxu0 %v6551
        %6603 = vmatprep.subr.mxu0 0.0
        %6604 = vmatpush1.msra.mxu0 %v6546
        %6605 = vmatprep.subr.mxu0 0.0
        %6606 = vmatpush1.msra.mxu0 %v6541
        %6607 = vmatprep.subr.mxu0 0.0
        %6608 = vmatpush1.msra.mxu0 %v6536
        %6609 = vmatprep.subr.mxu0 0.0
        %6610 = vmatpush1.msra.mxu0 %v6531
        %6611 = vmatprep.subr.mxu0 0.0
        %6612 = vmatpush1.msra.mxu0 %v6526
        %6613 = vmatprep.subr.mxu0 0.0
        %6614 = vmatpush1.msra.mxu0 %v6521
        %6615 = vmatprep.subr.mxu0 0.0
        %6616 = vmatpush1.msra.mxu0 %v6516
        %6617 = vmatprep.subr.mxu0 0.0
        %6618 = vmatpush1.msra.mxu0 %v6511
        %6619 = vmatprep.subr.mxu0 0.0
        %6620 = vmatpush2.msra.mxu0 0.0
        %6621 = vmatprep.subr.mxu0 0.0
        %6622 = vmatpush2.msra.mxu0 0.0
        %6623 = vmatprep.subr.mxu0 0.0
        %6624 = vmatpush2.msra.mxu0 0.0
        %6625 = vmatprep.subr.mxu0 0.0
        %6626 = vmatpush2.msra.mxu0 0.0
        %6627 = vmatprep.subr.mxu0 0.0
        %6628 = vmatpush2.msra.mxu0 0.0
        %6629 = vmatprep.subr.mxu0 0.0
        %6630 = vmatpush2.msra.mxu0 0.0
        %6631 = vmatprep.subr.mxu0 0.0
        %6632 = vmatpush2.msra.mxu0 0.0
        %6633 = vmatprep.subr.mxu0 0.0
        %6634 = vmatpush2.msra.mxu0 0.0
        %6635 = vmatprep.subr.mxu0 0.0
        %6636 = vmatpush2.msra.mxu0 0.0
        %6637 = vmatprep.subr.mxu0 0.0
        %6638 = vmatpush2.msra.mxu0 0.0
        %6639 = vmatprep.subr.mxu0 0.0
        %6640 = vmatpush2.msra.mxu0 0.0
        %6641 = vmatprep.subr.mxu0 0.0
        %6642 = vmatpush2.msra.mxu0 0.0
        %6643 = vmatprep.subr.mxu0 0.0
        %6644 = vmatpush2.msra.mxu0 0.0
        %6645 = vmatprep.subr.mxu0 0.0
        %6646 = vmatpush2.msra.mxu0 0.0
        %6647 = vmatprep.subr.mxu0 0.0
        %6648 = vmatpush2.msra.mxu0 0.0
        %6649 = vmatprep.subr.mxu0 0.0
        %6650 = vmatpush2.msra.mxu0 0.0
        %6651 = vmatprep.mubr.f32.mxu0 0.0
        %6652 = vmatmul.mubr.f32.gmra.mxu0 %v6570
        %v6653 = vpop.f32.mrf.mxu0
        %v6654 = vadd.f32 0.0, %v6653
        %v6655 = vpop.f32.mrf.mxu0
        %6656 = vmatprep.mubr.f32.mxu0 0.0
        %6657 = vmatmul.mubr.f32.gmra.mxu0 %v6573
        %v6658 = vpop.f32.mrf.mxu0
        %v6659 = vadd.f32 0.0, %v6658
        %v6660 = vpop.f32.mrf.mxu0
        %6661 = vmatprep.mubr.f32.mxu0 0.0
        %6662 = vmatmul.mubr.f32.gmra.mxu0 %v6576
        %v6663 = vpop.f32.mrf.mxu0
        %v6664 = vadd.f32 0.0, %v6663
        %v6665 = vpop.f32.mrf.mxu0
        %6666 = vmatprep.mubr.f32.mxu0 0.0
        %6667 = vmatmul.mubr.f32.gmra.mxu0 %v6579
        %v6668 = vpop.f32.mrf.mxu0
        %v6669 = vadd.f32 0.0, %v6668
        %v6670 = vpop.f32.mrf.mxu0
        %6671 = vmatprep.mubr.f32.mxu0 0.0
        %6672 = vmatmul.mubr.f32.gmra.mxu0 %v6582
        %v6673 = vpop.f32.mrf.mxu0
        %v6674 = vadd.f32 0.0, %v6673
        %v6675 = vpop.f32.mrf.mxu0
        %6676 = vmatprep.mubr.f32.mxu0 0.0
        %6677 = vmatmul.mubr.f32.gmra.mxu0 %v6585
        %v6678 = vpop.f32.mrf.mxu0
        %v6679 = vadd.f32 0.0, %v6678
        %v6680 = vpop.f32.mrf.mxu0
        %6681 = vdwg.mxu0
        %6682 = vmatprep.subr.mxu0 0.0
        %6683 = vmatpush1.msra.mxu0 0.0
        %6684 = vmatprep.subr.mxu0 0.0
        %6685 = vmatpush1.msra.mxu0 0.0
        %6686 = vmatprep.subr.mxu0 0.0
        %6687 = vmatpush1.msra.mxu0 0.0
        %6688 = vmatprep.subr.mxu0 0.0
        %6689 = vmatpush1.msra.mxu0 0.0
        %6690 = vmatprep.subr.mxu0 0.0
        %6691 = vmatpush1.msra.mxu0 %v6443
        %6692 = vmatprep.subr.mxu0 0.0
        %6693 = vmatpush1.msra.mxu0 %v6442
        %6694 = vmatprep.subr.mxu0 0.0
        %6695 = vmatpush1.msra.mxu0 %v6441
        %6696 = vmatprep.subr.mxu0 0.0
        %6697 = vmatpush1.msra.mxu0 %v6440
        %6698 = vmatprep.subr.mxu0 0.0
        %6699 = vmatpush1.msra.mxu0 %v6439
        %6700 = vmatprep.subr.mxu0 0.0
        %6701 = vmatpush1.msra.mxu0 %v6438
        %6702 = vmatprep.subr.mxu0 0.0
        %6703 = vmatpush1.msra.mxu0 %v6437
        %6704 = vmatprep.subr.mxu0 0.0
        %6705 = vmatpush1.msra.mxu0 %v6436
        %6706 = vmatprep.subr.mxu0 0.0
        %6707 = vmatpush1.msra.mxu0 %v6435
        %6708 = vmatprep.subr.mxu0 0.0
        %6709 = vmatpush1.msra.mxu0 %v6434
        %6710 = vmatprep.subr.mxu0 0.0
        %6711 = vmatpush1.msra.mxu0 %v6433
        %6712 = vmatprep.subr.mxu0 0.0
        %6713 = vmatpush1.msra.mxu0 %v6432
        %6714 = vmatprep.subr.mxu0 0.0
        %6715 = vmatpush2.msra.mxu0 0.0
        %6716 = vmatprep.subr.mxu0 0.0
        %6717 = vmatpush2.msra.mxu0 0.0
        %6718 = vmatprep.subr.mxu0 0.0
        %6719 = vmatpush2.msra.mxu0 0.0
        %6720 = vmatprep.subr.mxu0 0.0
        %6721 = vmatpush2.msra.mxu0 0.0
        %6722 = vmatprep.subr.mxu0 0.0
        %6723 = vmatpush2.msra.mxu0 0.0
        %6724 = vmatprep.subr.mxu0 0.0
        %6725 = vmatpush2.msra.mxu0 0.0
        %6726 = vmatprep.subr.mxu0 0.0
        %6727 = vmatpush2.msra.mxu0 0.0
        %6728 = vmatprep.subr.mxu0 0.0
        %6729 = vmatpush2.msra.mxu0 0.0
        %6730 = vmatprep.subr.mxu0 0.0
        %6731 = vmatpush2.msra.mxu0 0.0
        %6732 = vmatprep.subr.mxu0 0.0
        %6733 = vmatpush2.msra.mxu0 0.0
        %6734 = vmatprep.subr.mxu0 0.0
        %6735 = vmatpush2.msra.mxu0 0.0
        %6736 = vmatprep.subr.mxu0 0.0
        %6737 = vmatpush2.msra.mxu0 0.0
        %6738 = vmatprep.subr.mxu0 0.0
        %6739 = vmatpush2.msra.mxu0 0.0
        %6740 = vmatprep.subr.mxu0 0.0
        %6741 = vmatpush2.msra.mxu0 0.0
        %6742 = vmatprep.subr.mxu0 0.0
        %6743 = vmatpush2.msra.mxu0 0.0
        %6744 = vmatprep.subr.mxu0 0.0
        %6745 = vmatpush2.msra.mxu0 0.0
        %6746 = vmatprep.mubr.f32.mxu0 0.0
        %6747 = vmatmul.mubr.f32.gmra.mxu0 %v5130
        %v6748 = vpop.f32.mrf.mxu0
        %v6749 = vadd.f32 0.0, %v6748
        %v6750 = vpop.f32.mrf.mxu0
        %6751 = vmatprep.mubr.f32.mxu0 0.0
        %6752 = vmatmul.mubr.f32.gmra.mxu0 %v5133
        %v6753 = vpop.f32.mrf.mxu0
        %v6754 = vadd.f32 0.0, %v6753
        %v6755 = vpop.f32.mrf.mxu0
        %6756 = vmatprep.mubr.f32.mxu0 0.0
        %6757 = vmatmul.mubr.f32.gmra.mxu0 %v5136
        %v6758 = vpop.f32.mrf.mxu0
        %v6759 = vadd.f32 0.0, %v6758
        %v6760 = vpop.f32.mrf.mxu0
        %6761 = vmatprep.mubr.f32.mxu0 0.0
        %6762 = vmatmul.mubr.f32.gmra.mxu0 %v5139
        %v6763 = vpop.f32.mrf.mxu0
        %v6764 = vadd.f32 0.0, %v6763
        %v6765 = vpop.f32.mrf.mxu0
        %6766 = vmatprep.mubr.f32.mxu0 0.0
        %6767 = vmatmul.mubr.f32.gmra.mxu0 %v5142
        %v6768 = vpop.f32.mrf.mxu0
        %v6769 = vadd.f32 0.0, %v6768
        %v6770 = vpop.f32.mrf.mxu0
        %6771 = vmatprep.mubr.f32.mxu0 0.0
        %6772 = vmatmul.mubr.f32.gmra.mxu0 %v5145
        %v6773 = vpop.f32.mrf.mxu0
        %v6774 = vadd.f32 0.0, %v6773
        %v6775 = vpop.f32.mrf.mxu0
        %6776 = vmatprep.mubr.f32.mxu0 0.0
        %6777 = vmatmul.mubr.f32.gmra.mxu0 %v5148
        %v6778 = vpop.f32.mrf.mxu0
        %v6779 = vadd.f32 0.0, %v6778
        %v6780 = vpop.f32.mrf.mxu0
        %6781 = vmatprep.mubr.f32.mxu0 0.0
        %6782 = vmatmul.mubr.f32.gmra.mxu0 %v5151
        %v6783 = vpop.f32.mrf.mxu0
        %v6784 = vadd.f32 0.0, %v6783
        %v6785 = vpop.f32.mrf.mxu0
        %6786 = vmatprep.mubr.f32.mxu0 0.0
        %6787 = vmatmul.mubr.f32.gmra.mxu0 %v5154
        %v6788 = vpop.f32.mrf.mxu0
        %v6789 = vadd.f32 0.0, %v6788
        %v6790 = vpop.f32.mrf.mxu0
        %6791 = vmatprep.mubr.f32.mxu0 0.0
        %6792 = vmatmul.mubr.f32.gmra.mxu0 %v5157
        %v6793 = vpop.f32.mrf.mxu0
        %v6794 = vadd.f32 0.0, %v6793
        %v6795 = vpop.f32.mrf.mxu0
        %6796 = vmatprep.mubr.f32.mxu0 0.0
        %6797 = vmatmul.mubr.f32.gmra.mxu0 %v5160
        %v6798 = vpop.f32.mrf.mxu0
        %v6799 = vadd.f32 0.0, %v6798
        %v6800 = vpop.f32.mrf.mxu0
        %6801 = vmatprep.mubr.f32.mxu0 0.0
        %6802 = vmatmul.mubr.f32.gmra.mxu0 %v5163
        %v6803 = vpop.f32.mrf.mxu0
        %v6804 = vadd.f32 0.0, %v6803
        %v6805 = vpop.f32.mrf.mxu0
        %6806 = vdwg.mxu0
        %6807 = vmatprep.subr.mxu0 0.0
        %6808 = vmatpush1.msra.mxu0 0.0
        %6809 = vmatprep.subr.mxu0 0.0
        %6810 = vmatpush1.msra.mxu0 0.0
        %6811 = vmatprep.subr.mxu0 0.0
        %6812 = vmatpush1.msra.mxu0 0.0
        %6813 = vmatprep.subr.mxu0 0.0
        %6814 = vmatpush1.msra.mxu0 0.0
        %6815 = vmatprep.subr.mxu0 0.0
        %6816 = vmatpush1.msra.mxu0 %v6804
        %6817 = vmatprep.subr.mxu0 0.0
        %6818 = vmatpush1.msra.mxu0 %v6799
        %6819 = vmatprep.subr.mxu0 0.0
        %6820 = vmatpush1.msra.mxu0 %v6794
        %6821 = vmatprep.subr.mxu0 0.0
        %6822 = vmatpush1.msra.mxu0 %v6789
        %6823 = vmatprep.subr.mxu0 0.0
        %6824 = vmatpush1.msra.mxu0 %v6784
        %6825 = vmatprep.subr.mxu0 0.0
        %6826 = vmatpush1.msra.mxu0 %v6779
        %6827 = vmatprep.subr.mxu0 0.0
        %6828 = vmatpush1.msra.mxu0 %v6774
        %6829 = vmatprep.subr.mxu0 0.0
        %6830 = vmatpush1.msra.mxu0 %v6769
        %6831 = vmatprep.subr.mxu0 0.0
        %6832 = vmatpush1.msra.mxu0 %v6764
        %6833 = vmatprep.subr.mxu0 0.0
        %6834 = vmatpush1.msra.mxu0 %v6759
        %6835 = vmatprep.subr.mxu0 0.0
        %6836 = vmatpush1.msra.mxu0 %v6754
        %6837 = vmatprep.subr.mxu0 0.0
        %6838 = vmatpush1.msra.mxu0 %v6749
        %6839 = vmatprep.subr.mxu0 0.0
        %6840 = vmatpush2.msra.mxu0 0.0
        %6841 = vmatprep.subr.mxu0 0.0
        %6842 = vmatpush2.msra.mxu0 0.0
        %6843 = vmatprep.subr.mxu0 0.0
        %6844 = vmatpush2.msra.mxu0 0.0
        %6845 = vmatprep.subr.mxu0 0.0
        %6846 = vmatpush2.msra.mxu0 0.0
        %6847 = vmatprep.subr.mxu0 0.0
        %6848 = vmatpush2.msra.mxu0 0.0
        %6849 = vmatprep.subr.mxu0 0.0
        %6850 = vmatpush2.msra.mxu0 0.0
        %6851 = vmatprep.subr.mxu0 0.0
        %6852 = vmatpush2.msra.mxu0 0.0
        %6853 = vmatprep.subr.mxu0 0.0
        %6854 = vmatpush2.msra.mxu0 0.0
        %6855 = vmatprep.subr.mxu0 0.0
        %6856 = vmatpush2.msra.mxu0 0.0
        %6857 = vmatprep.subr.mxu0 0.0
        %6858 = vmatpush2.msra.mxu0 0.0
        %6859 = vmatprep.subr.mxu0 0.0
        %6860 = vmatpush2.msra.mxu0 0.0
        %6861 = vmatprep.subr.mxu0 0.0
        %6862 = vmatpush2.msra.mxu0 0.0
        %6863 = vmatprep.subr.mxu0 0.0
        %6864 = vmatpush2.msra.mxu0 0.0
        %6865 = vmatprep.subr.mxu0 0.0
        %6866 = vmatpush2.msra.mxu0 0.0
        %6867 = vmatprep.subr.mxu0 0.0
        %6868 = vmatpush2.msra.mxu0 0.0
        %6869 = vmatprep.subr.mxu0 0.0
        %6870 = vmatpush2.msra.mxu0 0.0
        %6871 = vmatprep.mubr.f32.mxu0 0.0
        %6872 = vmatmul.mubr.f32.gmra.mxu0 %v6570
        %v6873 = vpop.f32.mrf.mxu0
        %v6874 = vadd.f32 0.0, %v6873
        %v6875 = vpop.f32.mrf.mxu0
        %6876 = vmatprep.mubr.f32.mxu0 0.0
        %6877 = vmatmul.mubr.f32.gmra.mxu0 %v6573
        %v6878 = vpop.f32.mrf.mxu0
        %v6879 = vadd.f32 0.0, %v6878
        %v6880 = vpop.f32.mrf.mxu0
        %6881 = vmatprep.mubr.f32.mxu0 0.0
        %6882 = vmatmul.mubr.f32.gmra.mxu0 %v6576
        %v6883 = vpop.f32.mrf.mxu0
        %v6884 = vadd.f32 0.0, %v6883
        %v6885 = vpop.f32.mrf.mxu0
        %6886 = vmatprep.mubr.f32.mxu0 0.0
        %6887 = vmatmul.mubr.f32.gmra.mxu0 %v6579
        %v6888 = vpop.f32.mrf.mxu0
        %v6889 = vadd.f32 0.0, %v6888
        %v6890 = vpop.f32.mrf.mxu0
        %6891 = vmatprep.mubr.f32.mxu0 0.0
        %6892 = vmatmul.mubr.f32.gmra.mxu0 %v6582
        %v6893 = vpop.f32.mrf.mxu0
        %v6894 = vadd.f32 0.0, %v6893
        %v6895 = vpop.f32.mrf.mxu0
        %6896 = vmatprep.mubr.f32.mxu0 0.0
        %6897 = vmatmul.mubr.f32.gmra.mxu0 %v6585
        %v6898 = vpop.f32.mrf.mxu0
        %v6899 = vadd.f32 0.0, %v6898
        %v6900 = vpop.f32.mrf.mxu0
        %6901 = vdwg.mxu0
        %v6902 = vld [vmem:[#allocation12] sm:$0xff]
        %v6903 = vld [vmem:[#allocation12 + $0x8] sm:$0xff]
        %v6904 = vld [vmem:[#allocation12 + $0x10] sm:$0xff]
        %v6905 = vld [vmem:[#allocation12 + $0x18] sm:$0xff]
        %v6906 = vld [vmem:[#allocation12 + $0x20] sm:$0x3f]
        %v6907 = vld [vmem:[#allocation13] sm:$0xff]
        %v6908 = vld [vmem:[#allocation13 + $0x8] sm:$0xff]
        %v6909 = vld [vmem:[#allocation13 + $0x10] sm:$0xff]
        %v6910 = vld [vmem:[#allocation13 + $0x18] sm:$0xff]
        %v6911 = vld [vmem:[#allocation13 + $0x20] sm:$0xff]
        %v6912 = vld [vmem:[#allocation13 + $0x28] sm:$0xff]
        %v6913 = vmul.f32 %v6654, %v6654
        %v6914 = vmul.f32 %v6659, %v6659
        %v6915 = vmul.f32 %v6664, %v6664
        %v6916 = vmul.f32 %v6669, %v6669
        %v6917 = vmul.f32 %v6674, %v6674
        %v6918 = vmul.f32 %v6679, %v6679
        %v6919 = vmul.f32 %v6874, %v6874
        %v6920 = vmul.f32 %v6879, %v6879
        %v6921 = vmul.f32 %v6884, %v6884
        %v6922 = vmul.f32 %v6889, %v6889
        %v6923 = vmul.f32 %v6894, %v6894
        %v6924 = vmul.f32 %v6899, %v6899
        %v6925 = vmul.f32 %v6654, %v6874
        %v6926 = vmul.f32 %v6659, %v6879
        %v6927 = vmul.f32 %v6664, %v6884
        %v6928 = vmul.f32 %v6669, %v6889
        %v6929 = vmul.f32 %v6674, %v6894
        %v6930 = vmul.f32 %v6679, %v6899
        %vm6931 = vcmask 392192
        %v6933 = vsel %vm6931, %v6654, 0
        %v6936 = vsel %vm6931, %v6659, 0
        %v6939 = vsel %vm6931, %v6664, 0
        %v6942 = vsel %vm6931, %v6669, 0
        %v6945 = vsel %vm6931, %v6674, 0
        %v6948 = vsel %vm6931, %v6679, 0
        %v6951 = vsel %vm6931, %v6874, 0
        %v6954 = vsel %vm6931, %v6879, 0
        %v6957 = vsel %vm6931, %v6884, 0
        %v6960 = vsel %vm6931, %v6889, 0
        %v6963 = vsel %vm6931, %v6894, 0
        %v6966 = vsel %vm6931, %v6899, 0
        %v6969 = vsel %vm6931, %v6913, 0
        %v6972 = vsel %vm6931, %v6914, 0
        %v6975 = vsel %vm6931, %v6915, 0
        %v6978 = vsel %vm6931, %v6916, 0
        %v6981 = vsel %vm6931, %v6917, 0
        %v6984 = vsel %vm6931, %v6918, 0
        %v6987 = vsel %vm6931, %v6919, 0
        %v6990 = vsel %vm6931, %v6920, 0
        %v6993 = vsel %vm6931, %v6921, 0
        %v6996 = vsel %vm6931, %v6922, 0
        %v6999 = vsel %vm6931, %v6923, 0
        %v7002 = vsel %vm6931, %v6924, 0
        %v7005 = vsel %vm6931, %v6925, 0
        %v7008 = vsel %vm6931, %v6926, 0
        %v7011 = vsel %vm6931, %v6927, 0
        %v7014 = vsel %vm6931, %v6928, 0
        %v7017 = vsel %vm6931, %v6929, 0
        %v7020 = vsel %vm6931, %v6930, 0
        %7022 = vmatprep.subr.mxu0 0.0
        %7023 = vmatpush1.msra.mxu0 0.0
        %7024 = vmatprep.subr.mxu0 0.0
        %7025 = vmatpush1.msra.mxu0 0.0
        %7026 = vmatprep.subr.mxu0 0.0
        %7027 = vmatpush1.msra.mxu0 0.0
        %7028 = vmatprep.subr.mxu0 0.0
        %7029 = vmatpush1.msra.mxu0 0.0
        %7030 = vmatprep.subr.mxu0 0.0
        %7031 = vmatpush1.msra.mxu0 0.0
        %7032 = vmatprep.subr.mxu0 0.0
        %7033 = vmatpush1.msra.mxu0 0.0
        %7034 = vmatprep.subr.mxu0 0.0
        %7035 = vmatpush1.msra.mxu0 0.0
        %7036 = vmatprep.subr.mxu0 0.0
        %7037 = vmatpush1.msra.mxu0 0.0
        %7038 = vmatprep.subr.mxu0 0.0
        %7039 = vmatpush1.msra.mxu0 0.0
        %7040 = vmatprep.subr.mxu0 0.0
        %7041 = vmatpush1.msra.mxu0 0.0
        %7042 = vmatprep.subr.mxu0 0.0
        %7043 = vmatpush1.msra.mxu0 %v6912
        %7044 = vmatprep.subr.mxu0 0.0
        %7045 = vmatpush1.msra.mxu0 %v6911
        %7046 = vmatprep.subr.mxu0 0.0
        %7047 = vmatpush1.msra.mxu0 %v6910
        %7048 = vmatprep.subr.mxu0 0.0
        %7049 = vmatpush1.msra.mxu0 %v6909
        %7050 = vmatprep.subr.mxu0 0.0
        %7051 = vmatpush1.msra.mxu0 %v6908
        %7052 = vmatprep.subr.mxu0 0.0
        %7053 = vmatpush1.msra.mxu0 %v6907
        %7054 = vmatprep.subr.mxu0 0.0
        %7055 = vmatpush2.msra.mxu0 0.0
        %7056 = vmatprep.subr.mxu0 0.0
        %7057 = vmatpush2.msra.mxu0 0.0
        %7058 = vmatprep.subr.mxu0 0.0
        %7059 = vmatpush2.msra.mxu0 0.0
        %7060 = vmatprep.subr.mxu0 0.0
        %7061 = vmatpush2.msra.mxu0 0.0
        %7062 = vmatprep.subr.mxu0 0.0
        %7063 = vmatpush2.msra.mxu0 0.0
        %7064 = vmatprep.subr.mxu0 0.0
        %7065 = vmatpush2.msra.mxu0 0.0
        %7066 = vmatprep.subr.mxu0 0.0
        %7067 = vmatpush2.msra.mxu0 0.0
        %7068 = vmatprep.subr.mxu0 0.0
        %7069 = vmatpush2.msra.mxu0 0.0
        %7070 = vmatprep.subr.mxu0 0.0
        %7071 = vmatpush2.msra.mxu0 0.0
        %7072 = vmatprep.subr.mxu0 0.0
        %7073 = vmatpush2.msra.mxu0 0.0
        %7074 = vmatprep.subr.mxu0 0.0
        %7075 = vmatpush2.msra.mxu0 0.0
        %7076 = vmatprep.subr.mxu0 0.0
        %7077 = vmatpush2.msra.mxu0 0.0
        %7078 = vmatprep.subr.mxu0 0.0
        %7079 = vmatpush2.msra.mxu0 0.0
        %7080 = vmatprep.subr.mxu0 0.0
        %7081 = vmatpush2.msra.mxu0 0.0
        %7082 = vmatprep.subr.mxu0 0.0
        %7083 = vmatpush2.msra.mxu0 0.0
        %7084 = vmatprep.subr.mxu0 0.0
        %7085 = vmatpush2.msra.mxu0 0.0
        %7086 = vmatprep.mubr.f32.mxu0 0.0
        %7087 = vmatmul.mubr.f32.gmra.mxu0 %v6933
        %v7088 = vpop.f32.mrf.mxu0
        %v7089 = vadd.f32 0.0, %v7088
        %v7090 = vpop.f32.mrf.mxu0
        %7091 = vmatprep.mubr.f32.mxu0 0.0
        %7092 = vmatmul.mubr.f32.gmra.mxu0 %v6936
        %v7093 = vpop.f32.mrf.mxu0
        %v7094 = vadd.f32 0.0, %v7093
        %v7095 = vpop.f32.mrf.mxu0
        %7096 = vmatprep.mubr.f32.mxu0 0.0
        %7097 = vmatmul.mubr.f32.gmra.mxu0 %v6939
        %v7098 = vpop.f32.mrf.mxu0
        %v7099 = vadd.f32 0.0, %v7098
        %v7100 = vpop.f32.mrf.mxu0
        %7101 = vmatprep.mubr.f32.mxu0 0.0
        %7102 = vmatmul.mubr.f32.gmra.mxu0 %v6942
        %v7103 = vpop.f32.mrf.mxu0
        %v7104 = vadd.f32 0.0, %v7103
        %v7105 = vpop.f32.mrf.mxu0
        %7106 = vmatprep.mubr.f32.mxu0 0.0
        %7107 = vmatmul.mubr.f32.gmra.mxu0 %v6945
        %v7108 = vpop.f32.mrf.mxu0
        %v7109 = vadd.f32 0.0, %v7108
        %v7110 = vpop.f32.mrf.mxu0
        %7111 = vmatprep.mubr.f32.mxu0 0.0
        %7112 = vmatmul.mubr.f32.gmra.mxu0 %v6948
        %v7113 = vpop.f32.mrf.mxu0
        %v7114 = vadd.f32 0.0, %v7113
        %v7115 = vpop.f32.mrf.mxu0
        %7116 = vmatprep.mubr.f32.mxu0 0.0
        %7117 = vmatmul.mubr.f32.gmra.mxu0 %v6951
        %v7118 = vpop.f32.mrf.mxu0
        %v7119 = vadd.f32 0.0, %v7118
        %v7120 = vpop.f32.mrf.mxu0
        %7121 = vmatprep.mubr.f32.mxu0 0.0
        %7122 = vmatmul.mubr.f32.gmra.mxu0 %v6954
        %v7123 = vpop.f32.mrf.mxu0
        %v7124 = vadd.f32 0.0, %v7123
        %v7125 = vpop.f32.mrf.mxu0
        %7126 = vmatprep.mubr.f32.mxu0 0.0
        %7127 = vmatmul.mubr.f32.gmra.mxu0 %v6957
        %v7128 = vpop.f32.mrf.mxu0
        %v7129 = vadd.f32 0.0, %v7128
        %v7130 = vpop.f32.mrf.mxu0
        %7131 = vmatprep.mubr.f32.mxu0 0.0
        %7132 = vmatmul.mubr.f32.gmra.mxu0 %v6960
        %v7133 = vpop.f32.mrf.mxu0
        %v7134 = vadd.f32 0.0, %v7133
        %v7135 = vpop.f32.mrf.mxu0
        %7136 = vmatprep.mubr.f32.mxu0 0.0
        %7137 = vmatmul.mubr.f32.gmra.mxu0 %v6963
        %v7138 = vpop.f32.mrf.mxu0
        %v7139 = vadd.f32 0.0, %v7138
        %v7140 = vpop.f32.mrf.mxu0
        %7141 = vmatprep.mubr.f32.mxu0 0.0
        %7142 = vmatmul.mubr.f32.gmra.mxu0 %v6966
        %v7143 = vpop.f32.mrf.mxu0
        %v7144 = vadd.f32 0.0, %v7143
        %v7145 = vpop.f32.mrf.mxu0
        %7146 = vmatprep.mubr.f32.mxu0 0.0
        %7147 = vmatmul.mubr.f32.gmra.mxu0 %v6969
        %v7148 = vpop.f32.mrf.mxu0
        %v7149 = vadd.f32 0.0, %v7148
        %v7150 = vpop.f32.mrf.mxu0
        %7151 = vmatprep.mubr.f32.mxu0 0.0
        %7152 = vmatmul.mubr.f32.gmra.mxu0 %v6972
        %v7153 = vpop.f32.mrf.mxu0
        %v7154 = vadd.f32 0.0, %v7153
        %v7155 = vpop.f32.mrf.mxu0
        %7156 = vmatprep.mubr.f32.mxu0 0.0
        %7157 = vmatmul.mubr.f32.gmra.mxu0 %v6975
        %v7158 = vpop.f32.mrf.mxu0
        %v7159 = vadd.f32 0.0, %v7158
        %v7160 = vpop.f32.mrf.mxu0
        %7161 = vmatprep.mubr.f32.mxu0 0.0
        %7162 = vmatmul.mubr.f32.gmra.mxu0 %v6978
        %v7163 = vpop.f32.mrf.mxu0
        %v7164 = vadd.f32 0.0, %v7163
        %v7165 = vpop.f32.mrf.mxu0
        %7166 = vmatprep.mubr.f32.mxu0 0.0
        %7167 = vmatmul.mubr.f32.gmra.mxu0 %v6981
        %v7168 = vpop.f32.mrf.mxu0
        %v7169 = vadd.f32 0.0, %v7168
        %v7170 = vpop.f32.mrf.mxu0
        %7171 = vmatprep.mubr.f32.mxu0 0.0
        %7172 = vmatmul.mubr.f32.gmra.mxu0 %v6984
        %v7173 = vpop.f32.mrf.mxu0
        %v7174 = vadd.f32 0.0, %v7173
        %v7175 = vpop.f32.mrf.mxu0
        %7176 = vmatprep.mubr.f32.mxu0 0.0
        %7177 = vmatmul.mubr.f32.gmra.mxu0 %v6987
        %v7178 = vpop.f32.mrf.mxu0
        %v7179 = vadd.f32 0.0, %v7178
        %v7180 = vpop.f32.mrf.mxu0
        %7181 = vmatprep.mubr.f32.mxu0 0.0
        %7182 = vmatmul.mubr.f32.gmra.mxu0 %v6990
        %v7183 = vpop.f32.mrf.mxu0
        %v7184 = vadd.f32 0.0, %v7183
        %v7185 = vpop.f32.mrf.mxu0
        %7186 = vmatprep.mubr.f32.mxu0 0.0
        %7187 = vmatmul.mubr.f32.gmra.mxu0 %v6993
        %v7188 = vpop.f32.mrf.mxu0
        %v7189 = vadd.f32 0.0, %v7188
        %v7190 = vpop.f32.mrf.mxu0
        %7191 = vmatprep.mubr.f32.mxu0 0.0
        %7192 = vmatmul.mubr.f32.gmra.mxu0 %v6996
        %v7193 = vpop.f32.mrf.mxu0
        %v7194 = vadd.f32 0.0, %v7193
        %v7195 = vpop.f32.mrf.mxu0
        %7196 = vmatprep.mubr.f32.mxu0 0.0
        %7197 = vmatmul.mubr.f32.gmra.mxu0 %v6999
        %v7198 = vpop.f32.mrf.mxu0
        %v7199 = vadd.f32 0.0, %v7198
        %v7200 = vpop.f32.mrf.mxu0
        %7201 = vmatprep.mubr.f32.mxu0 0.0
        %7202 = vmatmul.mubr.f32.gmra.mxu0 %v7002
        %v7203 = vpop.f32.mrf.mxu0
        %v7204 = vadd.f32 0.0, %v7203
        %v7205 = vpop.f32.mrf.mxu0
        %7206 = vmatprep.mubr.f32.mxu0 0.0
        %7207 = vmatmul.mubr.f32.gmra.mxu0 %v7005
        %v7208 = vpop.f32.mrf.mxu0
        %v7209 = vadd.f32 0.0, %v7208
        %v7210 = vpop.f32.mrf.mxu0
        %7211 = vmatprep.mubr.f32.mxu0 0.0
        %7212 = vmatmul.mubr.f32.gmra.mxu0 %v7008
        %v7213 = vpop.f32.mrf.mxu0
        %v7214 = vadd.f32 0.0, %v7213
        %v7215 = vpop.f32.mrf.mxu0
        %7216 = vmatprep.mubr.f32.mxu0 0.0
        %7217 = vmatmul.mubr.f32.gmra.mxu0 %v7011
        %v7218 = vpop.f32.mrf.mxu0
        %v7219 = vadd.f32 0.0, %v7218
        %v7220 = vpop.f32.mrf.mxu0
        %7221 = vmatprep.mubr.f32.mxu0 0.0
        %7222 = vmatmul.mubr.f32.gmra.mxu0 %v7014
        %v7223 = vpop.f32.mrf.mxu0
        %v7224 = vadd.f32 0.0, %v7223
        %v7225 = vpop.f32.mrf.mxu0
        %7226 = vmatprep.mubr.f32.mxu0 0.0
        %7227 = vmatmul.mubr.f32.gmra.mxu0 %v7017
        %v7228 = vpop.f32.mrf.mxu0
        %v7229 = vadd.f32 0.0, %v7228
        %v7230 = vpop.f32.mrf.mxu0
        %7231 = vmatprep.mubr.f32.mxu0 0.0
        %7232 = vmatmul.mubr.f32.gmra.mxu0 %v7020
        %v7233 = vpop.f32.mrf.mxu0
        %v7234 = vadd.f32 0.0, %v7233
        %v7235 = vpop.f32.mrf.mxu0
        %7236 = vdwg.mxu0
        %v7238 = vsel %vm6931, %v6902, 0
        %v7241 = vsel %vm6931, %v6903, 0
        %v7244 = vsel %vm6931, %v6904, 0
        %v7247 = vsel %vm6931, %v6905, 0
        %v7250 = vsel %vm6931, %v6906, 0
        %7252 = vmatprep.subr.mxu0 0.0
        %7253 = vmatpush1.msra.mxu0 0.0
        %7254 = vmatprep.subr.mxu0 0.0
        %7255 = vmatpush1.msra.mxu0 0.0
        %7256 = vmatprep.subr.mxu0 0.0
        %7257 = vmatpush1.msra.mxu0 0.0
        %7258 = vmatprep.subr.mxu0 0.0
        %7259 = vmatpush1.msra.mxu0 0.0
        %7260 = vmatprep.subr.mxu0 0.0
        %7261 = vmatpush1.msra.mxu0 0.0
        %7262 = vmatprep.subr.mxu0 0.0
        %7263 = vmatpush1.msra.mxu0 0.0
        %7264 = vmatprep.subr.mxu0 0.0
        %7265 = vmatpush1.msra.mxu0 0.0
        %7266 = vmatprep.subr.mxu0 0.0
        %7267 = vmatpush1.msra.mxu0 0.0
        %7268 = vmatprep.subr.mxu0 0.0
        %7269 = vmatpush1.msra.mxu0 0.0
        %7270 = vmatprep.subr.mxu0 0.0
        %7271 = vmatpush1.msra.mxu0 0.0
        %7272 = vmatprep.subr.mxu0 0.0
        %7273 = vmatpush1.msra.mxu0 %v7114
        %7274 = vmatprep.subr.mxu0 0.0
        %7275 = vmatpush1.msra.mxu0 %v7109
        %7276 = vmatprep.subr.mxu0 0.0
        %7277 = vmatpush1.msra.mxu0 %v7104
        %7278 = vmatprep.subr.mxu0 0.0
        %7279 = vmatpush1.msra.mxu0 %v7099
        %7280 = vmatprep.subr.mxu0 0.0
        %7281 = vmatpush1.msra.mxu0 %v7094
        %7282 = vmatprep.subr.mxu0 0.0
        %7283 = vmatpush1.msra.mxu0 %v7089
        %7284 = vmatprep.subr.mxu0 0.0
        %7285 = vmatpush2.msra.mxu0 0.0
        %7286 = vmatprep.subr.mxu0 0.0
        %7287 = vmatpush2.msra.mxu0 0.0
        %7288 = vmatprep.subr.mxu0 0.0
        %7289 = vmatpush2.msra.mxu0 0.0
        %7290 = vmatprep.subr.mxu0 0.0
        %7291 = vmatpush2.msra.mxu0 0.0
        %7292 = vmatprep.subr.mxu0 0.0
        %7293 = vmatpush2.msra.mxu0 0.0
        %7294 = vmatprep.subr.mxu0 0.0
        %7295 = vmatpush2.msra.mxu0 0.0
        %7296 = vmatprep.subr.mxu0 0.0
        %7297 = vmatpush2.msra.mxu0 0.0
        %7298 = vmatprep.subr.mxu0 0.0
        %7299 = vmatpush2.msra.mxu0 0.0
        %7300 = vmatprep.subr.mxu0 0.0
        %7301 = vmatpush2.msra.mxu0 0.0
        %7302 = vmatprep.subr.mxu0 0.0
        %7303 = vmatpush2.msra.mxu0 0.0
        %7304 = vmatprep.subr.mxu0 0.0
        %7305 = vmatpush2.msra.mxu0 0.0
        %7306 = vmatprep.subr.mxu0 0.0
        %7307 = vmatpush2.msra.mxu0 0.0
        %7308 = vmatprep.subr.mxu0 0.0
        %7309 = vmatpush2.msra.mxu0 0.0
        %7310 = vmatprep.subr.mxu0 0.0
        %7311 = vmatpush2.msra.mxu0 0.0
        %7312 = vmatprep.subr.mxu0 0.0
        %7313 = vmatpush2.msra.mxu0 0.0
        %7314 = vmatprep.subr.mxu0 0.0
        %7315 = vmatpush2.msra.mxu0 0.0
        %7316 = vmatprep.mubr.f32.mxu0 0.0
        %7317 = vmatmul.mubr.f32.gmra.mxu0 %v7238
        %v7318 = vpop.f32.mrf.mxu0
        %v7319 = vadd.f32 0.0, %v7318
        %v7320 = vpop.f32.mrf.mxu0
        %7321 = vmatprep.mubr.f32.mxu0 0.0
        %7322 = vmatmul.mubr.f32.gmra.mxu0 %v7241
        %v7323 = vpop.f32.mrf.mxu0
        %v7324 = vadd.f32 0.0, %v7323
        %v7325 = vpop.f32.mrf.mxu0
        %7326 = vmatprep.mubr.f32.mxu0 0.0
        %7327 = vmatmul.mubr.f32.gmra.mxu0 %v7244
        %v7328 = vpop.f32.mrf.mxu0
        %v7329 = vadd.f32 0.0, %v7328
        %v7330 = vpop.f32.mrf.mxu0
        %7331 = vmatprep.mubr.f32.mxu0 0.0
        %7332 = vmatmul.mubr.f32.gmra.mxu0 %v7247
        %v7333 = vpop.f32.mrf.mxu0
        %v7334 = vadd.f32 0.0, %v7333
        %v7335 = vpop.f32.mrf.mxu0
        %7336 = vmatprep.mubr.f32.mxu0 0.0
        %7337 = vmatmul.mubr.f32.gmra.mxu0 %v7250
        %v7338 = vpop.f32.mrf.mxu0
        %v7339 = vadd.f32 0.0, %v7338
        %v7340 = vpop.f32.mrf.mxu0
        %7341 = vdwg.mxu0
        %7342 = vmatprep.subr.mxu0 0.0
        %7343 = vmatpush1.msra.mxu0 0.0
        %7344 = vmatprep.subr.mxu0 0.0
        %7345 = vmatpush1.msra.mxu0 0.0
        %7346 = vmatprep.subr.mxu0 0.0
        %7347 = vmatpush1.msra.mxu0 0.0
        %7348 = vmatprep.subr.mxu0 0.0
        %7349 = vmatpush1.msra.mxu0 0.0
        %7350 = vmatprep.subr.mxu0 0.0
        %7351 = vmatpush1.msra.mxu0 0.0
        %7352 = vmatprep.subr.mxu0 0.0
        %7353 = vmatpush1.msra.mxu0 0.0
        %7354 = vmatprep.subr.mxu0 0.0
        %7355 = vmatpush1.msra.mxu0 0.0
        %7356 = vmatprep.subr.mxu0 0.0
        %7357 = vmatpush1.msra.mxu0 0.0
        %7358 = vmatprep.subr.mxu0 0.0
        %7359 = vmatpush1.msra.mxu0 0.0
        %7360 = vmatprep.subr.mxu0 0.0
        %7361 = vmatpush1.msra.mxu0 0.0
        %7362 = vmatprep.subr.mxu0 0.0
        %7363 = vmatpush1.msra.mxu0 %v7144
        %7364 = vmatprep.subr.mxu0 0.0
        %7365 = vmatpush1.msra.mxu0 %v7139
        %7366 = vmatprep.subr.mxu0 0.0
        %7367 = vmatpush1.msra.mxu0 %v7134
        %7368 = vmatprep.subr.mxu0 0.0
        %7369 = vmatpush1.msra.mxu0 %v7129
        %7370 = vmatprep.subr.mxu0 0.0
        %7371 = vmatpush1.msra.mxu0 %v7124
        %7372 = vmatprep.subr.mxu0 0.0
        %7373 = vmatpush1.msra.mxu0 %v7119
        %7374 = vmatprep.subr.mxu0 0.0
        %7375 = vmatpush2.msra.mxu0 0.0
        %7376 = vmatprep.subr.mxu0 0.0
        %7377 = vmatpush2.msra.mxu0 0.0
        %7378 = vmatprep.subr.mxu0 0.0
        %7379 = vmatpush2.msra.mxu0 0.0
        %7380 = vmatprep.subr.mxu0 0.0
        %7381 = vmatpush2.msra.mxu0 0.0
        %7382 = vmatprep.subr.mxu0 0.0
        %7383 = vmatpush2.msra.mxu0 0.0
        %7384 = vmatprep.subr.mxu0 0.0
        %7385 = vmatpush2.msra.mxu0 0.0
        %7386 = vmatprep.subr.mxu0 0.0
        %7387 = vmatpush2.msra.mxu0 0.0
        %7388 = vmatprep.subr.mxu0 0.0
        %7389 = vmatpush2.msra.mxu0 0.0
        %7390 = vmatprep.subr.mxu0 0.0
        %7391 = vmatpush2.msra.mxu0 0.0
        %7392 = vmatprep.subr.mxu0 0.0
        %7393 = vmatpush2.msra.mxu0 0.0
        %7394 = vmatprep.subr.mxu0 0.0
        %7395 = vmatpush2.msra.mxu0 0.0
        %7396 = vmatprep.subr.mxu0 0.0
        %7397 = vmatpush2.msra.mxu0 0.0
        %7398 = vmatprep.subr.mxu0 0.0
        %7399 = vmatpush2.msra.mxu0 0.0
        %7400 = vmatprep.subr.mxu0 0.0
        %7401 = vmatpush2.msra.mxu0 0.0
        %7402 = vmatprep.subr.mxu0 0.0
        %7403 = vmatpush2.msra.mxu0 0.0
        %7404 = vmatprep.subr.mxu0 0.0
        %7405 = vmatpush2.msra.mxu0 0.0
        %7406 = vmatprep.mubr.f32.mxu0 0.0
        %7407 = vmatmul.mubr.f32.gmra.mxu0 %v7238
        %v7408 = vpop.f32.mrf.mxu0
        %v7409 = vadd.f32 0.0, %v7408
        %v7410 = vpop.f32.mrf.mxu0
        %7411 = vmatprep.mubr.f32.mxu0 0.0
        %7412 = vmatmul.mubr.f32.gmra.mxu0 %v7241
        %v7413 = vpop.f32.mrf.mxu0
        %v7414 = vadd.f32 0.0, %v7413
        %v7415 = vpop.f32.mrf.mxu0
        %7416 = vmatprep.mubr.f32.mxu0 0.0
        %7417 = vmatmul.mubr.f32.gmra.mxu0 %v7244
        %v7418 = vpop.f32.mrf.mxu0
        %v7419 = vadd.f32 0.0, %v7418
        %v7420 = vpop.f32.mrf.mxu0
        %7421 = vmatprep.mubr.f32.mxu0 0.0
        %7422 = vmatmul.mubr.f32.gmra.mxu0 %v7247
        %v7423 = vpop.f32.mrf.mxu0
        %v7424 = vadd.f32 0.0, %v7423
        %v7425 = vpop.f32.mrf.mxu0
        %7426 = vmatprep.mubr.f32.mxu0 0.0
        %7427 = vmatmul.mubr.f32.gmra.mxu0 %v7250
        %v7428 = vpop.f32.mrf.mxu0
        %v7429 = vadd.f32 0.0, %v7428
        %v7430 = vpop.f32.mrf.mxu0
        %7431 = vdwg.mxu0
        %7432 = vmatprep.subr.mxu0 0.0
        %7433 = vmatpush1.msra.mxu0 0.0
        %7434 = vmatprep.subr.mxu0 0.0
        %7435 = vmatpush1.msra.mxu0 0.0
        %7436 = vmatprep.subr.mxu0 0.0
        %7437 = vmatpush1.msra.mxu0 0.0
        %7438 = vmatprep.subr.mxu0 0.0
        %7439 = vmatpush1.msra.mxu0 0.0
        %7440 = vmatprep.subr.mxu0 0.0
        %7441 = vmatpush1.msra.mxu0 0.0
        %7442 = vmatprep.subr.mxu0 0.0
        %7443 = vmatpush1.msra.mxu0 0.0
        %7444 = vmatprep.subr.mxu0 0.0
        %7445 = vmatpush1.msra.mxu0 0.0
        %7446 = vmatprep.subr.mxu0 0.0
        %7447 = vmatpush1.msra.mxu0 0.0
        %7448 = vmatprep.subr.mxu0 0.0
        %7449 = vmatpush1.msra.mxu0 0.0
        %7450 = vmatprep.subr.mxu0 0.0
        %7451 = vmatpush1.msra.mxu0 0.0
        %7452 = vmatprep.subr.mxu0 0.0
        %7453 = vmatpush1.msra.mxu0 %v7174
        %7454 = vmatprep.subr.mxu0 0.0
        %7455 = vmatpush1.msra.mxu0 %v7169
        %7456 = vmatprep.subr.mxu0 0.0
        %7457 = vmatpush1.msra.mxu0 %v7164
        %7458 = vmatprep.subr.mxu0 0.0
        %7459 = vmatpush1.msra.mxu0 %v7159
        %7460 = vmatprep.subr.mxu0 0.0
        %7461 = vmatpush1.msra.mxu0 %v7154
        %7462 = vmatprep.subr.mxu0 0.0
        %7463 = vmatpush1.msra.mxu0 %v7149
        %7464 = vmatprep.subr.mxu0 0.0
        %7465 = vmatpush2.msra.mxu0 0.0
        %7466 = vmatprep.subr.mxu0 0.0
        %7467 = vmatpush2.msra.mxu0 0.0
        %7468 = vmatprep.subr.mxu0 0.0
        %7469 = vmatpush2.msra.mxu0 0.0
        %7470 = vmatprep.subr.mxu0 0.0
        %7471 = vmatpush2.msra.mxu0 0.0
        %7472 = vmatprep.subr.mxu0 0.0
        %7473 = vmatpush2.msra.mxu0 0.0
        %7474 = vmatprep.subr.mxu0 0.0
        %7475 = vmatpush2.msra.mxu0 0.0
        %7476 = vmatprep.subr.mxu0 0.0
        %7477 = vmatpush2.msra.mxu0 0.0
        %7478 = vmatprep.subr.mxu0 0.0
        %7479 = vmatpush2.msra.mxu0 0.0
        %7480 = vmatprep.subr.mxu0 0.0
        %7481 = vmatpush2.msra.mxu0 0.0
        %7482 = vmatprep.subr.mxu0 0.0
        %7483 = vmatpush2.msra.mxu0 0.0
        %7484 = vmatprep.subr.mxu0 0.0
        %7485 = vmatpush2.msra.mxu0 0.0
        %7486 = vmatprep.subr.mxu0 0.0
        %7487 = vmatpush2.msra.mxu0 0.0
        %7488 = vmatprep.subr.mxu0 0.0
        %7489 = vmatpush2.msra.mxu0 0.0
        %7490 = vmatprep.subr.mxu0 0.0
        %7491 = vmatpush2.msra.mxu0 0.0
        %7492 = vmatprep.subr.mxu0 0.0
        %7493 = vmatpush2.msra.mxu0 0.0
        %7494 = vmatprep.subr.mxu0 0.0
        %7495 = vmatpush2.msra.mxu0 0.0
        %7496 = vmatprep.mubr.f32.mxu0 0.0
        %7497 = vmatmul.mubr.f32.gmra.mxu0 %v7238
        %v7498 = vpop.f32.mrf.mxu0
        %v7499 = vadd.f32 0.0, %v7498
        %v7500 = vpop.f32.mrf.mxu0
        %7501 = vmatprep.mubr.f32.mxu0 0.0
        %7502 = vmatmul.mubr.f32.gmra.mxu0 %v7241
        %v7503 = vpop.f32.mrf.mxu0
        %v7504 = vadd.f32 0.0, %v7503
        %v7505 = vpop.f32.mrf.mxu0
        %7506 = vmatprep.mubr.f32.mxu0 0.0
        %7507 = vmatmul.mubr.f32.gmra.mxu0 %v7244
        %v7508 = vpop.f32.mrf.mxu0
        %v7509 = vadd.f32 0.0, %v7508
        %v7510 = vpop.f32.mrf.mxu0
        %7511 = vmatprep.mubr.f32.mxu0 0.0
        %7512 = vmatmul.mubr.f32.gmra.mxu0 %v7247
        %v7513 = vpop.f32.mrf.mxu0
        %v7514 = vadd.f32 0.0, %v7513
        %v7515 = vpop.f32.mrf.mxu0
        %7516 = vmatprep.mubr.f32.mxu0 0.0
        %7517 = vmatmul.mubr.f32.gmra.mxu0 %v7250
        %v7518 = vpop.f32.mrf.mxu0
        %v7519 = vadd.f32 0.0, %v7518
        %v7520 = vpop.f32.mrf.mxu0
        %7521 = vdwg.mxu0
        %7522 = vmatprep.subr.mxu0 0.0
        %7523 = vmatpush1.msra.mxu0 0.0
        %7524 = vmatprep.subr.mxu0 0.0
        %7525 = vmatpush1.msra.mxu0 0.0
        %7526 = vmatprep.subr.mxu0 0.0
        %7527 = vmatpush1.msra.mxu0 0.0
        %7528 = vmatprep.subr.mxu0 0.0
        %7529 = vmatpush1.msra.mxu0 0.0
        %7530 = vmatprep.subr.mxu0 0.0
        %7531 = vmatpush1.msra.mxu0 0.0
        %7532 = vmatprep.subr.mxu0 0.0
        %7533 = vmatpush1.msra.mxu0 0.0
        %7534 = vmatprep.subr.mxu0 0.0
        %7535 = vmatpush1.msra.mxu0 0.0
        %7536 = vmatprep.subr.mxu0 0.0
        %7537 = vmatpush1.msra.mxu0 0.0
        %7538 = vmatprep.subr.mxu0 0.0
        %7539 = vmatpush1.msra.mxu0 0.0
        %7540 = vmatprep.subr.mxu0 0.0
        %7541 = vmatpush1.msra.mxu0 0.0
        %7542 = vmatprep.subr.mxu0 0.0
        %7543 = vmatpush1.msra.mxu0 %v7204
        %7544 = vmatprep.subr.mxu0 0.0
        %7545 = vmatpush1.msra.mxu0 %v7199
        %7546 = vmatprep.subr.mxu0 0.0
        %7547 = vmatpush1.msra.mxu0 %v7194
        %7548 = vmatprep.subr.mxu0 0.0
        %7549 = vmatpush1.msra.mxu0 %v7189
        %7550 = vmatprep.subr.mxu0 0.0
        %7551 = vmatpush1.msra.mxu0 %v7184
        %7552 = vmatprep.subr.mxu0 0.0
        %7553 = vmatpush1.msra.mxu0 %v7179
        %7554 = vmatprep.subr.mxu0 0.0
        %7555 = vmatpush2.msra.mxu0 0.0
        %7556 = vmatprep.subr.mxu0 0.0
        %7557 = vmatpush2.msra.mxu0 0.0
        %7558 = vmatprep.subr.mxu0 0.0
        %7559 = vmatpush2.msra.mxu0 0.0
        %7560 = vmatprep.subr.mxu0 0.0
        %7561 = vmatpush2.msra.mxu0 0.0
        %7562 = vmatprep.subr.mxu0 0.0
        %7563 = vmatpush2.msra.mxu0 0.0
        %7564 = vmatprep.subr.mxu0 0.0
        %7565 = vmatpush2.msra.mxu0 0.0
        %7566 = vmatprep.subr.mxu0 0.0
        %7567 = vmatpush2.msra.mxu0 0.0
        %7568 = vmatprep.subr.mxu0 0.0
        %7569 = vmatpush2.msra.mxu0 0.0
        %7570 = vmatprep.subr.mxu0 0.0
        %7571 = vmatpush2.msra.mxu0 0.0
        %7572 = vmatprep.subr.mxu0 0.0
        %7573 = vmatpush2.msra.mxu0 0.0
        %7574 = vmatprep.subr.mxu0 0.0
        %7575 = vmatpush2.msra.mxu0 0.0
        %7576 = vmatprep.subr.mxu0 0.0
        %7577 = vmatpush2.msra.mxu0 0.0
        %7578 = vmatprep.subr.mxu0 0.0
        %7579 = vmatpush2.msra.mxu0 0.0
        %7580 = vmatprep.subr.mxu0 0.0
        %7581 = vmatpush2.msra.mxu0 0.0
        %7582 = vmatprep.subr.mxu0 0.0
        %7583 = vmatpush2.msra.mxu0 0.0
        %7584 = vmatprep.subr.mxu0 0.0
        %7585 = vmatpush2.msra.mxu0 0.0
        %7586 = vmatprep.mubr.f32.mxu0 0.0
        %7587 = vmatmul.mubr.f32.gmra.mxu0 %v7238
        %v7588 = vpop.f32.mrf.mxu0
        %v7589 = vadd.f32 0.0, %v7588
        %v7590 = vpop.f32.mrf.mxu0
        %7591 = vmatprep.mubr.f32.mxu0 0.0
        %7592 = vmatmul.mubr.f32.gmra.mxu0 %v7241
        %v7593 = vpop.f32.mrf.mxu0
        %v7594 = vadd.f32 0.0, %v7593
        %v7595 = vpop.f32.mrf.mxu0
        %7596 = vmatprep.mubr.f32.mxu0 0.0
        %7597 = vmatmul.mubr.f32.gmra.mxu0 %v7244
        %v7598 = vpop.f32.mrf.mxu0
        %v7599 = vadd.f32 0.0, %v7598
        %v7600 = vpop.f32.mrf.mxu0
        %7601 = vmatprep.mubr.f32.mxu0 0.0
        %7602 = vmatmul.mubr.f32.gmra.mxu0 %v7247
        %v7603 = vpop.f32.mrf.mxu0
        %v7604 = vadd.f32 0.0, %v7603
        %v7605 = vpop.f32.mrf.mxu0
        %7606 = vmatprep.mubr.f32.mxu0 0.0
        %7607 = vmatmul.mubr.f32.gmra.mxu0 %v7250
        %v7608 = vpop.f32.mrf.mxu0
        %v7609 = vadd.f32 0.0, %v7608
        %v7610 = vpop.f32.mrf.mxu0
        %7611 = vdwg.mxu0
        %7612 = vmatprep.subr.mxu0 0.0
        %7613 = vmatpush1.msra.mxu0 0.0
        %7614 = vmatprep.subr.mxu0 0.0
        %7615 = vmatpush1.msra.mxu0 0.0
        %7616 = vmatprep.subr.mxu0 0.0
        %7617 = vmatpush1.msra.mxu0 0.0
        %7618 = vmatprep.subr.mxu0 0.0
        %7619 = vmatpush1.msra.mxu0 0.0
        %7620 = vmatprep.subr.mxu0 0.0
        %7621 = vmatpush1.msra.mxu0 0.0
        %7622 = vmatprep.subr.mxu0 0.0
        %7623 = vmatpush1.msra.mxu0 0.0
        %7624 = vmatprep.subr.mxu0 0.0
        %7625 = vmatpush1.msra.mxu0 0.0
        %7626 = vmatprep.subr.mxu0 0.0
        %7627 = vmatpush1.msra.mxu0 0.0
        %7628 = vmatprep.subr.mxu0 0.0
        %7629 = vmatpush1.msra.mxu0 0.0
        %7630 = vmatprep.subr.mxu0 0.0
        %7631 = vmatpush1.msra.mxu0 0.0
        %7632 = vmatprep.subr.mxu0 0.0
        %7633 = vmatpush1.msra.mxu0 %v7234
        %7634 = vmatprep.subr.mxu0 0.0
        %7635 = vmatpush1.msra.mxu0 %v7229
        %7636 = vmatprep.subr.mxu0 0.0
        %7637 = vmatpush1.msra.mxu0 %v7224
        %7638 = vmatprep.subr.mxu0 0.0
        %7639 = vmatpush1.msra.mxu0 %v7219
        %7640 = vmatprep.subr.mxu0 0.0
        %7641 = vmatpush1.msra.mxu0 %v7214
        %7642 = vmatprep.subr.mxu0 0.0
        %7643 = vmatpush1.msra.mxu0 %v7209
        %7644 = vmatprep.subr.mxu0 0.0
        %7645 = vmatpush2.msra.mxu0 0.0
        %7646 = vmatprep.subr.mxu0 0.0
        %7647 = vmatpush2.msra.mxu0 0.0
        %7648 = vmatprep.subr.mxu0 0.0
        %7649 = vmatpush2.msra.mxu0 0.0
        %7650 = vmatprep.subr.mxu0 0.0
        %7651 = vmatpush2.msra.mxu0 0.0
        %7652 = vmatprep.subr.mxu0 0.0
        %7653 = vmatpush2.msra.mxu0 0.0
        %7654 = vmatprep.subr.mxu0 0.0
        %7655 = vmatpush2.msra.mxu0 0.0
        %7656 = vmatprep.subr.mxu0 0.0
        %7657 = vmatpush2.msra.mxu0 0.0
        %7658 = vmatprep.subr.mxu0 0.0
        %7659 = vmatpush2.msra.mxu0 0.0
        %7660 = vmatprep.subr.mxu0 0.0
        %7661 = vmatpush2.msra.mxu0 0.0
        %7662 = vmatprep.subr.mxu0 0.0
        %7663 = vmatpush2.msra.mxu0 0.0
        %7664 = vmatprep.subr.mxu0 0.0
        %7665 = vmatpush2.msra.mxu0 0.0
        %7666 = vmatprep.subr.mxu0 0.0
        %7667 = vmatpush2.msra.mxu0 0.0
        %7668 = vmatprep.subr.mxu0 0.0
        %7669 = vmatpush2.msra.mxu0 0.0
        %7670 = vmatprep.subr.mxu0 0.0
        %7671 = vmatpush2.msra.mxu0 0.0
        %7672 = vmatprep.subr.mxu0 0.0
        %7673 = vmatpush2.msra.mxu0 0.0
        %7674 = vmatprep.subr.mxu0 0.0
        %7675 = vmatpush2.msra.mxu0 0.0
        %7676 = vmatprep.mubr.f32.mxu0 0.0
        %7677 = vmatmul.mubr.f32.gmra.mxu0 %v7238
        %v7678 = vpop.f32.mrf.mxu0
        %v7679 = vadd.f32 0.0, %v7678
        %v7680 = vpop.f32.mrf.mxu0
        %7681 = vmatprep.mubr.f32.mxu0 0.0
        %7682 = vmatmul.mubr.f32.gmra.mxu0 %v7241
        %v7683 = vpop.f32.mrf.mxu0
        %v7684 = vadd.f32 0.0, %v7683
        %v7685 = vpop.f32.mrf.mxu0
        %7686 = vmatprep.mubr.f32.mxu0 0.0
        %7687 = vmatmul.mubr.f32.gmra.mxu0 %v7244
        %v7688 = vpop.f32.mrf.mxu0
        %v7689 = vadd.f32 0.0, %v7688
        %v7690 = vpop.f32.mrf.mxu0
        %7691 = vmatprep.mubr.f32.mxu0 0.0
        %7692 = vmatmul.mubr.f32.gmra.mxu0 %v7247
        %v7693 = vpop.f32.mrf.mxu0
        %v7694 = vadd.f32 0.0, %v7693
        %v7695 = vpop.f32.mrf.mxu0
        %7696 = vmatprep.mubr.f32.mxu0 0.0
        %7697 = vmatmul.mubr.f32.gmra.mxu0 %v7250
        %v7698 = vpop.f32.mrf.mxu0
        %v7699 = vadd.f32 0.0, %v7698
        %v7700 = vpop.f32.mrf.mxu0
        %7701 = vdwg.mxu0
        %v7702 = vmul.f32 %v7319, %v7319
        %v7703 = vmul.f32 %v7324, %v7324
        %v7704 = vmul.f32 %v7329, %v7329
        %v7705 = vmul.f32 %v7334, %v7334
        %v7706 = vmul.f32 %v7339, %v7339
        %v7707 = vsub.f32 %v7499, %v7702
        %v7708 = vsub.f32 %v7504, %v7703
        %v7709 = vsub.f32 %v7509, %v7704
        %v7710 = vsub.f32 %v7514, %v7705
        %v7711 = vsub.f32 %v7519, %v7706
        %v7712 = vmul.f32 %v7409, %v7409
        %v7713 = vmul.f32 %v7414, %v7414
        %v7714 = vmul.f32 %v7419, %v7419
        %v7715 = vmul.f32 %v7424, %v7424
        %v7716 = vmul.f32 %v7429, %v7429
        %v7717 = vsub.f32 %v7589, %v7712
        %v7718 = vsub.f32 %v7594, %v7713
        %v7719 = vsub.f32 %v7599, %v7714
        %v7720 = vsub.f32 %v7604, %v7715
        %v7721 = vsub.f32 %v7609, %v7716
        %v7722 = vmul.f32 %v7319, %v7409
        %v7723 = vmul.f32 %v7324, %v7414
        %v7724 = vmul.f32 %v7329, %v7419
        %v7725 = vmul.f32 %v7334, %v7424
        %v7726 = vmul.f32 %v7339, %v7429
        %v7727 = vsub.f32 %v7679, %v7722
        %v7728 = vsub.f32 %v7684, %v7723
        %v7729 = vsub.f32 %v7689, %v7724
        %v7730 = vsub.f32 %v7694, %v7725
        %v7731 = vsub.f32 %v7699, %v7726
        %v7732 = vmul.f32 %v7727, 2.0
        %v7733 = vmul.f32 %v7728, 2.0
        %v7734 = vmul.f32 %v7729, 2.0
        %v7735 = vmul.f32 %v7730, 2.0
        %v7736 = vmul.f32 %v7731, 2.0
        %v7737 = vadd.f32 %v7732, 0.0009
        %v7738 = vadd.f32 %v7733, 0.0009
        %v7739 = vadd.f32 %v7734, 0.0009
        %v7740 = vadd.f32 %v7735, 0.0009
        %v7741 = vadd.f32 %v7736, 0.0009
        %v7742 = vadd.f32 %v7707, %v7717
        %v7743 = vadd.f32 %v7708, %v7718
        %v7744 = vadd.f32 %v7709, %v7719
        %v7745 = vadd.f32 %v7710, %v7720
        %v7746 = vadd.f32 %v7711, %v7721
        %v7747 = vadd.f32 %v7742, 0.0009
        %v7748 = vadd.f32 %v7743, 0.0009
        %v7749 = vadd.f32 %v7744, 0.0009
        %v7750 = vadd.f32 %v7745, 0.0009
        %v7751 = vadd.f32 %v7746, 0.0009
        %v7752 = vrcp.pop %v7747
        %v7753 = vmul.f32 %v7737, %v7752
        %v7754 = vrcp.pop %v7748
        %v7755 = vmul.f32 %v7738, %v7754
        %v7756 = vrcp.pop %v7749
        %v7757 = vmul.f32 %v7739, %v7756
        %v7758 = vrcp.pop %v7750
        %v7759 = vmul.f32 %v7740, %v7758
        %v7760 = vrcp.pop %v7751
        %v7761 = vmul.f32 %v7741, %v7760
        %v7762 = vadd.f32 %v7753, %v7755
        %v7763 = vadd.f32 %v7762, %v7757
        %v7764 = vadd.f32 %v7763, %v7759
        %v7765 = vsel %vm4312, %v7761, 0.0
        %v7766 = vadd.f32 %v7764, %v7765
        %7767 = vadd.xlane.f32.xlu0 %v7766
        %v7768 = vpop.xlane.xlu0 %7767
        %v7769 = vrot.slane %v7768, 4
        %v7770 = vadd.f32 %v7768, %v7769
        %v7771 = vrot.slane %v7770, 2
        %v7772 = vadd.f32 %v7770, %v7771
        %v7773 = vrot.slane %v7772, 1
        %v7774 = vadd.f32 %v7772, %v7773
        %s7775 = vtos %v7774
        %s7776 = ssub.f32 %s7775, 3420.0
        %s7777 = smul.f32 %s7776, 0.00069252076
        %s7778 = smax.f32 %s7777, 0.0
        %v7779 = vld [vmem:[#allocation27] sm:$0xff]
        %v7780 = vld [vmem:[#allocation27 + $0x8] sm:$0xff]
        %v7781 = vld [vmem:[#allocation27 + $0x10] sm:$0xff]
        %v7782 = vld [vmem:[#allocation28] sm:$0xff]
        %v7783 = vld [vmem:[#allocation28 + $0x8] sm:$0xff]
        %v7784 = vld [vmem:[#allocation28 + $0x10] sm:$0xff]
        %v7785 = vld [vmem:[#allocation28 + $0x18] sm:$0xff]
        %v7786 = vld [vmem:[#allocation28 + $0x20] sm:$0xff]
        %v7787 = vld [vmem:[#allocation28 + $0x28] sm:$0xff]
        %7788 = vmatprep.subr.mxu0 0.0
        %7789 = vmatpush1.msra.mxu0 0.0
        %7790 = vmatprep.subr.mxu0 0.0
        %7791 = vmatpush1.msra.mxu0 0.0
        %7792 = vmatprep.subr.mxu0 0.0
        %7793 = vmatpush1.msra.mxu0 0.0
        %7794 = vmatprep.subr.mxu0 0.0
        %7795 = vmatpush1.msra.mxu0 0.0
        %7796 = vmatprep.subr.mxu0 0.0
        %7797 = vmatpush1.msra.mxu0 0.0
        %7798 = vmatprep.subr.mxu0 0.0
        %7799 = vmatpush1.msra.mxu0 0.0
        %7800 = vmatprep.subr.mxu0 0.0
        %7801 = vmatpush1.msra.mxu0 0.0
        %7802 = vmatprep.subr.mxu0 0.0
        %7803 = vmatpush1.msra.mxu0 0.0
        %7804 = vmatprep.subr.mxu0 0.0
        %7805 = vmatpush1.msra.mxu0 0.0
        %7806 = vmatprep.subr.mxu0 0.0
        %7807 = vmatpush1.msra.mxu0 0.0
        %7808 = vmatprep.subr.mxu0 0.0
        %7809 = vmatpush1.msra.mxu0 %v7787
        %7810 = vmatprep.subr.mxu0 0.0
        %7811 = vmatpush1.msra.mxu0 %v7786
        %7812 = vmatprep.subr.mxu0 0.0
        %7813 = vmatpush1.msra.mxu0 %v7785
        %7814 = vmatprep.subr.mxu0 0.0
        %7815 = vmatpush1.msra.mxu0 %v7784
        %7816 = vmatprep.subr.mxu0 0.0
        %7817 = vmatpush1.msra.mxu0 %v7783
        %7818 = vmatprep.subr.mxu0 0.0
        %7819 = vmatpush1.msra.mxu0 %v7782
        %7820 = vmatprep.subr.mxu0 0.0
        %7821 = vmatpush2.msra.mxu0 0.0
        %7822 = vmatprep.subr.mxu0 0.0
        %7823 = vmatpush2.msra.mxu0 0.0
        %7824 = vmatprep.subr.mxu0 0.0
        %7825 = vmatpush2.msra.mxu0 0.0
        %7826 = vmatprep.subr.mxu0 0.0
        %7827 = vmatpush2.msra.mxu0 0.0
        %7828 = vmatprep.subr.mxu0 0.0
        %7829 = vmatpush2.msra.mxu0 0.0
        %7830 = vmatprep.subr.mxu0 0.0
        %7831 = vmatpush2.msra.mxu0 0.0
        %7832 = vmatprep.subr.mxu0 0.0
        %7833 = vmatpush2.msra.mxu0 0.0
        %7834 = vmatprep.subr.mxu0 0.0
        %7835 = vmatpush2.msra.mxu0 0.0
        %7836 = vmatprep.subr.mxu0 0.0
        %7837 = vmatpush2.msra.mxu0 0.0
        %7838 = vmatprep.subr.mxu0 0.0
        %7839 = vmatpush2.msra.mxu0 0.0
        %7840 = vmatprep.subr.mxu0 0.0
        %7841 = vmatpush2.msra.mxu0 0.0
        %7842 = vmatprep.subr.mxu0 0.0
        %7843 = vmatpush2.msra.mxu0 0.0
        %7844 = vmatprep.subr.mxu0 0.0
        %7845 = vmatpush2.msra.mxu0 0.0
        %7846 = vmatprep.subr.mxu0 0.0
        %7847 = vmatpush2.msra.mxu0 0.0
        %7848 = vmatprep.subr.mxu0 0.0
        %7849 = vmatpush2.msra.mxu0 0.0
        %7850 = vmatprep.subr.mxu0 0.0
        %7851 = vmatpush2.msra.mxu0 0.0
        %7852 = vmatprep.mubr.f32.mxu0 0.0
        %7853 = vmatmul.mubr.f32.gmra.mxu0 %v6933
        %v7854 = vpop.f32.mrf.mxu0
        %v7855 = vadd.f32 0.0, %v7854
        %v7856 = vpop.f32.mrf.mxu0
        %7857 = vmatprep.mubr.f32.mxu0 0.0
        %7858 = vmatmul.mubr.f32.gmra.mxu0 %v6936
        %v7859 = vpop.f32.mrf.mxu0
        %v7860 = vadd.f32 0.0, %v7859
        %v7861 = vpop.f32.mrf.mxu0
        %7862 = vmatprep.mubr.f32.mxu0 0.0
        %7863 = vmatmul.mubr.f32.gmra.mxu0 %v6939
        %v7864 = vpop.f32.mrf.mxu0
        %v7865 = vadd.f32 0.0, %v7864
        %v7866 = vpop.f32.mrf.mxu0
        %7867 = vmatprep.mubr.f32.mxu0 0.0
        %7868 = vmatmul.mubr.f32.gmra.mxu0 %v6942
        %v7869 = vpop.f32.mrf.mxu0
        %v7870 = vadd.f32 0.0, %v7869
        %v7871 = vpop.f32.mrf.mxu0
        %7872 = vmatprep.mubr.f32.mxu0 0.0
        %7873 = vmatmul.mubr.f32.gmra.mxu0 %v6945
        %v7874 = vpop.f32.mrf.mxu0
        %v7875 = vadd.f32 0.0, %v7874
        %v7876 = vpop.f32.mrf.mxu0
        %7877 = vmatprep.mubr.f32.mxu0 0.0
        %7878 = vmatmul.mubr.f32.gmra.mxu0 %v6948
        %v7879 = vpop.f32.mrf.mxu0
        %v7880 = vadd.f32 0.0, %v7879
        %v7881 = vpop.f32.mrf.mxu0
        %7882 = vdwg.mxu0
        %v7884 = vsel %vm6931, %v7779, 0
        %v7887 = vsel %vm6931, %v7780, 0
        %v7890 = vsel %vm6931, %v7781, 0
        %7892 = vmatprep.subr.mxu0 0.0
        %7893 = vmatpush1.msra.mxu0 0.0
        %7894 = vmatprep.subr.mxu0 0.0
        %7895 = vmatpush1.msra.mxu0 0.0
        %7896 = vmatprep.subr.mxu0 0.0
        %7897 = vmatpush1.msra.mxu0 0.0
        %7898 = vmatprep.subr.mxu0 0.0
        %7899 = vmatpush1.msra.mxu0 0.0
        %7900 = vmatprep.subr.mxu0 0.0
        %7901 = vmatpush1.msra.mxu0 0.0
        %7902 = vmatprep.subr.mxu0 0.0
        %7903 = vmatpush1.msra.mxu0 0.0
        %7904 = vmatprep.subr.mxu0 0.0
        %7905 = vmatpush1.msra.mxu0 0.0
        %7906 = vmatprep.subr.mxu0 0.0
        %7907 = vmatpush1.msra.mxu0 0.0
        %7908 = vmatprep.subr.mxu0 0.0
        %7909 = vmatpush1.msra.mxu0 0.0
        %7910 = vmatprep.subr.mxu0 0.0
        %7911 = vmatpush1.msra.mxu0 0.0
        %7912 = vmatprep.subr.mxu0 0.0
        %7913 = vmatpush1.msra.mxu0 %v7880
        %7914 = vmatprep.subr.mxu0 0.0
        %7915 = vmatpush1.msra.mxu0 %v7875
        %7916 = vmatprep.subr.mxu0 0.0
        %7917 = vmatpush1.msra.mxu0 %v7870
        %7918 = vmatprep.subr.mxu0 0.0
        %7919 = vmatpush1.msra.mxu0 %v7865
        %7920 = vmatprep.subr.mxu0 0.0
        %7921 = vmatpush1.msra.mxu0 %v7860
        %7922 = vmatprep.subr.mxu0 0.0
        %7923 = vmatpush1.msra.mxu0 %v7855
        %7924 = vmatprep.subr.mxu0 0.0
        %7925 = vmatpush2.msra.mxu0 0.0
        %7926 = vmatprep.subr.mxu0 0.0
        %7927 = vmatpush2.msra.mxu0 0.0
        %7928 = vmatprep.subr.mxu0 0.0
        %7929 = vmatpush2.msra.mxu0 0.0
        %7930 = vmatprep.subr.mxu0 0.0
        %7931 = vmatpush2.msra.mxu0 0.0
        %7932 = vmatprep.subr.mxu0 0.0
        %7933 = vmatpush2.msra.mxu0 0.0
        %7934 = vmatprep.subr.mxu0 0.0
        %7935 = vmatpush2.msra.mxu0 0.0
        %7936 = vmatprep.subr.mxu0 0.0
        %7937 = vmatpush2.msra.mxu0 0.0
        %7938 = vmatprep.subr.mxu0 0.0
        %7939 = vmatpush2.msra.mxu0 0.0
        %7940 = vmatprep.subr.mxu0 0.0
        %7941 = vmatpush2.msra.mxu0 0.0
        %7942 = vmatprep.subr.mxu0 0.0
        %7943 = vmatpush2.msra.mxu0 0.0
        %7944 = vmatprep.subr.mxu0 0.0
        %7945 = vmatpush2.msra.mxu0 0.0
        %7946 = vmatprep.subr.mxu0 0.0
        %7947 = vmatpush2.msra.mxu0 0.0
        %7948 = vmatprep.subr.mxu0 0.0
        %7949 = vmatpush2.msra.mxu0 0.0
        %7950 = vmatprep.subr.mxu0 0.0
        %7951 = vmatpush2.msra.mxu0 0.0
        %7952 = vmatprep.subr.mxu0 0.0
        %7953 = vmatpush2.msra.mxu0 0.0
        %7954 = vmatprep.subr.mxu0 0.0
        %7955 = vmatpush2.msra.mxu0 0.0
        %7956 = vmatprep.mubr.f32.mxu0 0.0
        %7957 = vmatmul.mubr.f32.gmra.mxu0 %v7884
        %v7958 = vpop.f32.mrf.mxu0
        %v7959 = vadd.f32 0.0, %v7958
        %v7960 = vpop.f32.mrf.mxu0
        %7961 = vmatprep.mubr.f32.mxu0 0.0
        %7962 = vmatmul.mubr.f32.gmra.mxu0 %v7887
        %v7963 = vpop.f32.mrf.mxu0
        %v7964 = vadd.f32 0.0, %v7963
        %v7965 = vpop.f32.mrf.mxu0
        %7966 = vmatprep.mubr.f32.mxu0 0.0
        %7967 = vmatmul.mubr.f32.gmra.mxu0 %v7890
        %v7968 = vpop.f32.mrf.mxu0
        %v7969 = vadd.f32 0.0, %v7968
        %v7970 = vpop.f32.mrf.mxu0
        %7971 = vdwg.mxu0
        %7972 = vmatprep.subr.mxu0 0.0
        %7973 = vmatpush1.msra.mxu0 0.0
        %7974 = vmatprep.subr.mxu0 0.0
        %7975 = vmatpush1.msra.mxu0 0.0
        %7976 = vmatprep.subr.mxu0 0.0
        %7977 = vmatpush1.msra.mxu0 0.0
        %7978 = vmatprep.subr.mxu0 0.0
        %7979 = vmatpush1.msra.mxu0 0.0
        %7980 = vmatprep.subr.mxu0 0.0
        %7981 = vmatpush1.msra.mxu0 0.0
        %7982 = vmatprep.subr.mxu0 0.0
        %7983 = vmatpush1.msra.mxu0 0.0
        %7984 = vmatprep.subr.mxu0 0.0
        %7985 = vmatpush1.msra.mxu0 0.0
        %7986 = vmatprep.subr.mxu0 0.0
        %7987 = vmatpush1.msra.mxu0 0.0
        %7988 = vmatprep.subr.mxu0 0.0
        %7989 = vmatpush1.msra.mxu0 0.0
        %7990 = vmatprep.subr.mxu0 0.0
        %7991 = vmatpush1.msra.mxu0 0.0
        %7992 = vmatprep.subr.mxu0 0.0
        %7993 = vmatpush1.msra.mxu0 %v7787
        %7994 = vmatprep.subr.mxu0 0.0
        %7995 = vmatpush1.msra.mxu0 %v7786
        %7996 = vmatprep.subr.mxu0 0.0
        %7997 = vmatpush1.msra.mxu0 %v7785
        %7998 = vmatprep.subr.mxu0 0.0
        %7999 = vmatpush1.msra.mxu0 %v7784
        %8000 = vmatprep.subr.mxu0 0.0
        %8001 = vmatpush1.msra.mxu0 %v7783
        %8002 = vmatprep.subr.mxu0 0.0
        %8003 = vmatpush1.msra.mxu0 %v7782
        %8004 = vmatprep.subr.mxu0 0.0
        %8005 = vmatpush2.msra.mxu0 0.0
        %8006 = vmatprep.subr.mxu0 0.0
        %8007 = vmatpush2.msra.mxu0 0.0
        %8008 = vmatprep.subr.mxu0 0.0
        %8009 = vmatpush2.msra.mxu0 0.0
        %8010 = vmatprep.subr.mxu0 0.0
        %8011 = vmatpush2.msra.mxu0 0.0
        %8012 = vmatprep.subr.mxu0 0.0
        %8013 = vmatpush2.msra.mxu0 0.0
        %8014 = vmatprep.subr.mxu0 0.0
        %8015 = vmatpush2.msra.mxu0 0.0
        %8016 = vmatprep.subr.mxu0 0.0
        %8017 = vmatpush2.msra.mxu0 0.0
        %8018 = vmatprep.subr.mxu0 0.0
        %8019 = vmatpush2.msra.mxu0 0.0
        %8020 = vmatprep.subr.mxu0 0.0
        %8021 = vmatpush2.msra.mxu0 0.0
        %8022 = vmatprep.subr.mxu0 0.0
        %8023 = vmatpush2.msra.mxu0 0.0
        %8024 = vmatprep.subr.mxu0 0.0
        %8025 = vmatpush2.msra.mxu0 0.0
        %8026 = vmatprep.subr.mxu0 0.0
        %8027 = vmatpush2.msra.mxu0 0.0
        %8028 = vmatprep.subr.mxu0 0.0
        %8029 = vmatpush2.msra.mxu0 0.0
        %8030 = vmatprep.subr.mxu0 0.0
        %8031 = vmatpush2.msra.mxu0 0.0
        %8032 = vmatprep.subr.mxu0 0.0
        %8033 = vmatpush2.msra.mxu0 0.0
        %8034 = vmatprep.subr.mxu0 0.0
        %8035 = vmatpush2.msra.mxu0 0.0
        %8036 = vmatprep.mubr.f32.mxu0 0.0
        %8037 = vmatmul.mubr.f32.gmra.mxu0 %v6951
        %v8038 = vpop.f32.mrf.mxu0
        %v8039 = vadd.f32 0.0, %v8038
        %v8040 = vpop.f32.mrf.mxu0
        %8041 = vmatprep.mubr.f32.mxu0 0.0
        %8042 = vmatmul.mubr.f32.gmra.mxu0 %v6954
        %v8043 = vpop.f32.mrf.mxu0
        %v8044 = vadd.f32 0.0, %v8043
        %v8045 = vpop.f32.mrf.mxu0
        %8046 = vmatprep.mubr.f32.mxu0 0.0
        %8047 = vmatmul.mubr.f32.gmra.mxu0 %v6957
        %v8048 = vpop.f32.mrf.mxu0
        %v8049 = vadd.f32 0.0, %v8048
        %v8050 = vpop.f32.mrf.mxu0
        %8051 = vmatprep.mubr.f32.mxu0 0.0
        %8052 = vmatmul.mubr.f32.gmra.mxu0 %v6960
        %v8053 = vpop.f32.mrf.mxu0
        %v8054 = vadd.f32 0.0, %v8053
        %v8055 = vpop.f32.mrf.mxu0
        %8056 = vmatprep.mubr.f32.mxu0 0.0
        %8057 = vmatmul.mubr.f32.gmra.mxu0 %v6963
        %v8058 = vpop.f32.mrf.mxu0
        %v8059 = vadd.f32 0.0, %v8058
        %v8060 = vpop.f32.mrf.mxu0
        %8061 = vmatprep.mubr.f32.mxu0 0.0
        %8062 = vmatmul.mubr.f32.gmra.mxu0 %v6966
        %v8063 = vpop.f32.mrf.mxu0
        %v8064 = vadd.f32 0.0, %v8063
        %v8065 = vpop.f32.mrf.mxu0
        %8066 = vdwg.mxu0
        %8067 = vmatprep.subr.mxu0 0.0
        %8068 = vmatpush1.msra.mxu0 0.0
        %8069 = vmatprep.subr.mxu0 0.0
        %8070 = vmatpush1.msra.mxu0 0.0
        %8071 = vmatprep.subr.mxu0 0.0
        %8072 = vmatpush1.msra.mxu0 0.0
        %8073 = vmatprep.subr.mxu0 0.0
        %8074 = vmatpush1.msra.mxu0 0.0
        %8075 = vmatprep.subr.mxu0 0.0
        %8076 = vmatpush1.msra.mxu0 0.0
        %8077 = vmatprep.subr.mxu0 0.0
        %8078 = vmatpush1.msra.mxu0 0.0
        %8079 = vmatprep.subr.mxu0 0.0
        %8080 = vmatpush1.msra.mxu0 0.0
        %8081 = vmatprep.subr.mxu0 0.0
        %8082 = vmatpush1.msra.mxu0 0.0
        %8083 = vmatprep.subr.mxu0 0.0
        %8084 = vmatpush1.msra.mxu0 0.0
        %8085 = vmatprep.subr.mxu0 0.0
        %8086 = vmatpush1.msra.mxu0 0.0
        %8087 = vmatprep.subr.mxu0 0.0
        %8088 = vmatpush1.msra.mxu0 %v8064
        %8089 = vmatprep.subr.mxu0 0.0
        %8090 = vmatpush1.msra.mxu0 %v8059
        %8091 = vmatprep.subr.mxu0 0.0
        %8092 = vmatpush1.msra.mxu0 %v8054
        %8093 = vmatprep.subr.mxu0 0.0
        %8094 = vmatpush1.msra.mxu0 %v8049
        %8095 = vmatprep.subr.mxu0 0.0
        %8096 = vmatpush1.msra.mxu0 %v8044
        %8097 = vmatprep.subr.mxu0 0.0
        %8098 = vmatpush1.msra.mxu0 %v8039
        %8099 = vmatprep.subr.mxu0 0.0
        %8100 = vmatpush2.msra.mxu0 0.0
        %8101 = vmatprep.subr.mxu0 0.0
        %8102 = vmatpush2.msra.mxu0 0.0
        %8103 = vmatprep.subr.mxu0 0.0
        %8104 = vmatpush2.msra.mxu0 0.0
        %8105 = vmatprep.subr.mxu0 0.0
        %8106 = vmatpush2.msra.mxu0 0.0
        %8107 = vmatprep.subr.mxu0 0.0
        %8108 = vmatpush2.msra.mxu0 0.0
        %8109 = vmatprep.subr.mxu0 0.0
        %8110 = vmatpush2.msra.mxu0 0.0
        %8111 = vmatprep.subr.mxu0 0.0
        %8112 = vmatpush2.msra.mxu0 0.0
        %8113 = vmatprep.subr.mxu0 0.0
        %8114 = vmatpush2.msra.mxu0 0.0
        %8115 = vmatprep.subr.mxu0 0.0
        %8116 = vmatpush2.msra.mxu0 0.0
        %8117 = vmatprep.subr.mxu0 0.0
        %8118 = vmatpush2.msra.mxu0 0.0
        %8119 = vmatprep.subr.mxu0 0.0
        %8120 = vmatpush2.msra.mxu0 0.0
        %8121 = vmatprep.subr.mxu0 0.0
        %8122 = vmatpush2.msra.mxu0 0.0
        %8123 = vmatprep.subr.mxu0 0.0
        %8124 = vmatpush2.msra.mxu0 0.0
        %8125 = vmatprep.subr.mxu0 0.0
        %8126 = vmatpush2.msra.mxu0 0.0
        %8127 = vmatprep.subr.mxu0 0.0
        %8128 = vmatpush2.msra.mxu0 0.0
        %8129 = vmatprep.subr.mxu0 0.0
        %8130 = vmatpush2.msra.mxu0 0.0
        %8131 = vmatprep.mubr.f32.mxu0 0.0
        %8132 = vmatmul.mubr.f32.gmra.mxu0 %v7884
        %v8133 = vpop.f32.mrf.mxu0
        %v8134 = vadd.f32 0.0, %v8133
        %v8135 = vpop.f32.mrf.mxu0
        %8136 = vmatprep.mubr.f32.mxu0 0.0
        %8137 = vmatmul.mubr.f32.gmra.mxu0 %v7887
        %v8138 = vpop.f32.mrf.mxu0
        %v8139 = vadd.f32 0.0, %v8138
        %v8140 = vpop.f32.mrf.mxu0
        %8141 = vmatprep.mubr.f32.mxu0 0.0
        %8142 = vmatmul.mubr.f32.gmra.mxu0 %v7890
        %v8143 = vpop.f32.mrf.mxu0
        %v8144 = vadd.f32 0.0, %v8143
        %v8145 = vpop.f32.mrf.mxu0
        %8146 = vdwg.mxu0
        %v8147 = vld [vmem:[#allocation15] sm:$0xff]
        %v8148 = vld [vmem:[#allocation15 + $0x8] sm:$0x3f]
        %v8149 = vld [vmem:[#allocation16] sm:$0xff]
        %v8150 = vld [vmem:[#allocation16 + $0x8] sm:$0xff]
        %v8151 = vld [vmem:[#allocation16 + $0x10] sm:$0xff]
        %v8152 = vmul.f32 %v7959, %v7959
        %v8153 = vmul.f32 %v7964, %v7964
        %v8154 = vmul.f32 %v7969, %v7969
        %v8155 = vmul.f32 %v8134, %v8134
        %v8156 = vmul.f32 %v8139, %v8139
        %v8157 = vmul.f32 %v8144, %v8144
        %v8158 = vmul.f32 %v7959, %v8134
        %v8159 = vmul.f32 %v7964, %v8139
        %v8160 = vmul.f32 %v7969, %v8144
        %vm8161 = vcmask 195584
        %v8163 = vsel %vm8161, %v7959, 0
        %v8166 = vsel %vm8161, %v7964, 0
        %v8169 = vsel %vm8161, %v7969, 0
        %v8172 = vsel %vm8161, %v8134, 0
        %v8175 = vsel %vm8161, %v8139, 0
        %v8178 = vsel %vm8161, %v8144, 0
        %v8181 = vsel %vm8161, %v8152, 0
        %v8184 = vsel %vm8161, %v8153, 0
        %v8187 = vsel %vm8161, %v8154, 0
        %v8190 = vsel %vm8161, %v8155, 0
        %v8193 = vsel %vm8161, %v8156, 0
        %v8196 = vsel %vm8161, %v8157, 0
        %v8199 = vsel %vm8161, %v8158, 0
        %v8202 = vsel %vm8161, %v8159, 0
        %v8205 = vsel %vm8161, %v8160, 0
        %8207 = vmatprep.subr.mxu0 0.0
        %8208 = vmatpush1.msra.mxu0 0.0
        %8209 = vmatprep.subr.mxu0 0.0
        %8210 = vmatpush1.msra.mxu0 0.0
        %8211 = vmatprep.subr.mxu0 0.0
        %8212 = vmatpush1.msra.mxu0 0.0
        %8213 = vmatprep.subr.mxu0 0.0
        %8214 = vmatpush1.msra.mxu0 0.0
        %8215 = vmatprep.subr.mxu0 0.0
        %8216 = vmatpush1.msra.mxu0 0.0
        %8217 = vmatprep.subr.mxu0 0.0
        %8218 = vmatpush1.msra.mxu0 0.0
        %8219 = vmatprep.subr.mxu0 0.0
        %8220 = vmatpush1.msra.mxu0 0.0
        %8221 = vmatprep.subr.mxu0 0.0
        %8222 = vmatpush1.msra.mxu0 0.0
        %8223 = vmatprep.subr.mxu0 0.0
        %8224 = vmatpush1.msra.mxu0 0.0
        %8225 = vmatprep.subr.mxu0 0.0
        %8226 = vmatpush1.msra.mxu0 0.0
        %8227 = vmatprep.subr.mxu0 0.0
        %8228 = vmatpush1.msra.mxu0 0.0
        %8229 = vmatprep.subr.mxu0 0.0
        %8230 = vmatpush1.msra.mxu0 0.0
        %8231 = vmatprep.subr.mxu0 0.0
        %8232 = vmatpush1.msra.mxu0 0.0
        %8233 = vmatprep.subr.mxu0 0.0
        %8234 = vmatpush1.msra.mxu0 %v8151
        %8235 = vmatprep.subr.mxu0 0.0
        %8236 = vmatpush1.msra.mxu0 %v8150
        %8237 = vmatprep.subr.mxu0 0.0
        %8238 = vmatpush1.msra.mxu0 %v8149
        %8239 = vmatprep.subr.mxu0 0.0
        %8240 = vmatpush2.msra.mxu0 0.0
        %8241 = vmatprep.subr.mxu0 0.0
        %8242 = vmatpush2.msra.mxu0 0.0
        %8243 = vmatprep.subr.mxu0 0.0
        %8244 = vmatpush2.msra.mxu0 0.0
        %8245 = vmatprep.subr.mxu0 0.0
        %8246 = vmatpush2.msra.mxu0 0.0
        %8247 = vmatprep.subr.mxu0 0.0
        %8248 = vmatpush2.msra.mxu0 0.0
        %8249 = vmatprep.subr.mxu0 0.0
        %8250 = vmatpush2.msra.mxu0 0.0
        %8251 = vmatprep.subr.mxu0 0.0
        %8252 = vmatpush2.msra.mxu0 0.0
        %8253 = vmatprep.subr.mxu0 0.0
        %8254 = vmatpush2.msra.mxu0 0.0
        %8255 = vmatprep.subr.mxu0 0.0
        %8256 = vmatpush2.msra.mxu0 0.0
        %8257 = vmatprep.subr.mxu0 0.0
        %8258 = vmatpush2.msra.mxu0 0.0
        %8259 = vmatprep.subr.mxu0 0.0
        %8260 = vmatpush2.msra.mxu0 0.0
        %8261 = vmatprep.subr.mxu0 0.0
        %8262 = vmatpush2.msra.mxu0 0.0
        %8263 = vmatprep.subr.mxu0 0.0
        %8264 = vmatpush2.msra.mxu0 0.0
        %8265 = vmatprep.subr.mxu0 0.0
        %8266 = vmatpush2.msra.mxu0 0.0
        %8267 = vmatprep.subr.mxu0 0.0
        %8268 = vmatpush2.msra.mxu0 0.0
        %8269 = vmatprep.subr.mxu0 0.0
        %8270 = vmatpush2.msra.mxu0 0.0
        %8271 = vmatprep.mubr.f32.mxu0 0.0
        %8272 = vmatmul.mubr.f32.gmra.mxu0 %v8163
        %v8273 = vpop.f32.mrf.mxu0
        %v8274 = vadd.f32 0.0, %v8273
        %v8275 = vpop.f32.mrf.mxu0
        %8276 = vmatprep.mubr.f32.mxu0 0.0
        %8277 = vmatmul.mubr.f32.gmra.mxu0 %v8166
        %v8278 = vpop.f32.mrf.mxu0
        %v8279 = vadd.f32 0.0, %v8278
        %v8280 = vpop.f32.mrf.mxu0
        %8281 = vmatprep.mubr.f32.mxu0 0.0
        %8282 = vmatmul.mubr.f32.gmra.mxu0 %v8169
        %v8283 = vpop.f32.mrf.mxu0
        %v8284 = vadd.f32 0.0, %v8283
        %v8285 = vpop.f32.mrf.mxu0
        %8286 = vmatprep.mubr.f32.mxu0 0.0
        %8287 = vmatmul.mubr.f32.gmra.mxu0 %v8172
        %v8288 = vpop.f32.mrf.mxu0
        %v8289 = vadd.f32 0.0, %v8288
        %v8290 = vpop.f32.mrf.mxu0
        %8291 = vmatprep.mubr.f32.mxu0 0.0
        %8292 = vmatmul.mubr.f32.gmra.mxu0 %v8175
        %v8293 = vpop.f32.mrf.mxu0
        %v8294 = vadd.f32 0.0, %v8293
        %v8295 = vpop.f32.mrf.mxu0
        %8296 = vmatprep.mubr.f32.mxu0 0.0
        %8297 = vmatmul.mubr.f32.gmra.mxu0 %v8178
        %v8298 = vpop.f32.mrf.mxu0
        %v8299 = vadd.f32 0.0, %v8298
        %v8300 = vpop.f32.mrf.mxu0
        %8301 = vmatprep.mubr.f32.mxu0 0.0
        %8302 = vmatmul.mubr.f32.gmra.mxu0 %v8181
        %v8303 = vpop.f32.mrf.mxu0
        %v8304 = vadd.f32 0.0, %v8303
        %v8305 = vpop.f32.mrf.mxu0
        %8306 = vmatprep.mubr.f32.mxu0 0.0
        %8307 = vmatmul.mubr.f32.gmra.mxu0 %v8184
        %v8308 = vpop.f32.mrf.mxu0
        %v8309 = vadd.f32 0.0, %v8308
        %v8310 = vpop.f32.mrf.mxu0
        %8311 = vmatprep.mubr.f32.mxu0 0.0
        %8312 = vmatmul.mubr.f32.gmra.mxu0 %v8187
        %v8313 = vpop.f32.mrf.mxu0
        %v8314 = vadd.f32 0.0, %v8313
        %v8315 = vpop.f32.mrf.mxu0
        %8316 = vmatprep.mubr.f32.mxu0 0.0
        %8317 = vmatmul.mubr.f32.gmra.mxu0 %v8190
        %v8318 = vpop.f32.mrf.mxu0
        %v8319 = vadd.f32 0.0, %v8318
        %v8320 = vpop.f32.mrf.mxu0
        %8321 = vmatprep.mubr.f32.mxu0 0.0
        %8322 = vmatmul.mubr.f32.gmra.mxu0 %v8193
        %v8323 = vpop.f32.mrf.mxu0
        %v8324 = vadd.f32 0.0, %v8323
        %v8325 = vpop.f32.mrf.mxu0
        %8326 = vmatprep.mubr.f32.mxu0 0.0
        %8327 = vmatmul.mubr.f32.gmra.mxu0 %v8196
        %v8328 = vpop.f32.mrf.mxu0
        %v8329 = vadd.f32 0.0, %v8328
        %v8330 = vpop.f32.mrf.mxu0
        %8331 = vmatprep.mubr.f32.mxu0 0.0
        %8332 = vmatmul.mubr.f32.gmra.mxu0 %v8199
        %v8333 = vpop.f32.mrf.mxu0
        %v8334 = vadd.f32 0.0, %v8333
        %v8335 = vpop.f32.mrf.mxu0
        %8336 = vmatprep.mubr.f32.mxu0 0.0
        %8337 = vmatmul.mubr.f32.gmra.mxu0 %v8202
        %v8338 = vpop.f32.mrf.mxu0
        %v8339 = vadd.f32 0.0, %v8338
        %v8340 = vpop.f32.mrf.mxu0
        %8341 = vmatprep.mubr.f32.mxu0 0.0
        %8342 = vmatmul.mubr.f32.gmra.mxu0 %v8205
        %v8343 = vpop.f32.mrf.mxu0
        %v8344 = vadd.f32 0.0, %v8343
        %v8345 = vpop.f32.mrf.mxu0
        %8346 = vdwg.mxu0
        %v8348 = vsel %vm8161, %v8147, 0
        %v8351 = vsel %vm8161, %v8148, 0
        %8353 = vmatprep.subr.mxu0 0.0
        %8354 = vmatpush1.msra.mxu0 0.0
        %8355 = vmatprep.subr.mxu0 0.0
        %8356 = vmatpush1.msra.mxu0 0.0
        %8357 = vmatprep.subr.mxu0 0.0
        %8358 = vmatpush1.msra.mxu0 0.0
        %8359 = vmatprep.subr.mxu0 0.0
        %8360 = vmatpush1.msra.mxu0 0.0
        %8361 = vmatprep.subr.mxu0 0.0
        %8362 = vmatpush1.msra.mxu0 0.0
        %8363 = vmatprep.subr.mxu0 0.0
        %8364 = vmatpush1.msra.mxu0 0.0
        %8365 = vmatprep.subr.mxu0 0.0
        %8366 = vmatpush1.msra.mxu0 0.0
        %8367 = vmatprep.subr.mxu0 0.0
        %8368 = vmatpush1.msra.mxu0 0.0
        %8369 = vmatprep.subr.mxu0 0.0
        %8370 = vmatpush1.msra.mxu0 0.0
        %8371 = vmatprep.subr.mxu0 0.0
        %8372 = vmatpush1.msra.mxu0 0.0
        %8373 = vmatprep.subr.mxu0 0.0
        %8374 = vmatpush1.msra.mxu0 0.0
        %8375 = vmatprep.subr.mxu0 0.0
        %8376 = vmatpush1.msra.mxu0 0.0
        %8377 = vmatprep.subr.mxu0 0.0
        %8378 = vmatpush1.msra.mxu0 0.0
        %8379 = vmatprep.subr.mxu0 0.0
        %8380 = vmatpush1.msra.mxu0 %v8284
        %8381 = vmatprep.subr.mxu0 0.0
        %8382 = vmatpush1.msra.mxu0 %v8279
        %8383 = vmatprep.subr.mxu0 0.0
        %8384 = vmatpush1.msra.mxu0 %v8274
        %8385 = vmatprep.subr.mxu0 0.0
        %8386 = vmatpush2.msra.mxu0 0.0
        %8387 = vmatprep.subr.mxu0 0.0
        %8388 = vmatpush2.msra.mxu0 0.0
        %8389 = vmatprep.subr.mxu0 0.0
        %8390 = vmatpush2.msra.mxu0 0.0
        %8391 = vmatprep.subr.mxu0 0.0
        %8392 = vmatpush2.msra.mxu0 0.0
        %8393 = vmatprep.subr.mxu0 0.0
        %8394 = vmatpush2.msra.mxu0 0.0
        %8395 = vmatprep.subr.mxu0 0.0
        %8396 = vmatpush2.msra.mxu0 0.0
        %8397 = vmatprep.subr.mxu0 0.0
        %8398 = vmatpush2.msra.mxu0 0.0
        %8399 = vmatprep.subr.mxu0 0.0
        %8400 = vmatpush2.msra.mxu0 0.0
        %8401 = vmatprep.subr.mxu0 0.0
        %8402 = vmatpush2.msra.mxu0 0.0
        %8403 = vmatprep.subr.mxu0 0.0
        %8404 = vmatpush2.msra.mxu0 0.0
        %8405 = vmatprep.subr.mxu0 0.0
        %8406 = vmatpush2.msra.mxu0 0.0
        %8407 = vmatprep.subr.mxu0 0.0
        %8408 = vmatpush2.msra.mxu0 0.0
        %8409 = vmatprep.subr.mxu0 0.0
        %8410 = vmatpush2.msra.mxu0 0.0
        %8411 = vmatprep.subr.mxu0 0.0
        %8412 = vmatpush2.msra.mxu0 0.0
        %8413 = vmatprep.subr.mxu0 0.0
        %8414 = vmatpush2.msra.mxu0 0.0
        %8415 = vmatprep.subr.mxu0 0.0
        %8416 = vmatpush2.msra.mxu0 0.0
        %8417 = vmatprep.mubr.f32.mxu0 0.0
        %8418 = vmatmul.mubr.f32.gmra.mxu0 %v8348
        %v8419 = vpop.f32.mrf.mxu0
        %v8420 = vadd.f32 0.0, %v8419
        %v8421 = vpop.f32.mrf.mxu0
        %8422 = vmatprep.mubr.f32.mxu0 0.0
        %8423 = vmatmul.mubr.f32.gmra.mxu0 %v8351
        %v8424 = vpop.f32.mrf.mxu0
        %v8425 = vadd.f32 0.0, %v8424
        %v8426 = vpop.f32.mrf.mxu0
        %8427 = vdwg.mxu0
        %8428 = vmatprep.subr.mxu0 0.0
        %8429 = vmatpush1.msra.mxu0 0.0
        %8430 = vmatprep.subr.mxu0 0.0
        %8431 = vmatpush1.msra.mxu0 0.0
        %8432 = vmatprep.subr.mxu0 0.0
        %8433 = vmatpush1.msra.mxu0 0.0
        %8434 = vmatprep.subr.mxu0 0.0
        %8435 = vmatpush1.msra.mxu0 0.0
        %8436 = vmatprep.subr.mxu0 0.0
        %8437 = vmatpush1.msra.mxu0 0.0
        %8438 = vmatprep.subr.mxu0 0.0
        %8439 = vmatpush1.msra.mxu0 0.0
        %8440 = vmatprep.subr.mxu0 0.0
        %8441 = vmatpush1.msra.mxu0 0.0
        %8442 = vmatprep.subr.mxu0 0.0
        %8443 = vmatpush1.msra.mxu0 0.0
        %8444 = vmatprep.subr.mxu0 0.0
        %8445 = vmatpush1.msra.mxu0 0.0
        %8446 = vmatprep.subr.mxu0 0.0
        %8447 = vmatpush1.msra.mxu0 0.0
        %8448 = vmatprep.subr.mxu0 0.0
        %8449 = vmatpush1.msra.mxu0 0.0
        %8450 = vmatprep.subr.mxu0 0.0
        %8451 = vmatpush1.msra.mxu0 0.0
        %8452 = vmatprep.subr.mxu0 0.0
        %8453 = vmatpush1.msra.mxu0 0.0
        %8454 = vmatprep.subr.mxu0 0.0
        %8455 = vmatpush1.msra.mxu0 %v8299
        %8456 = vmatprep.subr.mxu0 0.0
        %8457 = vmatpush1.msra.mxu0 %v8294
        %8458 = vmatprep.subr.mxu0 0.0
        %8459 = vmatpush1.msra.mxu0 %v8289
        %8460 = vmatprep.subr.mxu0 0.0
        %8461 = vmatpush2.msra.mxu0 0.0
        %8462 = vmatprep.subr.mxu0 0.0
        %8463 = vmatpush2.msra.mxu0 0.0
        %8464 = vmatprep.subr.mxu0 0.0
        %8465 = vmatpush2.msra.mxu0 0.0
        %8466 = vmatprep.subr.mxu0 0.0
        %8467 = vmatpush2.msra.mxu0 0.0
        %8468 = vmatprep.subr.mxu0 0.0
        %8469 = vmatpush2.msra.mxu0 0.0
        %8470 = vmatprep.subr.mxu0 0.0
        %8471 = vmatpush2.msra.mxu0 0.0
        %8472 = vmatprep.subr.mxu0 0.0
        %8473 = vmatpush2.msra.mxu0 0.0
        %8474 = vmatprep.subr.mxu0 0.0
        %8475 = vmatpush2.msra.mxu0 0.0
        %8476 = vmatprep.subr.mxu0 0.0
        %8477 = vmatpush2.msra.mxu0 0.0
        %8478 = vmatprep.subr.mxu0 0.0
        %8479 = vmatpush2.msra.mxu0 0.0
        %8480 = vmatprep.subr.mxu0 0.0
        %8481 = vmatpush2.msra.mxu0 0.0
        %8482 = vmatprep.subr.mxu0 0.0
        %8483 = vmatpush2.msra.mxu0 0.0
        %8484 = vmatprep.subr.mxu0 0.0
        %8485 = vmatpush2.msra.mxu0 0.0
        %8486 = vmatprep.subr.mxu0 0.0
        %8487 = vmatpush2.msra.mxu0 0.0
        %8488 = vmatprep.subr.mxu0 0.0
        %8489 = vmatpush2.msra.mxu0 0.0
        %8490 = vmatprep.subr.mxu0 0.0
        %8491 = vmatpush2.msra.mxu0 0.0
        %8492 = vmatprep.mubr.f32.mxu0 0.0
        %8493 = vmatmul.mubr.f32.gmra.mxu0 %v8348
        %v8494 = vpop.f32.mrf.mxu0
        %v8495 = vadd.f32 0.0, %v8494
        %v8496 = vpop.f32.mrf.mxu0
        %8497 = vmatprep.mubr.f32.mxu0 0.0
        %8498 = vmatmul.mubr.f32.gmra.mxu0 %v8351
        %v8499 = vpop.f32.mrf.mxu0
        %v8500 = vadd.f32 0.0, %v8499
        %v8501 = vpop.f32.mrf.mxu0
        %8502 = vdwg.mxu0
        %8503 = vmatprep.subr.mxu0 0.0
        %8504 = vmatpush1.msra.mxu0 0.0
        %8505 = vmatprep.subr.mxu0 0.0
        %8506 = vmatpush1.msra.mxu0 0.0
        %8507 = vmatprep.subr.mxu0 0.0
        %8508 = vmatpush1.msra.mxu0 0.0
        %8509 = vmatprep.subr.mxu0 0.0
        %8510 = vmatpush1.msra.mxu0 0.0
        %8511 = vmatprep.subr.mxu0 0.0
        %8512 = vmatpush1.msra.mxu0 0.0
        %8513 = vmatprep.subr.mxu0 0.0
        %8514 = vmatpush1.msra.mxu0 0.0
        %8515 = vmatprep.subr.mxu0 0.0
        %8516 = vmatpush1.msra.mxu0 0.0
        %8517 = vmatprep.subr.mxu0 0.0
        %8518 = vmatpush1.msra.mxu0 0.0
        %8519 = vmatprep.subr.mxu0 0.0
        %8520 = vmatpush1.msra.mxu0 0.0
        %8521 = vmatprep.subr.mxu0 0.0
        %8522 = vmatpush1.msra.mxu0 0.0
        %8523 = vmatprep.subr.mxu0 0.0
        %8524 = vmatpush1.msra.mxu0 0.0
        %8525 = vmatprep.subr.mxu0 0.0
        %8526 = vmatpush1.msra.mxu0 0.0
        %8527 = vmatprep.subr.mxu0 0.0
        %8528 = vmatpush1.msra.mxu0 0.0
        %8529 = vmatprep.subr.mxu0 0.0
        %8530 = vmatpush1.msra.mxu0 %v8314
        %8531 = vmatprep.subr.mxu0 0.0
        %8532 = vmatpush1.msra.mxu0 %v8309
        %8533 = vmatprep.subr.mxu0 0.0
        %8534 = vmatpush1.msra.mxu0 %v8304
        %8535 = vmatprep.subr.mxu0 0.0
        %8536 = vmatpush2.msra.mxu0 0.0
        %8537 = vmatprep.subr.mxu0 0.0
        %8538 = vmatpush2.msra.mxu0 0.0
        %8539 = vmatprep.subr.mxu0 0.0
        %8540 = vmatpush2.msra.mxu0 0.0
        %8541 = vmatprep.subr.mxu0 0.0
        %8542 = vmatpush2.msra.mxu0 0.0
        %8543 = vmatprep.subr.mxu0 0.0
        %8544 = vmatpush2.msra.mxu0 0.0
        %8545 = vmatprep.subr.mxu0 0.0
        %8546 = vmatpush2.msra.mxu0 0.0
        %8547 = vmatprep.subr.mxu0 0.0
        %8548 = vmatpush2.msra.mxu0 0.0
        %8549 = vmatprep.subr.mxu0 0.0
        %8550 = vmatpush2.msra.mxu0 0.0
        %8551 = vmatprep.subr.mxu0 0.0
        %8552 = vmatpush2.msra.mxu0 0.0
        %8553 = vmatprep.subr.mxu0 0.0
        %8554 = vmatpush2.msra.mxu0 0.0
        %8555 = vmatprep.subr.mxu0 0.0
        %8556 = vmatpush2.msra.mxu0 0.0
        %8557 = vmatprep.subr.mxu0 0.0
        %8558 = vmatpush2.msra.mxu0 0.0
        %8559 = vmatprep.subr.mxu0 0.0
        %8560 = vmatpush2.msra.mxu0 0.0
        %8561 = vmatprep.subr.mxu0 0.0
        %8562 = vmatpush2.msra.mxu0 0.0
        %8563 = vmatprep.subr.mxu0 0.0
        %8564 = vmatpush2.msra.mxu0 0.0
        %8565 = vmatprep.subr.mxu0 0.0
        %8566 = vmatpush2.msra.mxu0 0.0
        %8567 = vmatprep.mubr.f32.mxu0 0.0
        %8568 = vmatmul.mubr.f32.gmra.mxu0 %v8348
        %v8569 = vpop.f32.mrf.mxu0
        %v8570 = vadd.f32 0.0, %v8569
        %v8571 = vpop.f32.mrf.mxu0
        %8572 = vmatprep.mubr.f32.mxu0 0.0
        %8573 = vmatmul.mubr.f32.gmra.mxu0 %v8351
        %v8574 = vpop.f32.mrf.mxu0
        %v8575 = vadd.f32 0.0, %v8574
        %v8576 = vpop.f32.mrf.mxu0
        %8577 = vdwg.mxu0
        %8578 = vmatprep.subr.mxu0 0.0
        %8579 = vmatpush1.msra.mxu0 0.0
        %8580 = vmatprep.subr.mxu0 0.0
        %8581 = vmatpush1.msra.mxu0 0.0
        %8582 = vmatprep.subr.mxu0 0.0
        %8583 = vmatpush1.msra.mxu0 0.0
        %8584 = vmatprep.subr.mxu0 0.0
        %8585 = vmatpush1.msra.mxu0 0.0
        %8586 = vmatprep.subr.mxu0 0.0
        %8587 = vmatpush1.msra.mxu0 0.0
        %8588 = vmatprep.subr.mxu0 0.0
        %8589 = vmatpush1.msra.mxu0 0.0
        %8590 = vmatprep.subr.mxu0 0.0
        %8591 = vmatpush1.msra.mxu0 0.0
        %8592 = vmatprep.subr.mxu0 0.0
        %8593 = vmatpush1.msra.mxu0 0.0
        %8594 = vmatprep.subr.mxu0 0.0
        %8595 = vmatpush1.msra.mxu0 0.0
        %8596 = vmatprep.subr.mxu0 0.0
        %8597 = vmatpush1.msra.mxu0 0.0
        %8598 = vmatprep.subr.mxu0 0.0
        %8599 = vmatpush1.msra.mxu0 0.0
        %8600 = vmatprep.subr.mxu0 0.0
        %8601 = vmatpush1.msra.mxu0 0.0
        %8602 = vmatprep.subr.mxu0 0.0
        %8603 = vmatpush1.msra.mxu0 0.0
        %8604 = vmatprep.subr.mxu0 0.0
        %8605 = vmatpush1.msra.mxu0 %v8329
        %8606 = vmatprep.subr.mxu0 0.0
        %8607 = vmatpush1.msra.mxu0 %v8324
        %8608 = vmatprep.subr.mxu0 0.0
        %8609 = vmatpush1.msra.mxu0 %v8319
        %8610 = vmatprep.subr.mxu0 0.0
        %8611 = vmatpush2.msra.mxu0 0.0
        %8612 = vmatprep.subr.mxu0 0.0
        %8613 = vmatpush2.msra.mxu0 0.0
        %8614 = vmatprep.subr.mxu0 0.0
        %8615 = vmatpush2.msra.mxu0 0.0
        %8616 = vmatprep.subr.mxu0 0.0
        %8617 = vmatpush2.msra.mxu0 0.0
        %8618 = vmatprep.subr.mxu0 0.0
        %8619 = vmatpush2.msra.mxu0 0.0
        %8620 = vmatprep.subr.mxu0 0.0
        %8621 = vmatpush2.msra.mxu0 0.0
        %8622 = vmatprep.subr.mxu0 0.0
        %8623 = vmatpush2.msra.mxu0 0.0
        %8624 = vmatprep.subr.mxu0 0.0
        %8625 = vmatpush2.msra.mxu0 0.0
        %8626 = vmatprep.subr.mxu0 0.0
        %8627 = vmatpush2.msra.mxu0 0.0
        %8628 = vmatprep.subr.mxu0 0.0
        %8629 = vmatpush2.msra.mxu0 0.0
        %8630 = vmatprep.subr.mxu0 0.0
        %8631 = vmatpush2.msra.mxu0 0.0
        %8632 = vmatprep.subr.mxu0 0.0
        %8633 = vmatpush2.msra.mxu0 0.0
        %8634 = vmatprep.subr.mxu0 0.0
        %8635 = vmatpush2.msra.mxu0 0.0
        %8636 = vmatprep.subr.mxu0 0.0
        %8637 = vmatpush2.msra.mxu0 0.0
        %8638 = vmatprep.subr.mxu0 0.0
        %8639 = vmatpush2.msra.mxu0 0.0
        %8640 = vmatprep.subr.mxu0 0.0
        %8641 = vmatpush2.msra.mxu0 0.0
        %8642 = vmatprep.mubr.f32.mxu0 0.0
        %8643 = vmatmul.mubr.f32.gmra.mxu0 %v8348
        %v8644 = vpop.f32.mrf.mxu0
        %v8645 = vadd.f32 0.0, %v8644
        %v8646 = vpop.f32.mrf.mxu0
        %8647 = vmatprep.mubr.f32.mxu0 0.0
        %8648 = vmatmul.mubr.f32.gmra.mxu0 %v8351
        %v8649 = vpop.f32.mrf.mxu0
        %v8650 = vadd.f32 0.0, %v8649
        %v8651 = vpop.f32.mrf.mxu0
        %8652 = vdwg.mxu0
        %8653 = vmatprep.subr.mxu0 0.0
        %8654 = vmatpush1.msra.mxu0 0.0
        %8655 = vmatprep.subr.mxu0 0.0
        %8656 = vmatpush1.msra.mxu0 0.0
        %8657 = vmatprep.subr.mxu0 0.0
        %8658 = vmatpush1.msra.mxu0 0.0
        %8659 = vmatprep.subr.mxu0 0.0
        %8660 = vmatpush1.msra.mxu0 0.0
        %8661 = vmatprep.subr.mxu0 0.0
        %8662 = vmatpush1.msra.mxu0 0.0
        %8663 = vmatprep.subr.mxu0 0.0
        %8664 = vmatpush1.msra.mxu0 0.0
        %8665 = vmatprep.subr.mxu0 0.0
        %8666 = vmatpush1.msra.mxu0 0.0
        %8667 = vmatprep.subr.mxu0 0.0
        %8668 = vmatpush1.msra.mxu0 0.0
        %8669 = vmatprep.subr.mxu0 0.0
        %8670 = vmatpush1.msra.mxu0 0.0
        %8671 = vmatprep.subr.mxu0 0.0
        %8672 = vmatpush1.msra.mxu0 0.0
        %8673 = vmatprep.subr.mxu0 0.0
        %8674 = vmatpush1.msra.mxu0 0.0
        %8675 = vmatprep.subr.mxu0 0.0
        %8676 = vmatpush1.msra.mxu0 0.0
        %8677 = vmatprep.subr.mxu0 0.0
        %8678 = vmatpush1.msra.mxu0 0.0
        %8679 = vmatprep.subr.mxu0 0.0
        %8680 = vmatpush1.msra.mxu0 %v8344
        %8681 = vmatprep.subr.mxu0 0.0
        %8682 = vmatpush1.msra.mxu0 %v8339
        %8683 = vmatprep.subr.mxu0 0.0
        %8684 = vmatpush1.msra.mxu0 %v8334
        %8685 = vmatprep.subr.mxu0 0.0
        %8686 = vmatpush2.msra.mxu0 0.0
        %8687 = vmatprep.subr.mxu0 0.0
        %8688 = vmatpush2.msra.mxu0 0.0
        %8689 = vmatprep.subr.mxu0 0.0
        %8690 = vmatpush2.msra.mxu0 0.0
        %8691 = vmatprep.subr.mxu0 0.0
        %8692 = vmatpush2.msra.mxu0 0.0
        %8693 = vmatprep.subr.mxu0 0.0
        %8694 = vmatpush2.msra.mxu0 0.0
        %8695 = vmatprep.subr.mxu0 0.0
        %8696 = vmatpush2.msra.mxu0 0.0
        %8697 = vmatprep.subr.mxu0 0.0
        %8698 = vmatpush2.msra.mxu0 0.0
        %8699 = vmatprep.subr.mxu0 0.0
        %8700 = vmatpush2.msra.mxu0 0.0
        %8701 = vmatprep.subr.mxu0 0.0
        %8702 = vmatpush2.msra.mxu0 0.0
        %8703 = vmatprep.subr.mxu0 0.0
        %8704 = vmatpush2.msra.mxu0 0.0
        %8705 = vmatprep.subr.mxu0 0.0
        %8706 = vmatpush2.msra.mxu0 0.0
        %8707 = vmatprep.subr.mxu0 0.0
        %8708 = vmatpush2.msra.mxu0 0.0
        %8709 = vmatprep.subr.mxu0 0.0
        %8710 = vmatpush2.msra.mxu0 0.0
        %8711 = vmatprep.subr.mxu0 0.0
        %8712 = vmatpush2.msra.mxu0 0.0
        %8713 = vmatprep.subr.mxu0 0.0
        %8714 = vmatpush2.msra.mxu0 0.0
        %8715 = vmatprep.subr.mxu0 0.0
        %8716 = vmatpush2.msra.mxu0 0.0
        %8717 = vmatprep.mubr.f32.mxu0 0.0
        %8718 = vmatmul.mubr.f32.gmra.mxu0 %v8348
        %v8719 = vpop.f32.mrf.mxu0
        %v8720 = vadd.f32 0.0, %v8719
        %v8721 = vpop.f32.mrf.mxu0
        %8722 = vmatprep.mubr.f32.mxu0 0.0
        %8723 = vmatmul.mubr.f32.gmra.mxu0 %v8351
        %v8724 = vpop.f32.mrf.mxu0
        %v8725 = vadd.f32 0.0, %v8724
        %v8726 = vpop.f32.mrf.mxu0
        %8727 = vdwg.mxu0
        %v8728 = vmul.f32 %v8420, %v8420
        %v8729 = vmul.f32 %v8425, %v8425
        %v8730 = vsub.f32 %v8570, %v8728
        %v8731 = vsub.f32 %v8575, %v8729
        %v8732 = vmul.f32 %v8495, %v8495
        %v8733 = vmul.f32 %v8500, %v8500
        %v8734 = vsub.f32 %v8645, %v8732
        %v8735 = vsub.f32 %v8650, %v8733
        %v8736 = vmul.f32 %v8420, %v8495
        %v8737 = vmul.f32 %v8425, %v8500
        %v8738 = vsub.f32 %v8720, %v8736
        %v8739 = vsub.f32 %v8725, %v8737
        %v8740 = vmul.f32 %v8738, 2.0
        %v8741 = vmul.f32 %v8739, 2.0
        %v8742 = vadd.f32 %v8740, 0.0009
        %v8743 = vadd.f32 %v8741, 0.0009
        %v8744 = vadd.f32 %v8730, %v8734
        %v8745 = vadd.f32 %v8731, %v8735
        %v8746 = vadd.f32 %v8744, 0.0009
        %v8747 = vadd.f32 %v8745, 0.0009
        %v8748 = vrcp.pop %v8746
        %v8749 = vmul.f32 %v8742, %v8748
        %v8750 = vrcp.pop %v8747
        %v8751 = vmul.f32 %v8743, %v8750
        %v8752 = vsel %vm4312, %v8751, 0.0
        %v8753 = vadd.f32 %v8749, %v8752
        %8754 = vadd.xlane.f32.xlu0 %v8753
        %v8755 = vpop.xlane.xlu0 %8754
        %v8756 = vrot.slane %v8755, 4
        %v8757 = vadd.f32 %v8755, %v8756
        %v8758 = vrot.slane %v8757, 2
        %v8759 = vadd.f32 %v8757, %v8758
        %v8760 = vrot.slane %v8759, 1
        %v8761 = vadd.f32 %v8759, %v8760
        %s8762 = vtos %v8761
        %s8763 = ssub.f32 %s8762, 1596.0
        %s8764 = smul.f32 %s8763, 0.0051020407
        %s8765 = smax.f32 %s8764, 0.0
        %v8766 = vld [vmem:[#allocation30] sm:$0xff]
        %v8767 = vld [vmem:[#allocation30 + $0x8] sm:$0xf]
        %v8768 = vld [vmem:[#allocation31] sm:$0xff]
        %v8769 = vld [vmem:[#allocation31 + $0x8] sm:$0xff]
        %v8770 = vld [vmem:[#allocation31 + $0x10] sm:$0xff]
        %8771 = vmatprep.subr.mxu0 0.0
        %8772 = vmatpush1.msra.mxu0 0.0
        %8773 = vmatprep.subr.mxu0 0.0
        %8774 = vmatpush1.msra.mxu0 0.0
        %8775 = vmatprep.subr.mxu0 0.0
        %8776 = vmatpush1.msra.mxu0 0.0
        %8777 = vmatprep.subr.mxu0 0.0
        %8778 = vmatpush1.msra.mxu0 0.0
        %8779 = vmatprep.subr.mxu0 0.0
        %8780 = vmatpush1.msra.mxu0 0.0
        %8781 = vmatprep.subr.mxu0 0.0
        %8782 = vmatpush1.msra.mxu0 0.0
        %8783 = vmatprep.subr.mxu0 0.0
        %8784 = vmatpush1.msra.mxu0 0.0
        %8785 = vmatprep.subr.mxu0 0.0
        %8786 = vmatpush1.msra.mxu0 0.0
        %8787 = vmatprep.subr.mxu0 0.0
        %8788 = vmatpush1.msra.mxu0 0.0
        %8789 = vmatprep.subr.mxu0 0.0
        %8790 = vmatpush1.msra.mxu0 0.0
        %8791 = vmatprep.subr.mxu0 0.0
        %8792 = vmatpush1.msra.mxu0 0.0
        %8793 = vmatprep.subr.mxu0 0.0
        %8794 = vmatpush1.msra.mxu0 0.0
        %8795 = vmatprep.subr.mxu0 0.0
        %8796 = vmatpush1.msra.mxu0 0.0
        %8797 = vmatprep.subr.mxu0 0.0
        %8798 = vmatpush1.msra.mxu0 %v8770
        %8799 = vmatprep.subr.mxu0 0.0
        %8800 = vmatpush1.msra.mxu0 %v8769
        %8801 = vmatprep.subr.mxu0 0.0
        %8802 = vmatpush1.msra.mxu0 %v8768
        %8803 = vmatprep.subr.mxu0 0.0
        %8804 = vmatpush2.msra.mxu0 0.0
        %8805 = vmatprep.subr.mxu0 0.0
        %8806 = vmatpush2.msra.mxu0 0.0
        %8807 = vmatprep.subr.mxu0 0.0
        %8808 = vmatpush2.msra.mxu0 0.0
        %8809 = vmatprep.subr.mxu0 0.0
        %8810 = vmatpush2.msra.mxu0 0.0
        %8811 = vmatprep.subr.mxu0 0.0
        %8812 = vmatpush2.msra.mxu0 0.0
        %8813 = vmatprep.subr.mxu0 0.0
        %8814 = vmatpush2.msra.mxu0 0.0
        %8815 = vmatprep.subr.mxu0 0.0
        %8816 = vmatpush2.msra.mxu0 0.0
        %8817 = vmatprep.subr.mxu0 0.0
        %8818 = vmatpush2.msra.mxu0 0.0
        %8819 = vmatprep.subr.mxu0 0.0
        %8820 = vmatpush2.msra.mxu0 0.0
        %8821 = vmatprep.subr.mxu0 0.0
        %8822 = vmatpush2.msra.mxu0 0.0
        %8823 = vmatprep.subr.mxu0 0.0
        %8824 = vmatpush2.msra.mxu0 0.0
        %8825 = vmatprep.subr.mxu0 0.0
        %8826 = vmatpush2.msra.mxu0 0.0
        %8827 = vmatprep.subr.mxu0 0.0
        %8828 = vmatpush2.msra.mxu0 0.0
        %8829 = vmatprep.subr.mxu0 0.0
        %8830 = vmatpush2.msra.mxu0 0.0
        %8831 = vmatprep.subr.mxu0 0.0
        %8832 = vmatpush2.msra.mxu0 0.0
        %8833 = vmatprep.subr.mxu0 0.0
        %8834 = vmatpush2.msra.mxu0 0.0
        %8835 = vmatprep.mubr.f32.mxu0 0.0
        %8836 = vmatmul.mubr.f32.gmra.mxu0 %v8163
        %v8837 = vpop.f32.mrf.mxu0
        %v8838 = vadd.f32 0.0, %v8837
        %v8839 = vpop.f32.mrf.mxu0
        %8840 = vmatprep.mubr.f32.mxu0 0.0
        %8841 = vmatmul.mubr.f32.gmra.mxu0 %v8166
        %v8842 = vpop.f32.mrf.mxu0
        %v8843 = vadd.f32 0.0, %v8842
        %v8844 = vpop.f32.mrf.mxu0
        %8845 = vmatprep.mubr.f32.mxu0 0.0
        %8846 = vmatmul.mubr.f32.gmra.mxu0 %v8169
        %v8847 = vpop.f32.mrf.mxu0
        %v8848 = vadd.f32 0.0, %v8847
        %v8849 = vpop.f32.mrf.mxu0
        %8850 = vdwg.mxu0
        %v8852 = vsel %vm8161, %v8766, 0
        %v8855 = vsel %vm8161, %v8767, 0
        %8857 = vmatprep.subr.mxu0 0.0
        %8858 = vmatpush1.msra.mxu0 0.0
        %8859 = vmatprep.subr.mxu0 0.0
        %8860 = vmatpush1.msra.mxu0 0.0
        %8861 = vmatprep.subr.mxu0 0.0
        %8862 = vmatpush1.msra.mxu0 0.0
        %8863 = vmatprep.subr.mxu0 0.0
        %8864 = vmatpush1.msra.mxu0 0.0
        %8865 = vmatprep.subr.mxu0 0.0
        %8866 = vmatpush1.msra.mxu0 0.0
        %8867 = vmatprep.subr.mxu0 0.0
        %8868 = vmatpush1.msra.mxu0 0.0
        %8869 = vmatprep.subr.mxu0 0.0
        %8870 = vmatpush1.msra.mxu0 0.0
        %8871 = vmatprep.subr.mxu0 0.0
        %8872 = vmatpush1.msra.mxu0 0.0
        %8873 = vmatprep.subr.mxu0 0.0
        %8874 = vmatpush1.msra.mxu0 0.0
        %8875 = vmatprep.subr.mxu0 0.0
        %8876 = vmatpush1.msra.mxu0 0.0
        %8877 = vmatprep.subr.mxu0 0.0
        %8878 = vmatpush1.msra.mxu0 0.0
        %8879 = vmatprep.subr.mxu0 0.0
        %8880 = vmatpush1.msra.mxu0 0.0
        %8881 = vmatprep.subr.mxu0 0.0
        %8882 = vmatpush1.msra.mxu0 0.0
        %8883 = vmatprep.subr.mxu0 0.0
        %8884 = vmatpush1.msra.mxu0 %v8848
        %8885 = vmatprep.subr.mxu0 0.0
        %8886 = vmatpush1.msra.mxu0 %v8843
        %8887 = vmatprep.subr.mxu0 0.0
        %8888 = vmatpush1.msra.mxu0 %v8838
        %8889 = vmatprep.subr.mxu0 0.0
        %8890 = vmatpush2.msra.mxu0 0.0
        %8891 = vmatprep.subr.mxu0 0.0
        %8892 = vmatpush2.msra.mxu0 0.0
        %8893 = vmatprep.subr.mxu0 0.0
        %8894 = vmatpush2.msra.mxu0 0.0
        %8895 = vmatprep.subr.mxu0 0.0
        %8896 = vmatpush2.msra.mxu0 0.0
        %8897 = vmatprep.subr.mxu0 0.0
        %8898 = vmatpush2.msra.mxu0 0.0
        %8899 = vmatprep.subr.mxu0 0.0
        %8900 = vmatpush2.msra.mxu0 0.0
        %8901 = vmatprep.subr.mxu0 0.0
        %8902 = vmatpush2.msra.mxu0 0.0
        %8903 = vmatprep.subr.mxu0 0.0
        %8904 = vmatpush2.msra.mxu0 0.0
        %8905 = vmatprep.subr.mxu0 0.0
        %8906 = vmatpush2.msra.mxu0 0.0
        %8907 = vmatprep.subr.mxu0 0.0
        %8908 = vmatpush2.msra.mxu0 0.0
        %8909 = vmatprep.subr.mxu0 0.0
        %8910 = vmatpush2.msra.mxu0 0.0
        %8911 = vmatprep.subr.mxu0 0.0
        %8912 = vmatpush2.msra.mxu0 0.0
        %8913 = vmatprep.subr.mxu0 0.0
        %8914 = vmatpush2.msra.mxu0 0.0
        %8915 = vmatprep.subr.mxu0 0.0
        %8916 = vmatpush2.msra.mxu0 0.0
        %8917 = vmatprep.subr.mxu0 0.0
        %8918 = vmatpush2.msra.mxu0 0.0
        %8919 = vmatprep.subr.mxu0 0.0
        %8920 = vmatpush2.msra.mxu0 0.0
        %8921 = vmatprep.mubr.f32.mxu0 0.0
        %8922 = vmatmul.mubr.f32.gmra.mxu0 %v8852
        %v8923 = vpop.f32.mrf.mxu0
        %v8924 = vadd.f32 0.0, %v8923
        %v8925 = vpop.f32.mrf.mxu0
        %8926 = vmatprep.mubr.f32.mxu0 0.0
        %8927 = vmatmul.mubr.f32.gmra.mxu0 %v8855
        %v8928 = vpop.f32.mrf.mxu0
        %v8929 = vadd.f32 0.0, %v8928
        %v8930 = vpop.f32.mrf.mxu0
        %8931 = vdwg.mxu0
        %8932 = vmatprep.subr.mxu0 0.0
        %8933 = vmatpush1.msra.mxu0 0.0
        %8934 = vmatprep.subr.mxu0 0.0
        %8935 = vmatpush1.msra.mxu0 0.0
        %8936 = vmatprep.subr.mxu0 0.0
        %8937 = vmatpush1.msra.mxu0 0.0
        %8938 = vmatprep.subr.mxu0 0.0
        %8939 = vmatpush1.msra.mxu0 0.0
        %8940 = vmatprep.subr.mxu0 0.0
        %8941 = vmatpush1.msra.mxu0 0.0
        %8942 = vmatprep.subr.mxu0 0.0
        %8943 = vmatpush1.msra.mxu0 0.0
        %8944 = vmatprep.subr.mxu0 0.0
        %8945 = vmatpush1.msra.mxu0 0.0
        %8946 = vmatprep.subr.mxu0 0.0
        %8947 = vmatpush1.msra.mxu0 0.0
        %8948 = vmatprep.subr.mxu0 0.0
        %8949 = vmatpush1.msra.mxu0 0.0
        %8950 = vmatprep.subr.mxu0 0.0
        %8951 = vmatpush1.msra.mxu0 0.0
        %8952 = vmatprep.subr.mxu0 0.0
        %8953 = vmatpush1.msra.mxu0 0.0
        %8954 = vmatprep.subr.mxu0 0.0
        %8955 = vmatpush1.msra.mxu0 0.0
        %8956 = vmatprep.subr.mxu0 0.0
        %8957 = vmatpush1.msra.mxu0 0.0
        %8958 = vmatprep.subr.mxu0 0.0
        %8959 = vmatpush1.msra.mxu0 %v8770
        %8960 = vmatprep.subr.mxu0 0.0
        %8961 = vmatpush1.msra.mxu0 %v8769
        %8962 = vmatprep.subr.mxu0 0.0
        %8963 = vmatpush1.msra.mxu0 %v8768
        %8964 = vmatprep.subr.mxu0 0.0
        %8965 = vmatpush2.msra.mxu0 0.0
        %8966 = vmatprep.subr.mxu0 0.0
        %8967 = vmatpush2.msra.mxu0 0.0
        %8968 = vmatprep.subr.mxu0 0.0
        %8969 = vmatpush2.msra.mxu0 0.0
        %8970 = vmatprep.subr.mxu0 0.0
        %8971 = vmatpush2.msra.mxu0 0.0
        %8972 = vmatprep.subr.mxu0 0.0
        %8973 = vmatpush2.msra.mxu0 0.0
        %8974 = vmatprep.subr.mxu0 0.0
        %8975 = vmatpush2.msra.mxu0 0.0
        %8976 = vmatprep.subr.mxu0 0.0
        %8977 = vmatpush2.msra.mxu0 0.0
        %8978 = vmatprep.subr.mxu0 0.0
        %8979 = vmatpush2.msra.mxu0 0.0
        %8980 = vmatprep.subr.mxu0 0.0
        %8981 = vmatpush2.msra.mxu0 0.0
        %8982 = vmatprep.subr.mxu0 0.0
        %8983 = vmatpush2.msra.mxu0 0.0
        %8984 = vmatprep.subr.mxu0 0.0
        %8985 = vmatpush2.msra.mxu0 0.0
        %8986 = vmatprep.subr.mxu0 0.0
        %8987 = vmatpush2.msra.mxu0 0.0
        %8988 = vmatprep.subr.mxu0 0.0
        %8989 = vmatpush2.msra.mxu0 0.0
        %8990 = vmatprep.subr.mxu0 0.0
        %8991 = vmatpush2.msra.mxu0 0.0
        %8992 = vmatprep.subr.mxu0 0.0
        %8993 = vmatpush2.msra.mxu0 0.0
        %8994 = vmatprep.subr.mxu0 0.0
        %8995 = vmatpush2.msra.mxu0 0.0
        %8996 = vmatprep.mubr.f32.mxu0 0.0
        %8997 = vmatmul.mubr.f32.gmra.mxu0 %v8172
        %v8998 = vpop.f32.mrf.mxu0
        %v8999 = vadd.f32 0.0, %v8998
        %v9000 = vpop.f32.mrf.mxu0
        %9001 = vmatprep.mubr.f32.mxu0 0.0
        %9002 = vmatmul.mubr.f32.gmra.mxu0 %v8175
        %v9003 = vpop.f32.mrf.mxu0
        %v9004 = vadd.f32 0.0, %v9003
        %v9005 = vpop.f32.mrf.mxu0
        %9006 = vmatprep.mubr.f32.mxu0 0.0
        %9007 = vmatmul.mubr.f32.gmra.mxu0 %v8178
        %v9008 = vpop.f32.mrf.mxu0
        %v9009 = vadd.f32 0.0, %v9008
        %v9010 = vpop.f32.mrf.mxu0
        %9011 = vdwg.mxu0
        %9012 = vmatprep.subr.mxu0 0.0
        %9013 = vmatpush1.msra.mxu0 0.0
        %9014 = vmatprep.subr.mxu0 0.0
        %9015 = vmatpush1.msra.mxu0 0.0
        %9016 = vmatprep.subr.mxu0 0.0
        %9017 = vmatpush1.msra.mxu0 0.0
        %9018 = vmatprep.subr.mxu0 0.0
        %9019 = vmatpush1.msra.mxu0 0.0
        %9020 = vmatprep.subr.mxu0 0.0
        %9021 = vmatpush1.msra.mxu0 0.0
        %9022 = vmatprep.subr.mxu0 0.0
        %9023 = vmatpush1.msra.mxu0 0.0
        %9024 = vmatprep.subr.mxu0 0.0
        %9025 = vmatpush1.msra.mxu0 0.0
        %9026 = vmatprep.subr.mxu0 0.0
        %9027 = vmatpush1.msra.mxu0 0.0
        %9028 = vmatprep.subr.mxu0 0.0
        %9029 = vmatpush1.msra.mxu0 0.0
        %9030 = vmatprep.subr.mxu0 0.0
        %9031 = vmatpush1.msra.mxu0 0.0
        %9032 = vmatprep.subr.mxu0 0.0
        %9033 = vmatpush1.msra.mxu0 0.0
        %9034 = vmatprep.subr.mxu0 0.0
        %9035 = vmatpush1.msra.mxu0 0.0
        %9036 = vmatprep.subr.mxu0 0.0
        %9037 = vmatpush1.msra.mxu0 0.0
        %9038 = vmatprep.subr.mxu0 0.0
        %9039 = vmatpush1.msra.mxu0 %v9009
        %9040 = vmatprep.subr.mxu0 0.0
        %9041 = vmatpush1.msra.mxu0 %v9004
        %9042 = vmatprep.subr.mxu0 0.0
        %9043 = vmatpush1.msra.mxu0 %v8999
        %9044 = vmatprep.subr.mxu0 0.0
        %9045 = vmatpush2.msra.mxu0 0.0
        %9046 = vmatprep.subr.mxu0 0.0
        %9047 = vmatpush2.msra.mxu0 0.0
        %9048 = vmatprep.subr.mxu0 0.0
        %9049 = vmatpush2.msra.mxu0 0.0
        %9050 = vmatprep.subr.mxu0 0.0
        %9051 = vmatpush2.msra.mxu0 0.0
        %9052 = vmatprep.subr.mxu0 0.0
        %9053 = vmatpush2.msra.mxu0 0.0
        %9054 = vmatprep.subr.mxu0 0.0
        %9055 = vmatpush2.msra.mxu0 0.0
        %9056 = vmatprep.subr.mxu0 0.0
        %9057 = vmatpush2.msra.mxu0 0.0
        %9058 = vmatprep.subr.mxu0 0.0
        %9059 = vmatpush2.msra.mxu0 0.0
        %9060 = vmatprep.subr.mxu0 0.0
        %9061 = vmatpush2.msra.mxu0 0.0
        %9062 = vmatprep.subr.mxu0 0.0
        %9063 = vmatpush2.msra.mxu0 0.0
        %9064 = vmatprep.subr.mxu0 0.0
        %9065 = vmatpush2.msra.mxu0 0.0
        %9066 = vmatprep.subr.mxu0 0.0
        %9067 = vmatpush2.msra.mxu0 0.0
        %9068 = vmatprep.subr.mxu0 0.0
        %9069 = vmatpush2.msra.mxu0 0.0
        %9070 = vmatprep.subr.mxu0 0.0
        %9071 = vmatpush2.msra.mxu0 0.0
        %9072 = vmatprep.subr.mxu0 0.0
        %9073 = vmatpush2.msra.mxu0 0.0
        %9074 = vmatprep.subr.mxu0 0.0
        %9075 = vmatpush2.msra.mxu0 0.0
        %9076 = vmatprep.mubr.f32.mxu0 0.0
        %9077 = vmatmul.mubr.f32.gmra.mxu0 %v8852
        %v9078 = vpop.f32.mrf.mxu0
        %v9079 = vadd.f32 0.0, %v9078
        %v9080 = vpop.f32.mrf.mxu0
        %9081 = vmatprep.mubr.f32.mxu0 0.0
        %9082 = vmatmul.mubr.f32.gmra.mxu0 %v8855
        %v9083 = vpop.f32.mrf.mxu0
        %v9084 = vadd.f32 0.0, %v9083
        %v9085 = vpop.f32.mrf.mxu0
        %9086 = vdwg.mxu0
        %v9087 = vld [vmem:[#allocation18] sm:$0x3]
        %v9088 = vld [vmem:[#allocation19] sm:$0xff]
        %v9089 = vld [vmem:[#allocation19 + $0x8] sm:$0xf]
        %vm9090 = vcmask 97280
        %v9092 = vsel %vm9090, %v8924, 0
        %v9095 = vsel %vm9090, %v8929, 0
        %vm9097 = vcmask 1043456
        %v9099 = vsel %vm9097, %v9089, 0
        %9101 = vmatprep.subr.mxu0 0.0
        %9102 = vmatpush1.msra.mxu0 0.0
        %9103 = vmatprep.subr.mxu0 0.0
        %9104 = vmatpush1.msra.mxu0 0.0
        %9105 = vmatprep.subr.mxu0 0.0
        %9106 = vmatpush1.msra.mxu0 0.0
        %9107 = vmatprep.subr.mxu0 0.0
        %9108 = vmatpush1.msra.mxu0 0.0
        %9109 = vmatprep.subr.mxu0 0.0
        %9110 = vmatpush1.msra.mxu0 0.0
        %9111 = vmatprep.subr.mxu0 0.0
        %9112 = vmatpush1.msra.mxu0 0.0
        %9113 = vmatprep.subr.mxu0 0.0
        %9114 = vmatpush1.msra.mxu0 0.0
        %9115 = vmatprep.subr.mxu0 0.0
        %9116 = vmatpush1.msra.mxu0 0.0
        %9117 = vmatprep.subr.mxu0 0.0
        %9118 = vmatpush1.msra.mxu0 0.0
        %9119 = vmatprep.subr.mxu0 0.0
        %9120 = vmatpush1.msra.mxu0 0.0
        %9121 = vmatprep.subr.mxu0 0.0
        %9122 = vmatpush1.msra.mxu0 0.0
        %9123 = vmatprep.subr.mxu0 0.0
        %9124 = vmatpush1.msra.mxu0 0.0
        %9125 = vmatprep.subr.mxu0 0.0
        %9126 = vmatpush1.msra.mxu0 0.0
        %9127 = vmatprep.subr.mxu0 0.0
        %9128 = vmatpush1.msra.mxu0 0.0
        %9129 = vmatprep.subr.mxu0 0.0
        %9130 = vmatpush1.msra.mxu0 %v9099
        %9131 = vmatprep.subr.mxu0 0.0
        %9132 = vmatpush1.msra.mxu0 %v9088
        %9133 = vmatprep.subr.mxu0 0.0
        %9134 = vmatpush2.msra.mxu0 0.0
        %9135 = vmatprep.subr.mxu0 0.0
        %9136 = vmatpush2.msra.mxu0 0.0
        %9137 = vmatprep.subr.mxu0 0.0
        %9138 = vmatpush2.msra.mxu0 0.0
        %9139 = vmatprep.subr.mxu0 0.0
        %9140 = vmatpush2.msra.mxu0 0.0
        %9141 = vmatprep.subr.mxu0 0.0
        %9142 = vmatpush2.msra.mxu0 0.0
        %9143 = vmatprep.subr.mxu0 0.0
        %9144 = vmatpush2.msra.mxu0 0.0
        %9145 = vmatprep.subr.mxu0 0.0
        %9146 = vmatpush2.msra.mxu0 0.0
        %9147 = vmatprep.subr.mxu0 0.0
        %9148 = vmatpush2.msra.mxu0 0.0
        %9149 = vmatprep.subr.mxu0 0.0
        %9150 = vmatpush2.msra.mxu0 0.0
        %9151 = vmatprep.subr.mxu0 0.0
        %9152 = vmatpush2.msra.mxu0 0.0
        %9153 = vmatprep.subr.mxu0 0.0
        %9154 = vmatpush2.msra.mxu0 0.0
        %9155 = vmatprep.subr.mxu0 0.0
        %9156 = vmatpush2.msra.mxu0 0.0
        %9157 = vmatprep.subr.mxu0 0.0
        %9158 = vmatpush2.msra.mxu0 0.0
        %9159 = vmatprep.subr.mxu0 0.0
        %9160 = vmatpush2.msra.mxu0 0.0
        %9161 = vmatprep.subr.mxu0 0.0
        %9162 = vmatpush2.msra.mxu0 0.0
        %9163 = vmatprep.subr.mxu0 0.0
        %9164 = vmatpush2.msra.mxu0 0.0
        %9165 = vmatprep.mubr.f32.mxu0 0.0
        %9166 = vmatmul.mubr.f32.gmra.mxu0 %v9092
        %v9167 = vpop.f32.mrf.mxu0
        %v9168 = vadd.f32 0.0, %v9167
        %v9169 = vpop.f32.mrf.mxu0
        %9170 = vmatprep.mubr.f32.mxu0 0.0
        %9171 = vmatmul.mubr.f32.gmra.mxu0 %v9095
        %v9172 = vpop.f32.mrf.mxu0
        %v9173 = vadd.f32 0.0, %v9172
        %v9174 = vpop.f32.mrf.mxu0
        %9175 = vdwg.mxu0
        %v9177 = vsel %vm9090, %v9087, 0
        %v9180 = vsel %vm9097, %v9173, 0
        %9182 = vmatprep.subr.mxu0 0.0
        %9183 = vmatpush1.msra.mxu0 0.0
        %9184 = vmatprep.subr.mxu0 0.0
        %9185 = vmatpush1.msra.mxu0 0.0
        %9186 = vmatprep.subr.mxu0 0.0
        %9187 = vmatpush1.msra.mxu0 0.0
        %9188 = vmatprep.subr.mxu0 0.0
        %9189 = vmatpush1.msra.mxu0 0.0
        %9190 = vmatprep.subr.mxu0 0.0
        %9191 = vmatpush1.msra.mxu0 0.0
        %9192 = vmatprep.subr.mxu0 0.0
        %9193 = vmatpush1.msra.mxu0 0.0
        %9194 = vmatprep.subr.mxu0 0.0
        %9195 = vmatpush1.msra.mxu0 0.0
        %9196 = vmatprep.subr.mxu0 0.0
        %9197 = vmatpush1.msra.mxu0 0.0
        %9198 = vmatprep.subr.mxu0 0.0
        %9199 = vmatpush1.msra.mxu0 0.0
        %9200 = vmatprep.subr.mxu0 0.0
        %9201 = vmatpush1.msra.mxu0 0.0
        %9202 = vmatprep.subr.mxu0 0.0
        %9203 = vmatpush1.msra.mxu0 0.0
        %9204 = vmatprep.subr.mxu0 0.0
        %9205 = vmatpush1.msra.mxu0 0.0
        %9206 = vmatprep.subr.mxu0 0.0
        %9207 = vmatpush1.msra.mxu0 0.0
        %9208 = vmatprep.subr.mxu0 0.0
        %9209 = vmatpush1.msra.mxu0 0.0
        %9210 = vmatprep.subr.mxu0 0.0
        %9211 = vmatpush1.msra.mxu0 %v9180
        %9212 = vmatprep.subr.mxu0 0.0
        %9213 = vmatpush1.msra.mxu0 %v9168
        %9214 = vmatprep.subr.mxu0 0.0
        %9215 = vmatpush2.msra.mxu0 0.0
        %9216 = vmatprep.subr.mxu0 0.0
        %9217 = vmatpush2.msra.mxu0 0.0
        %9218 = vmatprep.subr.mxu0 0.0
        %9219 = vmatpush2.msra.mxu0 0.0
        %9220 = vmatprep.subr.mxu0 0.0
        %9221 = vmatpush2.msra.mxu0 0.0
        %9222 = vmatprep.subr.mxu0 0.0
        %9223 = vmatpush2.msra.mxu0 0.0
        %9224 = vmatprep.subr.mxu0 0.0
        %9225 = vmatpush2.msra.mxu0 0.0
        %9226 = vmatprep.subr.mxu0 0.0
        %9227 = vmatpush2.msra.mxu0 0.0
        %9228 = vmatprep.subr.mxu0 0.0
        %9229 = vmatpush2.msra.mxu0 0.0
        %9230 = vmatprep.subr.mxu0 0.0
        %9231 = vmatpush2.msra.mxu0 0.0
        %9232 = vmatprep.subr.mxu0 0.0
        %9233 = vmatpush2.msra.mxu0 0.0
        %9234 = vmatprep.subr.mxu0 0.0
        %9235 = vmatpush2.msra.mxu0 0.0
        %9236 = vmatprep.subr.mxu0 0.0
        %9237 = vmatpush2.msra.mxu0 0.0
        %9238 = vmatprep.subr.mxu0 0.0
        %9239 = vmatpush2.msra.mxu0 0.0
        %9240 = vmatprep.subr.mxu0 0.0
        %9241 = vmatpush2.msra.mxu0 0.0
        %9242 = vmatprep.subr.mxu0 0.0
        %9243 = vmatpush2.msra.mxu0 0.0
        %9244 = vmatprep.subr.mxu0 0.0
        %9245 = vmatpush2.msra.mxu0 0.0
        %9246 = vmatprep.mubr.f32.mxu0 0.0
        %9247 = vmatmul.mubr.f32.gmra.mxu0 %v9177
        %v9248 = vpop.f32.mrf.mxu0
        %v9249 = vadd.f32 0.0, %v9248
        %v9250 = vpop.f32.mrf.mxu0
        %9251 = vdwg.mxu0
        %v9253 = vsel %vm9090, %v9079, 0
        %v9256 = vsel %vm9090, %v9084, 0
        %9258 = vmatprep.subr.mxu0 0.0
        %9259 = vmatpush1.msra.mxu0 0.0
        %9260 = vmatprep.subr.mxu0 0.0
        %9261 = vmatpush1.msra.mxu0 0.0
        %9262 = vmatprep.subr.mxu0 0.0
        %9263 = vmatpush1.msra.mxu0 0.0
        %9264 = vmatprep.subr.mxu0 0.0
        %9265 = vmatpush1.msra.mxu0 0.0
        %9266 = vmatprep.subr.mxu0 0.0
        %9267 = vmatpush1.msra.mxu0 0.0
        %9268 = vmatprep.subr.mxu0 0.0
        %9269 = vmatpush1.msra.mxu0 0.0
        %9270 = vmatprep.subr.mxu0 0.0
        %9271 = vmatpush1.msra.mxu0 0.0
        %9272 = vmatprep.subr.mxu0 0.0
        %9273 = vmatpush1.msra.mxu0 0.0
        %9274 = vmatprep.subr.mxu0 0.0
        %9275 = vmatpush1.msra.mxu0 0.0
        %9276 = vmatprep.subr.mxu0 0.0
        %9277 = vmatpush1.msra.mxu0 0.0
        %9278 = vmatprep.subr.mxu0 0.0
        %9279 = vmatpush1.msra.mxu0 0.0
        %9280 = vmatprep.subr.mxu0 0.0
        %9281 = vmatpush1.msra.mxu0 0.0
        %9282 = vmatprep.subr.mxu0 0.0
        %9283 = vmatpush1.msra.mxu0 0.0
        %9284 = vmatprep.subr.mxu0 0.0
        %9285 = vmatpush1.msra.mxu0 0.0
        %9286 = vmatprep.subr.mxu0 0.0
        %9287 = vmatpush1.msra.mxu0 %v9099
        %9288 = vmatprep.subr.mxu0 0.0
        %9289 = vmatpush1.msra.mxu0 %v9088
        %9290 = vmatprep.subr.mxu0 0.0
        %9291 = vmatpush2.msra.mxu0 0.0
        %9292 = vmatprep.subr.mxu0 0.0
        %9293 = vmatpush2.msra.mxu0 0.0
        %9294 = vmatprep.subr.mxu0 0.0
        %9295 = vmatpush2.msra.mxu0 0.0
        %9296 = vmatprep.subr.mxu0 0.0
        %9297 = vmatpush2.msra.mxu0 0.0
        %9298 = vmatprep.subr.mxu0 0.0
        %9299 = vmatpush2.msra.mxu0 0.0
        %9300 = vmatprep.subr.mxu0 0.0
        %9301 = vmatpush2.msra.mxu0 0.0
        %9302 = vmatprep.subr.mxu0 0.0
        %9303 = vmatpush2.msra.mxu0 0.0
        %9304 = vmatprep.subr.mxu0 0.0
        %9305 = vmatpush2.msra.mxu0 0.0
        %9306 = vmatprep.subr.mxu0 0.0
        %9307 = vmatpush2.msra.mxu0 0.0
        %9308 = vmatprep.subr.mxu0 0.0
        %9309 = vmatpush2.msra.mxu0 0.0
        %9310 = vmatprep.subr.mxu0 0.0
        %9311 = vmatpush2.msra.mxu0 0.0
        %9312 = vmatprep.subr.mxu0 0.0
        %9313 = vmatpush2.msra.mxu0 0.0
        %9314 = vmatprep.subr.mxu0 0.0
        %9315 = vmatpush2.msra.mxu0 0.0
        %9316 = vmatprep.subr.mxu0 0.0
        %9317 = vmatpush2.msra.mxu0 0.0
        %9318 = vmatprep.subr.mxu0 0.0
        %9319 = vmatpush2.msra.mxu0 0.0
        %9320 = vmatprep.subr.mxu0 0.0
        %9321 = vmatpush2.msra.mxu0 0.0
        %9322 = vmatprep.mubr.f32.mxu0 0.0
        %9323 = vmatmul.mubr.f32.gmra.mxu0 %v9253
        %v9324 = vpop.f32.mrf.mxu0
        %v9325 = vadd.f32 0.0, %v9324
        %v9326 = vpop.f32.mrf.mxu0
        %9327 = vmatprep.mubr.f32.mxu0 0.0
        %9328 = vmatmul.mubr.f32.gmra.mxu0 %v9256
        %v9329 = vpop.f32.mrf.mxu0
        %v9330 = vadd.f32 0.0, %v9329
        %v9331 = vpop.f32.mrf.mxu0
        %9332 = vdwg.mxu0
        %v9334 = vsel %vm9097, %v9330, 0
        %9336 = vmatprep.subr.mxu0 0.0
        %9337 = vmatpush1.msra.mxu0 0.0
        %9338 = vmatprep.subr.mxu0 0.0
        %9339 = vmatpush1.msra.mxu0 0.0
        %9340 = vmatprep.subr.mxu0 0.0
        %9341 = vmatpush1.msra.mxu0 0.0
        %9342 = vmatprep.subr.mxu0 0.0
        %9343 = vmatpush1.msra.mxu0 0.0
        %9344 = vmatprep.subr.mxu0 0.0
        %9345 = vmatpush1.msra.mxu0 0.0
        %9346 = vmatprep.subr.mxu0 0.0
        %9347 = vmatpush1.msra.mxu0 0.0
        %9348 = vmatprep.subr.mxu0 0.0
        %9349 = vmatpush1.msra.mxu0 0.0
        %9350 = vmatprep.subr.mxu0 0.0
        %9351 = vmatpush1.msra.mxu0 0.0
        %9352 = vmatprep.subr.mxu0 0.0
        %9353 = vmatpush1.msra.mxu0 0.0
        %9354 = vmatprep.subr.mxu0 0.0
        %9355 = vmatpush1.msra.mxu0 0.0
        %9356 = vmatprep.subr.mxu0 0.0
        %9357 = vmatpush1.msra.mxu0 0.0
        %9358 = vmatprep.subr.mxu0 0.0
        %9359 = vmatpush1.msra.mxu0 0.0
        %9360 = vmatprep.subr.mxu0 0.0
        %9361 = vmatpush1.msra.mxu0 0.0
        %9362 = vmatprep.subr.mxu0 0.0
        %9363 = vmatpush1.msra.mxu0 0.0
        %9364 = vmatprep.subr.mxu0 0.0
        %9365 = vmatpush1.msra.mxu0 %v9334
        %9366 = vmatprep.subr.mxu0 0.0
        %9367 = vmatpush1.msra.mxu0 %v9325
        %9368 = vmatprep.subr.mxu0 0.0
        %9369 = vmatpush2.msra.mxu0 0.0
        %9370 = vmatprep.subr.mxu0 0.0
        %9371 = vmatpush2.msra.mxu0 0.0
        %9372 = vmatprep.subr.mxu0 0.0
        %9373 = vmatpush2.msra.mxu0 0.0
        %9374 = vmatprep.subr.mxu0 0.0
        %9375 = vmatpush2.msra.mxu0 0.0
        %9376 = vmatprep.subr.mxu0 0.0
        %9377 = vmatpush2.msra.mxu0 0.0
        %9378 = vmatprep.subr.mxu0 0.0
        %9379 = vmatpush2.msra.mxu0 0.0
        %9380 = vmatprep.subr.mxu0 0.0
        %9381 = vmatpush2.msra.mxu0 0.0
        %9382 = vmatprep.subr.mxu0 0.0
        %9383 = vmatpush2.msra.mxu0 0.0
        %9384 = vmatprep.subr.mxu0 0.0
        %9385 = vmatpush2.msra.mxu0 0.0
        %9386 = vmatprep.subr.mxu0 0.0
        %9387 = vmatpush2.msra.mxu0 0.0
        %9388 = vmatprep.subr.mxu0 0.0
        %9389 = vmatpush2.msra.mxu0 0.0
        %9390 = vmatprep.subr.mxu0 0.0
        %9391 = vmatpush2.msra.mxu0 0.0
        %9392 = vmatprep.subr.mxu0 0.0
        %9393 = vmatpush2.msra.mxu0 0.0
        %9394 = vmatprep.subr.mxu0 0.0
        %9395 = vmatpush2.msra.mxu0 0.0
        %9396 = vmatprep.subr.mxu0 0.0
        %9397 = vmatpush2.msra.mxu0 0.0
        %9398 = vmatprep.subr.mxu0 0.0
        %9399 = vmatpush2.msra.mxu0 0.0
        %9400 = vmatprep.mubr.f32.mxu0 0.0
        %9401 = vmatmul.mubr.f32.gmra.mxu0 %v9177
        %v9402 = vpop.f32.mrf.mxu0
        %v9403 = vadd.f32 0.0, %v9402
        %v9404 = vpop.f32.mrf.mxu0
        %9405 = vdwg.mxu0
        %v9406 = vmul.f32 %v8924, %v8924
        %v9407 = vmul.f32 %v8929, %v8929
        %v9409 = vsel %vm9090, %v9406, 0
        %v9412 = vsel %vm9090, %v9407, 0
        %9414 = vmatprep.subr.mxu0 0.0
        %9415 = vmatpush1.msra.mxu0 0.0
        %9416 = vmatprep.subr.mxu0 0.0
        %9417 = vmatpush1.msra.mxu0 0.0
        %9418 = vmatprep.subr.mxu0 0.0
        %9419 = vmatpush1.msra.mxu0 0.0
        %9420 = vmatprep.subr.mxu0 0.0
        %9421 = vmatpush1.msra.mxu0 0.0
        %9422 = vmatprep.subr.mxu0 0.0
        %9423 = vmatpush1.msra.mxu0 0.0
        %9424 = vmatprep.subr.mxu0 0.0
        %9425 = vmatpush1.msra.mxu0 0.0
        %9426 = vmatprep.subr.mxu0 0.0
        %9427 = vmatpush1.msra.mxu0 0.0
        %9428 = vmatprep.subr.mxu0 0.0
        %9429 = vmatpush1.msra.mxu0 0.0
        %9430 = vmatprep.subr.mxu0 0.0
        %9431 = vmatpush1.msra.mxu0 0.0
        %9432 = vmatprep.subr.mxu0 0.0
        %9433 = vmatpush1.msra.mxu0 0.0
        %9434 = vmatprep.subr.mxu0 0.0
        %9435 = vmatpush1.msra.mxu0 0.0
        %9436 = vmatprep.subr.mxu0 0.0
        %9437 = vmatpush1.msra.mxu0 0.0
        %9438 = vmatprep.subr.mxu0 0.0
        %9439 = vmatpush1.msra.mxu0 0.0
        %9440 = vmatprep.subr.mxu0 0.0
        %9441 = vmatpush1.msra.mxu0 0.0
        %9442 = vmatprep.subr.mxu0 0.0
        %9443 = vmatpush1.msra.mxu0 %v9099
        %9444 = vmatprep.subr.mxu0 0.0
        %9445 = vmatpush1.msra.mxu0 %v9088
        %9446 = vmatprep.subr.mxu0 0.0
        %9447 = vmatpush2.msra.mxu0 0.0
        %9448 = vmatprep.subr.mxu0 0.0
        %9449 = vmatpush2.msra.mxu0 0.0
        %9450 = vmatprep.subr.mxu0 0.0
        %9451 = vmatpush2.msra.mxu0 0.0
        %9452 = vmatprep.subr.mxu0 0.0
        %9453 = vmatpush2.msra.mxu0 0.0
        %9454 = vmatprep.subr.mxu0 0.0
        %9455 = vmatpush2.msra.mxu0 0.0
        %9456 = vmatprep.subr.mxu0 0.0
        %9457 = vmatpush2.msra.mxu0 0.0
        %9458 = vmatprep.subr.mxu0 0.0
        %9459 = vmatpush2.msra.mxu0 0.0
        %9460 = vmatprep.subr.mxu0 0.0
        %9461 = vmatpush2.msra.mxu0 0.0
        %9462 = vmatprep.subr.mxu0 0.0
        %9463 = vmatpush2.msra.mxu0 0.0
        %9464 = vmatprep.subr.mxu0 0.0
        %9465 = vmatpush2.msra.mxu0 0.0
        %9466 = vmatprep.subr.mxu0 0.0
        %9467 = vmatpush2.msra.mxu0 0.0
        %9468 = vmatprep.subr.mxu0 0.0
        %9469 = vmatpush2.msra.mxu0 0.0
        %9470 = vmatprep.subr.mxu0 0.0
        %9471 = vmatpush2.msra.mxu0 0.0
        %9472 = vmatprep.subr.mxu0 0.0
        %9473 = vmatpush2.msra.mxu0 0.0
        %9474 = vmatprep.subr.mxu0 0.0
        %9475 = vmatpush2.msra.mxu0 0.0
        %9476 = vmatprep.subr.mxu0 0.0
        %9477 = vmatpush2.msra.mxu0 0.0
        %9478 = vmatprep.mubr.f32.mxu0 0.0
        %9479 = vmatmul.mubr.f32.gmra.mxu0 %v9409
        %v9480 = vpop.f32.mrf.mxu0
        %v9481 = vadd.f32 0.0, %v9480
        %v9482 = vpop.f32.mrf.mxu0
        %9483 = vmatprep.mubr.f32.mxu0 0.0
        %9484 = vmatmul.mubr.f32.gmra.mxu0 %v9412
        %v9485 = vpop.f32.mrf.mxu0
        %v9486 = vadd.f32 0.0, %v9485
        %v9487 = vpop.f32.mrf.mxu0
        %9488 = vdwg.mxu0
        %v9490 = vsel %vm9097, %v9486, 0
        %9492 = vmatprep.subr.mxu0 0.0
        %9493 = vmatpush1.msra.mxu0 0.0
        %9494 = vmatprep.subr.mxu0 0.0
        %9495 = vmatpush1.msra.mxu0 0.0
        %9496 = vmatprep.subr.mxu0 0.0
        %9497 = vmatpush1.msra.mxu0 0.0
        %9498 = vmatprep.subr.mxu0 0.0
        %9499 = vmatpush1.msra.mxu0 0.0
        %9500 = vmatprep.subr.mxu0 0.0
        %9501 = vmatpush1.msra.mxu0 0.0
        %9502 = vmatprep.subr.mxu0 0.0
        %9503 = vmatpush1.msra.mxu0 0.0
        %9504 = vmatprep.subr.mxu0 0.0
        %9505 = vmatpush1.msra.mxu0 0.0
        %9506 = vmatprep.subr.mxu0 0.0
        %9507 = vmatpush1.msra.mxu0 0.0
        %9508 = vmatprep.subr.mxu0 0.0
        %9509 = vmatpush1.msra.mxu0 0.0
        %9510 = vmatprep.subr.mxu0 0.0
        %9511 = vmatpush1.msra.mxu0 0.0
        %9512 = vmatprep.subr.mxu0 0.0
        %9513 = vmatpush1.msra.mxu0 0.0
        %9514 = vmatprep.subr.mxu0 0.0
        %9515 = vmatpush1.msra.mxu0 0.0
        %9516 = vmatprep.subr.mxu0 0.0
        %9517 = vmatpush1.msra.mxu0 0.0
        %9518 = vmatprep.subr.mxu0 0.0
        %9519 = vmatpush1.msra.mxu0 0.0
        %9520 = vmatprep.subr.mxu0 0.0
        %9521 = vmatpush1.msra.mxu0 %v9490
        %9522 = vmatprep.subr.mxu0 0.0
        %9523 = vmatpush1.msra.mxu0 %v9481
        %9524 = vmatprep.subr.mxu0 0.0
        %9525 = vmatpush2.msra.mxu0 0.0
        %9526 = vmatprep.subr.mxu0 0.0
        %9527 = vmatpush2.msra.mxu0 0.0
        %9528 = vmatprep.subr.mxu0 0.0
        %9529 = vmatpush2.msra.mxu0 0.0
        %9530 = vmatprep.subr.mxu0 0.0
        %9531 = vmatpush2.msra.mxu0 0.0
        %9532 = vmatprep.subr.mxu0 0.0
        %9533 = vmatpush2.msra.mxu0 0.0
        %9534 = vmatprep.subr.mxu0 0.0
        %9535 = vmatpush2.msra.mxu0 0.0
        %9536 = vmatprep.subr.mxu0 0.0
        %9537 = vmatpush2.msra.mxu0 0.0
        %9538 = vmatprep.subr.mxu0 0.0
        %9539 = vmatpush2.msra.mxu0 0.0
        %9540 = vmatprep.subr.mxu0 0.0
        %9541 = vmatpush2.msra.mxu0 0.0
        %9542 = vmatprep.subr.mxu0 0.0
        %9543 = vmatpush2.msra.mxu0 0.0
        %9544 = vmatprep.subr.mxu0 0.0
        %9545 = vmatpush2.msra.mxu0 0.0
        %9546 = vmatprep.subr.mxu0 0.0
        %9547 = vmatpush2.msra.mxu0 0.0
        %9548 = vmatprep.subr.mxu0 0.0
        %9549 = vmatpush2.msra.mxu0 0.0
        %9550 = vmatprep.subr.mxu0 0.0
        %9551 = vmatpush2.msra.mxu0 0.0
        %9552 = vmatprep.subr.mxu0 0.0
        %9553 = vmatpush2.msra.mxu0 0.0
        %9554 = vmatprep.subr.mxu0 0.0
        %9555 = vmatpush2.msra.mxu0 0.0
        %9556 = vmatprep.mubr.f32.mxu0 0.0
        %9557 = vmatmul.mubr.f32.gmra.mxu0 %v9177
        %v9558 = vpop.f32.mrf.mxu0
        %v9559 = vadd.f32 0.0, %v9558
        %v9560 = vpop.f32.mrf.mxu0
        %9561 = vdwg.mxu0
        %v9562 = vmul.f32 %v9079, %v9079
        %v9563 = vmul.f32 %v9084, %v9084
        %v9565 = vsel %vm9090, %v9562, 0
        %v9568 = vsel %vm9090, %v9563, 0
        %9570 = vmatprep.subr.mxu0 0.0
        %9571 = vmatpush1.msra.mxu0 0.0
        %9572 = vmatprep.subr.mxu0 0.0
        %9573 = vmatpush1.msra.mxu0 0.0
        %9574 = vmatprep.subr.mxu0 0.0
        %9575 = vmatpush1.msra.mxu0 0.0
        %9576 = vmatprep.subr.mxu0 0.0
        %9577 = vmatpush1.msra.mxu0 0.0
        %9578 = vmatprep.subr.mxu0 0.0
        %9579 = vmatpush1.msra.mxu0 0.0
        %9580 = vmatprep.subr.mxu0 0.0
        %9581 = vmatpush1.msra.mxu0 0.0
        %9582 = vmatprep.subr.mxu0 0.0
        %9583 = vmatpush1.msra.mxu0 0.0
        %9584 = vmatprep.subr.mxu0 0.0
        %9585 = vmatpush1.msra.mxu0 0.0
        %9586 = vmatprep.subr.mxu0 0.0
        %9587 = vmatpush1.msra.mxu0 0.0
        %9588 = vmatprep.subr.mxu0 0.0
        %9589 = vmatpush1.msra.mxu0 0.0
        %9590 = vmatprep.subr.mxu0 0.0
        %9591 = vmatpush1.msra.mxu0 0.0
        %9592 = vmatprep.subr.mxu0 0.0
        %9593 = vmatpush1.msra.mxu0 0.0
        %9594 = vmatprep.subr.mxu0 0.0
        %9595 = vmatpush1.msra.mxu0 0.0
        %9596 = vmatprep.subr.mxu0 0.0
        %9597 = vmatpush1.msra.mxu0 0.0
        %9598 = vmatprep.subr.mxu0 0.0
        %9599 = vmatpush1.msra.mxu0 %v9099
        %9600 = vmatprep.subr.mxu0 0.0
        %9601 = vmatpush1.msra.mxu0 %v9088
        %9602 = vmatprep.subr.mxu0 0.0
        %9603 = vmatpush2.msra.mxu0 0.0
        %9604 = vmatprep.subr.mxu0 0.0
        %9605 = vmatpush2.msra.mxu0 0.0
        %9606 = vmatprep.subr.mxu0 0.0
        %9607 = vmatpush2.msra.mxu0 0.0
        %9608 = vmatprep.subr.mxu0 0.0
        %9609 = vmatpush2.msra.mxu0 0.0
        %9610 = vmatprep.subr.mxu0 0.0
        %9611 = vmatpush2.msra.mxu0 0.0
        %9612 = vmatprep.subr.mxu0 0.0
        %9613 = vmatpush2.msra.mxu0 0.0
        %9614 = vmatprep.subr.mxu0 0.0
        %9615 = vmatpush2.msra.mxu0 0.0
        %9616 = vmatprep.subr.mxu0 0.0
        %9617 = vmatpush2.msra.mxu0 0.0
        %9618 = vmatprep.subr.mxu0 0.0
        %9619 = vmatpush2.msra.mxu0 0.0
        %9620 = vmatprep.subr.mxu0 0.0
        %9621 = vmatpush2.msra.mxu0 0.0
        %9622 = vmatprep.subr.mxu0 0.0
        %9623 = vmatpush2.msra.mxu0 0.0
        %9624 = vmatprep.subr.mxu0 0.0
        %9625 = vmatpush2.msra.mxu0 0.0
        %9626 = vmatprep.subr.mxu0 0.0
        %9627 = vmatpush2.msra.mxu0 0.0
        %9628 = vmatprep.subr.mxu0 0.0
        %9629 = vmatpush2.msra.mxu0 0.0
        %9630 = vmatprep.subr.mxu0 0.0
        %9631 = vmatpush2.msra.mxu0 0.0
        %9632 = vmatprep.subr.mxu0 0.0
        %9633 = vmatpush2.msra.mxu0 0.0
        %9634 = vmatprep.mubr.f32.mxu0 0.0
        %9635 = vmatmul.mubr.f32.gmra.mxu0 %v9565
        %v9636 = vpop.f32.mrf.mxu0
        %v9637 = vadd.f32 0.0, %v9636
        %v9638 = vpop.f32.mrf.mxu0
        %9639 = vmatprep.mubr.f32.mxu0 0.0
        %9640 = vmatmul.mubr.f32.gmra.mxu0 %v9568
        %v9641 = vpop.f32.mrf.mxu0
        %v9642 = vadd.f32 0.0, %v9641
        %v9643 = vpop.f32.mrf.mxu0
        %9644 = vdwg.mxu0
        %v9646 = vsel %vm9097, %v9642, 0
        %9648 = vmatprep.subr.mxu0 0.0
        %9649 = vmatpush1.msra.mxu0 0.0
        %9650 = vmatprep.subr.mxu0 0.0
        %9651 = vmatpush1.msra.mxu0 0.0
        %9652 = vmatprep.subr.mxu0 0.0
        %9653 = vmatpush1.msra.mxu0 0.0
        %9654 = vmatprep.subr.mxu0 0.0
        %9655 = vmatpush1.msra.mxu0 0.0
        %9656 = vmatprep.subr.mxu0 0.0
        %9657 = vmatpush1.msra.mxu0 0.0
        %9658 = vmatprep.subr.mxu0 0.0
        %9659 = vmatpush1.msra.mxu0 0.0
        %9660 = vmatprep.subr.mxu0 0.0
        %9661 = vmatpush1.msra.mxu0 0.0
        %9662 = vmatprep.subr.mxu0 0.0
        %9663 = vmatpush1.msra.mxu0 0.0
        %9664 = vmatprep.subr.mxu0 0.0
        %9665 = vmatpush1.msra.mxu0 0.0
        %9666 = vmatprep.subr.mxu0 0.0
        %9667 = vmatpush1.msra.mxu0 0.0
        %9668 = vmatprep.subr.mxu0 0.0
        %9669 = vmatpush1.msra.mxu0 0.0
        %9670 = vmatprep.subr.mxu0 0.0
        %9671 = vmatpush1.msra.mxu0 0.0
        %9672 = vmatprep.subr.mxu0 0.0
        %9673 = vmatpush1.msra.mxu0 0.0
        %9674 = vmatprep.subr.mxu0 0.0
        %9675 = vmatpush1.msra.mxu0 0.0
        %9676 = vmatprep.subr.mxu0 0.0
        %9677 = vmatpush1.msra.mxu0 %v9646
        %9678 = vmatprep.subr.mxu0 0.0
        %9679 = vmatpush1.msra.mxu0 %v9637
        %9680 = vmatprep.subr.mxu0 0.0
        %9681 = vmatpush2.msra.mxu0 0.0
        %9682 = vmatprep.subr.mxu0 0.0
        %9683 = vmatpush2.msra.mxu0 0.0
        %9684 = vmatprep.subr.mxu0 0.0
        %9685 = vmatpush2.msra.mxu0 0.0
        %9686 = vmatprep.subr.mxu0 0.0
        %9687 = vmatpush2.msra.mxu0 0.0
        %9688 = vmatprep.subr.mxu0 0.0
        %9689 = vmatpush2.msra.mxu0 0.0
        %9690 = vmatprep.subr.mxu0 0.0
        %9691 = vmatpush2.msra.mxu0 0.0
        %9692 = vmatprep.subr.mxu0 0.0
        %9693 = vmatpush2.msra.mxu0 0.0
        %9694 = vmatprep.subr.mxu0 0.0
        %9695 = vmatpush2.msra.mxu0 0.0
        %9696 = vmatprep.subr.mxu0 0.0
        %9697 = vmatpush2.msra.mxu0 0.0
        %9698 = vmatprep.subr.mxu0 0.0
        %9699 = vmatpush2.msra.mxu0 0.0
        %9700 = vmatprep.subr.mxu0 0.0
        %9701 = vmatpush2.msra.mxu0 0.0
        %9702 = vmatprep.subr.mxu0 0.0
        %9703 = vmatpush2.msra.mxu0 0.0
        %9704 = vmatprep.subr.mxu0 0.0
        %9705 = vmatpush2.msra.mxu0 0.0
        %9706 = vmatprep.subr.mxu0 0.0
        %9707 = vmatpush2.msra.mxu0 0.0
        %9708 = vmatprep.subr.mxu0 0.0
        %9709 = vmatpush2.msra.mxu0 0.0
        %9710 = vmatprep.subr.mxu0 0.0
        %9711 = vmatpush2.msra.mxu0 0.0
        %9712 = vmatprep.mubr.f32.mxu0 0.0
        %9713 = vmatmul.mubr.f32.gmra.mxu0 %v9177
        %v9714 = vpop.f32.mrf.mxu0
        %v9715 = vadd.f32 0.0, %v9714
        %v9716 = vpop.f32.mrf.mxu0
        %9717 = vdwg.mxu0
        %v9718 = vmul.f32 %v8924, %v9079
        %v9719 = vmul.f32 %v8929, %v9084
        %v9721 = vsel %vm9090, %v9718, 0
        %v9724 = vsel %vm9090, %v9719, 0
        %9726 = vmatprep.subr.mxu0 0.0
        %9727 = vmatpush1.msra.mxu0 0.0
        %9728 = vmatprep.subr.mxu0 0.0
        %9729 = vmatpush1.msra.mxu0 0.0
        %9730 = vmatprep.subr.mxu0 0.0
        %9731 = vmatpush1.msra.mxu0 0.0
        %9732 = vmatprep.subr.mxu0 0.0
        %9733 = vmatpush1.msra.mxu0 0.0
        %9734 = vmatprep.subr.mxu0 0.0
        %9735 = vmatpush1.msra.mxu0 0.0
        %9736 = vmatprep.subr.mxu0 0.0
        %9737 = vmatpush1.msra.mxu0 0.0
        %9738 = vmatprep.subr.mxu0 0.0
        %9739 = vmatpush1.msra.mxu0 0.0
        %9740 = vmatprep.subr.mxu0 0.0
        %9741 = vmatpush1.msra.mxu0 0.0
        %9742 = vmatprep.subr.mxu0 0.0
        %9743 = vmatpush1.msra.mxu0 0.0
        %9744 = vmatprep.subr.mxu0 0.0
        %9745 = vmatpush1.msra.mxu0 0.0
        %9746 = vmatprep.subr.mxu0 0.0
        %9747 = vmatpush1.msra.mxu0 0.0
        %9748 = vmatprep.subr.mxu0 0.0
        %9749 = vmatpush1.msra.mxu0 0.0
        %9750 = vmatprep.subr.mxu0 0.0
        %9751 = vmatpush1.msra.mxu0 0.0
        %9752 = vmatprep.subr.mxu0 0.0
        %9753 = vmatpush1.msra.mxu0 0.0
        %9754 = vmatprep.subr.mxu0 0.0
        %9755 = vmatpush1.msra.mxu0 %v9099
        %9756 = vmatprep.subr.mxu0 0.0
        %9757 = vmatpush1.msra.mxu0 %v9088
        %9758 = vmatprep.subr.mxu0 0.0
        %9759 = vmatpush2.msra.mxu0 0.0
        %9760 = vmatprep.subr.mxu0 0.0
        %9761 = vmatpush2.msra.mxu0 0.0
        %9762 = vmatprep.subr.mxu0 0.0
        %9763 = vmatpush2.msra.mxu0 0.0
        %9764 = vmatprep.subr.mxu0 0.0
        %9765 = vmatpush2.msra.mxu0 0.0
        %9766 = vmatprep.subr.mxu0 0.0
        %9767 = vmatpush2.msra.mxu0 0.0
        %9768 = vmatprep.subr.mxu0 0.0
        %9769 = vmatpush2.msra.mxu0 0.0
        %9770 = vmatprep.subr.mxu0 0.0
        %9771 = vmatpush2.msra.mxu0 0.0
        %9772 = vmatprep.subr.mxu0 0.0
        %9773 = vmatpush2.msra.mxu0 0.0
        %9774 = vmatprep.subr.mxu0 0.0
        %9775 = vmatpush2.msra.mxu0 0.0
        %9776 = vmatprep.subr.mxu0 0.0
        %9777 = vmatpush2.msra.mxu0 0.0
        %9778 = vmatprep.subr.mxu0 0.0
        %9779 = vmatpush2.msra.mxu0 0.0
        %9780 = vmatprep.subr.mxu0 0.0
        %9781 = vmatpush2.msra.mxu0 0.0
        %9782 = vmatprep.subr.mxu0 0.0
        %9783 = vmatpush2.msra.mxu0 0.0
        %9784 = vmatprep.subr.mxu0 0.0
        %9785 = vmatpush2.msra.mxu0 0.0
        %9786 = vmatprep.subr.mxu0 0.0
        %9787 = vmatpush2.msra.mxu0 0.0
        %9788 = vmatprep.subr.mxu0 0.0
        %9789 = vmatpush2.msra.mxu0 0.0
        %9790 = vmatprep.mubr.f32.mxu0 0.0
        %9791 = vmatmul.mubr.f32.gmra.mxu0 %v9721
        %v9792 = vpop.f32.mrf.mxu0
        %v9793 = vadd.f32 0.0, %v9792
        %v9794 = vpop.f32.mrf.mxu0
        %9795 = vmatprep.mubr.f32.mxu0 0.0
        %9796 = vmatmul.mubr.f32.gmra.mxu0 %v9724
        %v9797 = vpop.f32.mrf.mxu0
        %v9798 = vadd.f32 0.0, %v9797
        %v9799 = vpop.f32.mrf.mxu0
        %9800 = vdwg.mxu0
        %v9802 = vsel %vm9097, %v9798, 0
        %9804 = vmatprep.subr.mxu0 0.0
        %9805 = vmatpush1.msra.mxu0 0.0
        %9806 = vmatprep.subr.mxu0 0.0
        %9807 = vmatpush1.msra.mxu0 0.0
        %9808 = vmatprep.subr.mxu0 0.0
        %9809 = vmatpush1.msra.mxu0 0.0
        %9810 = vmatprep.subr.mxu0 0.0
        %9811 = vmatpush1.msra.mxu0 0.0
        %9812 = vmatprep.subr.mxu0 0.0
        %9813 = vmatpush1.msra.mxu0 0.0
        %9814 = vmatprep.subr.mxu0 0.0
        %9815 = vmatpush1.msra.mxu0 0.0
        %9816 = vmatprep.subr.mxu0 0.0
        %9817 = vmatpush1.msra.mxu0 0.0
        %9818 = vmatprep.subr.mxu0 0.0
        %9819 = vmatpush1.msra.mxu0 0.0
        %9820 = vmatprep.subr.mxu0 0.0
        %9821 = vmatpush1.msra.mxu0 0.0
        %9822 = vmatprep.subr.mxu0 0.0
        %9823 = vmatpush1.msra.mxu0 0.0
        %9824 = vmatprep.subr.mxu0 0.0
        %9825 = vmatpush1.msra.mxu0 0.0
        %9826 = vmatprep.subr.mxu0 0.0
        %9827 = vmatpush1.msra.mxu0 0.0
        %9828 = vmatprep.subr.mxu0 0.0
        %9829 = vmatpush1.msra.mxu0 0.0
        %9830 = vmatprep.subr.mxu0 0.0
        %9831 = vmatpush1.msra.mxu0 0.0
        %9832 = vmatprep.subr.mxu0 0.0
        %9833 = vmatpush1.msra.mxu0 %v9802
        %9834 = vmatprep.subr.mxu0 0.0
        %9835 = vmatpush1.msra.mxu0 %v9793
        %9836 = vmatprep.subr.mxu0 0.0
        %9837 = vmatpush2.msra.mxu0 0.0
        %9838 = vmatprep.subr.mxu0 0.0
        %9839 = vmatpush2.msra.mxu0 0.0
        %9840 = vmatprep.subr.mxu0 0.0
        %9841 = vmatpush2.msra.mxu0 0.0
        %9842 = vmatprep.subr.mxu0 0.0
        %9843 = vmatpush2.msra.mxu0 0.0
        %9844 = vmatprep.subr.mxu0 0.0
        %9845 = vmatpush2.msra.mxu0 0.0
        %9846 = vmatprep.subr.mxu0 0.0
        %9847 = vmatpush2.msra.mxu0 0.0
        %9848 = vmatprep.subr.mxu0 0.0
        %9849 = vmatpush2.msra.mxu0 0.0
        %9850 = vmatprep.subr.mxu0 0.0
        %9851 = vmatpush2.msra.mxu0 0.0
        %9852 = vmatprep.subr.mxu0 0.0
        %9853 = vmatpush2.msra.mxu0 0.0
        %9854 = vmatprep.subr.mxu0 0.0
        %9855 = vmatpush2.msra.mxu0 0.0
        %9856 = vmatprep.subr.mxu0 0.0
        %9857 = vmatpush2.msra.mxu0 0.0
        %9858 = vmatprep.subr.mxu0 0.0
        %9859 = vmatpush2.msra.mxu0 0.0
        %9860 = vmatprep.subr.mxu0 0.0
        %9861 = vmatpush2.msra.mxu0 0.0
        %9862 = vmatprep.subr.mxu0 0.0
        %9863 = vmatpush2.msra.mxu0 0.0
        %9864 = vmatprep.subr.mxu0 0.0
        %9865 = vmatpush2.msra.mxu0 0.0
        %9866 = vmatprep.subr.mxu0 0.0
        %9867 = vmatpush2.msra.mxu0 0.0
        %9868 = vmatprep.mubr.f32.mxu0 0.0
        %9869 = vmatmul.mubr.f32.gmra.mxu0 %v9177
        %v9870 = vpop.f32.mrf.mxu0
        %v9871 = vadd.f32 0.0, %v9870
        %v9872 = vpop.f32.mrf.mxu0
        %9873 = vdwg.mxu0
        %v9874 = vmul.f32 %v9249, %v9249
        %v9875 = vsub.f32 %v9559, %v9874
        %v9876 = vmul.f32 %v9403, %v9403
        %v9877 = vsub.f32 %v9715, %v9876
        %v9878 = vmul.f32 %v9249, %v9403
        %v9879 = vsub.f32 %v9871, %v9878
        %v9880 = vmul.f32 %v9879, 2.0
        %v9881 = vadd.f32 %v9880, 0.0009
        %v9882 = vadd.f32 %v9875, %v9877
        %v9883 = vadd.f32 %v9882, 0.0009
        %v9884 = vrcp.pop %v9883
        %v9885 = vmul.f32 %v9881, %v9884
        %v9886 = vmul.f32 %v9249, 2.0
        %v9887 = vmul.f32 %v9886, %v9403
        %v9888 = vadd.f32 %v9887, 0.0001
        %v9889 = vadd.f32 %v9874, %v9876
        %v9890 = vadd.f32 %v9889, 0.0001
        %v9891 = vrcp.pop %v9890
        %v9892 = vmul.f32 %v9888, %v9891
        %v9893 = vmul.f32 %v9892, %v9885
        %vm9894 = vcmask 1041408
        %v9895 = vsel %vm9894, %v9893, 0.0
        %9896 = vadd.xlane.f32.xlu0 %v9895
        %v9897 = vpop.xlane.xlu0 %9896
        %v9898 = vrot.slane %v9897, 4
        %v9899 = vadd.f32 %v9897, %v9898
        %v9900 = vrot.slane %v9899, 2
        %v9901 = vadd.f32 %v9899, %v9900
        %v9902 = vrot.slane %v9901, 1
        %v9903 = vadd.f32 %v9901, %v9902
        %s9904 = vtos %v9903
        %s9905 = ssub.f32 %s9904, 252.0
        %s9906 = smul.f32 %s9905, 0.25
        %s9907 = smax.f32 %s9906, 0.0
        %v9908 = vlaneseq
        %v9909 = vshrl.u32 %v9908, 7
        %v9910 = vlaneseq
        %v9911 = vand.u32 %v9910, 127
        %vm9912 = vcmp.eq.s32.totalorder %v9909, 0
        %vm9913 = vcmp.eq.s32.totalorder %v9911, 0
        %vm9914 = vmand %vm9912, %vm9913
        %v9915 = vstv %s4328
        %v9916 = vsel %vm9914, %v9915, 0.0
        %vm9917 = vcmp.eq.s32.totalorder %v9909, 1
        %vm9918 = vmand %vm9917, %vm9913
        %v9919 = vstv %s6425
        %v9920 = vsel %vm9918, %v9919, %v9916
        %vm9921 = vcmp.eq.s32.totalorder %v9909, 2
        %vm9922 = vmand %vm9921, %vm9913
        %v9923 = vstv %s7778
        %v9924 = vsel %vm9922, %v9923, %v9920
        %vm9925 = vcmp.eq.s32.totalorder %v9909, 3
        %vm9926 = vmand %vm9925, %vm9913
        %v9927 = vstv %s8765
        %v9928 = vsel %vm9926, %v9927, %v9924
        %vm9929 = vcmp.eq.s32.totalorder %v9909, 4
        %vm9930 = vmand %vm9929, %vm9913
        %v9931 = vstv %s9907
        %v9932 = vsel %vm9930, %v9931, %v9928
        %vm9933 = vcmp.eq.s32.totalorder %v9909, 5
        %vm9934 = vmand %vm9933, %vm9913
        %v9935 = vstv %s1249
        %v9936 = vsel %vm9934, %v9935, %v9932
        %9937 = vst [vmem:[%s976] sm:$0xff] %v9936
        %p9938 = scmp.lt.s32.totalorder %s50, 1
        %s9939 = scalar_select %p9938, %s50, 1
        %p9940 = scmp.lt.s32.totalorder %s51, 2
        %s9941 = scalar_select %p9940, %s51, 2
        %s9942 = smul.addr %s9939, 3
        %s9943 = sadd.s32 %s9941, %s9942
        %s9944 = smul.addr %s9943, 8
        %s9945 = scalar_lea.vmem %s20, %s9944
        // Predicated region
        $region181: #{msssim_loss_forward.1} parent=99 // pred_check
          %p9946 = pneg %p512
        $region182: #{msssim_loss_forward.1} parent=99 // pred_check_branch
          %9948 = sbr.rel (%p9946) target = $region184
        $region183: #{msssim_loss_forward.1} parent=99 // pred_region
          _
        $region184: #{msssim_loss_forward.1} parent=99 // pred_fallthru
          _
      $region100: #{msssim_loss_forward.1} parent=5 // pred_fallthru
        _
      %p9949 = scmp.le.s32.totalorder 2, %s41
      // Predicated region
      $region185: #{msssim_loss_forward.1} parent=5 // pred_check
        %p9950 = pneg %p9949
      $region186: #{msssim_loss_forward.1} parent=5 // pred_check_branch
        %9952 = sbr.rel (%p9950) target = $region188
      $region187: #{msssim_loss_forward.1} parent=5 // pred_region
        %s9953 = ssub.s32 %s41, 2
        // Predicated region
        $region189: #{msssim_loss_forward.1} parent=187 // pred_check
          %p9954 = pneg %p518
        $region190: #{msssim_loss_forward.1} parent=187 // pred_check_branch
          %9956 = sbr.rel (%p9954) target = $region192
        $region191: #{msssim_loss_forward.1} parent=187 // pred_region
          %p9957 = scmp.lt.s32.totalorder %s52, 1
          %s9958 = scalar_select %p9957, %s52, 1
          %p9959 = scmp.lt.s32.totalorder %s53, 2
          %s9960 = scalar_select %p9959, %s53, 2
          %s9961 = smul.addr %s9958, 3
          %s9962 = sadd.s32 %s9960, %s9961
          %s9963 = smul.addr %s9962, 8
          %s9964 = scalar_lea.vmem %s20, %s9963
        $region192: #{msssim_loss_forward.1} parent=187 // pred_fallthru
          _
      $region188: #{msssim_loss_forward.1} parent=5 // pred_fallthru
        _
    $region6: #{msssim_loss_forward.1} parent=1 // loop_footer
      %s45 = sadd.s32 1, %s41
    $region7: #{msssim_loss_forward.1} parent=1 // loop_footer_branch
      %40 = sbr.rel target = $region3
    $region8: #{msssim_loss_forward.1} parent=1 // loop_exit
      _
    %9965 = vsyncpa [#allocation3], 1
    %s9966 = scalar_lea.sflag [#allocation3], 1
    %9967 = vsyncpa %s9966, 1
    %9968 = vsyncpa [#allocation5], 1
    %s9969 = scalar_lea.sflag [#allocation5], 1
    %9970 = vsyncpa %s9969, 1
    %9971 = vsyncpa [#allocation8], 1
    %9972 = vsyncpa [#allocation11], 1
    %9973 = vsyncpa [#allocation14], 1
    %9974 = vsyncpa [#allocation17], 1
    %9975 = vsyncpa [#allocation20], 1
    %9976 = vsyncpa [#allocation23], 1
    %9977 = vsyncpa [#allocation26], 1
    %9978 = vsyncpa [#allocation29], 1
    %9979 = vsyncpa [#allocation32], 1

</llo_original>
